<compile_context>
chip_gen: v7x
topology: tpu7x:2x2x1
jax: 0.10.0
libtpu: 0.0.40
codegen_flags: <defaults>
</compile_context>

<pallas_src>
import functools
import math

import jax
import jax.numpy as jnp
from jax import lax
from jax.experimental import pallas as pl
from jax.experimental.pallas import tpu as pltpu


def _round_up(x, m):
    return ((x + m - 1) // m) * m


def _pick_t_chunk(T, max_chunk):
    """Largest divisor of T that is <= max_chunk (bounds VMEM scratch)."""
    tc = max(1, min(int(max_chunk), int(T)))
    while T % tc:
        tc -= 1
    return tc


def _bi_gru_layer_kernel(num_streams, in_sizes, *refs):
    """One bidirectional GRU layer, both directions fused. Grid = (time-chunk,).

    refs layout (n = num_streams):
      refs[0:n]        x fwd chunk(s)   (Tc, B, E_i)  bf16   (time chunk c)
      refs[n:2n]       x bwd chunk(s)   (Tc, B, E_i)  bf16   (time chunk K-1-c)
      wih_ref          (2, E_tot, 3Hp)  bf16   fused r|z|n input->hidden weights
      whh_ref          (2, Hp, 3Hp)     bf16   fused hidden->hidden weights
      bx_ref           (2, 1, 3Hp)      f32    b_ih with b_hh(r,z) folded in
      bhn_ref          (2, 1, Hp)       f32    n-gate hidden bias
      outf_ref         (Tc, B, Hp)             forward outputs (chunk c)
      outb_ref         (Tc, B, Hp)             backward outputs (chunk K-1-c)
      hT_ref           (2, B, Hp)       f32    final hidden per direction
      hf_scr, hb_scr   (B, Hp)          f32    carried hidden states
      xpf_scr, xpb_scr (Tc, B, 3Hp)     bf16   hoisted input projections
    """
    n = num_streams
    xf_refs = refs[0:n]
    xb_refs = refs[n:2 * n]
    wih_ref, whh_ref, bx_ref, bhn_ref = refs[2 * n:2 * n + 4]
    outf_ref, outb_ref, hT_ref = refs[2 * n + 4:2 * n + 7]
    hf_scr, hb_scr, xpf_scr, xpb_scr = refs[2 * n + 7:2 * n + 11]

    Tc, B, Hp = outf_ref.shape
    G = 3 * Hp

    @pl.when(pl.program_id(0) == 0)
    def _init():
        hf_scr[...] = jnp.zeros_like(hf_scr)
        hb_scr[...] = jnp.zeros_like(hb_scr)

    # ---- hoisted fused-gate input projection: one big matmul per stream ----
    def project(x_refs, d, xp_scr):
        acc = None
        off = 0
        for x_ref, e in zip(x_refs, in_sizes):
            xm = x_ref[...].reshape(Tc * B, e)
            part = jnp.dot(xm, wih_ref[d, off:off + e, :],
                           preferred_element_type=jnp.float32)
            acc = part if acc is None else acc + part
            off += e
        xp_scr[...] = (acc + bx_ref[d]).reshape(Tc, B, G).astype(jnp.bfloat16)

    project(xf_refs, 0, xpf_scr)   # forward direction, chunk c
    project(xb_refs, 1, xpb_scr)   # backward direction, chunk K-1-c

    b_hn_f = bhn_ref[0]            # (1, Hp) f32
    b_hn_b = bhn_ref[1]

    def gru_cell(xg, hg, h_prev, b_hn):
        # single sigmoid over the contiguous, 128-aligned r|z block
        rz = jax.nn.sigmoid(xg[:, :2 * Hp] + hg[:, :2 * Hp])
        r = rz[:, :Hp]
        z = rz[:, Hp:]
        nv = jnp.tanh(xg[:, 2 * Hp:] + r * (hg[:, 2 * Hp:] + b_hn))
        return (1.0 - z) * nv + z * h_prev

    def step(s, carry):
        h_f, h_b = carry
        tb = Tc - 1 - s                                  # backward walks reversed
        xg_f = xpf_scr[s].astype(jnp.float32)            # (B, 3Hp)
        xg_b = xpb_scr[tb].astype(jnp.float32)
        # W_hh stays in its VMEM-resident block; read at use (no vreg hoist).
        hg_f = jnp.dot(h_f.astype(jnp.bfloat16), whh_ref[0],
                       preferred_element_type=jnp.float32)
        hg_b = jnp.dot(h_b.astype(jnp.bfloat16), whh_ref[1],
                       preferred_element_type=jnp.float32)
        h_f = gru_cell(xg_f, hg_f, h_f, b_hn_f)
        h_b = gru_cell(xg_b, hg_b, h_b, b_hn_b)
        outf_ref[s] = h_f.astype(outf_ref.dtype)
        outb_ref[tb] = h_b.astype(outb_ref.dtype)
        return (h_f, h_b)

    h_f, h_b = lax.fori_loop(0, Tc, step, (hf_scr[...], hb_scr[...]),
                             unroll=min(4, Tc))
    hf_scr[...] = h_f
    hb_scr[...] = h_b
    hT_ref[0] = h_f
    hT_ref[1] = h_b


def bi_gru_layer_pallas(xs, wih, whh, bias_x, bias_hn, *, t_chunk, out_dtype):
    """Run one bidirectional GRU layer (both directions fused) in one pallas_call.

    xs      : list of (T, B, E_i) bf16 input streams (1 for layer 0, 2 after)
    wih     : (2, E_tot, 3Hp) bf16     whh : (2, Hp, 3Hp) bf16
    bias_x  : (2, 1, 3Hp) f32          bias_hn : (2, 1, Hp) f32
    returns out_fwd (T,B,Hp), out_bwd (T,B,Hp) [out_dtype], hT (2,B,Hp) f32
    """
    T, B = int(xs[0].shape[0]), int(xs[0].shape[1])
    in_sizes = tuple(int(x.shape[2]) for x in xs)
    E_tot = sum(in_sizes)
    Hp = int(whh.shape[1])
    G = 3 * Hp
    assert wih.shape == (2, E_tot, G)
    assert T % t_chunk == 0
    K = T // t_chunk

    fwd_map = lambda c: (c, 0, 0)
    bwd_map = lambda c: (K - 1 - c, 0, 0)
    const_map = lambda c: (0, 0, 0)

    in_specs = [pl.BlockSpec((t_chunk, B, e), fwd_map) for e in in_sizes]
    in_specs += [pl.BlockSpec((t_chunk, B, e), bwd_map) for e in in_sizes]
    in_specs += [
        pl.BlockSpec((2, E_tot, G), const_map),
        pl.BlockSpec((2, Hp, G), const_map),
        pl.BlockSpec((2, 1, G), const_map),
        pl.BlockSpec((2, 1, Hp), const_map),
    ]
    out_specs = (
        pl.BlockSpec((t_chunk, B, Hp), fwd_map),
        pl.BlockSpec((t_chunk, B, Hp), bwd_map),
        pl.BlockSpec((2, B, Hp), const_map),
    )

    kernel = functools.partial(_bi_gru_layer_kernel, len(xs), in_sizes)

    cost = pl.CostEstimate(
        flops=int(4 * T * B * G * (E_tot + Hp)),
        transcendentals=int(6 * T * B * Hp),
        bytes_accessed=int(2 * 2 * T * B * E_tot * 2
                           + 2 * T * B * Hp * jnp.dtype(out_dtype).itemsize
                           + 2 * B * Hp * 4
                           + 2 * G * (E_tot + Hp) * 2
                           + 2 * (G + Hp) * 4),
    )

    out_f, out_b, hT = pl.pallas_call(
        kernel,
        out_shape=(jax.ShapeDtypeStruct((T, B, Hp), out_dtype),
                   jax.ShapeDtypeStruct((T, B, Hp), out_dtype),
                   jax.ShapeDtypeStruct((2, B, Hp), jnp.float32)),
        grid_spec=pltpu.PrefetchScalarGridSpec(
            num_scalar_prefetch=0,
            grid=(K,),
            in_specs=in_specs,
            out_specs=out_specs,
            scratch_shapes=[pltpu.VMEM((B, Hp), jnp.float32),
                            pltpu.VMEM((B, Hp), jnp.float32),
                            pltpu.VMEM((t_chunk, B, G), jnp.bfloat16),
                            pltpu.VMEM((t_chunk, B, G), jnp.bfloat16)],
        ),
        compiler_params=pltpu.CompilerParams(
            dimension_semantics=("arbitrary",),
            vmem_limit_bytes=32 * 1024 * 1024,   # fits v5e/v6e/v7x per-TC VMEM
        ),
        cost_estimate=cost,
    )(*xs, *xs, wih, whh, bias_x, bias_hn)
    return out_f, out_b, hT


def _pack_direction_params(w_ih, w_hh, b_ih, b_hh, H, Hp, in_splits):
    """PyTorch packed (3H, *) params -> fused, 128-lane-padded kernel layout.

    in_splits: list of (orig_width, padded_width) input-feature groups:
      layer 0 -> [(E, Ep)]; layer >0 -> [(H, Hp), (H, Hp)] (fwd/bwd streams).
    """
    def pad_gates(m):  # (rows, 3H) -> (rows, 3Hp); each gate block padded H->Hp
        blocks = [m[:, g * H:(g + 1) * H] for g in range(3)]
        return jnp.concatenate(
            [jnp.pad(blk, ((0, 0), (0, Hp - H))) for blk in blocks], axis=1)

    wih_t = pad_gates(jnp.transpose(w_ih))          # (E_layer, 3Hp)
    rows, off = [], 0
    for e, ep in in_splits:
        rows.append(jnp.pad(wih_t[off:off + e], ((0, ep - e), (0, 0))))
        off += e
    wih_p = jnp.concatenate(rows, axis=0).astype(jnp.bfloat16)   # (sum ep, 3Hp)

    whh_t = pad_gates(jnp.transpose(w_hh))          # (H, 3Hp)
    whh_p = jnp.pad(whh_t, ((0, Hp - H), (0, 0))).astype(jnp.bfloat16)  # (Hp,3Hp)

    # fold b_hh(r,z) into the input-side bias; keep b_hh(n) separate.
    bx = b_ih + jnp.concatenate([b_hh[:2 * H], jnp.zeros((H,), b_hh.dtype)])
    bias_x = pad_gates(bx.reshape(1, 3 * H))                     # (1, 3Hp) f32
    bias_hn = jnp.pad(b_hh[2 * H:].reshape(1, H), ((0, 0), (0, Hp - H)))
    return wih_p, whh_p, bias_x, bias_hn


def init_encoder_params(key, input_size, embed_size, hidden_size, n_layers=2):
    """Deterministic synthetic parameters, same shapes as the PyTorch module."""
    H = hidden_size
    Hp = _round_up(H, 128)
    Ep = _round_up(embed_size, 128)
    k_emb, key = jax.random.split(key)
    params = {
        "embedding": jax.random.normal(k_emb, (input_size, embed_size),
                                       dtype=jnp.float32),
        "gru": [],
    }
    bound = 1.0 / math.sqrt(hidden_size)
    for layer in range(n_layers):
        layer_in = embed_size if layer == 0 else 2 * H
        in_splits = [(embed_size, Ep)] if layer == 0 else [(H, Hp), (H, Hp)]
        packed = []
        for _ in range(2):                           # forward, backward
            key, k1, k2, k3, k4 = jax.random.split(key, 5)
            w_ih = jax.random.uniform(k1, (3 * H, layer_in), minval=-bound,
                                      maxval=bound, dtype=jnp.float32)
            w_hh = jax.random.uniform(k2, (3 * H, H), minval=-bound,
                                      maxval=bound, dtype=jnp.float32)
            b_ih = jax.random.uniform(k3, (3 * H,), minval=-bound,
                                      maxval=bound, dtype=jnp.float32)
            b_hh = jax.random.uniform(k4, (3 * H,), minval=-bound,
                                      maxval=bound, dtype=jnp.float32)
            packed.append(_pack_direction_params(w_ih, w_hh, b_ih, b_hh,
                                                 H, Hp, in_splits))
        params["gru"].append(tuple(
            jnp.stack([packed[0][i], packed[1][i]]) for i in range(4)))
    return params


@functools.partial(jax.jit, static_argnames=("hidden_size", "n_layers", "t_chunk"))
def encoder_rnn_forward(params, input_seqs, hidden_size, n_layers=2, t_chunk=64):
    """Mirrors EncoderRNN.forward (eval mode), bidirectional GRU."""
    T, B = input_seqs.shape
    H = hidden_size
    Hp = _round_up(H, 128)
    tc = _pick_t_chunk(T, t_chunk)

    emb = params["embedding"]
    E = int(emb.shape[1])
    Ep = _round_up(E, 128)

    # Embedding lookup (glue) + lane (embed->128) / sublane (batch->8) padding.
    embedded = emb[input_seqs].astype(jnp.bfloat16)              # (T, B, E)
    b_pad = (-B) % 8
    embedded = jnp.pad(embedded, ((0, 0), (0, b_pad), (0, Ep - E)))

    xs = [embedded]
    final_hiddens = []
    for layer in range(n_layers):
        wih, whh, bx, bhn = params["gru"][layer]
        last = layer == n_layers - 1
        out_f, out_b, hT = bi_gru_layer_pallas(
            xs, wih, whh, bx, bhn, t_chunk=tc,
            out_dtype=jnp.float32 if last else jnp.bfloat16)
        final_hiddens.append(hT[0])                  # layer fwd
        final_hiddens.append(hT[1])                  # layer bwd
        xs = [out_f, out_b]                          # fwd/bwd streams, no concat

    outputs = xs[0] + xs[1]                          # sum fwd + bwd halves (f32)
    hidden = jnp.stack(final_hiddens, axis=0)        # (2*n_layers, Bp, Hp)
    # strip padded batch rows and padded hidden lanes
    outputs = outputs[:, :B, :H]
    hidden = hidden[:, :B, :H]
    return outputs, hidden


if __name__ == "__main__":
    # Small, deterministic example consistent with the module's forward.
    input_size = 20     # vocab size
    embed_size = 16
    hidden_size = 32
    n_layers = 2
    seq_len = 8
    batch = 2

    key = jax.random.PRNGKey(0)
    k_params, k_seq = jax.random.split(key)
    params = init_encoder_params(k_params, input_size, embed_size, hidden_size,
                                 n_layers=n_layers)
    input_seqs = jax.random.randint(k_seq, (seq_len, batch), 0, input_size,
                                    dtype=jnp.int32)

    outputs, hidden = encoder_rnn_forward(params, input_seqs, hidden_size,
                                          n_layers=n_layers, t_chunk=4)
    jax.block_until_ready((outputs, hidden))

    assert outputs.shape == (seq_len, batch, hidden_size)
    assert hidden.shape == (n_layers * 2, batch, hidden_size)
    assert bool(jnp.all(jnp.isfinite(outputs))) and bool(jnp.all(jnp.isfinite(hidden)))
    print("KERNEL_OK")
</pallas_src>

<mosaic_0001>
module attributes {stable_mosaic.version = 11 : i64} {
  func.func @_bi_gru_layer_kernel(%arg0: i32, %arg1: memref<4x8x128xbf16, #tpu.memory_space<vmem>>, %arg2: memref<4x8x128xbf16, #tpu.memory_space<vmem>>, %arg3: memref<2x128x384xbf16, #tpu.memory_space<vmem>>, %arg4: memref<2x128x384xbf16, #tpu.memory_space<vmem>>, %arg5: memref<2x1x384xf32, #tpu.memory_space<vmem>>, %arg6: memref<2x1x128xf32, #tpu.memory_space<vmem>>, %arg7: memref<4x8x128xbf16, #tpu.memory_space<vmem>>, %arg8: memref<4x8x128xbf16, #tpu.memory_space<vmem>>, %arg9: memref<2x8x128xf32, #tpu.memory_space<vmem>>, %arg10: memref<8x128xf32, #tpu.memory_space<vmem>>, %arg11: memref<8x128xf32, #tpu.memory_space<vmem>>, %arg12: memref<4x8x384xbf16, #tpu.memory_space<vmem>>, %arg13: memref<4x8x384xbf16, #tpu.memory_space<vmem>>) attributes {dimension_semantics = [#tpu.dimension_semantics<arbitrary>], iteration_bounds = array<i64: 2>, scalar_prefetch = 0 : i64, scratch_operands = 4 : i64, tpu.core_type = #tpu.core_type<tc>, window_params = [{transform_indices = @transform_0, window_bounds = array<i64: 4, 8, 128>}, {transform_indices = @transform_1, window_bounds = array<i64: 4, 8, 128>}, {pipeline_mode = #tpu.pipeline_mode<synchronous>, transform_indices = @transform_2, window_bounds = array<i64: 2, 128, 384>}, {pipeline_mode = #tpu.pipeline_mode<synchronous>, transform_indices = @transform_3, window_bounds = array<i64: 2, 128, 384>}, {pipeline_mode = #tpu.pipeline_mode<synchronous>, transform_indices = @transform_4, window_bounds = array<i64: 2, 1, 384>}, {pipeline_mode = #tpu.pipeline_mode<synchronous>, transform_indices = @transform_5, window_bounds = array<i64: 2, 1, 128>}, {transform_indices = @transform_6, window_bounds = array<i64: 4, 8, 128>}, {transform_indices = @transform_7, window_bounds = array<i64: 4, 8, 128>}, {pipeline_mode = #tpu.pipeline_mode<synchronous>, transform_indices = @transform_8, window_bounds = array<i64: 2, 8, 128>}]} {
    %c0_i32 = arith.constant 0 : i32
    %0 = arith.cmpi eq, %arg0, %c0_i32 : i32
    %1 = arith.extui %0 : i1 to i32
    %c0_i32_0 = arith.constant 0 : i32
    %2 = arith.cmpi ne, %1, %c0_i32_0 : i32
    scf.if %2 {
      %cst_129 = arith.constant 0.000000e+00 : f32
      %325 = vector.broadcast %cst_129 : f32 to vector<8x128xf32>
      %c0_130 = arith.constant 0 : index
      %c0_131 = arith.constant 0 : index
      %326 = vector.load %arg10[%c0_130, %c0_131] : memref<8x128xf32, #tpu.memory_space<vmem>>, vector<8x128xf32>
      tpu.vector_store %arg10[%c0_130, %c0_131], %325 {strides = array<i32>} : memref<8x128xf32, #tpu.memory_space<vmem>>, vector<8x128xf32>,
      %cst_132 = arith.constant 0.000000e+00 : f32
      %327 = vector.broadcast %cst_132 : f32 to vector<8x128xf32>
      %c0_133 = arith.constant 0 : index
      %c0_134 = arith.constant 0 : index
      %328 = vector.load %arg11[%c0_133, %c0_134] : memref<8x128xf32, #tpu.memory_space<vmem>>, vector<8x128xf32>
      tpu.vector_store %arg11[%c0_133, %c0_134], %327 {strides = array<i32>} : memref<8x128xf32, #tpu.memory_space<vmem>>, vector<8x128xf32>,
    } else {
    }
    %c0 = arith.constant 0 : index
    %c0_1 = arith.constant 0 : index
    %c0_2 = arith.constant 0 : index
    %3 = vector.load %arg1[%c0, %c0_1, %c0_2] : memref<4x8x128xbf16, #tpu.memory_space<vmem>>, vector<4x8x128xbf16>
    %4 = vector.shape_cast %3 : vector<4x8x128xbf16> to vector<32x128xbf16>
    %c0_3 = arith.constant 0 : index
    %c0_4 = arith.constant 0 : index
    %c0_5 = arith.constant 0 : index
    %5 = vector.load %arg3[%c0_3, %c0_4, %c0_5] : memref<2x128x384xbf16, #tpu.memory_space<vmem>>, vector<1x128x384xbf16>
    %6 = vector.shape_cast %5 : vector<1x128x384xbf16> to vector<128x384xbf16>
    %cst = arith.constant dense<0.000000e+00> : vector<32x384xf32>
    %7 = tpu.matmul %4, %6, %cst {dimension_numbers = #tpu.dot_dimension_numbers<[1], [0], [0], [1], [0, 0, 1, 1], [], []>} : vector<32x128xbf16>, vector<128x384xbf16>, vector<32x384xf32> -> vector<32x384xf32>
    %c0_6 = arith.constant 0 : index
    %c0_7 = arith.constant 0 : index
    %c0_8 = arith.constant 0 : index
    %8 = vector.load %arg5[%c0_6, %c0_7, %c0_8] : memref<2x1x384xf32, #tpu.memory_space<vmem>>, vector<1x1x384xf32>
    %9 = vector.shape_cast %8 : vector<1x1x384xf32> to vector<1x384xf32>
    %10 = vector.broadcast %9 : vector<1x384xf32> to vector<32x384xf32>
    %11 = arith.addf %7, %10 : vector<32x384xf32>
    %12 = vector.shape_cast %11 : vector<32x384xf32> to vector<4x8x384xf32>
    %13 = arith.truncf %12 : vector<4x8x384xf32> to vector<4x8x384xbf16>
    %c0_9 = arith.constant 0 : index
    %c0_10 = arith.constant 0 : index
    %c0_11 = arith.constant 0 : index
    %14 = vector.load %arg12[%c0_9, %c0_10, %c0_11] : memref<4x8x384xbf16, #tpu.memory_space<vmem>>, vector<4x8x384xbf16>
    tpu.vector_store %arg12[%c0_9, %c0_10, %c0_11], %13 {strides = array<i32>} : memref<4x8x384xbf16, #tpu.memory_space<vmem>>, vector<4x8x384xbf16>,
    %c0_12 = arith.constant 0 : index
    %c0_13 = arith.constant 0 : index
    %c0_14 = arith.constant 0 : index
    %15 = vector.load %arg2[%c0_12, %c0_13, %c0_14] : memref<4x8x128xbf16, #tpu.memory_space<vmem>>, vector<4x8x128xbf16>
    %16 = vector.shape_cast %15 : vector<4x8x128xbf16> to vector<32x128xbf16>
    %c1 = arith.constant 1 : index
    %c0_15 = arith.constant 0 : index
    %c0_16 = arith.constant 0 : index
    %17 = vector.load %arg3[%c1, %c0_15, %c0_16] : memref<2x128x384xbf16, #tpu.memory_space<vmem>>, vector<1x128x384xbf16>
    %18 = vector.shape_cast %17 : vector<1x128x384xbf16> to vector<128x384xbf16>
    %cst_17 = arith.constant dense<0.000000e+00> : vector<32x384xf32>
    %19 = tpu.matmul %16, %18, %cst_17 {dimension_numbers = #tpu.dot_dimension_numbers<[1], [0], [0], [1], [0, 0, 1, 1], [], []>} : vector<32x128xbf16>, vector<128x384xbf16>, vector<32x384xf32> -> vector<32x384xf32>
    %c1_18 = arith.constant 1 : index
    %c0_19 = arith.constant 0 : index
    %c0_20 = arith.constant 0 : index
    %20 = vector.load %arg5[%c1_18, %c0_19, %c0_20] : memref<2x1x384xf32, #tpu.memory_space<vmem>>, vector<1x1x384xf32>
    %21 = vector.shape_cast %20 : vector<1x1x384xf32> to vector<1x384xf32>
    %22 = vector.broadcast %21 : vector<1x384xf32> to vector<32x384xf32>
    %23 = arith.addf %19, %22 : vector<32x384xf32>
    %24 = vector.shape_cast %23 : vector<32x384xf32> to vector<4x8x384xf32>
    %25 = arith.truncf %24 : vector<4x8x384xf32> to vector<4x8x384xbf16>
    %c0_21 = arith.constant 0 : index
    %c0_22 = arith.constant 0 : index
    %c0_23 = arith.constant 0 : index
    %26 = vector.load %arg13[%c0_21, %c0_22, %c0_23] : memref<4x8x384xbf16, #tpu.memory_space<vmem>>, vector<4x8x384xbf16>
    tpu.vector_store %arg13[%c0_21, %c0_22, %c0_23], %25 {strides = array<i32>} : memref<4x8x384xbf16, #tpu.memory_space<vmem>>, vector<4x8x384xbf16>,
    %c0_24 = arith.constant 0 : index
    %c0_25 = arith.constant 0 : index
    %c0_26 = arith.constant 0 : index
    %27 = vector.load %arg6[%c0_24, %c0_25, %c0_26] : memref<2x1x128xf32, #tpu.memory_space<vmem>>, vector<1x1x128xf32>
    %28 = vector.shape_cast %27 : vector<1x1x128xf32> to vector<1x128xf32>
    %c1_27 = arith.constant 1 : index
    %c0_28 = arith.constant 0 : index
    %c0_29 = arith.constant 0 : index
    %29 = vector.load %arg6[%c1_27, %c0_28, %c0_29] : memref<2x1x128xf32, #tpu.memory_space<vmem>>, vector<1x1x128xf32>
    %30 = vector.shape_cast %29 : vector<1x1x128xf32> to vector<1x128xf32>
    %c0_30 = arith.constant 0 : index
    %c0_31 = arith.constant 0 : index
    %31 = vector.load %arg10[%c0_30, %c0_31] : memref<8x128xf32, #tpu.memory_space<vmem>>, vector<8x128xf32>
    %c0_32 = arith.constant 0 : index
    %c0_33 = arith.constant 0 : index
    %32 = vector.load %arg11[%c0_32, %c0_33] : memref<8x128xf32, #tpu.memory_space<vmem>>, vector<8x128xf32>
    %c0_i32_34 = arith.constant 0 : i32
    %c3_i32 = arith.constant 3 : i32
    %33 = arith.subi %c3_i32, %c0_i32_34 : i32
    %34 = arith.index_cast %c0_i32_34 : i32 to index
    %c0_35 = arith.constant 0 : index
    %c0_36 = arith.constant 0 : index
    %35 = vector.load %arg12[%34, %c0_35, %c0_36] : memref<4x8x384xbf16, #tpu.memory_space<vmem>>, vector<1x8x384xbf16>
    %36 = vector.shape_cast %35 : vector<1x8x384xbf16> to vector<8x384xbf16>
    %37 = arith.extf %36 : vector<8x384xbf16> to vector<8x384xf32>
    %38 = arith.index_cast %33 : i32 to index
    %c0_37 = arith.constant 0 : index
    %c0_38 = arith.constant 0 : index
    %39 = vector.load %arg13[%38, %c0_37, %c0_38] : memref<4x8x384xbf16, #tpu.memory_space<vmem>>, vector<1x8x384xbf16>
    %40 = vector.shape_cast %39 : vector<1x8x384xbf16> to vector<8x384xbf16>
    %41 = arith.extf %40 : vector<8x384xbf16> to vector<8x384xf32>
    %42 = arith.truncf %31 : vector<8x128xf32> to vector<8x128xbf16>
    %c0_39 = arith.constant 0 : index
    %c0_40 = arith.constant 0 : index
    %c0_41 = arith.constant 0 : index
    %43 = vector.load %arg4[%c0_39, %c0_40, %c0_41] : memref<2x128x384xbf16, #tpu.memory_space<vmem>>, vector<1x128x384xbf16>
    %44 = vector.shape_cast %43 : vector<1x128x384xbf16> to vector<128x384xbf16>
    %cst_42 = arith.constant dense<0.000000e+00> : vector<8x384xf32>
    %45 = tpu.matmul %42, %44, %cst_42 {dimension_numbers = #tpu.dot_dimension_numbers<[1], [0], [0], [1], [0, 0, 1, 1], [], []>} : vector<8x128xbf16>, vector<128x384xbf16>, vector<8x384xf32> -> vector<8x384xf32>
    %46 = arith.truncf %32 : vector<8x128xf32> to vector<8x128xbf16>
    %c1_43 = arith.constant 1 : index
    %c0_44 = arith.constant 0 : index
    %c0_45 = arith.constant 0 : index
    %47 = vector.load %arg4[%c1_43, %c0_44, %c0_45] : memref<2x128x384xbf16, #tpu.memory_space<vmem>>, vector<1x128x384xbf16>
    %48 = vector.shape_cast %47 : vector<1x128x384xbf16> to vector<128x384xbf16>
    %cst_46 = arith.constant dense<0.000000e+00> : vector<8x384xf32>
    %49 = tpu.matmul %46, %48, %cst_46 {dimension_numbers = #tpu.dot_dimension_numbers<[1], [0], [0], [1], [0, 0, 1, 1], [], []>} : vector<8x128xbf16>, vector<128x384xbf16>, vector<8x384xf32> -> vector<8x384xf32>
    %50 = vector.extract_strided_slice %37 {offsets = [0, 0], sizes = [8, 256], strides = [1, 1]} : vector<8x384xf32> to vector<8x256xf32>
    %51 = vector.extract_strided_slice %45 {offsets = [0, 0], sizes = [8, 256], strides = [1, 1]} : vector<8x384xf32> to vector<8x256xf32>
    %52 = arith.addf %50, %51 : vector<8x256xf32>
    %53 = arith.negf %52 : vector<8x256xf32>
    %54 = math.exp %53 : vector<8x256xf32>
    %cst_47 = arith.constant 1.000000e+00 : f32
    %55 = vector.broadcast %cst_47 : f32 to vector<8x256xf32>
    %56 = arith.addf %55, %54 : vector<8x256xf32>
    %57 = arith.divf %55, %56 : vector<8x256xf32>
    %58 = vector.extract_strided_slice %57 {offsets = [0, 0], sizes = [8, 128], strides = [1, 1]} : vector<8x256xf32> to vector<8x128xf32>
    %59 = vector.extract_strided_slice %57 {offsets = [0, 128], sizes = [8, 128], strides = [1, 1]} : vector<8x256xf32> to vector<8x128xf32>
    %60 = vector.extract_strided_slice %37 {offsets = [0, 256], sizes = [8, 128], strides = [1, 1]} : vector<8x384xf32> to vector<8x128xf32>
    %61 = vector.extract_strided_slice %45 {offsets = [0, 256], sizes = [8, 128], strides = [1, 1]} : vector<8x384xf32> to vector<8x128xf32>
    %62 = vector.broadcast %28 : vector<1x128xf32> to vector<8x128xf32>
    %63 = arith.addf %61, %62 : vector<8x128xf32>
    %64 = arith.mulf %58, %63 : vector<8x128xf32>
    %65 = arith.addf %60, %64 : vector<8x128xf32>
    %66 = math.tanh %65 : vector<8x128xf32>
    %cst_48 = arith.constant 1.000000e+00 : f32
    %67 = vector.broadcast %cst_48 : f32 to vector<8x128xf32>
    %68 = arith.subf %67, %59 : vector<8x128xf32>
    %69 = arith.mulf %68, %66 : vector<8x128xf32>
    %70 = arith.mulf %59, %31 : vector<8x128xf32>
    %71 = arith.addf %69, %70 : vector<8x128xf32>
    %72 = vector.extract_strided_slice %41 {offsets = [0, 0], sizes = [8, 256], strides = [1, 1]} : vector<8x384xf32> to vector<8x256xf32>
    %73 = vector.extract_strided_slice %49 {offsets = [0, 0], sizes = [8, 256], strides = [1, 1]} : vector<8x384xf32> to vector<8x256xf32>
    %74 = arith.addf %72, %73 : vector<8x256xf32>
    %75 = arith.negf %74 : vector<8x256xf32>
    %76 = math.exp %75 : vector<8x256xf32>
    %cst_49 = arith.constant 1.000000e+00 : f32
    %77 = vector.broadcast %cst_49 : f32 to vector<8x256xf32>
    %78 = arith.addf %77, %76 : vector<8x256xf32>
    %79 = arith.divf %77, %78 : vector<8x256xf32>
    %80 = vector.extract_strided_slice %79 {offsets = [0, 0], sizes = [8, 128], strides = [1, 1]} : vector<8x256xf32> to vector<8x128xf32>
    %81 = vector.extract_strided_slice %79 {offsets = [0, 128], sizes = [8, 128], strides = [1, 1]} : vector<8x256xf32> to vector<8x128xf32>
    %82 = vector.extract_strided_slice %41 {offsets = [0, 256], sizes = [8, 128], strides = [1, 1]} : vector<8x384xf32> to vector<8x128xf32>
    %83 = vector.extract_strided_slice %49 {offsets = [0, 256], sizes = [8, 128], strides = [1, 1]} : vector<8x384xf32> to vector<8x128xf32>
    %84 = vector.broadcast %30 : vector<1x128xf32> to vector<8x128xf32>
    %85 = arith.addf %83, %84 : vector<8x128xf32>
    %86 = arith.mulf %80, %85 : vector<8x128xf32>
    %87 = arith.addf %82, %86 : vector<8x128xf32>
    %88 = math.tanh %87 : vector<8x128xf32>
    %cst_50 = arith.constant 1.000000e+00 : f32
    %89 = vector.broadcast %cst_50 : f32 to vector<8x128xf32>
    %90 = arith.subf %89, %81 : vector<8x128xf32>
    %91 = arith.mulf %90, %88 : vector<8x128xf32>
    %92 = arith.mulf %81, %32 : vector<8x128xf32>
    %93 = arith.addf %91, %92 : vector<8x128xf32>
    %94 = arith.truncf %71 : vector<8x128xf32> to vector<8x128xbf16>
    %95 = arith.index_cast %c0_i32_34 : i32 to index
    %c0_51 = arith.constant 0 : index
    %c0_52 = arith.constant 0 : index
    %96 = vector.load %arg7[%95, %c0_51, %c0_52] : memref<4x8x128xbf16, #tpu.memory_space<vmem>>, vector<1x8x128xbf16>
    %97 = vector.shape_cast %96 : vector<1x8x128xbf16> to vector<8x128xbf16>
    %98 = vector.shape_cast %94 : vector<8x128xbf16> to vector<1x8x128xbf16>
    tpu.vector_store %arg7[%95, %c0_51, %c0_52], %98 {strides = array<i32>} : memref<4x8x128xbf16, #tpu.memory_space<vmem>>, vector<1x8x128xbf16>,
    %99 = arith.truncf %93 : vector<8x128xf32> to vector<8x128xbf16>
    %100 = arith.index_cast %33 : i32 to index
    %c0_53 = arith.constant 0 : index
    %c0_54 = arith.constant 0 : index
    %101 = vector.load %arg8[%100, %c0_53, %c0_54] : memref<4x8x128xbf16, #tpu.memory_space<vmem>>, vector<1x8x128xbf16>
    %102 = vector.shape_cast %101 : vector<1x8x128xbf16> to vector<8x128xbf16>
    %103 = vector.shape_cast %99 : vector<8x128xbf16> to vector<1x8x128xbf16>
    tpu.vector_store %arg8[%100, %c0_53, %c0_54], %103 {strides = array<i32>} : memref<4x8x128xbf16, #tpu.memory_space<vmem>>, vector<1x8x128xbf16>,
    %c1_i32 = arith.constant 1 : i32
    %c3_i32_55 = arith.constant 3 : i32
    %104 = arith.subi %c3_i32_55, %c1_i32 : i32
    %105 = arith.index_cast %c1_i32 : i32 to index
    %c0_56 = arith.constant 0 : index
    %c0_57 = arith.constant 0 : index
    %106 = vector.load %arg12[%105, %c0_56, %c0_57] : memref<4x8x384xbf16, #tpu.memory_space<vmem>>, vector<1x8x384xbf16>
    %107 = vector.shape_cast %106 : vector<1x8x384xbf16> to vector<8x384xbf16>
    %108 = arith.extf %107 : vector<8x384xbf16> to vector<8x384xf32>
    %109 = arith.index_cast %104 : i32 to index
    %c0_58 = arith.constant 0 : index
    %c0_59 = arith.constant 0 : index
    %110 = vector.load %arg13[%109, %c0_58, %c0_59] : memref<4x8x384xbf16, #tpu.memory_space<vmem>>, vector<1x8x384xbf16>
    %111 = vector.shape_cast %110 : vector<1x8x384xbf16> to vector<8x384xbf16>
    %112 = arith.extf %111 : vector<8x384xbf16> to vector<8x384xf32>
    %113 = arith.truncf %71 : vector<8x128xf32> to vector<8x128xbf16>
    %c0_60 = arith.constant 0 : index
    %c0_61 = arith.constant 0 : index
    %c0_62 = arith.constant 0 : index
    %114 = vector.load %arg4[%c0_60, %c0_61, %c0_62] : memref<2x128x384xbf16, #tpu.memory_space<vmem>>, vector<1x128x384xbf16>
    %115 = vector.shape_cast %114 : vector<1x128x384xbf16> to vector<128x384xbf16>
    %cst_63 = arith.constant dense<0.000000e+00> : vector<8x384xf32>
    %116 = tpu.matmul %113, %115, %cst_63 {dimension_numbers = #tpu.dot_dimension_numbers<[1], [0], [0], [1], [0, 0, 1, 1], [], []>} : vector<8x128xbf16>, vector<128x384xbf16>, vector<8x384xf32> -> vector<8x384xf32>
    %117 = arith.truncf %93 : vector<8x128xf32> to vector<8x128xbf16>
    %c1_64 = arith.constant 1 : index
    %c0_65 = arith.constant 0 : index
    %c0_66 = arith.constant 0 : index
    %118 = vector.load %arg4[%c1_64, %c0_65, %c0_66] : memref<2x128x384xbf16, #tpu.memory_space<vmem>>, vector<1x128x384xbf16>
    %119 = vector.shape_cast %118 : vector<1x128x384xbf16> to vector<128x384xbf16>
    %cst_67 = arith.constant dense<0.000000e+00> : vector<8x384xf32>
    %120 = tpu.matmul %117, %119, %cst_67 {dimension_numbers = #tpu.dot_dimension_numbers<[1], [0], [0], [1], [0, 0, 1, 1], [], []>} : vector<8x128xbf16>, vector<128x384xbf16>, vector<8x384xf32> -> vector<8x384xf32>
    %121 = vector.extract_strided_slice %108 {offsets = [0, 0], sizes = [8, 256], strides = [1, 1]} : vector<8x384xf32> to vector<8x256xf32>
    %122 = vector.extract_strided_slice %116 {offsets = [0, 0], sizes = [8, 256], strides = [1, 1]} : vector<8x384xf32> to vector<8x256xf32>
    %123 = arith.addf %121, %122 : vector<8x256xf32>
    %124 = arith.negf %123 : vector<8x256xf32>
    %125 = math.exp %124 : vector<8x256xf32>
    %cst_68 = arith.constant 1.000000e+00 : f32
    %126 = vector.broadcast %cst_68 : f32 to vector<8x256xf32>
    %127 = arith.addf %126, %125 : vector<8x256xf32>
    %128 = arith.divf %126, %127 : vector<8x256xf32>
    %129 = vector.extract_strided_slice %128 {offsets = [0, 0], sizes = [8, 128], strides = [1, 1]} : vector<8x256xf32> to vector<8x128xf32>
    %130 = vector.extract_strided_slice %128 {offsets = [0, 128], sizes = [8, 128], strides = [1, 1]} : vector<8x256xf32> to vector<8x128xf32>
    %131 = vector.extract_strided_slice %108 {offsets = [0, 256], sizes = [8, 128], strides = [1, 1]} : vector<8x384xf32> to vector<8x128xf32>
    %132 = vector.extract_strided_slice %116 {offsets = [0, 256], sizes = [8, 128], strides = [1, 1]} : vector<8x384xf32> to vector<8x128xf32>
    %133 = vector.broadcast %28 : vector<1x128xf32> to vector<8x128xf32>
    %134 = arith.addf %132, %133 : vector<8x128xf32>
    %135 = arith.mulf %129, %134 : vector<8x128xf32>
    %136 = arith.addf %131, %135 : vector<8x128xf32>
    %137 = math.tanh %136 : vector<8x128xf32>
    %cst_69 = arith.constant 1.000000e+00 : f32
    %138 = vector.broadcast %cst_69 : f32 to vector<8x128xf32>
    %139 = arith.subf %138, %130 : vector<8x128xf32>
    %140 = arith.mulf %139, %137 : vector<8x128xf32>
    %141 = arith.mulf %130, %71 : vector<8x128xf32>
    %142 = arith.addf %140, %141 : vector<8x128xf32>
    %143 = vector.extract_strided_slice %112 {offsets = [0, 0], sizes = [8, 256], strides = [1, 1]} : vector<8x384xf32> to vector<8x256xf32>
    %144 = vector.extract_strided_slice %120 {offsets = [0, 0], sizes = [8, 256], strides = [1, 1]} : vector<8x384xf32> to vector<8x256xf32>
    %145 = arith.addf %143, %144 : vector<8x256xf32>
    %146 = arith.negf %145 : vector<8x256xf32>
    %147 = math.exp %146 : vector<8x256xf32>
    %cst_70 = arith.constant 1.000000e+00 : f32
    %148 = vector.broadcast %cst_70 : f32 to vector<8x256xf32>
    %149 = arith.addf %148, %147 : vector<8x256xf32>
    %150 = arith.divf %148, %149 : vector<8x256xf32>
    %151 = vector.extract_strided_slice %150 {offsets = [0, 0], sizes = [8, 128], strides = [1, 1]} : vector<8x256xf32> to vector<8x128xf32>
    %152 = vector.extract_strided_slice %150 {offsets = [0, 128], sizes = [8, 128], strides = [1, 1]} : vector<8x256xf32> to vector<8x128xf32>
    %153 = vector.extract_strided_slice %112 {offsets = [0, 256], sizes = [8, 128], strides = [1, 1]} : vector<8x384xf32> to vector<8x128xf32>
    %154 = vector.extract_strided_slice %120 {offsets = [0, 256], sizes = [8, 128], strides = [1, 1]} : vector<8x384xf32> to vector<8x128xf32>
    %155 = vector.broadcast %30 : vector<1x128xf32> to vector<8x128xf32>
    %156 = arith.addf %154, %155 : vector<8x128xf32>
    %157 = arith.mulf %151, %156 : vector<8x128xf32>
    %158 = arith.addf %153, %157 : vector<8x128xf32>
    %159 = math.tanh %158 : vector<8x128xf32>
    %cst_71 = arith.constant 1.000000e+00 : f32
    %160 = vector.broadcast %cst_71 : f32 to vector<8x128xf32>
    %161 = arith.subf %160, %152 : vector<8x128xf32>
    %162 = arith.mulf %161, %159 : vector<8x128xf32>
    %163 = arith.mulf %152, %93 : vector<8x128xf32>
    %164 = arith.addf %162, %163 : vector<8x128xf32>
    %165 = arith.truncf %142 : vector<8x128xf32> to vector<8x128xbf16>
    %166 = arith.index_cast %c1_i32 : i32 to index
    %c0_72 = arith.constant 0 : index
    %c0_73 = arith.constant 0 : index
    %167 = vector.load %arg7[%166, %c0_72, %c0_73] : memref<4x8x128xbf16, #tpu.memory_space<vmem>>, vector<1x8x128xbf16>
    %168 = vector.shape_cast %167 : vector<1x8x128xbf16> to vector<8x128xbf16>
    %169 = vector.shape_cast %165 : vector<8x128xbf16> to vector<1x8x128xbf16>
    tpu.vector_store %arg7[%166, %c0_72, %c0_73], %169 {strides = array<i32>} : memref<4x8x128xbf16, #tpu.memory_space<vmem>>, vector<1x8x128xbf16>,
    %170 = arith.truncf %164 : vector<8x128xf32> to vector<8x128xbf16>
    %171 = arith.index_cast %104 : i32 to index
    %c0_74 = arith.constant 0 : index
    %c0_75 = arith.constant 0 : index
    %172 = vector.load %arg8[%171, %c0_74, %c0_75] : memref<4x8x128xbf16, #tpu.memory_space<vmem>>, vector<1x8x128xbf16>
    %173 = vector.shape_cast %172 : vector<1x8x128xbf16> to vector<8x128xbf16>
    %174 = vector.shape_cast %170 : vector<8x128xbf16> to vector<1x8x128xbf16>
    tpu.vector_store %arg8[%171, %c0_74, %c0_75], %174 {strides = array<i32>} : memref<4x8x128xbf16, #tpu.memory_space<vmem>>, vector<1x8x128xbf16>,
    %c2_i32 = arith.constant 2 : i32
    %c3_i32_76 = arith.constant 3 : i32
    %175 = arith.subi %c3_i32_76, %c2_i32 : i32
    %176 = arith.index_cast %c2_i32 : i32 to index
    %c0_77 = arith.constant 0 : index
    %c0_78 = arith.constant 0 : index
    %177 = vector.load %arg12[%176, %c0_77, %c0_78] : memref<4x8x384xbf16, #tpu.memory_space<vmem>>, vector<1x8x384xbf16>
    %178 = vector.shape_cast %177 : vector<1x8x384xbf16> to vector<8x384xbf16>
    %179 = arith.extf %178 : vector<8x384xbf16> to vector<8x384xf32>
    %180 = arith.index_cast %175 : i32 to index
    %c0_79 = arith.constant 0 : index
    %c0_80 = arith.constant 0 : index
    %181 = vector.load %arg13[%180, %c0_79, %c0_80] : memref<4x8x384xbf16, #tpu.memory_space<vmem>>, vector<1x8x384xbf16>
    %182 = vector.shape_cast %181 : vector<1x8x384xbf16> to vector<8x384xbf16>
    %183 = arith.extf %182 : vector<8x384xbf16> to vector<8x384xf32>
    %184 = arith.truncf %142 : vector<8x128xf32> to vector<8x128xbf16>
    %c0_81 = arith.constant 0 : index
    %c0_82 = arith.constant 0 : index
    %c0_83 = arith.constant 0 : index
    %185 = vector.load %arg4[%c0_81, %c0_82, %c0_83] : memref<2x128x384xbf16, #tpu.memory_space<vmem>>, vector<1x128x384xbf16>
    %186 = vector.shape_cast %185 : vector<1x128x384xbf16> to vector<128x384xbf16>
    %cst_84 = arith.constant dense<0.000000e+00> : vector<8x384xf32>
    %187 = tpu.matmul %184, %186, %cst_84 {dimension_numbers = #tpu.dot_dimension_numbers<[1], [0], [0], [1], [0, 0, 1, 1], [], []>} : vector<8x128xbf16>, vector<128x384xbf16>, vector<8x384xf32> -> vector<8x384xf32>
    %188 = arith.truncf %164 : vector<8x128xf32> to vector<8x128xbf16>
    %c1_85 = arith.constant 1 : index
    %c0_86 = arith.constant 0 : index
    %c0_87 = arith.constant 0 : index
    %189 = vector.load %arg4[%c1_85, %c0_86, %c0_87] : memref<2x128x384xbf16, #tpu.memory_space<vmem>>, vector<1x128x384xbf16>
    %190 = vector.shape_cast %189 : vector<1x128x384xbf16> to vector<128x384xbf16>
    %cst_88 = arith.constant dense<0.000000e+00> : vector<8x384xf32>
    %191 = tpu.matmul %188, %190, %cst_88 {dimension_numbers = #tpu.dot_dimension_numbers<[1], [0], [0], [1], [0, 0, 1, 1], [], []>} : vector<8x128xbf16>, vector<128x384xbf16>, vector<8x384xf32> -> vector<8x384xf32>
    %192 = vector.extract_strided_slice %179 {offsets = [0, 0], sizes = [8, 256], strides = [1, 1]} : vector<8x384xf32> to vector<8x256xf32>
    %193 = vector.extract_strided_slice %187 {offsets = [0, 0], sizes = [8, 256], strides = [1, 1]} : vector<8x384xf32> to vector<8x256xf32>
    %194 = arith.addf %192, %193 : vector<8x256xf32>
    %195 = arith.negf %194 : vector<8x256xf32>
    %196 = math.exp %195 : vector<8x256xf32>
    %cst_89 = arith.constant 1.000000e+00 : f32
    %197 = vector.broadcast %cst_89 : f32 to vector<8x256xf32>
    %198 = arith.addf %197, %196 : vector<8x256xf32>
    %199 = arith.divf %197, %198 : vector<8x256xf32>
    %200 = vector.extract_strided_slice %199 {offsets = [0, 0], sizes = [8, 128], strides = [1, 1]} : vector<8x256xf32> to vector<8x128xf32>
    %201 = vector.extract_strided_slice %199 {offsets = [0, 128], sizes = [8, 128], strides = [1, 1]} : vector<8x256xf32> to vector<8x128xf32>
    %202 = vector.extract_strided_slice %179 {offsets = [0, 256], sizes = [8, 128], strides = [1, 1]} : vector<8x384xf32> to vector<8x128xf32>
    %203 = vector.extract_strided_slice %187 {offsets = [0, 256], sizes = [8, 128], strides = [1, 1]} : vector<8x384xf32> to vector<8x128xf32>
    %204 = vector.broadcast %28 : vector<1x128xf32> to vector<8x128xf32>
    %205 = arith.addf %203, %204 : vector<8x128xf32>
    %206 = arith.mulf %200, %205 : vector<8x128xf32>
    %207 = arith.addf %202, %206 : vector<8x128xf32>
    %208 = math.tanh %207 : vector<8x128xf32>
    %cst_90 = arith.constant 1.000000e+00 : f32
    %209 = vector.broadcast %cst_90 : f32 to vector<8x128xf32>
    %210 = arith.subf %209, %201 : vector<8x128xf32>
    %211 = arith.mulf %210, %208 : vector<8x128xf32>
    %212 = arith.mulf %201, %142 : vector<8x128xf32>
    %213 = arith.addf %211, %212 : vector<8x128xf32>
    %214 = vector.extract_strided_slice %183 {offsets = [0, 0], sizes = [8, 256], strides = [1, 1]} : vector<8x384xf32> to vector<8x256xf32>
    %215 = vector.extract_strided_slice %191 {offsets = [0, 0], sizes = [8, 256], strides = [1, 1]} : vector<8x384xf32> to vector<8x256xf32>
    %216 = arith.addf %214, %215 : vector<8x256xf32>
    %217 = arith.negf %216 : vector<8x256xf32>
    %218 = math.exp %217 : vector<8x256xf32>
    %cst_91 = arith.constant 1.000000e+00 : f32
    %219 = vector.broadcast %cst_91 : f32 to vector<8x256xf32>
    %220 = arith.addf %219, %218 : vector<8x256xf32>
    %221 = arith.divf %219, %220 : vector<8x256xf32>
    %222 = vector.extract_strided_slice %221 {offsets = [0, 0], sizes = [8, 128], strides = [1, 1]} : vector<8x256xf32> to vector<8x128xf32>
    %223 = vector.extract_strided_slice %221 {offsets = [0, 128], sizes = [8, 128], strides = [1, 1]} : vector<8x256xf32> to vector<8x128xf32>
    %224 = vector.extract_strided_slice %183 {offsets = [0, 256], sizes = [8, 128], strides = [1, 1]} : vector<8x384xf32> to vector<8x128xf32>
    %225 = vector.extract_strided_slice %191 {offsets = [0, 256], sizes = [8, 128], strides = [1, 1]} : vector<8x384xf32> to vector<8x128xf32>
    %226 = vector.broadcast %30 : vector<1x128xf32> to vector<8x128xf32>
    %227 = arith.addf %225, %226 : vector<8x128xf32>
    %228 = arith.mulf %222, %227 : vector<8x128xf32>
    %229 = arith.addf %224, %228 : vector<8x128xf32>
    %230 = math.tanh %229 : vector<8x128xf32>
    %cst_92 = arith.constant 1.000000e+00 : f32
    %231 = vector.broadcast %cst_92 : f32 to vector<8x128xf32>
    %232 = arith.subf %231, %223 : vector<8x128xf32>
    %233 = arith.mulf %232, %230 : vector<8x128xf32>
    %234 = arith.mulf %223, %164 : vector<8x128xf32>
    %235 = arith.addf %233, %234 : vector<8x128xf32>
    %236 = arith.truncf %213 : vector<8x128xf32> to vector<8x128xbf16>
    %237 = arith.index_cast %c2_i32 : i32 to index
    %c0_93 = arith.constant 0 : index
    %c0_94 = arith.constant 0 : index
    %238 = vector.load %arg7[%237, %c0_93, %c0_94] : memref<4x8x128xbf16, #tpu.memory_space<vmem>>, vector<1x8x128xbf16>
    %239 = vector.shape_cast %238 : vector<1x8x128xbf16> to vector<8x128xbf16>
    %240 = vector.shape_cast %236 : vector<8x128xbf16> to vector<1x8x128xbf16>
    tpu.vector_store %arg7[%237, %c0_93, %c0_94], %240 {strides = array<i32>} : memref<4x8x128xbf16, #tpu.memory_space<vmem>>, vector<1x8x128xbf16>,
    %241 = arith.truncf %235 : vector<8x128xf32> to vector<8x128xbf16>
    %242 = arith.index_cast %175 : i32 to index
    %c0_95 = arith.constant 0 : index
    %c0_96 = arith.constant 0 : index
    %243 = vector.load %arg8[%242, %c0_95, %c0_96] : memref<4x8x128xbf16, #tpu.memory_space<vmem>>, vector<1x8x128xbf16>
    %244 = vector.shape_cast %243 : vector<1x8x128xbf16> to vector<8x128xbf16>
    %245 = vector.shape_cast %241 : vector<8x128xbf16> to vector<1x8x128xbf16>
    tpu.vector_store %arg8[%242, %c0_95, %c0_96], %245 {strides = array<i32>} : memref<4x8x128xbf16, #tpu.memory_space<vmem>>, vector<1x8x128xbf16>,
    %c3_i32_97 = arith.constant 3 : i32
    %c3_i32_98 = arith.constant 3 : i32
    %246 = arith.subi %c3_i32_98, %c3_i32_97 : i32
    %247 = arith.index_cast %c3_i32_97 : i32 to index
    %c0_99 = arith.constant 0 : index
    %c0_100 = arith.constant 0 : index
    %248 = vector.load %arg12[%247, %c0_99, %c0_100] : memref<4x8x384xbf16, #tpu.memory_space<vmem>>, vector<1x8x384xbf16>
    %249 = vector.shape_cast %248 : vector<1x8x384xbf16> to vector<8x384xbf16>
    %250 = arith.extf %249 : vector<8x384xbf16> to vector<8x384xf32>
    %251 = arith.index_cast %246 : i32 to index
    %c0_101 = arith.constant 0 : index
    %c0_102 = arith.constant 0 : index
    %252 = vector.load %arg13[%251, %c0_101, %c0_102] : memref<4x8x384xbf16, #tpu.memory_space<vmem>>, vector<1x8x384xbf16>
    %253 = vector.shape_cast %252 : vector<1x8x384xbf16> to vector<8x384xbf16>
    %254 = arith.extf %253 : vector<8x384xbf16> to vector<8x384xf32>
    %255 = arith.truncf %213 : vector<8x128xf32> to vector<8x128xbf16>
    %c0_103 = arith.constant 0 : index
    %c0_104 = arith.constant 0 : index
    %c0_105 = arith.constant 0 : index
    %256 = vector.load %arg4[%c0_103, %c0_104, %c0_105] : memref<2x128x384xbf16, #tpu.memory_space<vmem>>, vector<1x128x384xbf16>
    %257 = vector.shape_cast %256 : vector<1x128x384xbf16> to vector<128x384xbf16>
    %cst_106 = arith.constant dense<0.000000e+00> : vector<8x384xf32>
    %258 = tpu.matmul %255, %257, %cst_106 {dimension_numbers = #tpu.dot_dimension_numbers<[1], [0], [0], [1], [0, 0, 1, 1], [], []>} : vector<8x128xbf16>, vector<128x384xbf16>, vector<8x384xf32> -> vector<8x384xf32>
    %259 = arith.truncf %235 : vector<8x128xf32> to vector<8x128xbf16>
    %c1_107 = arith.constant 1 : index
    %c0_108 = arith.constant 0 : index
    %c0_109 = arith.constant 0 : index
    %260 = vector.load %arg4[%c1_107, %c0_108, %c0_109] : memref<2x128x384xbf16, #tpu.memory_space<vmem>>, vector<1x128x384xbf16>
    %261 = vector.shape_cast %260 : vector<1x128x384xbf16> to vector<128x384xbf16>
    %cst_110 = arith.constant dense<0.000000e+00> : vector<8x384xf32>
    %262 = tpu.matmul %259, %261, %cst_110 {dimension_numbers = #tpu.dot_dimension_numbers<[1], [0], [0], [1], [0, 0, 1, 1], [], []>} : vector<8x128xbf16>, vector<128x384xbf16>, vector<8x384xf32> -> vector<8x384xf32>
    %263 = vector.extract_strided_slice %250 {offsets = [0, 0], sizes = [8, 256], strides = [1, 1]} : vector<8x384xf32> to vector<8x256xf32>
    %264 = vector.extract_strided_slice %258 {offsets = [0, 0], sizes = [8, 256], strides = [1, 1]} : vector<8x384xf32> to vector<8x256xf32>
    %265 = arith.addf %263, %264 : vector<8x256xf32>
    %266 = arith.negf %265 : vector<8x256xf32>
    %267 = math.exp %266 : vector<8x256xf32>
    %cst_111 = arith.constant 1.000000e+00 : f32
    %268 = vector.broadcast %cst_111 : f32 to vector<8x256xf32>
    %269 = arith.addf %268, %267 : vector<8x256xf32>
    %270 = arith.divf %268, %269 : vector<8x256xf32>
    %271 = vector.extract_strided_slice %270 {offsets = [0, 0], sizes = [8, 128], strides = [1, 1]} : vector<8x256xf32> to vector<8x128xf32>
    %272 = vector.extract_strided_slice %270 {offsets = [0, 128], sizes = [8, 128], strides = [1, 1]} : vector<8x256xf32> to vector<8x128xf32>
    %273 = vector.extract_strided_slice %250 {offsets = [0, 256], sizes = [8, 128], strides = [1, 1]} : vector<8x384xf32> to vector<8x128xf32>
    %274 = vector.extract_strided_slice %258 {offsets = [0, 256], sizes = [8, 128], strides = [1, 1]} : vector<8x384xf32> to vector<8x128xf32>
    %275 = vector.broadcast %28 : vector<1x128xf32> to vector<8x128xf32>
    %276 = arith.addf %274, %275 : vector<8x128xf32>
    %277 = arith.mulf %271, %276 : vector<8x128xf32>
    %278 = arith.addf %273, %277 : vector<8x128xf32>
    %279 = math.tanh %278 : vector<8x128xf32>
    %cst_112 = arith.constant 1.000000e+00 : f32
    %280 = vector.broadcast %cst_112 : f32 to vector<8x128xf32>
    %281 = arith.subf %280, %272 : vector<8x128xf32>
    %282 = arith.mulf %281, %279 : vector<8x128xf32>
    %283 = arith.mulf %272, %213 : vector<8x128xf32>
    %284 = arith.addf %282, %283 : vector<8x128xf32>
    %285 = vector.extract_strided_slice %254 {offsets = [0, 0], sizes = [8, 256], strides = [1, 1]} : vector<8x384xf32> to vector<8x256xf32>
    %286 = vector.extract_strided_slice %262 {offsets = [0, 0], sizes = [8, 256], strides = [1, 1]} : vector<8x384xf32> to vector<8x256xf32>
    %287 = arith.addf %285, %286 : vector<8x256xf32>
    %288 = arith.negf %287 : vector<8x256xf32>
    %289 = math.exp %288 : vector<8x256xf32>
    %cst_113 = arith.constant 1.000000e+00 : f32
    %290 = vector.broadcast %cst_113 : f32 to vector<8x256xf32>
    %291 = arith.addf %290, %289 : vector<8x256xf32>
    %292 = arith.divf %290, %291 : vector<8x256xf32>
    %293 = vector.extract_strided_slice %292 {offsets = [0, 0], sizes = [8, 128], strides = [1, 1]} : vector<8x256xf32> to vector<8x128xf32>
    %294 = vector.extract_strided_slice %292 {offsets = [0, 128], sizes = [8, 128], strides = [1, 1]} : vector<8x256xf32> to vector<8x128xf32>
    %295 = vector.extract_strided_slice %254 {offsets = [0, 256], sizes = [8, 128], strides = [1, 1]} : vector<8x384xf32> to vector<8x128xf32>
    %296 = vector.extract_strided_slice %262 {offsets = [0, 256], sizes = [8, 128], strides = [1, 1]} : vector<8x384xf32> to vector<8x128xf32>
    %297 = vector.broadcast %30 : vector<1x128xf32> to vector<8x128xf32>
    %298 = arith.addf %296, %297 : vector<8x128xf32>
    %299 = arith.mulf %293, %298 : vector<8x128xf32>
    %300 = arith.addf %295, %299 : vector<8x128xf32>
    %301 = math.tanh %300 : vector<8x128xf32>
    %cst_114 = arith.constant 1.000000e+00 : f32
    %302 = vector.broadcast %cst_114 : f32 to vector<8x128xf32>
    %303 = arith.subf %302, %294 : vector<8x128xf32>
    %304 = arith.mulf %303, %301 : vector<8x128xf32>
    %305 = arith.mulf %294, %235 : vector<8x128xf32>
    %306 = arith.addf %304, %305 : vector<8x128xf32>
    %307 = arith.truncf %284 : vector<8x128xf32> to vector<8x128xbf16>
    %308 = arith.index_cast %c3_i32_97 : i32 to index
    %c0_115 = arith.constant 0 : index
    %c0_116 = arith.constant 0 : index
    %309 = vector.load %arg7[%308, %c0_115, %c0_116] : memref<4x8x128xbf16, #tpu.memory_space<vmem>>, vector<1x8x128xbf16>
    %310 = vector.shape_cast %309 : vector<1x8x128xbf16> to vector<8x128xbf16>
    %311 = vector.shape_cast %307 : vector<8x128xbf16> to vector<1x8x128xbf16>
    tpu.vector_store %arg7[%308, %c0_115, %c0_116], %311 {strides = array<i32>} : memref<4x8x128xbf16, #tpu.memory_space<vmem>>, vector<1x8x128xbf16>,
    %312 = arith.truncf %306 : vector<8x128xf32> to vector<8x128xbf16>
    %313 = arith.index_cast %246 : i32 to index
    %c0_117 = arith.constant 0 : index
    %c0_118 = arith.constant 0 : index
    %314 = vector.load %arg8[%313, %c0_117, %c0_118] : memref<4x8x128xbf16, #tpu.memory_space<vmem>>, vector<1x8x128xbf16>
    %315 = vector.shape_cast %314 : vector<1x8x128xbf16> to vector<8x128xbf16>
    %316 = vector.shape_cast %312 : vector<8x128xbf16> to vector<1x8x128xbf16>
    tpu.vector_store %arg8[%313, %c0_117, %c0_118], %316 {strides = array<i32>} : memref<4x8x128xbf16, #tpu.memory_space<vmem>>, vector<1x8x128xbf16>,
    %c4_i32 = arith.constant 4 : i32
    %c0_119 = arith.constant 0 : index
    %c0_120 = arith.constant 0 : index
    %317 = vector.load %arg10[%c0_119, %c0_120] : memref<8x128xf32, #tpu.memory_space<vmem>>, vector<8x128xf32>
    tpu.vector_store %arg10[%c0_119, %c0_120], %284 {strides = array<i32>} : memref<8x128xf32, #tpu.memory_space<vmem>>, vector<8x128xf32>,
    %c0_121 = arith.constant 0 : index
    %c0_122 = arith.constant 0 : index
    %318 = vector.load %arg11[%c0_121, %c0_122] : memref<8x128xf32, #tpu.memory_space<vmem>>, vector<8x128xf32>
    tpu.vector_store %arg11[%c0_121, %c0_122], %306 {strides = array<i32>} : memref<8x128xf32, #tpu.memory_space<vmem>>, vector<8x128xf32>,
    %c0_123 = arith.constant 0 : index
    %c0_124 = arith.constant 0 : index
    %c0_125 = arith.constant 0 : index
    %319 = vector.load %arg9[%c0_123, %c0_124, %c0_125] : memref<2x8x128xf32, #tpu.memory_space<vmem>>, vector<1x8x128xf32>
    %320 = vector.shape_cast %319 : vector<1x8x128xf32> to vector<8x128xf32>
    %321 = vector.shape_cast %284 : vector<8x128xf32> to vector<1x8x128xf32>
    tpu.vector_store %arg9[%c0_123, %c0_124, %c0_125], %321 {strides = array<i32>} : memref<2x8x128xf32, #tpu.memory_space<vmem>>, vector<1x8x128xf32>,
    %c1_126 = arith.constant 1 : index
    %c0_127 = arith.constant 0 : index
    %c0_128 = arith.constant 0 : index
    %322 = vector.load %arg9[%c1_126, %c0_127, %c0_128] : memref<2x8x128xf32, #tpu.memory_space<vmem>>, vector<1x8x128xf32>
    %323 = vector.shape_cast %322 : vector<1x8x128xf32> to vector<8x128xf32>
    %324 = vector.shape_cast %306 : vector<8x128xf32> to vector<1x8x128xf32>
    tpu.vector_store %arg9[%c1_126, %c0_127, %c0_128], %324 {strides = array<i32>} : memref<2x8x128xf32, #tpu.memory_space<vmem>>, vector<1x8x128xf32>,
    return
  }
  func.func @transform_0(%arg0: i32) -> (i32, i32, i32) {
    %c0_i32 = arith.constant 0 : i32
    %c0_i32_0 = arith.constant 0 : i32
    %c0_i32_1 = arith.constant 0 : i32
    return %arg0, %c0_i32, %c0_i32_0 : i32, i32, i32
  }
  func.func @transform_1(%arg0: i32) -> (i32, i32, i32) {
    %c1_i32 = arith.constant 1 : i32
    %0 = arith.subi %c1_i32, %arg0 : i32
    %c0_i32 = arith.constant 0 : i32
    %c0_i32_0 = arith.constant 0 : i32
    %c0_i32_1 = arith.constant 0 : i32
    return %0, %c0_i32, %c0_i32_0 : i32, i32, i32
  }
  func.func @transform_2(%arg0: i32) -> (i32, i32, i32) {
    %c0_i32 = arith.constant 0 : i32
    %c0_i32_0 = arith.constant 0 : i32
    %c0_i32_1 = arith.constant 0 : i32
    %c0_i32_2 = arith.constant 0 : i32
    return %c0_i32, %c0_i32_0, %c0_i32_1 : i32, i32, i32
  }
  func.func @transform_3(%arg0: i32) -> (i32, i32, i32) {
    %c0_i32 = arith.constant 0 : i32
    %c0_i32_0 = arith.constant 0 : i32
    %c0_i32_1 = arith.constant 0 : i32
    %c0_i32_2 = arith.constant 0 : i32
    return %c0_i32, %c0_i32_0, %c0_i32_1 : i32, i32, i32
  }
  func.func @transform_4(%arg0: i32) -> (i32, i32, i32) {
    %c0_i32 = arith.constant 0 : i32
    %c0_i32_0 = arith.constant 0 : i32
    %c0_i32_1 = arith.constant 0 : i32
    %c0_i32_2 = arith.constant 0 : i32
    return %c0_i32, %c0_i32_0, %c0_i32_1 : i32, i32, i32
  }
  func.func @transform_5(%arg0: i32) -> (i32, i32, i32) {
    %c0_i32 = arith.constant 0 : i32
    %c0_i32_0 = arith.constant 0 : i32
    %c0_i32_1 = arith.constant 0 : i32
    %c0_i32_2 = arith.constant 0 : i32
    return %c0_i32, %c0_i32_0, %c0_i32_1 : i32, i32, i32
  }
  func.func @transform_6(%arg0: i32) -> (i32, i32, i32) {
    %c0_i32 = arith.constant 0 : i32
    %c0_i32_0 = arith.constant 0 : i32
    %c0_i32_1 = arith.constant 0 : i32
    return %arg0, %c0_i32, %c0_i32_0 : i32, i32, i32
  }
  func.func @transform_7(%arg0: i32) -> (i32, i32, i32) {
    %c1_i32 = arith.constant 1 : i32
    %0 = arith.subi %c1_i32, %arg0 : i32
    %c0_i32 = arith.constant 0 : i32
    %c0_i32_0 = arith.constant 0 : i32
    %c0_i32_1 = arith.constant 0 : i32
    return %0, %c0_i32, %c0_i32_0 : i32, i32, i32
  }
  func.func @transform_8(%arg0: i32) -> (i32, i32, i32) {
    %c0_i32 = arith.constant 0 : i32
    %c0_i32_0 = arith.constant 0 : i32
    %c0_i32_1 = arith.constant 0 : i32
    %c0_i32_2 = arith.constant 0 : i32
    return %c0_i32, %c0_i32_0, %c0_i32_1 : i32, i32, i32
  }
}

module attributes {stable_mosaic.version = 11 : i64} {
  func.func @_bi_gru_layer_kernel(%arg0: i32, %arg1: memref<4x8x128xbf16, #tpu.memory_space<vmem>>, %arg2: memref<4x8x128xbf16, #tpu.memory_space<vmem>>, %arg3: memref<4x8x128xbf16, #tpu.memory_space<vmem>>, %arg4: memref<4x8x128xbf16, #tpu.memory_space<vmem>>, %arg5: memref<2x256x384xbf16, #tpu.memory_space<vmem>>, %arg6: memref<2x128x384xbf16, #tpu.memory_space<vmem>>, %arg7: memref<2x1x384xf32, #tpu.memory_space<vmem>>, %arg8: memref<2x1x128xf32, #tpu.memory_space<vmem>>, %arg9: memref<4x8x128xf32, #tpu.memory_space<vmem>>, %arg10: memref<4x8x128xf32, #tpu.memory_space<vmem>>, %arg11: memref<2x8x128xf32, #tpu.memory_space<vmem>>, %arg12: memref<8x128xf32, #tpu.memory_space<vmem>>, %arg13: memref<8x128xf32, #tpu.memory_space<vmem>>, %arg14: memref<4x8x384xbf16, #tpu.memory_space<vmem>>, %arg15: memref<4x8x384xbf16, #tpu.memory_space<vmem>>) attributes {dimension_semantics = [#tpu.dimension_semantics<arbitrary>], iteration_bounds = array<i64: 2>, scalar_prefetch = 0 : i64, scratch_operands = 4 : i64, tpu.core_type = #tpu.core_type<tc>, window_params = [{transform_indices = @transform_0, window_bounds = array<i64: 4, 8, 128>}, {transform_indices = @transform_1, window_bounds = array<i64: 4, 8, 128>}, {transform_indices = @transform_2, window_bounds = array<i64: 4, 8, 128>}, {transform_indices = @transform_3, window_bounds = array<i64: 4, 8, 128>}, {pipeline_mode = #tpu.pipeline_mode<synchronous>, transform_indices = @transform_4, window_bounds = array<i64: 2, 256, 384>}, {pipeline_mode = #tpu.pipeline_mode<synchronous>, transform_indices = @transform_5, window_bounds = array<i64: 2, 128, 384>}, {pipeline_mode = #tpu.pipeline_mode<synchronous>, transform_indices = @transform_6, window_bounds = array<i64: 2, 1, 384>}, {pipeline_mode = #tpu.pipeline_mode<synchronous>, transform_indices = @transform_7, window_bounds = array<i64: 2, 1, 128>}, {transform_indices = @transform_8, window_bounds = array<i64: 4, 8, 128>}, {transform_indices = @transform_9, window_bounds = array<i64: 4, 8, 128>}, {pipeline_mode = #tpu.pipeline_mode<synchronous>, transform_indices = @transform_10, window_bounds = array<i64: 2, 8, 128>}]} {
    %c0_i32 = arith.constant 0 : i32
    %0 = arith.cmpi eq, %arg0, %c0_i32 : i32
    %1 = arith.extui %0 : i1 to i32
    %c0_i32_0 = arith.constant 0 : i32
    %2 = arith.cmpi ne, %1, %c0_i32_0 : i32
    scf.if %2 {
      %cst_142 = arith.constant 0.000000e+00 : f32
      %329 = vector.broadcast %cst_142 : f32 to vector<8x128xf32>
      %c0_143 = arith.constant 0 : index
      %c0_144 = arith.constant 0 : index
      %330 = vector.load %arg12[%c0_143, %c0_144] : memref<8x128xf32, #tpu.memory_space<vmem>>, vector<8x128xf32>
      tpu.vector_store %arg12[%c0_143, %c0_144], %329 {strides = array<i32>} : memref<8x128xf32, #tpu.memory_space<vmem>>, vector<8x128xf32>,
      %cst_145 = arith.constant 0.000000e+00 : f32
      %331 = vector.broadcast %cst_145 : f32 to vector<8x128xf32>
      %c0_146 = arith.constant 0 : index
      %c0_147 = arith.constant 0 : index
      %332 = vector.load %arg13[%c0_146, %c0_147] : memref<8x128xf32, #tpu.memory_space<vmem>>, vector<8x128xf32>
      tpu.vector_store %arg13[%c0_146, %c0_147], %331 {strides = array<i32>} : memref<8x128xf32, #tpu.memory_space<vmem>>, vector<8x128xf32>,
    } else {
    }
    %c0 = arith.constant 0 : index
    %c0_1 = arith.constant 0 : index
    %c0_2 = arith.constant 0 : index
    %3 = vector.load %arg1[%c0, %c0_1, %c0_2] : memref<4x8x128xbf16, #tpu.memory_space<vmem>>, vector<4x8x128xbf16>
    %4 = vector.shape_cast %3 : vector<4x8x128xbf16> to vector<32x128xbf16>
    %c0_3 = arith.constant 0 : index
    %c0_4 = arith.constant 0 : index
    %c0_5 = arith.constant 0 : index
    %5 = vector.load %arg5[%c0_3, %c0_4, %c0_5] : memref<2x256x384xbf16, #tpu.memory_space<vmem>>, vector<1x128x384xbf16>
    %6 = vector.shape_cast %5 : vector<1x128x384xbf16> to vector<128x384xbf16>
    %cst = arith.constant dense<0.000000e+00> : vector<32x384xf32>
    %7 = tpu.matmul %4, %6, %cst {dimension_numbers = #tpu.dot_dimension_numbers<[1], [0], [0], [1], [0, 0, 1, 1], [], []>} : vector<32x128xbf16>, vector<128x384xbf16>, vector<32x384xf32> -> vector<32x384xf32>
    %c0_6 = arith.constant 0 : index
    %c0_7 = arith.constant 0 : index
    %c0_8 = arith.constant 0 : index
    %8 = vector.load %arg2[%c0_6, %c0_7, %c0_8] : memref<4x8x128xbf16, #tpu.memory_space<vmem>>, vector<4x8x128xbf16>
    %9 = vector.shape_cast %8 : vector<4x8x128xbf16> to vector<32x128xbf16>
    %c0_9 = arith.constant 0 : index
    %c128 = arith.constant 128 : index
    %c0_10 = arith.constant 0 : index
    %10 = vector.load %arg5[%c0_9, %c128, %c0_10] : memref<2x256x384xbf16, #tpu.memory_space<vmem>>, vector<1x128x384xbf16>
    %11 = vector.shape_cast %10 : vector<1x128x384xbf16> to vector<128x384xbf16>
    %cst_11 = arith.constant dense<0.000000e+00> : vector<32x384xf32>
    %12 = tpu.matmul %9, %11, %cst_11 {dimension_numbers = #tpu.dot_dimension_numbers<[1], [0], [0], [1], [0, 0, 1, 1], [], []>} : vector<32x128xbf16>, vector<128x384xbf16>, vector<32x384xf32> -> vector<32x384xf32>
    %13 = arith.addf %7, %12 : vector<32x384xf32>
    %c0_12 = arith.constant 0 : index
    %c0_13 = arith.constant 0 : index
    %c0_14 = arith.constant 0 : index
    %14 = vector.load %arg7[%c0_12, %c0_13, %c0_14] : memref<2x1x384xf32, #tpu.memory_space<vmem>>, vector<1x1x384xf32>
    %15 = vector.shape_cast %14 : vector<1x1x384xf32> to vector<1x384xf32>
    %16 = vector.broadcast %15 : vector<1x384xf32> to vector<32x384xf32>
    %17 = arith.addf %13, %16 : vector<32x384xf32>
    %18 = vector.shape_cast %17 : vector<32x384xf32> to vector<4x8x384xf32>
    %19 = arith.truncf %18 : vector<4x8x384xf32> to vector<4x8x384xbf16>
    %c0_15 = arith.constant 0 : index
    %c0_16 = arith.constant 0 : index
    %c0_17 = arith.constant 0 : index
    %20 = vector.load %arg14[%c0_15, %c0_16, %c0_17] : memref<4x8x384xbf16, #tpu.memory_space<vmem>>, vector<4x8x384xbf16>
    tpu.vector_store %arg14[%c0_15, %c0_16, %c0_17], %19 {strides = array<i32>} : memref<4x8x384xbf16, #tpu.memory_space<vmem>>, vector<4x8x384xbf16>,
    %c0_18 = arith.constant 0 : index
    %c0_19 = arith.constant 0 : index
    %c0_20 = arith.constant 0 : index
    %21 = vector.load %arg3[%c0_18, %c0_19, %c0_20] : memref<4x8x128xbf16, #tpu.memory_space<vmem>>, vector<4x8x128xbf16>
    %22 = vector.shape_cast %21 : vector<4x8x128xbf16> to vector<32x128xbf16>
    %c1 = arith.constant 1 : index
    %c0_21 = arith.constant 0 : index
    %c0_22 = arith.constant 0 : index
    %23 = vector.load %arg5[%c1, %c0_21, %c0_22] : memref<2x256x384xbf16, #tpu.memory_space<vmem>>, vector<1x128x384xbf16>
    %24 = vector.shape_cast %23 : vector<1x128x384xbf16> to vector<128x384xbf16>
    %cst_23 = arith.constant dense<0.000000e+00> : vector<32x384xf32>
    %25 = tpu.matmul %22, %24, %cst_23 {dimension_numbers = #tpu.dot_dimension_numbers<[1], [0], [0], [1], [0, 0, 1, 1], [], []>} : vector<32x128xbf16>, vector<128x384xbf16>, vector<32x384xf32> -> vector<32x384xf32>
    %c0_24 = arith.constant 0 : index
    %c0_25 = arith.constant 0 : index
    %c0_26 = arith.constant 0 : index
    %26 = vector.load %arg4[%c0_24, %c0_25, %c0_26] : memref<4x8x128xbf16, #tpu.memory_space<vmem>>, vector<4x8x128xbf16>
    %27 = vector.shape_cast %26 : vector<4x8x128xbf16> to vector<32x128xbf16>
    %c1_27 = arith.constant 1 : index
    %c128_28 = arith.constant 128 : index
    %c0_29 = arith.constant 0 : index
    %28 = vector.load %arg5[%c1_27, %c128_28, %c0_29] : memref<2x256x384xbf16, #tpu.memory_space<vmem>>, vector<1x128x384xbf16>
    %29 = vector.shape_cast %28 : vector<1x128x384xbf16> to vector<128x384xbf16>
    %cst_30 = arith.constant dense<0.000000e+00> : vector<32x384xf32>
    %30 = tpu.matmul %27, %29, %cst_30 {dimension_numbers = #tpu.dot_dimension_numbers<[1], [0], [0], [1], [0, 0, 1, 1], [], []>} : vector<32x128xbf16>, vector<128x384xbf16>, vector<32x384xf32> -> vector<32x384xf32>
    %31 = arith.addf %25, %30 : vector<32x384xf32>
    %c1_31 = arith.constant 1 : index
    %c0_32 = arith.constant 0 : index
    %c0_33 = arith.constant 0 : index
    %32 = vector.load %arg7[%c1_31, %c0_32, %c0_33] : memref<2x1x384xf32, #tpu.memory_space<vmem>>, vector<1x1x384xf32>
    %33 = vector.shape_cast %32 : vector<1x1x384xf32> to vector<1x384xf32>
    %34 = vector.broadcast %33 : vector<1x384xf32> to vector<32x384xf32>
    %35 = arith.addf %31, %34 : vector<32x384xf32>
    %36 = vector.shape_cast %35 : vector<32x384xf32> to vector<4x8x384xf32>
    %37 = arith.truncf %36 : vector<4x8x384xf32> to vector<4x8x384xbf16>
    %c0_34 = arith.constant 0 : index
    %c0_35 = arith.constant 0 : index
    %c0_36 = arith.constant 0 : index
    %38 = vector.load %arg15[%c0_34, %c0_35, %c0_36] : memref<4x8x384xbf16, #tpu.memory_space<vmem>>, vector<4x8x384xbf16>
    tpu.vector_store %arg15[%c0_34, %c0_35, %c0_36], %37 {strides = array<i32>} : memref<4x8x384xbf16, #tpu.memory_space<vmem>>, vector<4x8x384xbf16>,
    %c0_37 = arith.constant 0 : index
    %c0_38 = arith.constant 0 : index
    %c0_39 = arith.constant 0 : index
    %39 = vector.load %arg8[%c0_37, %c0_38, %c0_39] : memref<2x1x128xf32, #tpu.memory_space<vmem>>, vector<1x1x128xf32>
    %40 = vector.shape_cast %39 : vector<1x1x128xf32> to vector<1x128xf32>
    %c1_40 = arith.constant 1 : index
    %c0_41 = arith.constant 0 : index
    %c0_42 = arith.constant 0 : index
    %41 = vector.load %arg8[%c1_40, %c0_41, %c0_42] : memref<2x1x128xf32, #tpu.memory_space<vmem>>, vector<1x1x128xf32>
    %42 = vector.shape_cast %41 : vector<1x1x128xf32> to vector<1x128xf32>
    %c0_43 = arith.constant 0 : index
    %c0_44 = arith.constant 0 : index
    %43 = vector.load %arg12[%c0_43, %c0_44] : memref<8x128xf32, #tpu.memory_space<vmem>>, vector<8x128xf32>
    %c0_45 = arith.constant 0 : index
    %c0_46 = arith.constant 0 : index
    %44 = vector.load %arg13[%c0_45, %c0_46] : memref<8x128xf32, #tpu.memory_space<vmem>>, vector<8x128xf32>
    %c0_i32_47 = arith.constant 0 : i32
    %c3_i32 = arith.constant 3 : i32
    %45 = arith.subi %c3_i32, %c0_i32_47 : i32
    %46 = arith.index_cast %c0_i32_47 : i32 to index
    %c0_48 = arith.constant 0 : index
    %c0_49 = arith.constant 0 : index
    %47 = vector.load %arg14[%46, %c0_48, %c0_49] : memref<4x8x384xbf16, #tpu.memory_space<vmem>>, vector<1x8x384xbf16>
    %48 = vector.shape_cast %47 : vector<1x8x384xbf16> to vector<8x384xbf16>
    %49 = arith.extf %48 : vector<8x384xbf16> to vector<8x384xf32>
    %50 = arith.index_cast %45 : i32 to index
    %c0_50 = arith.constant 0 : index
    %c0_51 = arith.constant 0 : index
    %51 = vector.load %arg15[%50, %c0_50, %c0_51] : memref<4x8x384xbf16, #tpu.memory_space<vmem>>, vector<1x8x384xbf16>
    %52 = vector.shape_cast %51 : vector<1x8x384xbf16> to vector<8x384xbf16>
    %53 = arith.extf %52 : vector<8x384xbf16> to vector<8x384xf32>
    %54 = arith.truncf %43 : vector<8x128xf32> to vector<8x128xbf16>
    %c0_52 = arith.constant 0 : index
    %c0_53 = arith.constant 0 : index
    %c0_54 = arith.constant 0 : index
    %55 = vector.load %arg6[%c0_52, %c0_53, %c0_54] : memref<2x128x384xbf16, #tpu.memory_space<vmem>>, vector<1x128x384xbf16>
    %56 = vector.shape_cast %55 : vector<1x128x384xbf16> to vector<128x384xbf16>
    %cst_55 = arith.constant dense<0.000000e+00> : vector<8x384xf32>
    %57 = tpu.matmul %54, %56, %cst_55 {dimension_numbers = #tpu.dot_dimension_numbers<[1], [0], [0], [1], [0, 0, 1, 1], [], []>} : vector<8x128xbf16>, vector<128x384xbf16>, vector<8x384xf32> -> vector<8x384xf32>
    %58 = arith.truncf %44 : vector<8x128xf32> to vector<8x128xbf16>
    %c1_56 = arith.constant 1 : index
    %c0_57 = arith.constant 0 : index
    %c0_58 = arith.constant 0 : index
    %59 = vector.load %arg6[%c1_56, %c0_57, %c0_58] : memref<2x128x384xbf16, #tpu.memory_space<vmem>>, vector<1x128x384xbf16>
    %60 = vector.shape_cast %59 : vector<1x128x384xbf16> to vector<128x384xbf16>
    %cst_59 = arith.constant dense<0.000000e+00> : vector<8x384xf32>
    %61 = tpu.matmul %58, %60, %cst_59 {dimension_numbers = #tpu.dot_dimension_numbers<[1], [0], [0], [1], [0, 0, 1, 1], [], []>} : vector<8x128xbf16>, vector<128x384xbf16>, vector<8x384xf32> -> vector<8x384xf32>
    %62 = vector.extract_strided_slice %49 {offsets = [0, 0], sizes = [8, 256], strides = [1, 1]} : vector<8x384xf32> to vector<8x256xf32>
    %63 = vector.extract_strided_slice %57 {offsets = [0, 0], sizes = [8, 256], strides = [1, 1]} : vector<8x384xf32> to vector<8x256xf32>
    %64 = arith.addf %62, %63 : vector<8x256xf32>
    %65 = arith.negf %64 : vector<8x256xf32>
    %66 = math.exp %65 : vector<8x256xf32>
    %cst_60 = arith.constant 1.000000e+00 : f32
    %67 = vector.broadcast %cst_60 : f32 to vector<8x256xf32>
    %68 = arith.addf %67, %66 : vector<8x256xf32>
    %69 = arith.divf %67, %68 : vector<8x256xf32>
    %70 = vector.extract_strided_slice %69 {offsets = [0, 0], sizes = [8, 128], strides = [1, 1]} : vector<8x256xf32> to vector<8x128xf32>
    %71 = vector.extract_strided_slice %69 {offsets = [0, 128], sizes = [8, 128], strides = [1, 1]} : vector<8x256xf32> to vector<8x128xf32>
    %72 = vector.extract_strided_slice %49 {offsets = [0, 256], sizes = [8, 128], strides = [1, 1]} : vector<8x384xf32> to vector<8x128xf32>
    %73 = vector.extract_strided_slice %57 {offsets = [0, 256], sizes = [8, 128], strides = [1, 1]} : vector<8x384xf32> to vector<8x128xf32>
    %74 = vector.broadcast %40 : vector<1x128xf32> to vector<8x128xf32>
    %75 = arith.addf %73, %74 : vector<8x128xf32>
    %76 = arith.mulf %70, %75 : vector<8x128xf32>
    %77 = arith.addf %72, %76 : vector<8x128xf32>
    %78 = math.tanh %77 : vector<8x128xf32>
    %cst_61 = arith.constant 1.000000e+00 : f32
    %79 = vector.broadcast %cst_61 : f32 to vector<8x128xf32>
    %80 = arith.subf %79, %71 : vector<8x128xf32>
    %81 = arith.mulf %80, %78 : vector<8x128xf32>
    %82 = arith.mulf %71, %43 : vector<8x128xf32>
    %83 = arith.addf %81, %82 : vector<8x128xf32>
    %84 = vector.extract_strided_slice %53 {offsets = [0, 0], sizes = [8, 256], strides = [1, 1]} : vector<8x384xf32> to vector<8x256xf32>
    %85 = vector.extract_strided_slice %61 {offsets = [0, 0], sizes = [8, 256], strides = [1, 1]} : vector<8x384xf32> to vector<8x256xf32>
    %86 = arith.addf %84, %85 : vector<8x256xf32>
    %87 = arith.negf %86 : vector<8x256xf32>
    %88 = math.exp %87 : vector<8x256xf32>
    %cst_62 = arith.constant 1.000000e+00 : f32
    %89 = vector.broadcast %cst_62 : f32 to vector<8x256xf32>
    %90 = arith.addf %89, %88 : vector<8x256xf32>
    %91 = arith.divf %89, %90 : vector<8x256xf32>
    %92 = vector.extract_strided_slice %91 {offsets = [0, 0], sizes = [8, 128], strides = [1, 1]} : vector<8x256xf32> to vector<8x128xf32>
    %93 = vector.extract_strided_slice %91 {offsets = [0, 128], sizes = [8, 128], strides = [1, 1]} : vector<8x256xf32> to vector<8x128xf32>
    %94 = vector.extract_strided_slice %53 {offsets = [0, 256], sizes = [8, 128], strides = [1, 1]} : vector<8x384xf32> to vector<8x128xf32>
    %95 = vector.extract_strided_slice %61 {offsets = [0, 256], sizes = [8, 128], strides = [1, 1]} : vector<8x384xf32> to vector<8x128xf32>
    %96 = vector.broadcast %42 : vector<1x128xf32> to vector<8x128xf32>
    %97 = arith.addf %95, %96 : vector<8x128xf32>
    %98 = arith.mulf %92, %97 : vector<8x128xf32>
    %99 = arith.addf %94, %98 : vector<8x128xf32>
    %100 = math.tanh %99 : vector<8x128xf32>
    %cst_63 = arith.constant 1.000000e+00 : f32
    %101 = vector.broadcast %cst_63 : f32 to vector<8x128xf32>
    %102 = arith.subf %101, %93 : vector<8x128xf32>
    %103 = arith.mulf %102, %100 : vector<8x128xf32>
    %104 = arith.mulf %93, %44 : vector<8x128xf32>
    %105 = arith.addf %103, %104 : vector<8x128xf32>
    %106 = arith.index_cast %c0_i32_47 : i32 to index
    %c0_64 = arith.constant 0 : index
    %c0_65 = arith.constant 0 : index
    %107 = vector.load %arg9[%106, %c0_64, %c0_65] : memref<4x8x128xf32, #tpu.memory_space<vmem>>, vector<1x8x128xf32>
    %108 = vector.shape_cast %107 : vector<1x8x128xf32> to vector<8x128xf32>
    %109 = vector.shape_cast %83 : vector<8x128xf32> to vector<1x8x128xf32>
    tpu.vector_store %arg9[%106, %c0_64, %c0_65], %109 {strides = array<i32>} : memref<4x8x128xf32, #tpu.memory_space<vmem>>, vector<1x8x128xf32>,
    %110 = arith.index_cast %45 : i32 to index
    %c0_66 = arith.constant 0 : index
    %c0_67 = arith.constant 0 : index
    %111 = vector.load %arg10[%110, %c0_66, %c0_67] : memref<4x8x128xf32, #tpu.memory_space<vmem>>, vector<1x8x128xf32>
    %112 = vector.shape_cast %111 : vector<1x8x128xf32> to vector<8x128xf32>
    %113 = vector.shape_cast %105 : vector<8x128xf32> to vector<1x8x128xf32>
    tpu.vector_store %arg10[%110, %c0_66, %c0_67], %113 {strides = array<i32>} : memref<4x8x128xf32, #tpu.memory_space<vmem>>, vector<1x8x128xf32>,
    %c1_i32 = arith.constant 1 : i32
    %c3_i32_68 = arith.constant 3 : i32
    %114 = arith.subi %c3_i32_68, %c1_i32 : i32
    %115 = arith.index_cast %c1_i32 : i32 to index
    %c0_69 = arith.constant 0 : index
    %c0_70 = arith.constant 0 : index
    %116 = vector.load %arg14[%115, %c0_69, %c0_70] : memref<4x8x384xbf16, #tpu.memory_space<vmem>>, vector<1x8x384xbf16>
    %117 = vector.shape_cast %116 : vector<1x8x384xbf16> to vector<8x384xbf16>
    %118 = arith.extf %117 : vector<8x384xbf16> to vector<8x384xf32>
    %119 = arith.index_cast %114 : i32 to index
    %c0_71 = arith.constant 0 : index
    %c0_72 = arith.constant 0 : index
    %120 = vector.load %arg15[%119, %c0_71, %c0_72] : memref<4x8x384xbf16, #tpu.memory_space<vmem>>, vector<1x8x384xbf16>
    %121 = vector.shape_cast %120 : vector<1x8x384xbf16> to vector<8x384xbf16>
    %122 = arith.extf %121 : vector<8x384xbf16> to vector<8x384xf32>
    %123 = arith.truncf %83 : vector<8x128xf32> to vector<8x128xbf16>
    %c0_73 = arith.constant 0 : index
    %c0_74 = arith.constant 0 : index
    %c0_75 = arith.constant 0 : index
    %124 = vector.load %arg6[%c0_73, %c0_74, %c0_75] : memref<2x128x384xbf16, #tpu.memory_space<vmem>>, vector<1x128x384xbf16>
    %125 = vector.shape_cast %124 : vector<1x128x384xbf16> to vector<128x384xbf16>
    %cst_76 = arith.constant dense<0.000000e+00> : vector<8x384xf32>
    %126 = tpu.matmul %123, %125, %cst_76 {dimension_numbers = #tpu.dot_dimension_numbers<[1], [0], [0], [1], [0, 0, 1, 1], [], []>} : vector<8x128xbf16>, vector<128x384xbf16>, vector<8x384xf32> -> vector<8x384xf32>
    %127 = arith.truncf %105 : vector<8x128xf32> to vector<8x128xbf16>
    %c1_77 = arith.constant 1 : index
    %c0_78 = arith.constant 0 : index
    %c0_79 = arith.constant 0 : index
    %128 = vector.load %arg6[%c1_77, %c0_78, %c0_79] : memref<2x128x384xbf16, #tpu.memory_space<vmem>>, vector<1x128x384xbf16>
    %129 = vector.shape_cast %128 : vector<1x128x384xbf16> to vector<128x384xbf16>
    %cst_80 = arith.constant dense<0.000000e+00> : vector<8x384xf32>
    %130 = tpu.matmul %127, %129, %cst_80 {dimension_numbers = #tpu.dot_dimension_numbers<[1], [0], [0], [1], [0, 0, 1, 1], [], []>} : vector<8x128xbf16>, vector<128x384xbf16>, vector<8x384xf32> -> vector<8x384xf32>
    %131 = vector.extract_strided_slice %118 {offsets = [0, 0], sizes = [8, 256], strides = [1, 1]} : vector<8x384xf32> to vector<8x256xf32>
    %132 = vector.extract_strided_slice %126 {offsets = [0, 0], sizes = [8, 256], strides = [1, 1]} : vector<8x384xf32> to vector<8x256xf32>
    %133 = arith.addf %131, %132 : vector<8x256xf32>
    %134 = arith.negf %133 : vector<8x256xf32>
    %135 = math.exp %134 : vector<8x256xf32>
    %cst_81 = arith.constant 1.000000e+00 : f32
    %136 = vector.broadcast %cst_81 : f32 to vector<8x256xf32>
    %137 = arith.addf %136, %135 : vector<8x256xf32>
    %138 = arith.divf %136, %137 : vector<8x256xf32>
    %139 = vector.extract_strided_slice %138 {offsets = [0, 0], sizes = [8, 128], strides = [1, 1]} : vector<8x256xf32> to vector<8x128xf32>
    %140 = vector.extract_strided_slice %138 {offsets = [0, 128], sizes = [8, 128], strides = [1, 1]} : vector<8x256xf32> to vector<8x128xf32>
    %141 = vector.extract_strided_slice %118 {offsets = [0, 256], sizes = [8, 128], strides = [1, 1]} : vector<8x384xf32> to vector<8x128xf32>
    %142 = vector.extract_strided_slice %126 {offsets = [0, 256], sizes = [8, 128], strides = [1, 1]} : vector<8x384xf32> to vector<8x128xf32>
    %143 = vector.broadcast %40 : vector<1x128xf32> to vector<8x128xf32>
    %144 = arith.addf %142, %143 : vector<8x128xf32>
    %145 = arith.mulf %139, %144 : vector<8x128xf32>
    %146 = arith.addf %141, %145 : vector<8x128xf32>
    %147 = math.tanh %146 : vector<8x128xf32>
    %cst_82 = arith.constant 1.000000e+00 : f32
    %148 = vector.broadcast %cst_82 : f32 to vector<8x128xf32>
    %149 = arith.subf %148, %140 : vector<8x128xf32>
    %150 = arith.mulf %149, %147 : vector<8x128xf32>
    %151 = arith.mulf %140, %83 : vector<8x128xf32>
    %152 = arith.addf %150, %151 : vector<8x128xf32>
    %153 = vector.extract_strided_slice %122 {offsets = [0, 0], sizes = [8, 256], strides = [1, 1]} : vector<8x384xf32> to vector<8x256xf32>
    %154 = vector.extract_strided_slice %130 {offsets = [0, 0], sizes = [8, 256], strides = [1, 1]} : vector<8x384xf32> to vector<8x256xf32>
    %155 = arith.addf %153, %154 : vector<8x256xf32>
    %156 = arith.negf %155 : vector<8x256xf32>
    %157 = math.exp %156 : vector<8x256xf32>
    %cst_83 = arith.constant 1.000000e+00 : f32
    %158 = vector.broadcast %cst_83 : f32 to vector<8x256xf32>
    %159 = arith.addf %158, %157 : vector<8x256xf32>
    %160 = arith.divf %158, %159 : vector<8x256xf32>
    %161 = vector.extract_strided_slice %160 {offsets = [0, 0], sizes = [8, 128], strides = [1, 1]} : vector<8x256xf32> to vector<8x128xf32>
    %162 = vector.extract_strided_slice %160 {offsets = [0, 128], sizes = [8, 128], strides = [1, 1]} : vector<8x256xf32> to vector<8x128xf32>
    %163 = vector.extract_strided_slice %122 {offsets = [0, 256], sizes = [8, 128], strides = [1, 1]} : vector<8x384xf32> to vector<8x128xf32>
    %164 = vector.extract_strided_slice %130 {offsets = [0, 256], sizes = [8, 128], strides = [1, 1]} : vector<8x384xf32> to vector<8x128xf32>
    %165 = vector.broadcast %42 : vector<1x128xf32> to vector<8x128xf32>
    %166 = arith.addf %164, %165 : vector<8x128xf32>
    %167 = arith.mulf %161, %166 : vector<8x128xf32>
    %168 = arith.addf %163, %167 : vector<8x128xf32>
    %169 = math.tanh %168 : vector<8x128xf32>
    %cst_84 = arith.constant 1.000000e+00 : f32
    %170 = vector.broadcast %cst_84 : f32 to vector<8x128xf32>
    %171 = arith.subf %170, %162 : vector<8x128xf32>
    %172 = arith.mulf %171, %169 : vector<8x128xf32>
    %173 = arith.mulf %162, %105 : vector<8x128xf32>
    %174 = arith.addf %172, %173 : vector<8x128xf32>
    %175 = arith.index_cast %c1_i32 : i32 to index
    %c0_85 = arith.constant 0 : index
    %c0_86 = arith.constant 0 : index
    %176 = vector.load %arg9[%175, %c0_85, %c0_86] : memref<4x8x128xf32, #tpu.memory_space<vmem>>, vector<1x8x128xf32>
    %177 = vector.shape_cast %176 : vector<1x8x128xf32> to vector<8x128xf32>
    %178 = vector.shape_cast %152 : vector<8x128xf32> to vector<1x8x128xf32>
    tpu.vector_store %arg9[%175, %c0_85, %c0_86], %178 {strides = array<i32>} : memref<4x8x128xf32, #tpu.memory_space<vmem>>, vector<1x8x128xf32>,
    %179 = arith.index_cast %114 : i32 to index
    %c0_87 = arith.constant 0 : index
    %c0_88 = arith.constant 0 : index
    %180 = vector.load %arg10[%179, %c0_87, %c0_88] : memref<4x8x128xf32, #tpu.memory_space<vmem>>, vector<1x8x128xf32>
    %181 = vector.shape_cast %180 : vector<1x8x128xf32> to vector<8x128xf32>
    %182 = vector.shape_cast %174 : vector<8x128xf32> to vector<1x8x128xf32>
    tpu.vector_store %arg10[%179, %c0_87, %c0_88], %182 {strides = array<i32>} : memref<4x8x128xf32, #tpu.memory_space<vmem>>, vector<1x8x128xf32>,
    %c2_i32 = arith.constant 2 : i32
    %c3_i32_89 = arith.constant 3 : i32
    %183 = arith.subi %c3_i32_89, %c2_i32 : i32
    %184 = arith.index_cast %c2_i32 : i32 to index
    %c0_90 = arith.constant 0 : index
    %c0_91 = arith.constant 0 : index
    %185 = vector.load %arg14[%184, %c0_90, %c0_91] : memref<4x8x384xbf16, #tpu.memory_space<vmem>>, vector<1x8x384xbf16>
    %186 = vector.shape_cast %185 : vector<1x8x384xbf16> to vector<8x384xbf16>
    %187 = arith.extf %186 : vector<8x384xbf16> to vector<8x384xf32>
    %188 = arith.index_cast %183 : i32 to index
    %c0_92 = arith.constant 0 : index
    %c0_93 = arith.constant 0 : index
    %189 = vector.load %arg15[%188, %c0_92, %c0_93] : memref<4x8x384xbf16, #tpu.memory_space<vmem>>, vector<1x8x384xbf16>
    %190 = vector.shape_cast %189 : vector<1x8x384xbf16> to vector<8x384xbf16>
    %191 = arith.extf %190 : vector<8x384xbf16> to vector<8x384xf32>
    %192 = arith.truncf %152 : vector<8x128xf32> to vector<8x128xbf16>
    %c0_94 = arith.constant 0 : index
    %c0_95 = arith.constant 0 : index
    %c0_96 = arith.constant 0 : index
    %193 = vector.load %arg6[%c0_94, %c0_95, %c0_96] : memref<2x128x384xbf16, #tpu.memory_space<vmem>>, vector<1x128x384xbf16>
    %194 = vector.shape_cast %193 : vector<1x128x384xbf16> to vector<128x384xbf16>
    %cst_97 = arith.constant dense<0.000000e+00> : vector<8x384xf32>
    %195 = tpu.matmul %192, %194, %cst_97 {dimension_numbers = #tpu.dot_dimension_numbers<[1], [0], [0], [1], [0, 0, 1, 1], [], []>} : vector<8x128xbf16>, vector<128x384xbf16>, vector<8x384xf32> -> vector<8x384xf32>
    %196 = arith.truncf %174 : vector<8x128xf32> to vector<8x128xbf16>
    %c1_98 = arith.constant 1 : index
    %c0_99 = arith.constant 0 : index
    %c0_100 = arith.constant 0 : index
    %197 = vector.load %arg6[%c1_98, %c0_99, %c0_100] : memref<2x128x384xbf16, #tpu.memory_space<vmem>>, vector<1x128x384xbf16>
    %198 = vector.shape_cast %197 : vector<1x128x384xbf16> to vector<128x384xbf16>
    %cst_101 = arith.constant dense<0.000000e+00> : vector<8x384xf32>
    %199 = tpu.matmul %196, %198, %cst_101 {dimension_numbers = #tpu.dot_dimension_numbers<[1], [0], [0], [1], [0, 0, 1, 1], [], []>} : vector<8x128xbf16>, vector<128x384xbf16>, vector<8x384xf32> -> vector<8x384xf32>
    %200 = vector.extract_strided_slice %187 {offsets = [0, 0], sizes = [8, 256], strides = [1, 1]} : vector<8x384xf32> to vector<8x256xf32>
    %201 = vector.extract_strided_slice %195 {offsets = [0, 0], sizes = [8, 256], strides = [1, 1]} : vector<8x384xf32> to vector<8x256xf32>
    %202 = arith.addf %200, %201 : vector<8x256xf32>
    %203 = arith.negf %202 : vector<8x256xf32>
    %204 = math.exp %203 : vector<8x256xf32>
    %cst_102 = arith.constant 1.000000e+00 : f32
    %205 = vector.broadcast %cst_102 : f32 to vector<8x256xf32>
    %206 = arith.addf %205, %204 : vector<8x256xf32>
    %207 = arith.divf %205, %206 : vector<8x256xf32>
    %208 = vector.extract_strided_slice %207 {offsets = [0, 0], sizes = [8, 128], strides = [1, 1]} : vector<8x256xf32> to vector<8x128xf32>
    %209 = vector.extract_strided_slice %207 {offsets = [0, 128], sizes = [8, 128], strides = [1, 1]} : vector<8x256xf32> to vector<8x128xf32>
    %210 = vector.extract_strided_slice %187 {offsets = [0, 256], sizes = [8, 128], strides = [1, 1]} : vector<8x384xf32> to vector<8x128xf32>
    %211 = vector.extract_strided_slice %195 {offsets = [0, 256], sizes = [8, 128], strides = [1, 1]} : vector<8x384xf32> to vector<8x128xf32>
    %212 = vector.broadcast %40 : vector<1x128xf32> to vector<8x128xf32>
    %213 = arith.addf %211, %212 : vector<8x128xf32>
    %214 = arith.mulf %208, %213 : vector<8x128xf32>
    %215 = arith.addf %210, %214 : vector<8x128xf32>
    %216 = math.tanh %215 : vector<8x128xf32>
    %cst_103 = arith.constant 1.000000e+00 : f32
    %217 = vector.broadcast %cst_103 : f32 to vector<8x128xf32>
    %218 = arith.subf %217, %209 : vector<8x128xf32>
    %219 = arith.mulf %218, %216 : vector<8x128xf32>
    %220 = arith.mulf %209, %152 : vector<8x128xf32>
    %221 = arith.addf %219, %220 : vector<8x128xf32>
    %222 = vector.extract_strided_slice %191 {offsets = [0, 0], sizes = [8, 256], strides = [1, 1]} : vector<8x384xf32> to vector<8x256xf32>
    %223 = vector.extract_strided_slice %199 {offsets = [0, 0], sizes = [8, 256], strides = [1, 1]} : vector<8x384xf32> to vector<8x256xf32>
    %224 = arith.addf %222, %223 : vector<8x256xf32>
    %225 = arith.negf %224 : vector<8x256xf32>
    %226 = math.exp %225 : vector<8x256xf32>
    %cst_104 = arith.constant 1.000000e+00 : f32
    %227 = vector.broadcast %cst_104 : f32 to vector<8x256xf32>
    %228 = arith.addf %227, %226 : vector<8x256xf32>
    %229 = arith.divf %227, %228 : vector<8x256xf32>
    %230 = vector.extract_strided_slice %229 {offsets = [0, 0], sizes = [8, 128], strides = [1, 1]} : vector<8x256xf32> to vector<8x128xf32>
    %231 = vector.extract_strided_slice %229 {offsets = [0, 128], sizes = [8, 128], strides = [1, 1]} : vector<8x256xf32> to vector<8x128xf32>
    %232 = vector.extract_strided_slice %191 {offsets = [0, 256], sizes = [8, 128], strides = [1, 1]} : vector<8x384xf32> to vector<8x128xf32>
    %233 = vector.extract_strided_slice %199 {offsets = [0, 256], sizes = [8, 128], strides = [1, 1]} : vector<8x384xf32> to vector<8x128xf32>
    %234 = vector.broadcast %42 : vector<1x128xf32> to vector<8x128xf32>
    %235 = arith.addf %233, %234 : vector<8x128xf32>
    %236 = arith.mulf %230, %235 : vector<8x128xf32>
    %237 = arith.addf %232, %236 : vector<8x128xf32>
    %238 = math.tanh %237 : vector<8x128xf32>
    %cst_105 = arith.constant 1.000000e+00 : f32
    %239 = vector.broadcast %cst_105 : f32 to vector<8x128xf32>
    %240 = arith.subf %239, %231 : vector<8x128xf32>
    %241 = arith.mulf %240, %238 : vector<8x128xf32>
    %242 = arith.mulf %231, %174 : vector<8x128xf32>
    %243 = arith.addf %241, %242 : vector<8x128xf32>
    %244 = arith.index_cast %c2_i32 : i32 to index
    %c0_106 = arith.constant 0 : index
    %c0_107 = arith.constant 0 : index
    %245 = vector.load %arg9[%244, %c0_106, %c0_107] : memref<4x8x128xf32, #tpu.memory_space<vmem>>, vector<1x8x128xf32>
    %246 = vector.shape_cast %245 : vector<1x8x128xf32> to vector<8x128xf32>
    %247 = vector.shape_cast %221 : vector<8x128xf32> to vector<1x8x128xf32>
    tpu.vector_store %arg9[%244, %c0_106, %c0_107], %247 {strides = array<i32>} : memref<4x8x128xf32, #tpu.memory_space<vmem>>, vector<1x8x128xf32>,
    %248 = arith.index_cast %183 : i32 to index
    %c0_108 = arith.constant 0 : index
    %c0_109 = arith.constant 0 : index
    %249 = vector.load %arg10[%248, %c0_108, %c0_109] : memref<4x8x128xf32, #tpu.memory_space<vmem>>, vector<1x8x128xf32>
    %250 = vector.shape_cast %249 : vector<1x8x128xf32> to vector<8x128xf32>
    %251 = vector.shape_cast %243 : vector<8x128xf32> to vector<1x8x128xf32>
    tpu.vector_store %arg10[%248, %c0_108, %c0_109], %251 {strides = array<i32>} : memref<4x8x128xf32, #tpu.memory_space<vmem>>, vector<1x8x128xf32>,
    %c3_i32_110 = arith.constant 3 : i32
    %c3_i32_111 = arith.constant 3 : i32
    %252 = arith.subi %c3_i32_111, %c3_i32_110 : i32
    %253 = arith.index_cast %c3_i32_110 : i32 to index
    %c0_112 = arith.constant 0 : index
    %c0_113 = arith.constant 0 : index
    %254 = vector.load %arg14[%253, %c0_112, %c0_113] : memref<4x8x384xbf16, #tpu.memory_space<vmem>>, vector<1x8x384xbf16>
    %255 = vector.shape_cast %254 : vector<1x8x384xbf16> to vector<8x384xbf16>
    %256 = arith.extf %255 : vector<8x384xbf16> to vector<8x384xf32>
    %257 = arith.index_cast %252 : i32 to index
    %c0_114 = arith.constant 0 : index
    %c0_115 = arith.constant 0 : index
    %258 = vector.load %arg15[%257, %c0_114, %c0_115] : memref<4x8x384xbf16, #tpu.memory_space<vmem>>, vector<1x8x384xbf16>
    %259 = vector.shape_cast %258 : vector<1x8x384xbf16> to vector<8x384xbf16>
    %260 = arith.extf %259 : vector<8x384xbf16> to vector<8x384xf32>
    %261 = arith.truncf %221 : vector<8x128xf32> to vector<8x128xbf16>
    %c0_116 = arith.constant 0 : index
    %c0_117 = arith.constant 0 : index
    %c0_118 = arith.constant 0 : index
    %262 = vector.load %arg6[%c0_116, %c0_117, %c0_118] : memref<2x128x384xbf16, #tpu.memory_space<vmem>>, vector<1x128x384xbf16>
    %263 = vector.shape_cast %262 : vector<1x128x384xbf16> to vector<128x384xbf16>
    %cst_119 = arith.constant dense<0.000000e+00> : vector<8x384xf32>
    %264 = tpu.matmul %261, %263, %cst_119 {dimension_numbers = #tpu.dot_dimension_numbers<[1], [0], [0], [1], [0, 0, 1, 1], [], []>} : vector<8x128xbf16>, vector<128x384xbf16>, vector<8x384xf32> -> vector<8x384xf32>
    %265 = arith.truncf %243 : vector<8x128xf32> to vector<8x128xbf16>
    %c1_120 = arith.constant 1 : index
    %c0_121 = arith.constant 0 : index
    %c0_122 = arith.constant 0 : index
    %266 = vector.load %arg6[%c1_120, %c0_121, %c0_122] : memref<2x128x384xbf16, #tpu.memory_space<vmem>>, vector<1x128x384xbf16>
    %267 = vector.shape_cast %266 : vector<1x128x384xbf16> to vector<128x384xbf16>
    %cst_123 = arith.constant dense<0.000000e+00> : vector<8x384xf32>
    %268 = tpu.matmul %265, %267, %cst_123 {dimension_numbers = #tpu.dot_dimension_numbers<[1], [0], [0], [1], [0, 0, 1, 1], [], []>} : vector<8x128xbf16>, vector<128x384xbf16>, vector<8x384xf32> -> vector<8x384xf32>
    %269 = vector.extract_strided_slice %256 {offsets = [0, 0], sizes = [8, 256], strides = [1, 1]} : vector<8x384xf32> to vector<8x256xf32>
    %270 = vector.extract_strided_slice %264 {offsets = [0, 0], sizes = [8, 256], strides = [1, 1]} : vector<8x384xf32> to vector<8x256xf32>
    %271 = arith.addf %269, %270 : vector<8x256xf32>
    %272 = arith.negf %271 : vector<8x256xf32>
    %273 = math.exp %272 : vector<8x256xf32>
    %cst_124 = arith.constant 1.000000e+00 : f32
    %274 = vector.broadcast %cst_124 : f32 to vector<8x256xf32>
    %275 = arith.addf %274, %273 : vector<8x256xf32>
    %276 = arith.divf %274, %275 : vector<8x256xf32>
    %277 = vector.extract_strided_slice %276 {offsets = [0, 0], sizes = [8, 128], strides = [1, 1]} : vector<8x256xf32> to vector<8x128xf32>
    %278 = vector.extract_strided_slice %276 {offsets = [0, 128], sizes = [8, 128], strides = [1, 1]} : vector<8x256xf32> to vector<8x128xf32>
    %279 = vector.extract_strided_slice %256 {offsets = [0, 256], sizes = [8, 128], strides = [1, 1]} : vector<8x384xf32> to vector<8x128xf32>
    %280 = vector.extract_strided_slice %264 {offsets = [0, 256], sizes = [8, 128], strides = [1, 1]} : vector<8x384xf32> to vector<8x128xf32>
    %281 = vector.broadcast %40 : vector<1x128xf32> to vector<8x128xf32>
    %282 = arith.addf %280, %281 : vector<8x128xf32>
    %283 = arith.mulf %277, %282 : vector<8x128xf32>
    %284 = arith.addf %279, %283 : vector<8x128xf32>
    %285 = math.tanh %284 : vector<8x128xf32>
    %cst_125 = arith.constant 1.000000e+00 : f32
    %286 = vector.broadcast %cst_125 : f32 to vector<8x128xf32>
    %287 = arith.subf %286, %278 : vector<8x128xf32>
    %288 = arith.mulf %287, %285 : vector<8x128xf32>
    %289 = arith.mulf %278, %221 : vector<8x128xf32>
    %290 = arith.addf %288, %289 : vector<8x128xf32>
    %291 = vector.extract_strided_slice %260 {offsets = [0, 0], sizes = [8, 256], strides = [1, 1]} : vector<8x384xf32> to vector<8x256xf32>
    %292 = vector.extract_strided_slice %268 {offsets = [0, 0], sizes = [8, 256], strides = [1, 1]} : vector<8x384xf32> to vector<8x256xf32>
    %293 = arith.addf %291, %292 : vector<8x256xf32>
    %294 = arith.negf %293 : vector<8x256xf32>
    %295 = math.exp %294 : vector<8x256xf32>
    %cst_126 = arith.constant 1.000000e+00 : f32
    %296 = vector.broadcast %cst_126 : f32 to vector<8x256xf32>
    %297 = arith.addf %296, %295 : vector<8x256xf32>
    %298 = arith.divf %296, %297 : vector<8x256xf32>
    %299 = vector.extract_strided_slice %298 {offsets = [0, 0], sizes = [8, 128], strides = [1, 1]} : vector<8x256xf32> to vector<8x128xf32>
    %300 = vector.extract_strided_slice %298 {offsets = [0, 128], sizes = [8, 128], strides = [1, 1]} : vector<8x256xf32> to vector<8x128xf32>
    %301 = vector.extract_strided_slice %260 {offsets = [0, 256], sizes = [8, 128], strides = [1, 1]} : vector<8x384xf32> to vector<8x128xf32>
    %302 = vector.extract_strided_slice %268 {offsets = [0, 256], sizes = [8, 128], strides = [1, 1]} : vector<8x384xf32> to vector<8x128xf32>
    %303 = vector.broadcast %42 : vector<1x128xf32> to vector<8x128xf32>
    %304 = arith.addf %302, %303 : vector<8x128xf32>
    %305 = arith.mulf %299, %304 : vector<8x128xf32>
    %306 = arith.addf %301, %305 : vector<8x128xf32>
    %307 = math.tanh %306 : vector<8x128xf32>
    %cst_127 = arith.constant 1.000000e+00 : f32
    %308 = vector.broadcast %cst_127 : f32 to vector<8x128xf32>
    %309 = arith.subf %308, %300 : vector<8x128xf32>
    %310 = arith.mulf %309, %307 : vector<8x128xf32>
    %311 = arith.mulf %300, %243 : vector<8x128xf32>
    %312 = arith.addf %310, %311 : vector<8x128xf32>
    %313 = arith.index_cast %c3_i32_110 : i32 to index
    %c0_128 = arith.constant 0 : index
    %c0_129 = arith.constant 0 : index
    %314 = vector.load %arg9[%313, %c0_128, %c0_129] : memref<4x8x128xf32, #tpu.memory_space<vmem>>, vector<1x8x128xf32>
    %315 = vector.shape_cast %314 : vector<1x8x128xf32> to vector<8x128xf32>
    %316 = vector.shape_cast %290 : vector<8x128xf32> to vector<1x8x128xf32>
    tpu.vector_store %arg9[%313, %c0_128, %c0_129], %316 {strides = array<i32>} : memref<4x8x128xf32, #tpu.memory_space<vmem>>, vector<1x8x128xf32>,
    %317 = arith.index_cast %252 : i32 to index
    %c0_130 = arith.constant 0 : index
    %c0_131 = arith.constant 0 : index
    %318 = vector.load %arg10[%317, %c0_130, %c0_131] : memref<4x8x128xf32, #tpu.memory_space<vmem>>, vector<1x8x128xf32>
    %319 = vector.shape_cast %318 : vector<1x8x128xf32> to vector<8x128xf32>
    %320 = vector.shape_cast %312 : vector<8x128xf32> to vector<1x8x128xf32>
    tpu.vector_store %arg10[%317, %c0_130, %c0_131], %320 {strides = array<i32>} : memref<4x8x128xf32, #tpu.memory_space<vmem>>, vector<1x8x128xf32>,
    %c4_i32 = arith.constant 4 : i32
    %c0_132 = arith.constant 0 : index
    %c0_133 = arith.constant 0 : index
    %321 = vector.load %arg12[%c0_132, %c0_133] : memref<8x128xf32, #tpu.memory_space<vmem>>, vector<8x128xf32>
    tpu.vector_store %arg12[%c0_132, %c0_133], %290 {strides = array<i32>} : memref<8x128xf32, #tpu.memory_space<vmem>>, vector<8x128xf32>,
    %c0_134 = arith.constant 0 : index
    %c0_135 = arith.constant 0 : index
    %322 = vector.load %arg13[%c0_134, %c0_135] : memref<8x128xf32, #tpu.memory_space<vmem>>, vector<8x128xf32>
    tpu.vector_store %arg13[%c0_134, %c0_135], %312 {strides = array<i32>} : memref<8x128xf32, #tpu.memory_space<vmem>>, vector<8x128xf32>,
    %c0_136 = arith.constant 0 : index
    %c0_137 = arith.constant 0 : index
    %c0_138 = arith.constant 0 : index
    %323 = vector.load %arg11[%c0_136, %c0_137, %c0_138] : memref<2x8x128xf32, #tpu.memory_space<vmem>>, vector<1x8x128xf32>
    %324 = vector.shape_cast %323 : vector<1x8x128xf32> to vector<8x128xf32>
    %325 = vector.shape_cast %290 : vector<8x128xf32> to vector<1x8x128xf32>
    tpu.vector_store %arg11[%c0_136, %c0_137, %c0_138], %325 {strides = array<i32>} : memref<2x8x128xf32, #tpu.memory_space<vmem>>, vector<1x8x128xf32>,
    %c1_139 = arith.constant 1 : index
    %c0_140 = arith.constant 0 : index
    %c0_141 = arith.constant 0 : index
    %326 = vector.load %arg11[%c1_139, %c0_140, %c0_141] : memref<2x8x128xf32, #tpu.memory_space<vmem>>, vector<1x8x128xf32>
    %327 = vector.shape_cast %326 : vector<1x8x128xf32> to vector<8x128xf32>
    %328 = vector.shape_cast %312 : vector<8x128xf32> to vector<1x8x128xf32>
    tpu.vector_store %arg11[%c1_139, %c0_140, %c0_141], %328 {strides = array<i32>} : memref<2x8x128xf32, #tpu.memory_space<vmem>>, vector<1x8x128xf32>,
    return
  }
  func.func @transform_0(%arg0: i32) -> (i32, i32, i32) {
    %c0_i32 = arith.constant 0 : i32
    %c0_i32_0 = arith.constant 0 : i32
    %c0_i32_1 = arith.constant 0 : i32
    return %arg0, %c0_i32, %c0_i32_0 : i32, i32, i32
  }
  func.func @transform_1(%arg0: i32) -> (i32, i32, i32) {
    %c0_i32 = arith.constant 0 : i32
    %c0_i32_0 = arith.constant 0 : i32
    %c0_i32_1 = arith.constant 0 : i32
    return %arg0, %c0_i32, %c0_i32_0 : i32, i32, i32
  }
  func.func @transform_2(%arg0: i32) -> (i32, i32, i32) {
    %c1_i32 = arith.constant 1 : i32
    %0 = arith.subi %c1_i32, %arg0 : i32
    %c0_i32 = arith.constant 0 : i32
    %c0_i32_0 = arith.constant 0 : i32
    %c0_i32_1 = arith.constant 0 : i32
    return %0, %c0_i32, %c0_i32_0 : i32, i32, i32
  }
  func.func @transform_3(%arg0: i32) -> (i32, i32, i32) {
    %c1_i32 = arith.constant 1 : i32
    %0 = arith.subi %c1_i32, %arg0 : i32
    %c0_i32 = arith.constant 0 : i32
    %c0_i32_0 = arith.constant 0 : i32
    %c0_i32_1 = arith.constant 0 : i32
    return %0, %c0_i32, %c0_i32_0 : i32, i32, i32
  }
  func.func @transform_4(%arg0: i32) -> (i32, i32, i32) {
    %c0_i32 = arith.constant 0 : i32
    %c0_i32_0 = arith.constant 0 : i32
    %c0_i32_1 = arith.constant 0 : i32
    %c0_i32_2 = arith.constant 0 : i32
    return %c0_i32, %c0_i32_0, %c0_i32_1 : i32, i32, i32
  }
  func.func @transform_5(%arg0: i32) -> (i32, i32, i32) {
    %c0_i32 = arith.constant 0 : i32
    %c0_i32_0 = arith.constant 0 : i32
    %c0_i32_1 = arith.constant 0 : i32
    %c0_i32_2 = arith.constant 0 : i32
    return %c0_i32, %c0_i32_0, %c0_i32_1 : i32, i32, i32
  }
  func.func @transform_6(%arg0: i32) -> (i32, i32, i32) {
    %c0_i32 = arith.constant 0 : i32
    %c0_i32_0 = arith.constant 0 : i32
    %c0_i32_1 = arith.constant 0 : i32
    %c0_i32_2 = arith.constant 0 : i32
    return %c0_i32, %c0_i32_0, %c0_i32_1 : i32, i32, i32
  }
  func.func @transform_7(%arg0: i32) -> (i32, i32, i32) {
    %c0_i32 = arith.constant 0 : i32
    %c0_i32_0 = arith.constant 0 : i32
    %c0_i32_1 = arith.constant 0 : i32
    %c0_i32_2 = arith.constant 0 : i32
    return %c0_i32, %c0_i32_0, %c0_i32_1 : i32, i32, i32
  }
  func.func @transform_8(%arg0: i32) -> (i32, i32, i32) {
    %c0_i32 = arith.constant 0 : i32
    %c0_i32_0 = arith.constant 0 : i32
    %c0_i32_1 = arith.constant 0 : i32
    return %arg0, %c0_i32, %c0_i32_0 : i32, i32, i32
  }
  func.func @transform_9(%arg0: i32) -> (i32, i32, i32) {
    %c1_i32 = arith.constant 1 : i32
    %0 = arith.subi %c1_i32, %arg0 : i32
    %c0_i32 = arith.constant 0 : i32
    %c0_i32_0 = arith.constant 0 : i32
    %c0_i32_1 = arith.constant 0 : i32
    return %0, %c0_i32, %c0_i32_0 : i32, i32, i32
  }
  func.func @transform_10(%arg0: i32) -> (i32, i32, i32) {
    %c0_i32 = arith.constant 0 : i32
    %c0_i32_0 = arith.constant 0 : i32
    %c0_i32_1 = arith.constant 0 : i32
    %c0_i32_2 = arith.constant 0 : i32
    return %c0_i32, %c0_i32_0, %c0_i32_1 : i32, i32, i32
  }
}

</mosaic_0001>

<llo_original>
// kernel: encoder_rnn_forward.2
$region0: #{encoder_rnn_forward.2}
  #allocation0 [shape = 'u32[]', space=smem, size = 0x4, offset = 0x4, fixed_abs, tag = 'smem constant byte address 0x4 - core index']
  #allocation1 [shape = 'u32[144,128]{1,0:T(1,128)}', space=vmem, size = 0x12000, scoped, tag = 'internal scratch']
  #allocation2 [shape = 'f32[8,128]{1,0:T(8,128)}', space=vmem, size = 0x1000, scoped, tag = 'scratch operand']
  #allocation3 [shape = 'f32[8,128]{1,0:T(8,128)}', space=vmem, size = 0x1000, scoped, tag = 'scratch operand']
  #allocation4 [shape = 'bf16[4,8,384]{2,1,0:T(8,128)(2,1)}', space=vmem, size = 0x6000, scoped, tag = 'scratch operand']
  #allocation5 [shape = 'bf16[4,8,384]{2,1,0:T(8,128)(2,1)}', space=vmem, size = 0x6000, scoped, tag = 'scratch operand']
  %s0 = inlined_call_operand.vmem [shape: bf16[8,8,128], index: 0, kind: input, shape index: {}, may-alias: {0,1}]
  %s1 = inlined_call_operand.vmem [shape: bf16[8,8,128], index: 1, kind: input, shape index: {}, may-alias: {0,1}]
  %s2 = inlined_call_operand.hbm [shape: bf16[2,128,384], index: 2, kind: input, shape index: {}]
  %s3 = inlined_call_operand.hbm [shape: bf16[2,128,384], index: 3, kind: input, shape index: {}]
  %s4 = inlined_call_operand.hbm [shape: f32[2,1,384], index: 4, kind: input, shape index: {}]
  %s5 = inlined_call_operand.hbm [shape: f32[2,1,128], index: 5, kind: input, shape index: {}]
  %s6 = inlined_call_operand.vmem [shape: bf16[8,8,128], index: 6, kind: output, shape index: {0}]
  %s7 = inlined_call_operand.vmem [shape: bf16[8,8,128], index: 7, kind: output, shape index: {1}]
  %s8 = inlined_call_operand.vmem [shape: f32[2,8,128], index: 8, kind: output, shape index: {2}]
  %9 = xla_tuple %s6, %s7, %s8
  %s10 = sld [smem:[#allocation0]]
  $region93: #{encoder_rnn_forward.2} parent=0
    _
  %s12 = ssub.s32 1, %s10
  %s13 = scalar_select 0, %s12, %s10
  $region1: #{encoder_rnn_forward.2} parent=0
    #allocation6 [shape = 'u8[196608]{0}', space=vmem, size = 0x30000, scoped, tag = 'input window, operand 2, single buffered']
    #allocation7 [shape = 's32[2]{0}', space=sflag, size = 0x8, scoped, tag = 'scoped memory for encoder_rnn_forward.2']
    #allocation8 [shape = 'u8[196608]{0}', space=vmem, size = 0x30000, scoped, tag = 'input window, operand 3, single buffered']
    #allocation9 [shape = 's32[1]{0}', space=sflag, size = 0x4, scoped, tag = 'scoped memory for encoder_rnn_forward.2']
    #allocation10 [shape = 'u8[3072]{0}', space=vmem, size = 0xc00, scoped, tag = 'input window, operand 4, single buffered']
    #allocation11 [shape = 'u8[1024]{0}', space=vmem, size = 0x400, scoped, tag = 'input window, operand 5, single buffered']
    #allocation12 [shape = 's32[1]{0}', space=sflag, size = 0x4, scoped, tag = 'scoped memory for encoder_rnn_forward.2']
    %14 = vsyncpa [#allocation7], 0
    %15 = vsyncpa [#allocation9], 0
    %16 = vsyncpa [#allocation12], 0
    loop: start=0, step=1, limit=4
    $region2: #{encoder_rnn_forward.2} parent=1 // loop_pre_header
      _
    $region3: #{encoder_rnn_forward.2} parent=1 // loop_header
      %s18 = sphi 0, %s22
      %p19 = scmp.ge.s32.totalorder %s18, 4
      %s28 = sphi 0, %s30
      %s31 = sphi 0, %s28
      %s32 = sphi 0, %s31
      %s48 = sphi 0, %s32
      %s56 = sphi 0, %s58
      %s59 = sphi 0, %s56
      %s60 = sphi 0, %s59
      %s76 = sphi 0, %s60
      %s80 = sphi 0, %s80
      %s82 = sphi 0, %s80
      %s83 = sphi 0, %s82
      %s97 = sphi 0, %s83
      %s101 = sphi 0, %s101
      %s103 = sphi 0, %s101
      %s104 = sphi 0, %s103
      %s118 = sphi 0, %s104
      %s122 = sphi 0, %s122
      %s124 = sphi 0, %s122
      %s125 = sphi 0, %s124
      %s139 = sphi 0, %s125
      %s143 = sphi 0, %s143
      %s145 = sphi 0, %s143
      %s146 = sphi 0, %s145
      %s160 = sphi 0, %s146
      %s166 = sphi 0, %s168
      %s169 = sphi 0, %s166
      %s170 = sphi 0, %s169
      %s186 = sphi 0, %s170
      %s194 = sphi 0, %s196
      %s197 = sphi 0, %s194
      %s198 = sphi 0, %s197
      %s214 = sphi 0, %s198
      %s218 = sphi 0, %s218
      %s220 = sphi 0, %s218
      %s221 = sphi 0, %s220
      %s235 = sphi 0, %s221
    $region4: #{encoder_rnn_forward.2} parent=1 // loop_header_branch
      %21 = sbr.rel (%p19) target = $region8
    $region5: #{encoder_rnn_forward.2} parent=1 // loop_body
      %s23 = ssub.s32 %s18, 1
      %s24 = ssub.s32 %s18, 2
      %s25 = sadd.s32 %s18, 1
      %s26 = ssub.s32 %s18, %s25
      %p27 = scmp.eq.s32.totalorder %s26, 0
      %s29 = sadd.s32 %s28, 1
      %s30 = scalar_select %p27, %s28, %s29
      %p33 = pneg %p27
      %p34 = scmp.eq.s32.totalorder %s18, 1
      %p35 = por %p33, %p34
      %p36 = scmp.ne.s32.totalorder %s28, %s31
      %p37 = scmp.eq.s32.totalorder %s18, 0
      %p38 = por %p36, %p37
      %p39 = scmp.ne.s32.totalorder %s28, %s31
      %p40 = scmp.eq.s32.totalorder %s23, 1
      %p41 = por %p39, %p40
      %p42 = scmp.ne.s32.totalorder %s31, %s32
      %p43 = scmp.eq.s32.totalorder %s23, 0
      %p44 = por %p42, %p43
      %p45 = scmp.ne.s32.totalorder %s31, %s32
      %p46 = scmp.eq.s32.totalorder %s24, 1
      %p47 = por %p45, %p46
      %p49 = scmp.ne.s32.totalorder %s32, %s48
      %p50 = scmp.eq.s32.totalorder %s24, 0
      %p51 = por %p49, %p50
      %s52 = ssub.s32 1, %s18
      %s53 = ssub.s32 1, %s25
      %s54 = ssub.s32 %s52, %s53
      %p55 = scmp.eq.s32.totalorder %s54, 0
      %s57 = sadd.s32 %s56, 1
      %s58 = scalar_select %p55, %s56, %s57
      %p61 = pneg %p55
      %p62 = scmp.eq.s32.totalorder %s18, 1
      %p63 = por %p61, %p62
      %p64 = scmp.ne.s32.totalorder %s56, %s59
      %p65 = scmp.eq.s32.totalorder %s18, 0
      %p66 = por %p64, %p65
      %p67 = scmp.ne.s32.totalorder %s56, %s59
      %p68 = scmp.eq.s32.totalorder %s23, 1
      %p69 = por %p67, %p68
      %p70 = scmp.ne.s32.totalorder %s59, %s60
      %p71 = scmp.eq.s32.totalorder %s23, 0
      %p72 = por %p70, %p71
      %p73 = scmp.ne.s32.totalorder %s59, %s60
      %p74 = scmp.eq.s32.totalorder %s24, 1
      %p75 = por %p73, %p74
      %p77 = scmp.ne.s32.totalorder %s60, %s76
      %p78 = scmp.eq.s32.totalorder %s24, 0
      %p79 = por %p77, %p78
      %s81 = sadd.s32 %s80, 1
      %p84 = scmp.eq.s32.totalorder %s18, 1
      %p85 = scmp.ne.s32.totalorder %s80, %s82
      %p86 = scmp.eq.s32.totalorder %s18, 0
      %p87 = por %p85, %p86
      %p88 = scmp.ne.s32.totalorder %s80, %s82
      %p89 = scmp.eq.s32.totalorder %s23, 1
      %p90 = por %p88, %p89
      %p91 = scmp.ne.s32.totalorder %s82, %s83
      %p92 = scmp.eq.s32.totalorder %s23, 0
      %p93 = por %p91, %p92
      %p94 = scmp.ne.s32.totalorder %s82, %s83
      %p95 = scmp.eq.s32.totalorder %s24, 1
      %p96 = por %p94, %p95
      %p98 = scmp.ne.s32.totalorder %s83, %s97
      %p99 = scmp.eq.s32.totalorder %s24, 0
      %p100 = por %p98, %p99
      %s102 = sadd.s32 %s101, 1
      %p105 = scmp.eq.s32.totalorder %s18, 1
      %p106 = scmp.ne.s32.totalorder %s101, %s103
      %p107 = scmp.eq.s32.totalorder %s18, 0
      %p108 = por %p106, %p107
      %p109 = scmp.ne.s32.totalorder %s101, %s103
      %p110 = scmp.eq.s32.totalorder %s23, 1
      %p111 = por %p109, %p110
      %p112 = scmp.ne.s32.totalorder %s103, %s104
      %p113 = scmp.eq.s32.totalorder %s23, 0
      %p114 = por %p112, %p113
      %p115 = scmp.ne.s32.totalorder %s103, %s104
      %p116 = scmp.eq.s32.totalorder %s24, 1
      %p117 = por %p115, %p116
      %p119 = scmp.ne.s32.totalorder %s104, %s118
      %p120 = scmp.eq.s32.totalorder %s24, 0
      %p121 = por %p119, %p120
      %s123 = sadd.s32 %s122, 1
      %p126 = scmp.eq.s32.totalorder %s18, 1
      %p127 = scmp.ne.s32.totalorder %s122, %s124
      %p128 = scmp.eq.s32.totalorder %s18, 0
      %p129 = por %p127, %p128
      %p130 = scmp.ne.s32.totalorder %s122, %s124
      %p131 = scmp.eq.s32.totalorder %s23, 1
      %p132 = por %p130, %p131
      %p133 = scmp.ne.s32.totalorder %s124, %s125
      %p134 = scmp.eq.s32.totalorder %s23, 0
      %p135 = por %p133, %p134
      %p136 = scmp.ne.s32.totalorder %s124, %s125
      %p137 = scmp.eq.s32.totalorder %s24, 1
      %p138 = por %p136, %p137
      %p140 = scmp.ne.s32.totalorder %s125, %s139
      %p141 = scmp.eq.s32.totalorder %s24, 0
      %p142 = por %p140, %p141
      %s144 = sadd.s32 %s143, 1
      %p147 = scmp.eq.s32.totalorder %s18, 1
      %p148 = scmp.ne.s32.totalorder %s143, %s145
      %p149 = scmp.eq.s32.totalorder %s18, 0
      %p150 = por %p148, %p149
      %p151 = scmp.ne.s32.totalorder %s143, %s145
      %p152 = scmp.eq.s32.totalorder %s23, 1
      %p153 = por %p151, %p152
      %p154 = scmp.ne.s32.totalorder %s145, %s146
      %p155 = scmp.eq.s32.totalorder %s23, 0
      %p156 = por %p154, %p155
      %p157 = scmp.ne.s32.totalorder %s145, %s146
      %p158 = scmp.eq.s32.totalorder %s24, 1
      %p159 = por %p157, %p158
      %p161 = scmp.ne.s32.totalorder %s146, %s160
      %p162 = scmp.eq.s32.totalorder %s24, 0
      %p163 = por %p161, %p162
      %s164 = ssub.s32 %s18, %s25
      %p165 = scmp.eq.s32.totalorder %s164, 0
      %s167 = sadd.s32 %s166, 1
      %s168 = scalar_select %p165, %s166, %s167
      %p171 = pneg %p165
      %p172 = scmp.eq.s32.totalorder %s18, 1
      %p173 = por %p171, %p172
      %p174 = scmp.ne.s32.totalorder %s166, %s169
      %p175 = scmp.eq.s32.totalorder %s18, 0
      %p176 = por %p174, %p175
      %p177 = scmp.ne.s32.totalorder %s166, %s169
      %p178 = scmp.eq.s32.totalorder %s23, 1
      %p179 = por %p177, %p178
      %p180 = scmp.ne.s32.totalorder %s169, %s170
      %p181 = scmp.eq.s32.totalorder %s23, 0
      %p182 = por %p180, %p181
      %p183 = scmp.ne.s32.totalorder %s169, %s170
      %p184 = scmp.eq.s32.totalorder %s24, 1
      %p185 = por %p183, %p184
      %p187 = scmp.ne.s32.totalorder %s170, %s186
      %p188 = scmp.eq.s32.totalorder %s24, 0
      %p189 = por %p187, %p188
      %s190 = ssub.s32 1, %s18
      %s191 = ssub.s32 1, %s25
      %s192 = ssub.s32 %s190, %s191
      %p193 = scmp.eq.s32.totalorder %s192, 0
      %s195 = sadd.s32 %s194, 1
      %s196 = scalar_select %p193, %s194, %s195
      %p199 = pneg %p193
      %p200 = scmp.eq.s32.totalorder %s18, 1
      %p201 = por %p199, %p200
      %p202 = scmp.ne.s32.totalorder %s194, %s197
      %p203 = scmp.eq.s32.totalorder %s18, 0
      %p204 = por %p202, %p203
      %p205 = scmp.ne.s32.totalorder %s194, %s197
      %p206 = scmp.eq.s32.totalorder %s23, 1
      %p207 = por %p205, %p206
      %p208 = scmp.ne.s32.totalorder %s197, %s198
      %p209 = scmp.eq.s32.totalorder %s23, 0
      %p210 = por %p208, %p209
      %p211 = scmp.ne.s32.totalorder %s197, %s198
      %p212 = scmp.eq.s32.totalorder %s24, 1
      %p213 = por %p211, %p212
      %p215 = scmp.ne.s32.totalorder %s198, %s214
      %p216 = scmp.eq.s32.totalorder %s24, 0
      %p217 = por %p215, %p216
      %s219 = sadd.s32 %s218, 1
      %p222 = scmp.eq.s32.totalorder %s18, 1
      %p223 = scmp.ne.s32.totalorder %s218, %s220
      %p224 = scmp.eq.s32.totalorder %s18, 0
      %p225 = por %p223, %p224
      %p226 = scmp.ne.s32.totalorder %s218, %s220
      %p227 = scmp.eq.s32.totalorder %s23, 1
      %p228 = por %p226, %p227
      %p229 = scmp.ne.s32.totalorder %s220, %s221
      %p230 = scmp.eq.s32.totalorder %s23, 0
      %p231 = por %p229, %p230
      %p232 = scmp.ne.s32.totalorder %s220, %s221
      %p233 = scmp.eq.s32.totalorder %s24, 1
      %p234 = por %p232, %p233
      %p236 = scmp.ne.s32.totalorder %s221, %s235
      %p237 = scmp.eq.s32.totalorder %s24, 0
      %p238 = por %p236, %p237
      %p239 = scmp.le.s32.totalorder 1, %s18
      %p240 = scmp.lt.s32.totalorder %s18, 3
      %p241 = pnand %p239, %p240
      %p242 = pneg %p241
      // Predicated region
      $region9: #{encoder_rnn_forward.2} parent=5 // pred_check
        _
      $region10: #{encoder_rnn_forward.2} parent=5 // pred_check_branch
        %244 = sbr.rel (%p241) target = $region12
      $region11: #{encoder_rnn_forward.2} parent=5 // pred_region
        %s245 = ssub.s32 %s18, 1
        // Predicated region
        $region13: #{encoder_rnn_forward.2} parent=11 // pred_check
          %p246 = pneg %p93
        $region14: #{encoder_rnn_forward.2} parent=11 // pred_check_branch
          %248 = sbr.rel (%p246) target = $region16
        $region15: #{encoder_rnn_forward.2} parent=11 // pred_region
          %s250 = ssub.s32 6144, 6144
          %251 = vsyncadd [#allocation7], %s250
          %s252 = sshll.u32 [#allocation6], 4
          %s253 = int_to_ptr.vmem [resolvable:$true] %s252
          %258 = dma.hbm_to_vmem [thread:$0]  %s2, 6144, %s253, [#allocation7], 192, 192, 12
        $region16: #{encoder_rnn_forward.2} parent=11 // pred_fallthru
          _
        // Predicated region
        $region17: #{encoder_rnn_forward.2} parent=11 // pred_check
          %p259 = pneg %p114
        $region18: #{encoder_rnn_forward.2} parent=11 // pred_check_branch
          %261 = sbr.rel (%p259) target = $region20
        $region19: #{encoder_rnn_forward.2} parent=11 // pred_region
          %s263 = ssub.s32 6144, 6144
          %264 = vsyncadd [#allocation9], %s263
          %s265 = sshll.u32 [#allocation8], 4
          %s266 = int_to_ptr.vmem [resolvable:$true] %s265
          %271 = dma.hbm_to_vmem [thread:$0]  %s3, 6144, %s266, [#allocation9], 192, 192, 12
        $region20: #{encoder_rnn_forward.2} parent=11 // pred_fallthru
          _
        // Predicated region
        $region21: #{encoder_rnn_forward.2} parent=11 // pred_check
          %p272 = pneg %p135
        $region22: #{encoder_rnn_forward.2} parent=11 // pred_check_branch
          %274 = sbr.rel (%p272) target = $region24
        $region23: #{encoder_rnn_forward.2} parent=11 // pred_region
          %s276 = ssub.s32 96, 96
          %277 = vsyncadd [#allocation9], %s276
          %s278 = sshll.u32 [#allocation10], 4
          %s279 = int_to_ptr.vmem [resolvable:$true] %s278
          %284 = dma.hbm_to_vmem [thread:$0]  %s4, 96, %s279, [#allocation9], 48, 48, 3
        $region24: #{encoder_rnn_forward.2} parent=11 // pred_fallthru
          _
        // Predicated region
        $region25: #{encoder_rnn_forward.2} parent=11 // pred_check
          %p285 = pneg %p156
        $region26: #{encoder_rnn_forward.2} parent=11 // pred_check_branch
          %287 = sbr.rel (%p285) target = $region28
        $region27: #{encoder_rnn_forward.2} parent=11 // pred_region
          %s289 = ssub.s32 32, 32
          %290 = vsyncadd [#allocation12], %s289
          %s291 = sshll.u32 [#allocation11], 4
          %s292 = int_to_ptr.vmem [resolvable:$true] %s291
          %297 = dma.hbm_to_vmem [thread:$0]  %s5, 32, %s292, [#allocation12], 16, 16, 1
        $region28: #{encoder_rnn_forward.2} parent=11 // pred_fallthru
          _
      $region12: #{encoder_rnn_forward.2} parent=5 // pred_fallthru
        _
      %p298 = scmp.lt.s32.totalorder %s18, 2
      // Predicated region
      $region29: #{encoder_rnn_forward.2} parent=5 // pred_check
        %p299 = pneg %p298
      $region30: #{encoder_rnn_forward.2} parent=5 // pred_check_branch
        %301 = sbr.rel (%p299) target = $region32
      $region31: #{encoder_rnn_forward.2} parent=5 // pred_region
        // Predicated region
        $region33: #{encoder_rnn_forward.2} parent=31 // pred_check
          %p302 = pneg %p38
        $region34: #{encoder_rnn_forward.2} parent=31 // pred_check_branch
          %304 = sbr.rel (%p302) target = $region36
        $region35: #{encoder_rnn_forward.2} parent=31 // pred_region
          %s305 = smul.u32 4, %s18
          %p306 = scmp.lt.s32.totalorder %s305, 7
          %s307 = scalar_select %p306, %s305, 7
          %s308 = smul.addr %s307, 4
          %s309 = scalar_lea.vmem %s0, %s308
          %s310 = smul.u32 4, %s18
        $region36: #{encoder_rnn_forward.2} parent=31 // pred_fallthru
          _
        // Predicated region
        $region37: #{encoder_rnn_forward.2} parent=31 // pred_check
          %p311 = pneg %p66
        $region38: #{encoder_rnn_forward.2} parent=31 // pred_check_branch
          %313 = sbr.rel (%p311) target = $region40
        $region39: #{encoder_rnn_forward.2} parent=31 // pred_region
          %s314 = ssub.s32 1, %s18
          %s315 = smul.u32 4, %s314
          %p316 = scmp.lt.s32.totalorder %s315, 7
          %s317 = scalar_select %p316, %s315, 7
          %s318 = smul.addr %s317, 4
          %s319 = scalar_lea.vmem %s1, %s318
          %s320 = ssub.s32 1, %s18
          %s321 = smul.u32 4, %s320
        $region40: #{encoder_rnn_forward.2} parent=31 // pred_fallthru
          _
      $region32: #{encoder_rnn_forward.2} parent=5 // pred_fallthru
        _
      %p322 = scmp.le.s32.totalorder 1, %s18
      %p323 = scmp.lt.s32.totalorder %s18, 3
      %p324 = pnand %p322, %p323
      %p325 = pneg %p324
      // Predicated region
      $region41: #{encoder_rnn_forward.2} parent=5 // pred_check
        _
      $region42: #{encoder_rnn_forward.2} parent=5 // pred_check_branch
        %327 = sbr.rel (%p324) target = $region44
      $region43: #{encoder_rnn_forward.2} parent=5 // pred_region
        %s328 = ssub.s32 %s18, 1
        // Predicated region
        $region45: #{encoder_rnn_forward.2} parent=43 // pred_check
          %p329 = pneg %p93
        $region46: #{encoder_rnn_forward.2} parent=43 // pred_check_branch
          %331 = sbr.rel (%p329) target = $region48
        $region47: #{encoder_rnn_forward.2} parent=43 // pred_region
          %332 = dma.done [#allocation7], 6144
        $region48: #{encoder_rnn_forward.2} parent=43 // pred_fallthru
          _
        // Predicated region
        $region49: #{encoder_rnn_forward.2} parent=43 // pred_check
          %p333 = pneg %p114
        $region50: #{encoder_rnn_forward.2} parent=43 // pred_check_branch
          %335 = sbr.rel (%p333) target = $region52
        $region51: #{encoder_rnn_forward.2} parent=43 // pred_region
          %336 = dma.done [#allocation9], 6144
        $region52: #{encoder_rnn_forward.2} parent=43 // pred_fallthru
          _
        // Predicated region
        $region53: #{encoder_rnn_forward.2} parent=43 // pred_check
          %p337 = pneg %p135
        $region54: #{encoder_rnn_forward.2} parent=43 // pred_check_branch
          %339 = sbr.rel (%p337) target = $region56
        $region55: #{encoder_rnn_forward.2} parent=43 // pred_region
          %340 = dma.done [#allocation9], 96
        $region56: #{encoder_rnn_forward.2} parent=43 // pred_fallthru
          _
        // Predicated region
        $region57: #{encoder_rnn_forward.2} parent=43 // pred_check
          %p341 = pneg %p156
        $region58: #{encoder_rnn_forward.2} parent=43 // pred_check_branch
          %343 = sbr.rel (%p341) target = $region60
        $region59: #{encoder_rnn_forward.2} parent=43 // pred_region
          %344 = dma.done [#allocation12], 32
        $region60: #{encoder_rnn_forward.2} parent=43 // pred_fallthru
          _
        %s345 = smul.u32 4, %s23
        %p346 = scmp.lt.s32.totalorder %s345, 7
        %s347 = scalar_select %p346, %s345, 7
        %s348 = smul.addr %s347, 4
        %s349 = scalar_lea.vmem %s0, %s348
        %p350 = pneg %p44
        %p351 = pneg %p41
        %s352 = ssub.s32 1, %s23
        %s353 = smul.u32 4, %s352
        %p354 = scmp.lt.s32.totalorder %s353, 7
        %s355 = scalar_select %p354, %s353, 7
        %s356 = smul.addr %s355, 4
        %s357 = scalar_lea.vmem %s1, %s356
        %p358 = pneg %p72
        %p359 = pneg %p69
        %p360 = pneg %p93
        %p361 = pneg %p90
        %p362 = pneg %p114
        %p363 = pneg %p111
        %p364 = pneg %p135
        %p365 = pneg %p132
        %p366 = pneg %p156
        %p367 = pneg %p153
        %p368 = pneg %p182
        %p369 = pneg %p179
        %s370 = smul.u32 4, %s23
        %p371 = scmp.lt.s32.totalorder %s370, 7
        %s372 = scalar_select %p371, %s370, 7
        %s373 = smul.addr %s372, 4
        %s374 = scalar_lea.vmem %s6, %s373
        %p375 = pneg %p210
        %p376 = pneg %p207
        %s377 = ssub.s32 1, %s23
        %s378 = smul.u32 4, %s377
        %p379 = scmp.lt.s32.totalorder %s378, 7
        %s380 = scalar_select %p379, %s378, 7
        %s381 = smul.addr %s380, 4
        %s382 = scalar_lea.vmem %s7, %s381
        %p383 = pneg %p231
        %p384 = pneg %p228
        %s385 = smul.u32 4, %s23
        %p386 = scmp.lt.s32.totalorder %s385, 7
        %s387 = scalar_select %p386, %s385, 7
        %s388 = smul.addr %s387, 4
        %s389 = scalar_lea.vmem %s0, %s388
        %s390 = smul.u32 4, %s23
        %s391 = ssub.s32 1, %s23
        %s392 = smul.u32 4, %s391
        %p393 = scmp.lt.s32.totalorder %s392, 7
        %s394 = scalar_select %p393, %s392, 7
        %s395 = smul.addr %s394, 4
        %s396 = scalar_lea.vmem %s1, %s395
        %s397 = ssub.s32 1, %s23
        %s398 = smul.u32 4, %s397
        %s399 = smul.u32 4, %s23
        %p400 = scmp.lt.s32.totalorder %s399, 7
        %s401 = scalar_select %p400, %s399, 7
        %s402 = smul.addr %s401, 4
        %s403 = scalar_lea.vmem %s6, %s402
        %s404 = smul.u32 4, %s23
        %s405 = ssub.s32 1, %s23
        %s406 = smul.u32 4, %s405
        %p407 = scmp.lt.s32.totalorder %s406, 7
        %s408 = scalar_select %p407, %s406, 7
        %s409 = smul.addr %s408, 4
        %s410 = scalar_lea.vmem %s7, %s409
        %s411 = ssub.s32 1, %s23
        %s412 = smul.u32 4, %s411
        %p414 = scmp.eq.s32.totalorder %s23, 0
        // Predicated region
        $region61: #{encoder_rnn_forward.2} parent=43 // pred_check
          %p415 = pneg %p414
        $region62: #{encoder_rnn_forward.2} parent=43 // pred_check_branch
          %417 = sbr.rel (%p415) target = $region64
        $region63: #{encoder_rnn_forward.2} parent=43 // pred_region
          %418 = vst [vmem:[#allocation2] sm:$0xff] 0.0
          %419 = vst [vmem:[#allocation3] sm:$0xff] 0.0
        $region64: #{encoder_rnn_forward.2} parent=43 // pred_fallthru
          _
        %v420 = vld [vmem:[%s389] sm:$0xf]
        %v421 = vld [vmem:[%s389 + $0x4] sm:$0xf]
        %v422 = vld [vmem:[%s389 + $0x8] sm:$0xf]
        %v423 = vld [vmem:[%s389 + $0xc] sm:$0xf]
        %v424 = vld [vmem:[#allocation6] sm:$0xff]
        %v425 = vld [vmem:[#allocation6 + $0x8] sm:$0xf]
        %v426 = vld [vmem:[#allocation6 + $0xc] sm:$0xff]
        %v427 = vld [vmem:[#allocation6 + $0x14] sm:$0xf]
        %v428 = vld [vmem:[#allocation6 + $0x18] sm:$0xff]
        %v429 = vld [vmem:[#allocation6 + $0x20] sm:$0xf]
        %v430 = vld [vmem:[#allocation6 + $0x24] sm:$0xff]
        %v431 = vld [vmem:[#allocation6 + $0x2c] sm:$0xf]
        %v432 = vld [vmem:[#allocation6 + $0x30] sm:$0xff]
        %v433 = vld [vmem:[#allocation6 + $0x38] sm:$0xf]
        %v434 = vld [vmem:[#allocation6 + $0x3c] sm:$0xff]
        %v435 = vld [vmem:[#allocation6 + $0x44] sm:$0xf]
        %v436 = vld [vmem:[#allocation6 + $0x48] sm:$0xff]
        %v437 = vld [vmem:[#allocation6 + $0x50] sm:$0xf]
        %v438 = vld [vmem:[#allocation6 + $0x54] sm:$0xff]
        %v439 = vld [vmem:[#allocation6 + $0x5c] sm:$0xf]
        %v440 = vld [vmem:[#allocation6 + $0x60] sm:$0xff]
        %v441 = vld [vmem:[#allocation6 + $0x68] sm:$0xf]
        %v442 = vld [vmem:[#allocation6 + $0x6c] sm:$0xff]
        %v443 = vld [vmem:[#allocation6 + $0x74] sm:$0xf]
        %v444 = vld [vmem:[#allocation6 + $0x78] sm:$0xff]
        %v445 = vld [vmem:[#allocation6 + $0x80] sm:$0xf]
        %v446 = vld [vmem:[#allocation6 + $0x84] sm:$0xff]
        %v447 = vld [vmem:[#allocation6 + $0x8c] sm:$0xf]
        %v448 = vld [vmem:[#allocation6 + $0x90] sm:$0xff]
        %v449 = vld [vmem:[#allocation6 + $0x98] sm:$0xf]
        %v450 = vld [vmem:[#allocation6 + $0x9c] sm:$0xff]
        %v451 = vld [vmem:[#allocation6 + $0xa4] sm:$0xf]
        %v452 = vld [vmem:[#allocation6 + $0xa8] sm:$0xff]
        %v453 = vld [vmem:[#allocation6 + $0xb0] sm:$0xf]
        %v454 = vld [vmem:[#allocation6 + $0xb4] sm:$0xff]
        %v455 = vld [vmem:[#allocation6 + $0xbc] sm:$0xf]
        %v456 = vld [vmem:[#allocation10] sm:$0x7]
        %v458 = vlaneseq
        %v459 = vshrl.u32 %v458, 7
        %v460 = vsub.s32 0, %v459
        %v461 = vrot.slane %v456, %v460
        %v462 = vlaneseq
        %v463 = vshrl.u32 %v462, 7
        %v464 = vsub.s32 1, %v463
        %v465 = vrot.slane %v456, %v464
        %v466 = vlaneseq
        %v467 = vshrl.u32 %v466, 7
        %v468 = vsub.s32 2, %v467
        %v469 = vrot.slane %v456, %v468
        %v477 = vunpack.c.l.b16 %v420
        %v478 = vunpack.c.l.b16 %v421
        %v479 = vunpack.c.l.b16 %v422
        %v480 = vunpack.c.l.b16 %v423
        %v481 = vpack.c.b16 %v478, %v477
        %v482 = vpack.c.b16 %v480, %v479
        %v517 = vunpack.c.l.b16 %v424
        %v518 = vunpack.c.h.b16 %v424
        %v519 = vunpack.c.l.b16 %v425
        %v520 = vunpack.c.l.b16 %v426
        %v521 = vunpack.c.h.b16 %v426
        %v522 = vunpack.c.l.b16 %v427
        %v523 = vunpack.c.l.b16 %v428
        %v524 = vunpack.c.h.b16 %v428
        %v525 = vunpack.c.l.b16 %v429
        %v526 = vunpack.c.l.b16 %v430
        %v527 = vunpack.c.h.b16 %v430
        %v528 = vunpack.c.l.b16 %v431
        %v529 = vunpack.c.l.b16 %v432
        %v530 = vunpack.c.h.b16 %v432
        %v531 = vunpack.c.l.b16 %v433
        %v532 = vunpack.c.l.b16 %v434
        %v533 = vunpack.c.h.b16 %v434
        %v534 = vunpack.c.l.b16 %v435
        %v535 = vunpack.c.l.b16 %v436
        %v536 = vunpack.c.h.b16 %v436
        %v537 = vunpack.c.l.b16 %v437
        %v538 = vunpack.c.l.b16 %v438
        %v539 = vunpack.c.h.b16 %v438
        %v540 = vunpack.c.l.b16 %v439
        %v541 = vunpack.c.l.b16 %v440
        %v542 = vunpack.c.h.b16 %v440
        %v543 = vunpack.c.l.b16 %v441
        %v544 = vunpack.c.l.b16 %v442
        %v545 = vunpack.c.h.b16 %v442
        %v546 = vunpack.c.l.b16 %v443
        %v547 = vunpack.c.l.b16 %v444
        %v548 = vunpack.c.h.b16 %v444
        %v549 = vunpack.c.l.b16 %v445
        %v550 = vunpack.c.l.b16 %v446
        %v551 = vunpack.c.h.b16 %v446
        %v552 = vunpack.c.l.b16 %v447
        %v553 = vunpack.c.l.b16 %v448
        %v554 = vunpack.c.h.b16 %v448
        %v555 = vunpack.c.l.b16 %v449
        %v556 = vunpack.c.l.b16 %v450
        %v557 = vunpack.c.h.b16 %v450
        %v558 = vunpack.c.l.b16 %v451
        %v559 = vunpack.c.l.b16 %v452
        %v560 = vunpack.c.h.b16 %v452
        %v561 = vunpack.c.l.b16 %v453
        %v562 = vunpack.c.l.b16 %v454
        %v563 = vunpack.c.h.b16 %v454
        %v564 = vunpack.c.l.b16 %v455
        %v565 = vpack.c.b16 %v520, %v517
        %v566 = vpack.c.b16 %v521, %v518
        %v567 = vpack.c.b16 %v522, %v519
        %v568 = vpack.c.b16 %v526, %v523
        %v569 = vpack.c.b16 %v527, %v524
        %v570 = vpack.c.b16 %v528, %v525
        %v571 = vpack.c.b16 %v532, %v529
        %v572 = vpack.c.b16 %v533, %v530
        %v573 = vpack.c.b16 %v534, %v531
        %v574 = vpack.c.b16 %v538, %v535
        %v575 = vpack.c.b16 %v539, %v536
        %v576 = vpack.c.b16 %v540, %v537
        %v577 = vpack.c.b16 %v544, %v541
        %v578 = vpack.c.b16 %v545, %v542
        %v579 = vpack.c.b16 %v546, %v543
        %v580 = vpack.c.b16 %v550, %v547
        %v581 = vpack.c.b16 %v551, %v548
        %v582 = vpack.c.b16 %v552, %v549
        %v583 = vpack.c.b16 %v556, %v553
        %v584 = vpack.c.b16 %v557, %v554
        %v585 = vpack.c.b16 %v558, %v555
        %v586 = vpack.c.b16 %v562, %v559
        %v587 = vpack.c.b16 %v563, %v560
        %v588 = vpack.c.b16 %v564, %v561
        %613 = vmatprep.subr.bf16.mxu0 %v566
        %614 = vmatpush1.bf16.msra.mxu0 %v565
        %615 = vmatprep.subr.bf16.mxu0 %v569
        %616 = vmatpush1.bf16.msra.mxu0 %v568
        %617 = vmatprep.subr.bf16.mxu0 %v572
        %618 = vmatpush1.bf16.msra.mxu0 %v571
        %619 = vmatprep.subr.bf16.mxu0 %v575
        %620 = vmatpush1.bf16.msra.mxu0 %v574
        %621 = vmatprep.subr.bf16.mxu0 %v578
        %622 = vmatpush1.bf16.msra.mxu0 %v577
        %623 = vmatprep.subr.bf16.mxu0 %v581
        %624 = vmatpush1.bf16.msra.mxu0 %v580
        %625 = vmatprep.subr.bf16.mxu0 %v584
        %626 = vmatpush1.bf16.msra.mxu0 %v583
        %627 = vmatprep.subr.bf16.mxu0 %v587
        %628 = vmatpush1.bf16.msra.mxu0 %v586
        %629 = vmatprep.subr.bf16.mxu0 0
        %630 = vmatpush1.bf16.msra.mxu0 0
        %631 = vmatprep.subr.bf16.mxu0 0
        %632 = vmatpush1.bf16.msra.mxu0 0
        %633 = vmatprep.subr.bf16.mxu0 0
        %634 = vmatpush1.bf16.msra.mxu0 0
        %635 = vmatprep.subr.bf16.mxu0 0
        %636 = vmatpush1.bf16.msra.mxu0 0
        %637 = vmatprep.subr.bf16.mxu0 0
        %638 = vmatpush1.bf16.msra.mxu0 0
        %639 = vmatprep.subr.bf16.mxu0 0
        %640 = vmatpush1.bf16.msra.mxu0 0
        %641 = vmatprep.subr.bf16.mxu0 0
        %642 = vmatpush1.bf16.msra.mxu0 0
        %643 = vmatprep.subr.bf16.mxu0 0
        %644 = vmatpush1.bf16.msra.mxu0 0
        %645 = vmatprep.mubr.bf16.mxu0 0
        %646 = vmatmul.mubr.bf16.gmra.mrb[0].mxu0 %v481
        %v647 = vpop.f32.mrb[0].mxu0
        %v648 = vadd.f32 %v461, %v647
        %v649 = vpop.f32.mrb[0].mxu0
        %v650 = vadd.f32 %v465, %v649
        %v651 = vpop.f32.mrb[0].mxu0
        %v652 = vadd.f32 %v461, %v651
        %v653 = vpop.f32.mrb[0].mxu0
        %v654 = vadd.f32 %v465, %v653
        %655 = vmatprep.mubr.bf16.mxu0 0
        %656 = vmatmul.mubr.bf16.gmra.mrb[0].mxu0 %v482
        %v657 = vpop.f32.mrb[0].mxu0
        %v658 = vadd.f32 %v461, %v657
        %v659 = vpop.f32.mrb[0].mxu0
        %v660 = vadd.f32 %v465, %v659
        %v661 = vpop.f32.mrb[0].mxu0
        %v662 = vadd.f32 %v461, %v661
        %v663 = vpop.f32.mrb[0].mxu0
        %v664 = vadd.f32 %v465, %v663
        %665 = vdwg.mxu0
        %666 = vmatprep.subr.bf16.mxu0 0
        %667 = vmatpush1.bf16.msra.mxu0 %v567
        %668 = vmatprep.subr.bf16.mxu0 0
        %669 = vmatpush1.bf16.msra.mxu0 %v570
        %670 = vmatprep.subr.bf16.mxu0 0
        %671 = vmatpush1.bf16.msra.mxu0 %v573
        %672 = vmatprep.subr.bf16.mxu0 0
        %673 = vmatpush1.bf16.msra.mxu0 %v576
        %674 = vmatprep.subr.bf16.mxu0 0
        %675 = vmatpush1.bf16.msra.mxu0 %v579
        %676 = vmatprep.subr.bf16.mxu0 0
        %677 = vmatpush1.bf16.msra.mxu0 %v582
        %678 = vmatprep.subr.bf16.mxu0 0
        %679 = vmatpush1.bf16.msra.mxu0 %v585
        %680 = vmatprep.subr.bf16.mxu0 0
        %681 = vmatpush1.bf16.msra.mxu0 %v588
        %682 = vmatprep.subr.bf16.mxu0 0
        %683 = vmatpush1.bf16.msra.mxu0 0
        %684 = vmatprep.subr.bf16.mxu0 0
        %685 = vmatpush1.bf16.msra.mxu0 0
        %686 = vmatprep.subr.bf16.mxu0 0
        %687 = vmatpush1.bf16.msra.mxu0 0
        %688 = vmatprep.subr.bf16.mxu0 0
        %689 = vmatpush1.bf16.msra.mxu0 0
        %690 = vmatprep.subr.bf16.mxu0 0
        %691 = vmatpush1.bf16.msra.mxu0 0
        %692 = vmatprep.subr.bf16.mxu0 0
        %693 = vmatpush1.bf16.msra.mxu0 0
        %694 = vmatprep.subr.bf16.mxu0 0
        %695 = vmatpush1.bf16.msra.mxu0 0
        %696 = vmatprep.subr.bf16.mxu0 0
        %697 = vmatpush1.bf16.msra.mxu0 0
        %698 = vmatprep.mubr.bf16.mxu0 0
        %699 = vmatmul.mubr.bf16.gmra.mrb[0].mxu0 %v481
        %v700 = vpop.f32.mrb[0].mxu0
        %v701 = vadd.f32 %v469, %v700
        %v702 = vpop.f32.mrb[0].mxu0
        %v703 = vpop.f32.mrb[0].mxu0
        %v704 = vadd.f32 %v469, %v703
        %v705 = vpop.f32.mrb[0].mxu0
        %706 = vmatprep.mubr.bf16.mxu0 0
        %707 = vmatmul.mubr.bf16.gmra.mrb[0].mxu0 %v482
        %v708 = vpop.f32.mrb[0].mxu0
        %v709 = vadd.f32 %v469, %v708
        %v710 = vpop.f32.mrb[0].mxu0
        %v711 = vpop.f32.mrb[0].mxu0
        %v712 = vadd.f32 %v469, %v711
        %v713 = vpop.f32.mrb[0].mxu0
        %714 = vdwg.mxu0
        %v715 = vpack.c.bf16 %v648, %v648
        %v716 = vpack.c.bf16 %v650, %v650
        %v717 = vpack.c.bf16 %v701, %v701
        %v718 = vpack.c.bf16 %v652, %v652
        %v719 = vpack.c.bf16 %v654, %v654
        %v720 = vpack.c.bf16 %v704, %v704
        %v721 = vpack.c.bf16 %v658, %v658
        %v722 = vpack.c.bf16 %v660, %v660
        %v723 = vpack.c.bf16 %v709, %v709
        %v724 = vpack.c.bf16 %v662, %v662
        %v725 = vpack.c.bf16 %v664, %v664
        %v726 = vpack.c.bf16 %v712, %v712
        %v739 = vunpack.c.l.b16 %v715
        %v740 = vunpack.c.l.b16 %v716
        %v741 = vunpack.c.l.b16 %v717
        %v742 = vunpack.c.l.b16 %v718
        %v743 = vunpack.c.l.b16 %v719
        %v744 = vunpack.c.l.b16 %v720
        %v745 = vunpack.c.l.b16 %v721
        %v746 = vunpack.c.l.b16 %v722
        %v747 = vunpack.c.l.b16 %v723
        %v748 = vunpack.c.l.b16 %v724
        %v749 = vunpack.c.l.b16 %v725
        %v750 = vunpack.c.l.b16 %v726
        %v751 = vpack.c.b16 %v740, %v739
        %v752 = vpack.c.b16 %v741, %v741
        %v753 = vpack.c.b16 %v743, %v742
        %v754 = vpack.c.b16 %v744, %v744
        %v755 = vpack.c.b16 %v746, %v745
        %v756 = vpack.c.b16 %v747, %v747
        %v757 = vpack.c.b16 %v749, %v748
        %v758 = vpack.c.b16 %v750, %v750
        %767 = vst [vmem:[#allocation4] sm:$0xff] %v751
        %768 = vst [vmem:[#allocation4 + $0x8] sm:$0xf] %v752
        %769 = vst [vmem:[#allocation4 + $0xc] sm:$0xff] %v753
        %770 = vst [vmem:[#allocation4 + $0x14] sm:$0xf] %v754
        %771 = vst [vmem:[#allocation4 + $0x18] sm:$0xff] %v755
        %772 = vst [vmem:[#allocation4 + $0x20] sm:$0xf] %v756
        %773 = vst [vmem:[#allocation4 + $0x24] sm:$0xff] %v757
        %774 = vst [vmem:[#allocation4 + $0x2c] sm:$0xf] %v758
        %v775 = vld [vmem:[%s396] sm:$0xf]
        %v776 = vld [vmem:[%s396 + $0x4] sm:$0xf]
        %v777 = vld [vmem:[%s396 + $0x8] sm:$0xf]
        %v778 = vld [vmem:[%s396 + $0xc] sm:$0xf]
        %s779 = scalar_lea.vmem [#allocation6], 192
        %v780 = vld [vmem:[%s779] sm:$0xff]
        %v781 = vld [vmem:[%s779 + $0x8] sm:$0xf]
        %v782 = vld [vmem:[%s779 + $0xc] sm:$0xff]
        %v783 = vld [vmem:[%s779 + $0x14] sm:$0xf]
        %v784 = vld [vmem:[%s779 + $0x18] sm:$0xff]
        %v785 = vld [vmem:[%s779 + $0x20] sm:$0xf]
        %v786 = vld [vmem:[%s779 + $0x24] sm:$0xff]
        %v787 = vld [vmem:[%s779 + $0x2c] sm:$0xf]
        %v788 = vld [vmem:[%s779 + $0x30] sm:$0xff]
        %v789 = vld [vmem:[%s779 + $0x38] sm:$0xf]
        %v790 = vld [vmem:[%s779 + $0x3c] sm:$0xff]
        %v791 = vld [vmem:[%s779 + $0x44] sm:$0xf]
        %v792 = vld [vmem:[%s779 + $0x48] sm:$0xff]
        %v793 = vld [vmem:[%s779 + $0x50] sm:$0xf]
        %v794 = vld [vmem:[%s779 + $0x54] sm:$0xff]
        %v795 = vld [vmem:[%s779 + $0x5c] sm:$0xf]
        %v796 = vld [vmem:[%s779 + $0x60] sm:$0xff]
        %v797 = vld [vmem:[%s779 + $0x68] sm:$0xf]
        %v798 = vld [vmem:[%s779 + $0x6c] sm:$0xff]
        %v799 = vld [vmem:[%s779 + $0x74] sm:$0xf]
        %v800 = vld [vmem:[%s779 + $0x78] sm:$0xff]
        %v801 = vld [vmem:[%s779 + $0x80] sm:$0xf]
        %v802 = vld [vmem:[%s779 + $0x84] sm:$0xff]
        %v803 = vld [vmem:[%s779 + $0x8c] sm:$0xf]
        %v804 = vld [vmem:[%s779 + $0x90] sm:$0xff]
        %v805 = vld [vmem:[%s779 + $0x98] sm:$0xf]
        %v806 = vld [vmem:[%s779 + $0x9c] sm:$0xff]
        %v807 = vld [vmem:[%s779 + $0xa4] sm:$0xf]
        %v808 = vld [vmem:[%s779 + $0xa8] sm:$0xff]
        %v809 = vld [vmem:[%s779 + $0xb0] sm:$0xf]
        %v810 = vld [vmem:[%s779 + $0xb4] sm:$0xff]
        %v811 = vld [vmem:[%s779 + $0xbc] sm:$0xf]
        %s812 = scalar_lea.vmem [#allocation10], 3
        %v813 = vld [vmem:[%s812] sm:$0x7]
        %v815 = vlaneseq
        %v816 = vshrl.u32 %v815, 7
        %v817 = vsub.s32 0, %v816
        %v818 = vrot.slane %v813, %v817
        %v819 = vlaneseq
        %v820 = vshrl.u32 %v819, 7
        %v821 = vsub.s32 1, %v820
        %v822 = vrot.slane %v813, %v821
        %v823 = vlaneseq
        %v824 = vshrl.u32 %v823, 7
        %v825 = vsub.s32 2, %v824
        %v826 = vrot.slane %v813, %v825
        %v834 = vunpack.c.l.b16 %v775
        %v835 = vunpack.c.l.b16 %v776
        %v836 = vunpack.c.l.b16 %v777
        %v837 = vunpack.c.l.b16 %v778
        %v838 = vpack.c.b16 %v835, %v834
        %v839 = vpack.c.b16 %v837, %v836
        %v874 = vunpack.c.l.b16 %v780
        %v875 = vunpack.c.h.b16 %v780
        %v876 = vunpack.c.l.b16 %v781
        %v877 = vunpack.c.l.b16 %v782
        %v878 = vunpack.c.h.b16 %v782
        %v879 = vunpack.c.l.b16 %v783
        %v880 = vunpack.c.l.b16 %v784
        %v881 = vunpack.c.h.b16 %v784
        %v882 = vunpack.c.l.b16 %v785
        %v883 = vunpack.c.l.b16 %v786
        %v884 = vunpack.c.h.b16 %v786
        %v885 = vunpack.c.l.b16 %v787
        %v886 = vunpack.c.l.b16 %v788
        %v887 = vunpack.c.h.b16 %v788
        %v888 = vunpack.c.l.b16 %v789
        %v889 = vunpack.c.l.b16 %v790
        %v890 = vunpack.c.h.b16 %v790
        %v891 = vunpack.c.l.b16 %v791
        %v892 = vunpack.c.l.b16 %v792
        %v893 = vunpack.c.h.b16 %v792
        %v894 = vunpack.c.l.b16 %v793
        %v895 = vunpack.c.l.b16 %v794
        %v896 = vunpack.c.h.b16 %v794
        %v897 = vunpack.c.l.b16 %v795
        %v898 = vunpack.c.l.b16 %v796
        %v899 = vunpack.c.h.b16 %v796
        %v900 = vunpack.c.l.b16 %v797
        %v901 = vunpack.c.l.b16 %v798
        %v902 = vunpack.c.h.b16 %v798
        %v903 = vunpack.c.l.b16 %v799
        %v904 = vunpack.c.l.b16 %v800
        %v905 = vunpack.c.h.b16 %v800
        %v906 = vunpack.c.l.b16 %v801
        %v907 = vunpack.c.l.b16 %v802
        %v908 = vunpack.c.h.b16 %v802
        %v909 = vunpack.c.l.b16 %v803
        %v910 = vunpack.c.l.b16 %v804
        %v911 = vunpack.c.h.b16 %v804
        %v912 = vunpack.c.l.b16 %v805
        %v913 = vunpack.c.l.b16 %v806
        %v914 = vunpack.c.h.b16 %v806
        %v915 = vunpack.c.l.b16 %v807
        %v916 = vunpack.c.l.b16 %v808
        %v917 = vunpack.c.h.b16 %v808
        %v918 = vunpack.c.l.b16 %v809
        %v919 = vunpack.c.l.b16 %v810
        %v920 = vunpack.c.h.b16 %v810
        %v921 = vunpack.c.l.b16 %v811
        %v922 = vpack.c.b16 %v877, %v874
        %v923 = vpack.c.b16 %v878, %v875
        %v924 = vpack.c.b16 %v879, %v876
        %v925 = vpack.c.b16 %v883, %v880
        %v926 = vpack.c.b16 %v884, %v881
        %v927 = vpack.c.b16 %v885, %v882
        %v928 = vpack.c.b16 %v889, %v886
        %v929 = vpack.c.b16 %v890, %v887
        %v930 = vpack.c.b16 %v891, %v888
        %v931 = vpack.c.b16 %v895, %v892
        %v932 = vpack.c.b16 %v896, %v893
        %v933 = vpack.c.b16 %v897, %v894
        %v934 = vpack.c.b16 %v901, %v898
        %v935 = vpack.c.b16 %v902, %v899
        %v936 = vpack.c.b16 %v903, %v900
        %v937 = vpack.c.b16 %v907, %v904
        %v938 = vpack.c.b16 %v908, %v905
        %v939 = vpack.c.b16 %v909, %v906
        %v940 = vpack.c.b16 %v913, %v910
        %v941 = vpack.c.b16 %v914, %v911
        %v942 = vpack.c.b16 %v915, %v912
        %v943 = vpack.c.b16 %v919, %v916
        %v944 = vpack.c.b16 %v920, %v917
        %v945 = vpack.c.b16 %v921, %v918
        %970 = vmatprep.subr.bf16.mxu0 %v923
        %971 = vmatpush1.bf16.msra.mxu0 %v922
        %972 = vmatprep.subr.bf16.mxu0 %v926
        %973 = vmatpush1.bf16.msra.mxu0 %v925
        %974 = vmatprep.subr.bf16.mxu0 %v929
        %975 = vmatpush1.bf16.msra.mxu0 %v928
        %976 = vmatprep.subr.bf16.mxu0 %v932
        %977 = vmatpush1.bf16.msra.mxu0 %v931
        %978 = vmatprep.subr.bf16.mxu0 %v935
        %979 = vmatpush1.bf16.msra.mxu0 %v934
        %980 = vmatprep.subr.bf16.mxu0 %v938
        %981 = vmatpush1.bf16.msra.mxu0 %v937
        %982 = vmatprep.subr.bf16.mxu0 %v941
        %983 = vmatpush1.bf16.msra.mxu0 %v940
        %984 = vmatprep.subr.bf16.mxu0 %v944
        %985 = vmatpush1.bf16.msra.mxu0 %v943
        %986 = vmatprep.subr.bf16.mxu0 0
        %987 = vmatpush1.bf16.msra.mxu0 0
        %988 = vmatprep.subr.bf16.mxu0 0
        %989 = vmatpush1.bf16.msra.mxu0 0
        %990 = vmatprep.subr.bf16.mxu0 0
        %991 = vmatpush1.bf16.msra.mxu0 0
        %992 = vmatprep.subr.bf16.mxu0 0
        %993 = vmatpush1.bf16.msra.mxu0 0
        %994 = vmatprep.subr.bf16.mxu0 0
        %995 = vmatpush1.bf16.msra.mxu0 0
        %996 = vmatprep.subr.bf16.mxu0 0
        %997 = vmatpush1.bf16.msra.mxu0 0
        %998 = vmatprep.subr.bf16.mxu0 0
        %999 = vmatpush1.bf16.msra.mxu0 0
        %1000 = vmatprep.subr.bf16.mxu0 0
        %1001 = vmatpush1.bf16.msra.mxu0 0
        %1002 = vmatprep.mubr.bf16.mxu0 0
        %1003 = vmatmul.mubr.bf16.gmra.mrb[0].mxu0 %v838
        %v1004 = vpop.f32.mrb[0].mxu0
        %v1005 = vadd.f32 %v818, %v1004
        %v1006 = vpop.f32.mrb[0].mxu0
        %v1007 = vadd.f32 %v822, %v1006
        %v1008 = vpop.f32.mrb[0].mxu0
        %v1009 = vadd.f32 %v818, %v1008
        %v1010 = vpop.f32.mrb[0].mxu0
        %v1011 = vadd.f32 %v822, %v1010
        %1012 = vmatprep.mubr.bf16.mxu0 0
        %1013 = vmatmul.mubr.bf16.gmra.mrb[0].mxu0 %v839
        %v1014 = vpop.f32.mrb[0].mxu0
        %v1015 = vadd.f32 %v818, %v1014
        %v1016 = vpop.f32.mrb[0].mxu0
        %v1017 = vadd.f32 %v822, %v1016
        %v1018 = vpop.f32.mrb[0].mxu0
        %v1019 = vadd.f32 %v818, %v1018
        %v1020 = vpop.f32.mrb[0].mxu0
        %v1021 = vadd.f32 %v822, %v1020
        %1022 = vdwg.mxu0
        %1023 = vmatprep.subr.bf16.mxu0 0
        %1024 = vmatpush1.bf16.msra.mxu0 %v924
        %1025 = vmatprep.subr.bf16.mxu0 0
        %1026 = vmatpush1.bf16.msra.mxu0 %v927
        %1027 = vmatprep.subr.bf16.mxu0 0
        %1028 = vmatpush1.bf16.msra.mxu0 %v930
        %1029 = vmatprep.subr.bf16.mxu0 0
        %1030 = vmatpush1.bf16.msra.mxu0 %v933
        %1031 = vmatprep.subr.bf16.mxu0 0
        %1032 = vmatpush1.bf16.msra.mxu0 %v936
        %1033 = vmatprep.subr.bf16.mxu0 0
        %1034 = vmatpush1.bf16.msra.mxu0 %v939
        %1035 = vmatprep.subr.bf16.mxu0 0
        %1036 = vmatpush1.bf16.msra.mxu0 %v942
        %1037 = vmatprep.subr.bf16.mxu0 0
        %1038 = vmatpush1.bf16.msra.mxu0 %v945
        %1039 = vmatprep.subr.bf16.mxu0 0
        %1040 = vmatpush1.bf16.msra.mxu0 0
        %1041 = vmatprep.subr.bf16.mxu0 0
        %1042 = vmatpush1.bf16.msra.mxu0 0
        %1043 = vmatprep.subr.bf16.mxu0 0
        %1044 = vmatpush1.bf16.msra.mxu0 0
        %1045 = vmatprep.subr.bf16.mxu0 0
        %1046 = vmatpush1.bf16.msra.mxu0 0
        %1047 = vmatprep.subr.bf16.mxu0 0
        %1048 = vmatpush1.bf16.msra.mxu0 0
        %1049 = vmatprep.subr.bf16.mxu0 0
        %1050 = vmatpush1.bf16.msra.mxu0 0
        %1051 = vmatprep.subr.bf16.mxu0 0
        %1052 = vmatpush1.bf16.msra.mxu0 0
        %1053 = vmatprep.subr.bf16.mxu0 0
        %1054 = vmatpush1.bf16.msra.mxu0 0
        %1055 = vmatprep.mubr.bf16.mxu0 0
        %1056 = vmatmul.mubr.bf16.gmra.mrb[0].mxu0 %v838
        %v1057 = vpop.f32.mrb[0].mxu0
        %v1058 = vadd.f32 %v826, %v1057
        %v1059 = vpop.f32.mrb[0].mxu0
        %v1060 = vpop.f32.mrb[0].mxu0
        %v1061 = vadd.f32 %v826, %v1060
        %v1062 = vpop.f32.mrb[0].mxu0
        %1063 = vmatprep.mubr.bf16.mxu0 0
        %1064 = vmatmul.mubr.bf16.gmra.mrb[0].mxu0 %v839
        %v1065 = vpop.f32.mrb[0].mxu0
        %v1066 = vadd.f32 %v826, %v1065
        %v1067 = vpop.f32.mrb[0].mxu0
        %v1068 = vpop.f32.mrb[0].mxu0
        %v1069 = vadd.f32 %v826, %v1068
        %v1070 = vpop.f32.mrb[0].mxu0
        %1071 = vdwg.mxu0
        %v1072 = vpack.c.bf16 %v1005, %v1005
        %v1073 = vpack.c.bf16 %v1007, %v1007
        %v1074 = vpack.c.bf16 %v1058, %v1058
        %v1075 = vpack.c.bf16 %v1009, %v1009
        %v1076 = vpack.c.bf16 %v1011, %v1011
        %v1077 = vpack.c.bf16 %v1061, %v1061
        %v1078 = vpack.c.bf16 %v1015, %v1015
        %v1079 = vpack.c.bf16 %v1017, %v1017
        %v1080 = vpack.c.bf16 %v1066, %v1066
        %v1081 = vpack.c.bf16 %v1019, %v1019
        %v1082 = vpack.c.bf16 %v1021, %v1021
        %v1083 = vpack.c.bf16 %v1069, %v1069
        %v1096 = vunpack.c.l.b16 %v1072
        %v1097 = vunpack.c.l.b16 %v1073
        %v1098 = vunpack.c.l.b16 %v1074
        %v1099 = vunpack.c.l.b16 %v1075
        %v1100 = vunpack.c.l.b16 %v1076
        %v1101 = vunpack.c.l.b16 %v1077
        %v1102 = vunpack.c.l.b16 %v1078
        %v1103 = vunpack.c.l.b16 %v1079
        %v1104 = vunpack.c.l.b16 %v1080
        %v1105 = vunpack.c.l.b16 %v1081
        %v1106 = vunpack.c.l.b16 %v1082
        %v1107 = vunpack.c.l.b16 %v1083
        %v1108 = vpack.c.b16 %v1097, %v1096
        %v1109 = vpack.c.b16 %v1098, %v1098
        %v1110 = vpack.c.b16 %v1100, %v1099
        %v1111 = vpack.c.b16 %v1101, %v1101
        %v1112 = vpack.c.b16 %v1103, %v1102
        %v1113 = vpack.c.b16 %v1104, %v1104
        %v1114 = vpack.c.b16 %v1106, %v1105
        %v1115 = vpack.c.b16 %v1107, %v1107
        %1124 = vst [vmem:[#allocation5] sm:$0xff] %v1108
        %1125 = vst [vmem:[#allocation5 + $0x8] sm:$0xf] %v1109
        %1126 = vst [vmem:[#allocation5 + $0xc] sm:$0xff] %v1110
        %1127 = vst [vmem:[#allocation5 + $0x14] sm:$0xf] %v1111
        %1128 = vst [vmem:[#allocation5 + $0x18] sm:$0xff] %v1112
        %1129 = vst [vmem:[#allocation5 + $0x20] sm:$0xf] %v1113
        %1130 = vst [vmem:[#allocation5 + $0x24] sm:$0xff] %v1114
        %1131 = vst [vmem:[#allocation5 + $0x2c] sm:$0xf] %v1115
        %v1132 = vld [vmem:[#allocation11] sm:$0x1]
        %s1133 = scalar_lea.vmem [#allocation11], 1
        %v1134 = vld [vmem:[%s1133] sm:$0x1]
        %v1135 = vld [vmem:[#allocation2] sm:$0xff]
        %v1136 = vld [vmem:[#allocation3] sm:$0xff]
        %v1137 = vld [vmem:[#allocation4] sm:$0xff]
        %v1138 = vld [vmem:[#allocation4 + $0x8] sm:$0xf]
        %v1139 = vunpack.c.l.bf16 %v1137
        %v1140 = vunpack.c.h.bf16 %v1137
        %v1141 = vunpack.c.l.bf16 %v1138
        %s1142 = scalar_lea.vmem [#allocation5], 36
        %v1143 = vld [vmem:[%s1142] sm:$0xff]
        %v1144 = vld [vmem:[%s1142 + $0x8] sm:$0xf]
        %v1145 = vunpack.c.l.bf16 %v1143
        %v1146 = vunpack.c.h.bf16 %v1143
        %v1147 = vunpack.c.l.bf16 %v1144
        %v1148 = vpack.c.bf16 %v1135, %v1135
        %v1149 = vld [vmem:[#allocation8] sm:$0xff]
        %v1150 = vld [vmem:[#allocation8 + $0x8] sm:$0xf]
        %v1151 = vld [vmem:[#allocation8 + $0xc] sm:$0xff]
        %v1152 = vld [vmem:[#allocation8 + $0x14] sm:$0xf]
        %v1153 = vld [vmem:[#allocation8 + $0x18] sm:$0xff]
        %v1154 = vld [vmem:[#allocation8 + $0x20] sm:$0xf]
        %v1155 = vld [vmem:[#allocation8 + $0x24] sm:$0xff]
        %v1156 = vld [vmem:[#allocation8 + $0x2c] sm:$0xf]
        %v1157 = vld [vmem:[#allocation8 + $0x30] sm:$0xff]
        %v1158 = vld [vmem:[#allocation8 + $0x38] sm:$0xf]
        %v1159 = vld [vmem:[#allocation8 + $0x3c] sm:$0xff]
        %v1160 = vld [vmem:[#allocation8 + $0x44] sm:$0xf]
        %v1161 = vld [vmem:[#allocation8 + $0x48] sm:$0xff]
        %v1162 = vld [vmem:[#allocation8 + $0x50] sm:$0xf]
        %v1163 = vld [vmem:[#allocation8 + $0x54] sm:$0xff]
        %v1164 = vld [vmem:[#allocation8 + $0x5c] sm:$0xf]
        %v1165 = vld [vmem:[#allocation8 + $0x60] sm:$0xff]
        %v1166 = vld [vmem:[#allocation8 + $0x68] sm:$0xf]
        %v1167 = vld [vmem:[#allocation8 + $0x6c] sm:$0xff]
        %v1168 = vld [vmem:[#allocation8 + $0x74] sm:$0xf]
        %v1169 = vld [vmem:[#allocation8 + $0x78] sm:$0xff]
        %v1170 = vld [vmem:[#allocation8 + $0x80] sm:$0xf]
        %v1171 = vld [vmem:[#allocation8 + $0x84] sm:$0xff]
        %v1172 = vld [vmem:[#allocation8 + $0x8c] sm:$0xf]
        %v1173 = vld [vmem:[#allocation8 + $0x90] sm:$0xff]
        %v1174 = vld [vmem:[#allocation8 + $0x98] sm:$0xf]
        %v1175 = vld [vmem:[#allocation8 + $0x9c] sm:$0xff]
        %v1176 = vld [vmem:[#allocation8 + $0xa4] sm:$0xf]
        %v1177 = vld [vmem:[#allocation8 + $0xa8] sm:$0xff]
        %v1178 = vld [vmem:[#allocation8 + $0xb0] sm:$0xf]
        %v1179 = vld [vmem:[#allocation8 + $0xb4] sm:$0xff]
        %v1180 = vld [vmem:[#allocation8 + $0xbc] sm:$0xf]
        %v1213 = vunpack.c.l.b16 %v1149
        %v1214 = vunpack.c.h.b16 %v1149
        %v1215 = vunpack.c.l.b16 %v1150
        %v1216 = vunpack.c.l.b16 %v1151
        %v1217 = vunpack.c.h.b16 %v1151
        %v1218 = vunpack.c.l.b16 %v1152
        %v1219 = vunpack.c.l.b16 %v1153
        %v1220 = vunpack.c.h.b16 %v1153
        %v1221 = vunpack.c.l.b16 %v1154
        %v1222 = vunpack.c.l.b16 %v1155
        %v1223 = vunpack.c.h.b16 %v1155
        %v1224 = vunpack.c.l.b16 %v1156
        %v1225 = vunpack.c.l.b16 %v1157
        %v1226 = vunpack.c.h.b16 %v1157
        %v1227 = vunpack.c.l.b16 %v1158
        %v1228 = vunpack.c.l.b16 %v1159
        %v1229 = vunpack.c.h.b16 %v1159
        %v1230 = vunpack.c.l.b16 %v1160
        %v1231 = vunpack.c.l.b16 %v1161
        %v1232 = vunpack.c.h.b16 %v1161
        %v1233 = vunpack.c.l.b16 %v1162
        %v1234 = vunpack.c.l.b16 %v1163
        %v1235 = vunpack.c.h.b16 %v1163
        %v1236 = vunpack.c.l.b16 %v1164
        %v1237 = vunpack.c.l.b16 %v1165
        %v1238 = vunpack.c.h.b16 %v1165
        %v1239 = vunpack.c.l.b16 %v1166
        %v1240 = vunpack.c.l.b16 %v1167
        %v1241 = vunpack.c.h.b16 %v1167
        %v1242 = vunpack.c.l.b16 %v1168
        %v1243 = vunpack.c.l.b16 %v1169
        %v1244 = vunpack.c.h.b16 %v1169
        %v1245 = vunpack.c.l.b16 %v1170
        %v1246 = vunpack.c.l.b16 %v1171
        %v1247 = vunpack.c.h.b16 %v1171
        %v1248 = vunpack.c.l.b16 %v1172
        %v1249 = vunpack.c.l.b16 %v1173
        %v1250 = vunpack.c.h.b16 %v1173
        %v1251 = vunpack.c.l.b16 %v1174
        %v1252 = vunpack.c.l.b16 %v1175
        %v1253 = vunpack.c.h.b16 %v1175
        %v1254 = vunpack.c.l.b16 %v1176
        %v1255 = vunpack.c.l.b16 %v1177
        %v1256 = vunpack.c.h.b16 %v1177
        %v1257 = vunpack.c.l.b16 %v1178
        %v1258 = vunpack.c.l.b16 %v1179
        %v1259 = vunpack.c.h.b16 %v1179
        %v1260 = vunpack.c.l.b16 %v1180
        %v1261 = vpack.c.b16 %v1216, %v1213
        %v1262 = vpack.c.b16 %v1217, %v1214
        %v1263 = vpack.c.b16 %v1218, %v1215
        %v1264 = vpack.c.b16 %v1222, %v1219
        %v1265 = vpack.c.b16 %v1223, %v1220
        %v1266 = vpack.c.b16 %v1224, %v1221
        %v1267 = vpack.c.b16 %v1228, %v1225
        %v1268 = vpack.c.b16 %v1229, %v1226
        %v1269 = vpack.c.b16 %v1230, %v1227
        %v1270 = vpack.c.b16 %v1234, %v1231
        %v1271 = vpack.c.b16 %v1235, %v1232
        %v1272 = vpack.c.b16 %v1236, %v1233
        %v1273 = vpack.c.b16 %v1240, %v1237
        %v1274 = vpack.c.b16 %v1241, %v1238
        %v1275 = vpack.c.b16 %v1242, %v1239
        %v1276 = vpack.c.b16 %v1246, %v1243
        %v1277 = vpack.c.b16 %v1247, %v1244
        %v1278 = vpack.c.b16 %v1248, %v1245
        %v1279 = vpack.c.b16 %v1252, %v1249
        %v1280 = vpack.c.b16 %v1253, %v1250
        %v1281 = vpack.c.b16 %v1254, %v1251
        %v1282 = vpack.c.b16 %v1258, %v1255
        %v1283 = vpack.c.b16 %v1259, %v1256
        %v1284 = vpack.c.b16 %v1260, %v1257
        %1309 = vmatprep.subr.bf16.mxu0 %v1262
        %1310 = vmatpush1.bf16.msra.mxu0 %v1261
        %1311 = vmatprep.subr.bf16.mxu0 %v1265
        %1312 = vmatpush1.bf16.msra.mxu0 %v1264
        %1313 = vmatprep.subr.bf16.mxu0 %v1268
        %1314 = vmatpush1.bf16.msra.mxu0 %v1267
        %1315 = vmatprep.subr.bf16.mxu0 %v1271
        %1316 = vmatpush1.bf16.msra.mxu0 %v1270
        %1317 = vmatprep.subr.bf16.mxu0 %v1274
        %1318 = vmatpush1.bf16.msra.mxu0 %v1273
        %1319 = vmatprep.subr.bf16.mxu0 %v1277
        %1320 = vmatpush1.bf16.msra.mxu0 %v1276
        %1321 = vmatprep.subr.bf16.mxu0 %v1280
        %1322 = vmatpush1.bf16.msra.mxu0 %v1279
        %1323 = vmatprep.subr.bf16.mxu0 %v1283
        %1324 = vmatpush1.bf16.msra.mxu0 %v1282
        %1325 = vmatprep.subr.bf16.mxu0 0
        %1326 = vmatpush1.bf16.msra.mxu0 0
        %1327 = vmatprep.subr.bf16.mxu0 0
        %1328 = vmatpush1.bf16.msra.mxu0 0
        %1329 = vmatprep.subr.bf16.mxu0 0
        %1330 = vmatpush1.bf16.msra.mxu0 0
        %1331 = vmatprep.subr.bf16.mxu0 0
        %1332 = vmatpush1.bf16.msra.mxu0 0
        %1333 = vmatprep.subr.bf16.mxu0 0
        %1334 = vmatpush1.bf16.msra.mxu0 0
        %1335 = vmatprep.subr.bf16.mxu0 0
        %1336 = vmatpush1.bf16.msra.mxu0 0
        %1337 = vmatprep.subr.bf16.mxu0 0
        %1338 = vmatpush1.bf16.msra.mxu0 0
        %1339 = vmatprep.subr.bf16.mxu0 0
        %1340 = vmatpush1.bf16.msra.mxu0 0
        %1341 = vmatprep.mubr.bf16.mxu0 0
        %1342 = vmatmul.mubr.bf16.gmra.mrb[0].mxu0 %v1148
        %v1343 = vpop.f32.mrb[0].mxu0
        %v1344 = vadd.f32 0.0, %v1343
        %v1345 = vpop.f32.mrb[0].mxu0
        %v1346 = vadd.f32 0.0, %v1345
        %v1347 = vpop.f32.mrb[0].mxu0
        %v1348 = vpop.f32.mrb[0].mxu0
        %1349 = vdwg.mxu0
        %1350 = vmatprep.subr.bf16.mxu0 0
        %1351 = vmatpush1.bf16.msra.mxu0 %v1263
        %1352 = vmatprep.subr.bf16.mxu0 0
        %1353 = vmatpush1.bf16.msra.mxu0 %v1266
        %1354 = vmatprep.subr.bf16.mxu0 0
        %1355 = vmatpush1.bf16.msra.mxu0 %v1269
        %1356 = vmatprep.subr.bf16.mxu0 0
        %1357 = vmatpush1.bf16.msra.mxu0 %v1272
        %1358 = vmatprep.subr.bf16.mxu0 0
        %1359 = vmatpush1.bf16.msra.mxu0 %v1275
        %1360 = vmatprep.subr.bf16.mxu0 0
        %1361 = vmatpush1.bf16.msra.mxu0 %v1278
        %1362 = vmatprep.subr.bf16.mxu0 0
        %1363 = vmatpush1.bf16.msra.mxu0 %v1281
        %1364 = vmatprep.subr.bf16.mxu0 0
        %1365 = vmatpush1.bf16.msra.mxu0 %v1284
        %1366 = vmatprep.subr.bf16.mxu0 0
        %1367 = vmatpush1.bf16.msra.mxu0 0
        %1368 = vmatprep.subr.bf16.mxu0 0
        %1369 = vmatpush1.bf16.msra.mxu0 0
        %1370 = vmatprep.subr.bf16.mxu0 0
        %1371 = vmatpush1.bf16.msra.mxu0 0
        %1372 = vmatprep.subr.bf16.mxu0 0
        %1373 = vmatpush1.bf16.msra.mxu0 0
        %1374 = vmatprep.subr.bf16.mxu0 0
        %1375 = vmatpush1.bf16.msra.mxu0 0
        %1376 = vmatprep.subr.bf16.mxu0 0
        %1377 = vmatpush1.bf16.msra.mxu0 0
        %1378 = vmatprep.subr.bf16.mxu0 0
        %1379 = vmatpush1.bf16.msra.mxu0 0
        %1380 = vmatprep.subr.bf16.mxu0 0
        %1381 = vmatpush1.bf16.msra.mxu0 0
        %1382 = vmatprep.mubr.bf16.mxu0 0
        %1383 = vmatmul.mubr.bf16.gmra.mrb[0].mxu0 %v1148
        %v1384 = vpop.f32.mrb[0].mxu0
        %v1385 = vadd.f32 0.0, %v1384
        %v1386 = vpop.f32.mrb[0].mxu0
        %v1387 = vpop.f32.mrb[0].mxu0
        %v1388 = vpop.f32.mrb[0].mxu0
        %1389 = vdwg.mxu0
        %v1390 = vpack.c.bf16 %v1136, %v1136
        %s1391 = scalar_lea.vmem [#allocation8], 192
        %v1392 = vld [vmem:[%s1391] sm:$0xff]
        %v1393 = vld [vmem:[%s1391 + $0x8] sm:$0xf]
        %v1394 = vld [vmem:[%s1391 + $0xc] sm:$0xff]
        %v1395 = vld [vmem:[%s1391 + $0x14] sm:$0xf]
        %v1396 = vld [vmem:[%s1391 + $0x18] sm:$0xff]
        %v1397 = vld [vmem:[%s1391 + $0x20] sm:$0xf]
        %v1398 = vld [vmem:[%s1391 + $0x24] sm:$0xff]
        %v1399 = vld [vmem:[%s1391 + $0x2c] sm:$0xf]
        %v1400 = vld [vmem:[%s1391 + $0x30] sm:$0xff]
        %v1401 = vld [vmem:[%s1391 + $0x38] sm:$0xf]
        %v1402 = vld [vmem:[%s1391 + $0x3c] sm:$0xff]
        %v1403 = vld [vmem:[%s1391 + $0x44] sm:$0xf]
        %v1404 = vld [vmem:[%s1391 + $0x48] sm:$0xff]
        %v1405 = vld [vmem:[%s1391 + $0x50] sm:$0xf]
        %v1406 = vld [vmem:[%s1391 + $0x54] sm:$0xff]
        %v1407 = vld [vmem:[%s1391 + $0x5c] sm:$0xf]
        %v1408 = vld [vmem:[%s1391 + $0x60] sm:$0xff]
        %v1409 = vld [vmem:[%s1391 + $0x68] sm:$0xf]
        %v1410 = vld [vmem:[%s1391 + $0x6c] sm:$0xff]
        %v1411 = vld [vmem:[%s1391 + $0x74] sm:$0xf]
        %v1412 = vld [vmem:[%s1391 + $0x78] sm:$0xff]
        %v1413 = vld [vmem:[%s1391 + $0x80] sm:$0xf]
        %v1414 = vld [vmem:[%s1391 + $0x84] sm:$0xff]
        %v1415 = vld [vmem:[%s1391 + $0x8c] sm:$0xf]
        %v1416 = vld [vmem:[%s1391 + $0x90] sm:$0xff]
        %v1417 = vld [vmem:[%s1391 + $0x98] sm:$0xf]
        %v1418 = vld [vmem:[%s1391 + $0x9c] sm:$0xff]
        %v1419 = vld [vmem:[%s1391 + $0xa4] sm:$0xf]
        %v1420 = vld [vmem:[%s1391 + $0xa8] sm:$0xff]
        %v1421 = vld [vmem:[%s1391 + $0xb0] sm:$0xf]
        %v1422 = vld [vmem:[%s1391 + $0xb4] sm:$0xff]
        %v1423 = vld [vmem:[%s1391 + $0xbc] sm:$0xf]
        %v1456 = vunpack.c.l.b16 %v1392
        %v1457 = vunpack.c.h.b16 %v1392
        %v1458 = vunpack.c.l.b16 %v1393
        %v1459 = vunpack.c.l.b16 %v1394
        %v1460 = vunpack.c.h.b16 %v1394
        %v1461 = vunpack.c.l.b16 %v1395
        %v1462 = vunpack.c.l.b16 %v1396
        %v1463 = vunpack.c.h.b16 %v1396
        %v1464 = vunpack.c.l.b16 %v1397
        %v1465 = vunpack.c.l.b16 %v1398
        %v1466 = vunpack.c.h.b16 %v1398
        %v1467 = vunpack.c.l.b16 %v1399
        %v1468 = vunpack.c.l.b16 %v1400
        %v1469 = vunpack.c.h.b16 %v1400
        %v1470 = vunpack.c.l.b16 %v1401
        %v1471 = vunpack.c.l.b16 %v1402
        %v1472 = vunpack.c.h.b16 %v1402
        %v1473 = vunpack.c.l.b16 %v1403
        %v1474 = vunpack.c.l.b16 %v1404
        %v1475 = vunpack.c.h.b16 %v1404
        %v1476 = vunpack.c.l.b16 %v1405
        %v1477 = vunpack.c.l.b16 %v1406
        %v1478 = vunpack.c.h.b16 %v1406
        %v1479 = vunpack.c.l.b16 %v1407
        %v1480 = vunpack.c.l.b16 %v1408
        %v1481 = vunpack.c.h.b16 %v1408
        %v1482 = vunpack.c.l.b16 %v1409
        %v1483 = vunpack.c.l.b16 %v1410
        %v1484 = vunpack.c.h.b16 %v1410
        %v1485 = vunpack.c.l.b16 %v1411
        %v1486 = vunpack.c.l.b16 %v1412
        %v1487 = vunpack.c.h.b16 %v1412
        %v1488 = vunpack.c.l.b16 %v1413
        %v1489 = vunpack.c.l.b16 %v1414
        %v1490 = vunpack.c.h.b16 %v1414
        %v1491 = vunpack.c.l.b16 %v1415
        %v1492 = vunpack.c.l.b16 %v1416
        %v1493 = vunpack.c.h.b16 %v1416
        %v1494 = vunpack.c.l.b16 %v1417
        %v1495 = vunpack.c.l.b16 %v1418
        %v1496 = vunpack.c.h.b16 %v1418
        %v1497 = vunpack.c.l.b16 %v1419
        %v1498 = vunpack.c.l.b16 %v1420
        %v1499 = vunpack.c.h.b16 %v1420
        %v1500 = vunpack.c.l.b16 %v1421
        %v1501 = vunpack.c.l.b16 %v1422
        %v1502 = vunpack.c.h.b16 %v1422
        %v1503 = vunpack.c.l.b16 %v1423
        %v1504 = vpack.c.b16 %v1459, %v1456
        %v1505 = vpack.c.b16 %v1460, %v1457
        %v1506 = vpack.c.b16 %v1461, %v1458
        %v1507 = vpack.c.b16 %v1465, %v1462
        %v1508 = vpack.c.b16 %v1466, %v1463
        %v1509 = vpack.c.b16 %v1467, %v1464
        %v1510 = vpack.c.b16 %v1471, %v1468
        %v1511 = vpack.c.b16 %v1472, %v1469
        %v1512 = vpack.c.b16 %v1473, %v1470
        %v1513 = vpack.c.b16 %v1477, %v1474
        %v1514 = vpack.c.b16 %v1478, %v1475
        %v1515 = vpack.c.b16 %v1479, %v1476
        %v1516 = vpack.c.b16 %v1483, %v1480
        %v1517 = vpack.c.b16 %v1484, %v1481
        %v1518 = vpack.c.b16 %v1485, %v1482
        %v1519 = vpack.c.b16 %v1489, %v1486
        %v1520 = vpack.c.b16 %v1490, %v1487
        %v1521 = vpack.c.b16 %v1491, %v1488
        %v1522 = vpack.c.b16 %v1495, %v1492
        %v1523 = vpack.c.b16 %v1496, %v1493
        %v1524 = vpack.c.b16 %v1497, %v1494
        %v1525 = vpack.c.b16 %v1501, %v1498
        %v1526 = vpack.c.b16 %v1502, %v1499
        %v1527 = vpack.c.b16 %v1503, %v1500
        %1552 = vmatprep.subr.bf16.mxu0 %v1505
        %1553 = vmatpush1.bf16.msra.mxu0 %v1504
        %1554 = vmatprep.subr.bf16.mxu0 %v1508
        %1555 = vmatpush1.bf16.msra.mxu0 %v1507
        %1556 = vmatprep.subr.bf16.mxu0 %v1511
        %1557 = vmatpush1.bf16.msra.mxu0 %v1510
        %1558 = vmatprep.subr.bf16.mxu0 %v1514
        %1559 = vmatpush1.bf16.msra.mxu0 %v1513
        %1560 = vmatprep.subr.bf16.mxu0 %v1517
        %1561 = vmatpush1.bf16.msra.mxu0 %v1516
        %1562 = vmatprep.subr.bf16.mxu0 %v1520
        %1563 = vmatpush1.bf16.msra.mxu0 %v1519
        %1564 = vmatprep.subr.bf16.mxu0 %v1523
        %1565 = vmatpush1.bf16.msra.mxu0 %v1522
        %1566 = vmatprep.subr.bf16.mxu0 %v1526
        %1567 = vmatpush1.bf16.msra.mxu0 %v1525
        %1568 = vmatprep.subr.bf16.mxu0 0
        %1569 = vmatpush1.bf16.msra.mxu0 0
        %1570 = vmatprep.subr.bf16.mxu0 0
        %1571 = vmatpush1.bf16.msra.mxu0 0
        %1572 = vmatprep.subr.bf16.mxu0 0
        %1573 = vmatpush1.bf16.msra.mxu0 0
        %1574 = vmatprep.subr.bf16.mxu0 0
        %1575 = vmatpush1.bf16.msra.mxu0 0
        %1576 = vmatprep.subr.bf16.mxu0 0
        %1577 = vmatpush1.bf16.msra.mxu0 0
        %1578 = vmatprep.subr.bf16.mxu0 0
        %1579 = vmatpush1.bf16.msra.mxu0 0
        %1580 = vmatprep.subr.bf16.mxu0 0
        %1581 = vmatpush1.bf16.msra.mxu0 0
        %1582 = vmatprep.subr.bf16.mxu0 0
        %1583 = vmatpush1.bf16.msra.mxu0 0
        %1584 = vmatprep.mubr.bf16.mxu0 0
        %1585 = vmatmul.mubr.bf16.gmra.mrb[0].mxu0 %v1390
        %v1586 = vpop.f32.mrb[0].mxu0
        %v1587 = vadd.f32 0.0, %v1586
        %v1588 = vpop.f32.mrb[0].mxu0
        %v1589 = vadd.f32 0.0, %v1588
        %v1590 = vpop.f32.mrb[0].mxu0
        %v1591 = vpop.f32.mrb[0].mxu0
        %1592 = vdwg.mxu0
        %1593 = vmatprep.subr.bf16.mxu0 0
        %1594 = vmatpush1.bf16.msra.mxu0 %v1506
        %1595 = vmatprep.subr.bf16.mxu0 0
        %1596 = vmatpush1.bf16.msra.mxu0 %v1509
        %1597 = vmatprep.subr.bf16.mxu0 0
        %1598 = vmatpush1.bf16.msra.mxu0 %v1512
        %1599 = vmatprep.subr.bf16.mxu0 0
        %1600 = vmatpush1.bf16.msra.mxu0 %v1515
        %1601 = vmatprep.subr.bf16.mxu0 0
        %1602 = vmatpush1.bf16.msra.mxu0 %v1518
        %1603 = vmatprep.subr.bf16.mxu0 0
        %1604 = vmatpush1.bf16.msra.mxu0 %v1521
        %1605 = vmatprep.subr.bf16.mxu0 0
        %1606 = vmatpush1.bf16.msra.mxu0 %v1524
        %1607 = vmatprep.subr.bf16.mxu0 0
        %1608 = vmatpush1.bf16.msra.mxu0 %v1527
        %1609 = vmatprep.subr.bf16.mxu0 0
        %1610 = vmatpush1.bf16.msra.mxu0 0
        %1611 = vmatprep.subr.bf16.mxu0 0
        %1612 = vmatpush1.bf16.msra.mxu0 0
        %1613 = vmatprep.subr.bf16.mxu0 0
        %1614 = vmatpush1.bf16.msra.mxu0 0
        %1615 = vmatprep.subr.bf16.mxu0 0
        %1616 = vmatpush1.bf16.msra.mxu0 0
        %1617 = vmatprep.subr.bf16.mxu0 0
        %1618 = vmatpush1.bf16.msra.mxu0 0
        %1619 = vmatprep.subr.bf16.mxu0 0
        %1620 = vmatpush1.bf16.msra.mxu0 0
        %1621 = vmatprep.subr.bf16.mxu0 0
        %1622 = vmatpush1.bf16.msra.mxu0 0
        %1623 = vmatprep.subr.bf16.mxu0 0
        %1624 = vmatpush1.bf16.msra.mxu0 0
        %1625 = vmatprep.mubr.bf16.mxu0 0
        %1626 = vmatmul.mubr.bf16.gmra.mrb[0].mxu0 %v1390
        %v1627 = vpop.f32.mrb[0].mxu0
        %v1628 = vadd.f32 0.0, %v1627
        %v1629 = vpop.f32.mrb[0].mxu0
        %v1630 = vpop.f32.mrb[0].mxu0
        %v1631 = vpop.f32.mrb[0].mxu0
        %1632 = vdwg.mxu0
        %v1633 = vadd.f32 %v1139, %v1344
        %v1634 = vadd.f32 %v1140, %v1346
        %v1635 = vxor.u32 %v1633, 2147483648
        %v1636 = vxor.u32 %v1634, 2147483648
        %v1637 = vmul.f32 %v1635, 1.442695
        %v1638 = vpow.pop %v1637
        %v1639 = vmul.f32 %v1636, 1.442695
        %v1640 = vpow.pop %v1639
        %v1641 = vadd.f32 %v1638, 1.0
        %v1642 = vadd.f32 %v1640, 1.0
        %v1643 = vrcp.pop %v1641
        %v1644 = vmul.f32 1.0, %v1643
        %v1645 = vrcp.pop %v1642
        %v1646 = vmul.f32 1.0, %v1645
        %v1648 = vlaneseq
        %v1649 = vshrl.u32 %v1648, 7
        %v1650 = vsub.s32 0, %v1649
        %v1651 = vrot.slane %v1132, %v1650
        %v1653 = vadd.f32 %v1385, %v1651
        %v1654 = vmul.f32 %v1644, %v1653
        %v1655 = vadd.f32 %v1141, %v1654
        %v1656 = vtanh.pop %v1655
        %v1657 = vsub.f32 1.0, %v1646
        %v1658 = vmul.f32 %v1657, %v1656
        %v1659 = vmul.f32 %v1646, %v1135
        %v1660 = vadd.f32 %v1658, %v1659
        %v1661 = vadd.f32 %v1145, %v1587
        %v1662 = vadd.f32 %v1146, %v1589
        %v1663 = vxor.u32 %v1661, 2147483648
        %v1664 = vxor.u32 %v1662, 2147483648
        %v1665 = vmul.f32 %v1663, 1.442695
        %v1666 = vpow.pop %v1665
        %v1667 = vmul.f32 %v1664, 1.442695
        %v1668 = vpow.pop %v1667
        %v1669 = vadd.f32 %v1666, 1.0
        %v1670 = vadd.f32 %v1668, 1.0
        %v1671 = vrcp.pop %v1669
        %v1672 = vmul.f32 1.0, %v1671
        %v1673 = vrcp.pop %v1670
        %v1674 = vmul.f32 1.0, %v1673
        %v1676 = vlaneseq
        %v1677 = vshrl.u32 %v1676, 7
        %v1678 = vsub.s32 0, %v1677
        %v1679 = vrot.slane %v1134, %v1678
        %v1681 = vadd.f32 %v1628, %v1679
        %v1682 = vmul.f32 %v1672, %v1681
        %v1683 = vadd.f32 %v1147, %v1682
        %v1684 = vtanh.pop %v1683
        %v1685 = vsub.f32 1.0, %v1674
        %v1686 = vmul.f32 %v1685, %v1684
        %v1687 = vmul.f32 %v1674, %v1136
        %v1688 = vadd.f32 %v1686, %v1687
        %v1689 = vpack.c.bf16 %v1660, %v1660
        %1690 = vst [vmem:[%s403] sm:$0xf] %v1689
        %v1691 = vpack.c.bf16 %v1688, %v1688
        %s1692 = scalar_lea.vmem %s410, 12
        %1693 = vst [vmem:[%s1692] sm:$0xf] %v1691
        %s1694 = scalar_lea.vmem [#allocation4], 12
        %v1695 = vld [vmem:[%s1694] sm:$0xff]
        %v1696 = vld [vmem:[%s1694 + $0x8] sm:$0xf]
        %v1697 = vunpack.c.l.bf16 %v1695
        %v1698 = vunpack.c.h.bf16 %v1695
        %v1699 = vunpack.c.l.bf16 %v1696
        %s1700 = scalar_lea.vmem [#allocation5], 24
        %v1701 = vld [vmem:[%s1700] sm:$0xff]
        %v1702 = vld [vmem:[%s1700 + $0x8] sm:$0xf]
        %v1703 = vunpack.c.l.bf16 %v1701
        %v1704 = vunpack.c.h.bf16 %v1701
        %v1705 = vunpack.c.l.bf16 %v1702
        %v1706 = vld [vmem:[#allocation8] sm:$0xff]
        %v1707 = vld [vmem:[#allocation8 + $0x8] sm:$0xf]
        %v1708 = vld [vmem:[#allocation8 + $0xc] sm:$0xff]
        %v1709 = vld [vmem:[#allocation8 + $0x14] sm:$0xf]
        %v1710 = vld [vmem:[#allocation8 + $0x18] sm:$0xff]
        %v1711 = vld [vmem:[#allocation8 + $0x20] sm:$0xf]
        %v1712 = vld [vmem:[#allocation8 + $0x24] sm:$0xff]
        %v1713 = vld [vmem:[#allocation8 + $0x2c] sm:$0xf]
        %v1714 = vld [vmem:[#allocation8 + $0x30] sm:$0xff]
        %v1715 = vld [vmem:[#allocation8 + $0x38] sm:$0xf]
        %v1716 = vld [vmem:[#allocation8 + $0x3c] sm:$0xff]
        %v1717 = vld [vmem:[#allocation8 + $0x44] sm:$0xf]
        %v1718 = vld [vmem:[#allocation8 + $0x48] sm:$0xff]
        %v1719 = vld [vmem:[#allocation8 + $0x50] sm:$0xf]
        %v1720 = vld [vmem:[#allocation8 + $0x54] sm:$0xff]
        %v1721 = vld [vmem:[#allocation8 + $0x5c] sm:$0xf]
        %v1722 = vld [vmem:[#allocation8 + $0x60] sm:$0xff]
        %v1723 = vld [vmem:[#allocation8 + $0x68] sm:$0xf]
        %v1724 = vld [vmem:[#allocation8 + $0x6c] sm:$0xff]
        %v1725 = vld [vmem:[#allocation8 + $0x74] sm:$0xf]
        %v1726 = vld [vmem:[#allocation8 + $0x78] sm:$0xff]
        %v1727 = vld [vmem:[#allocation8 + $0x80] sm:$0xf]
        %v1728 = vld [vmem:[#allocation8 + $0x84] sm:$0xff]
        %v1729 = vld [vmem:[#allocation8 + $0x8c] sm:$0xf]
        %v1730 = vld [vmem:[#allocation8 + $0x90] sm:$0xff]
        %v1731 = vld [vmem:[#allocation8 + $0x98] sm:$0xf]
        %v1732 = vld [vmem:[#allocation8 + $0x9c] sm:$0xff]
        %v1733 = vld [vmem:[#allocation8 + $0xa4] sm:$0xf]
        %v1734 = vld [vmem:[#allocation8 + $0xa8] sm:$0xff]
        %v1735 = vld [vmem:[#allocation8 + $0xb0] sm:$0xf]
        %v1736 = vld [vmem:[#allocation8 + $0xb4] sm:$0xff]
        %v1737 = vld [vmem:[#allocation8 + $0xbc] sm:$0xf]
        %v1770 = vunpack.c.l.b16 %v1706
        %v1771 = vunpack.c.h.b16 %v1706
        %v1772 = vunpack.c.l.b16 %v1707
        %v1773 = vunpack.c.l.b16 %v1708
        %v1774 = vunpack.c.h.b16 %v1708
        %v1775 = vunpack.c.l.b16 %v1709
        %v1776 = vunpack.c.l.b16 %v1710
        %v1777 = vunpack.c.h.b16 %v1710
        %v1778 = vunpack.c.l.b16 %v1711
        %v1779 = vunpack.c.l.b16 %v1712
        %v1780 = vunpack.c.h.b16 %v1712
        %v1781 = vunpack.c.l.b16 %v1713
        %v1782 = vunpack.c.l.b16 %v1714
        %v1783 = vunpack.c.h.b16 %v1714
        %v1784 = vunpack.c.l.b16 %v1715
        %v1785 = vunpack.c.l.b16 %v1716
        %v1786 = vunpack.c.h.b16 %v1716
        %v1787 = vunpack.c.l.b16 %v1717
        %v1788 = vunpack.c.l.b16 %v1718
        %v1789 = vunpack.c.h.b16 %v1718
        %v1790 = vunpack.c.l.b16 %v1719
        %v1791 = vunpack.c.l.b16 %v1720
        %v1792 = vunpack.c.h.b16 %v1720
        %v1793 = vunpack.c.l.b16 %v1721
        %v1794 = vunpack.c.l.b16 %v1722
        %v1795 = vunpack.c.h.b16 %v1722
        %v1796 = vunpack.c.l.b16 %v1723
        %v1797 = vunpack.c.l.b16 %v1724
        %v1798 = vunpack.c.h.b16 %v1724
        %v1799 = vunpack.c.l.b16 %v1725
        %v1800 = vunpack.c.l.b16 %v1726
        %v1801 = vunpack.c.h.b16 %v1726
        %v1802 = vunpack.c.l.b16 %v1727
        %v1803 = vunpack.c.l.b16 %v1728
        %v1804 = vunpack.c.h.b16 %v1728
        %v1805 = vunpack.c.l.b16 %v1729
        %v1806 = vunpack.c.l.b16 %v1730
        %v1807 = vunpack.c.h.b16 %v1730
        %v1808 = vunpack.c.l.b16 %v1731
        %v1809 = vunpack.c.l.b16 %v1732
        %v1810 = vunpack.c.h.b16 %v1732
        %v1811 = vunpack.c.l.b16 %v1733
        %v1812 = vunpack.c.l.b16 %v1734
        %v1813 = vunpack.c.h.b16 %v1734
        %v1814 = vunpack.c.l.b16 %v1735
        %v1815 = vunpack.c.l.b16 %v1736
        %v1816 = vunpack.c.h.b16 %v1736
        %v1817 = vunpack.c.l.b16 %v1737
        %v1818 = vpack.c.b16 %v1773, %v1770
        %v1819 = vpack.c.b16 %v1774, %v1771
        %v1820 = vpack.c.b16 %v1775, %v1772
        %v1821 = vpack.c.b16 %v1779, %v1776
        %v1822 = vpack.c.b16 %v1780, %v1777
        %v1823 = vpack.c.b16 %v1781, %v1778
        %v1824 = vpack.c.b16 %v1785, %v1782
        %v1825 = vpack.c.b16 %v1786, %v1783
        %v1826 = vpack.c.b16 %v1787, %v1784
        %v1827 = vpack.c.b16 %v1791, %v1788
        %v1828 = vpack.c.b16 %v1792, %v1789
        %v1829 = vpack.c.b16 %v1793, %v1790
        %v1830 = vpack.c.b16 %v1797, %v1794
        %v1831 = vpack.c.b16 %v1798, %v1795
        %v1832 = vpack.c.b16 %v1799, %v1796
        %v1833 = vpack.c.b16 %v1803, %v1800
        %v1834 = vpack.c.b16 %v1804, %v1801
        %v1835 = vpack.c.b16 %v1805, %v1802
        %v1836 = vpack.c.b16 %v1809, %v1806
        %v1837 = vpack.c.b16 %v1810, %v1807
        %v1838 = vpack.c.b16 %v1811, %v1808
        %v1839 = vpack.c.b16 %v1815, %v1812
        %v1840 = vpack.c.b16 %v1816, %v1813
        %v1841 = vpack.c.b16 %v1817, %v1814
        %1866 = vmatprep.subr.bf16.mxu0 %v1819
        %1867 = vmatpush1.bf16.msra.mxu0 %v1818
        %1868 = vmatprep.subr.bf16.mxu0 %v1822
        %1869 = vmatpush1.bf16.msra.mxu0 %v1821
        %1870 = vmatprep.subr.bf16.mxu0 %v1825
        %1871 = vmatpush1.bf16.msra.mxu0 %v1824
        %1872 = vmatprep.subr.bf16.mxu0 %v1828
        %1873 = vmatpush1.bf16.msra.mxu0 %v1827
        %1874 = vmatprep.subr.bf16.mxu0 %v1831
        %1875 = vmatpush1.bf16.msra.mxu0 %v1830
        %1876 = vmatprep.subr.bf16.mxu0 %v1834
        %1877 = vmatpush1.bf16.msra.mxu0 %v1833
        %1878 = vmatprep.subr.bf16.mxu0 %v1837
        %1879 = vmatpush1.bf16.msra.mxu0 %v1836
        %1880 = vmatprep.subr.bf16.mxu0 %v1840
        %1881 = vmatpush1.bf16.msra.mxu0 %v1839
        %1882 = vmatprep.subr.bf16.mxu0 0
        %1883 = vmatpush1.bf16.msra.mxu0 0
        %1884 = vmatprep.subr.bf16.mxu0 0
        %1885 = vmatpush1.bf16.msra.mxu0 0
        %1886 = vmatprep.subr.bf16.mxu0 0
        %1887 = vmatpush1.bf16.msra.mxu0 0
        %1888 = vmatprep.subr.bf16.mxu0 0
        %1889 = vmatpush1.bf16.msra.mxu0 0
        %1890 = vmatprep.subr.bf16.mxu0 0
        %1891 = vmatpush1.bf16.msra.mxu0 0
        %1892 = vmatprep.subr.bf16.mxu0 0
        %1893 = vmatpush1.bf16.msra.mxu0 0
        %1894 = vmatprep.subr.bf16.mxu0 0
        %1895 = vmatpush1.bf16.msra.mxu0 0
        %1896 = vmatprep.subr.bf16.mxu0 0
        %1897 = vmatpush1.bf16.msra.mxu0 0
        %1898 = vmatprep.mubr.bf16.mxu0 0
        %1899 = vmatmul.mubr.bf16.gmra.mrb[0].mxu0 %v1689
        %v1900 = vpop.f32.mrb[0].mxu0
        %v1901 = vadd.f32 0.0, %v1900
        %v1902 = vpop.f32.mrb[0].mxu0
        %v1903 = vadd.f32 0.0, %v1902
        %v1904 = vpop.f32.mrb[0].mxu0
        %v1905 = vpop.f32.mrb[0].mxu0
        %1906 = vdwg.mxu0
        %1907 = vmatprep.subr.bf16.mxu0 0
        %1908 = vmatpush1.bf16.msra.mxu0 %v1820
        %1909 = vmatprep.subr.bf16.mxu0 0
        %1910 = vmatpush1.bf16.msra.mxu0 %v1823
        %1911 = vmatprep.subr.bf16.mxu0 0
        %1912 = vmatpush1.bf16.msra.mxu0 %v1826
        %1913 = vmatprep.subr.bf16.mxu0 0
        %1914 = vmatpush1.bf16.msra.mxu0 %v1829
        %1915 = vmatprep.subr.bf16.mxu0 0
        %1916 = vmatpush1.bf16.msra.mxu0 %v1832
        %1917 = vmatprep.subr.bf16.mxu0 0
        %1918 = vmatpush1.bf16.msra.mxu0 %v1835
        %1919 = vmatprep.subr.bf16.mxu0 0
        %1920 = vmatpush1.bf16.msra.mxu0 %v1838
        %1921 = vmatprep.subr.bf16.mxu0 0
        %1922 = vmatpush1.bf16.msra.mxu0 %v1841
        %1923 = vmatprep.subr.bf16.mxu0 0
        %1924 = vmatpush1.bf16.msra.mxu0 0
        %1925 = vmatprep.subr.bf16.mxu0 0
        %1926 = vmatpush1.bf16.msra.mxu0 0
        %1927 = vmatprep.subr.bf16.mxu0 0
        %1928 = vmatpush1.bf16.msra.mxu0 0
        %1929 = vmatprep.subr.bf16.mxu0 0
        %1930 = vmatpush1.bf16.msra.mxu0 0
        %1931 = vmatprep.subr.bf16.mxu0 0
        %1932 = vmatpush1.bf16.msra.mxu0 0
        %1933 = vmatprep.subr.bf16.mxu0 0
        %1934 = vmatpush1.bf16.msra.mxu0 0
        %1935 = vmatprep.subr.bf16.mxu0 0
        %1936 = vmatpush1.bf16.msra.mxu0 0
        %1937 = vmatprep.subr.bf16.mxu0 0
        %1938 = vmatpush1.bf16.msra.mxu0 0
        %1939 = vmatprep.mubr.bf16.mxu0 0
        %1940 = vmatmul.mubr.bf16.gmra.mrb[0].mxu0 %v1689
        %v1941 = vpop.f32.mrb[0].mxu0
        %v1942 = vadd.f32 0.0, %v1941
        %v1943 = vpop.f32.mrb[0].mxu0
        %v1944 = vpop.f32.mrb[0].mxu0
        %v1945 = vpop.f32.mrb[0].mxu0
        %1946 = vdwg.mxu0
        %v1947 = vld [vmem:[%s1391] sm:$0xff]
        %v1948 = vld [vmem:[%s1391 + $0x8] sm:$0xf]
        %v1949 = vld [vmem:[%s1391 + $0xc] sm:$0xff]
        %v1950 = vld [vmem:[%s1391 + $0x14] sm:$0xf]
        %v1951 = vld [vmem:[%s1391 + $0x18] sm:$0xff]
        %v1952 = vld [vmem:[%s1391 + $0x20] sm:$0xf]
        %v1953 = vld [vmem:[%s1391 + $0x24] sm:$0xff]
        %v1954 = vld [vmem:[%s1391 + $0x2c] sm:$0xf]
        %v1955 = vld [vmem:[%s1391 + $0x30] sm:$0xff]
        %v1956 = vld [vmem:[%s1391 + $0x38] sm:$0xf]
        %v1957 = vld [vmem:[%s1391 + $0x3c] sm:$0xff]
        %v1958 = vld [vmem:[%s1391 + $0x44] sm:$0xf]
        %v1959 = vld [vmem:[%s1391 + $0x48] sm:$0xff]
        %v1960 = vld [vmem:[%s1391 + $0x50] sm:$0xf]
        %v1961 = vld [vmem:[%s1391 + $0x54] sm:$0xff]
        %v1962 = vld [vmem:[%s1391 + $0x5c] sm:$0xf]
        %v1963 = vld [vmem:[%s1391 + $0x60] sm:$0xff]
        %v1964 = vld [vmem:[%s1391 + $0x68] sm:$0xf]
        %v1965 = vld [vmem:[%s1391 + $0x6c] sm:$0xff]
        %v1966 = vld [vmem:[%s1391 + $0x74] sm:$0xf]
        %v1967 = vld [vmem:[%s1391 + $0x78] sm:$0xff]
        %v1968 = vld [vmem:[%s1391 + $0x80] sm:$0xf]
        %v1969 = vld [vmem:[%s1391 + $0x84] sm:$0xff]
        %v1970 = vld [vmem:[%s1391 + $0x8c] sm:$0xf]
        %v1971 = vld [vmem:[%s1391 + $0x90] sm:$0xff]
        %v1972 = vld [vmem:[%s1391 + $0x98] sm:$0xf]
        %v1973 = vld [vmem:[%s1391 + $0x9c] sm:$0xff]
        %v1974 = vld [vmem:[%s1391 + $0xa4] sm:$0xf]
        %v1975 = vld [vmem:[%s1391 + $0xa8] sm:$0xff]
        %v1976 = vld [vmem:[%s1391 + $0xb0] sm:$0xf]
        %v1977 = vld [vmem:[%s1391 + $0xb4] sm:$0xff]
        %v1978 = vld [vmem:[%s1391 + $0xbc] sm:$0xf]
        %v2011 = vunpack.c.l.b16 %v1947
        %v2012 = vunpack.c.h.b16 %v1947
        %v2013 = vunpack.c.l.b16 %v1948
        %v2014 = vunpack.c.l.b16 %v1949
        %v2015 = vunpack.c.h.b16 %v1949
        %v2016 = vunpack.c.l.b16 %v1950
        %v2017 = vunpack.c.l.b16 %v1951
        %v2018 = vunpack.c.h.b16 %v1951
        %v2019 = vunpack.c.l.b16 %v1952
        %v2020 = vunpack.c.l.b16 %v1953
        %v2021 = vunpack.c.h.b16 %v1953
        %v2022 = vunpack.c.l.b16 %v1954
        %v2023 = vunpack.c.l.b16 %v1955
        %v2024 = vunpack.c.h.b16 %v1955
        %v2025 = vunpack.c.l.b16 %v1956
        %v2026 = vunpack.c.l.b16 %v1957
        %v2027 = vunpack.c.h.b16 %v1957
        %v2028 = vunpack.c.l.b16 %v1958
        %v2029 = vunpack.c.l.b16 %v1959
        %v2030 = vunpack.c.h.b16 %v1959
        %v2031 = vunpack.c.l.b16 %v1960
        %v2032 = vunpack.c.l.b16 %v1961
        %v2033 = vunpack.c.h.b16 %v1961
        %v2034 = vunpack.c.l.b16 %v1962
        %v2035 = vunpack.c.l.b16 %v1963
        %v2036 = vunpack.c.h.b16 %v1963
        %v2037 = vunpack.c.l.b16 %v1964
        %v2038 = vunpack.c.l.b16 %v1965
        %v2039 = vunpack.c.h.b16 %v1965
        %v2040 = vunpack.c.l.b16 %v1966
        %v2041 = vunpack.c.l.b16 %v1967
        %v2042 = vunpack.c.h.b16 %v1967
        %v2043 = vunpack.c.l.b16 %v1968
        %v2044 = vunpack.c.l.b16 %v1969
        %v2045 = vunpack.c.h.b16 %v1969
        %v2046 = vunpack.c.l.b16 %v1970
        %v2047 = vunpack.c.l.b16 %v1971
        %v2048 = vunpack.c.h.b16 %v1971
        %v2049 = vunpack.c.l.b16 %v1972
        %v2050 = vunpack.c.l.b16 %v1973
        %v2051 = vunpack.c.h.b16 %v1973
        %v2052 = vunpack.c.l.b16 %v1974
        %v2053 = vunpack.c.l.b16 %v1975
        %v2054 = vunpack.c.h.b16 %v1975
        %v2055 = vunpack.c.l.b16 %v1976
        %v2056 = vunpack.c.l.b16 %v1977
        %v2057 = vunpack.c.h.b16 %v1977
        %v2058 = vunpack.c.l.b16 %v1978
        %v2059 = vpack.c.b16 %v2014, %v2011
        %v2060 = vpack.c.b16 %v2015, %v2012
        %v2061 = vpack.c.b16 %v2016, %v2013
        %v2062 = vpack.c.b16 %v2020, %v2017
        %v2063 = vpack.c.b16 %v2021, %v2018
        %v2064 = vpack.c.b16 %v2022, %v2019
        %v2065 = vpack.c.b16 %v2026, %v2023
        %v2066 = vpack.c.b16 %v2027, %v2024
        %v2067 = vpack.c.b16 %v2028, %v2025
        %v2068 = vpack.c.b16 %v2032, %v2029
        %v2069 = vpack.c.b16 %v2033, %v2030
        %v2070 = vpack.c.b16 %v2034, %v2031
        %v2071 = vpack.c.b16 %v2038, %v2035
        %v2072 = vpack.c.b16 %v2039, %v2036
        %v2073 = vpack.c.b16 %v2040, %v2037
        %v2074 = vpack.c.b16 %v2044, %v2041
        %v2075 = vpack.c.b16 %v2045, %v2042
        %v2076 = vpack.c.b16 %v2046, %v2043
        %v2077 = vpack.c.b16 %v2050, %v2047
        %v2078 = vpack.c.b16 %v2051, %v2048
        %v2079 = vpack.c.b16 %v2052, %v2049
        %v2080 = vpack.c.b16 %v2056, %v2053
        %v2081 = vpack.c.b16 %v2057, %v2054
        %v2082 = vpack.c.b16 %v2058, %v2055
        %2107 = vmatprep.subr.bf16.mxu0 %v2060
        %2108 = vmatpush1.bf16.msra.mxu0 %v2059
        %2109 = vmatprep.subr.bf16.mxu0 %v2063
        %2110 = vmatpush1.bf16.msra.mxu0 %v2062
        %2111 = vmatprep.subr.bf16.mxu0 %v2066
        %2112 = vmatpush1.bf16.msra.mxu0 %v2065
        %2113 = vmatprep.subr.bf16.mxu0 %v2069
        %2114 = vmatpush1.bf16.msra.mxu0 %v2068
        %2115 = vmatprep.subr.bf16.mxu0 %v2072
        %2116 = vmatpush1.bf16.msra.mxu0 %v2071
        %2117 = vmatprep.subr.bf16.mxu0 %v2075
        %2118 = vmatpush1.bf16.msra.mxu0 %v2074
        %2119 = vmatprep.subr.bf16.mxu0 %v2078
        %2120 = vmatpush1.bf16.msra.mxu0 %v2077
        %2121 = vmatprep.subr.bf16.mxu0 %v2081
        %2122 = vmatpush1.bf16.msra.mxu0 %v2080
        %2123 = vmatprep.subr.bf16.mxu0 0
        %2124 = vmatpush1.bf16.msra.mxu0 0
        %2125 = vmatprep.subr.bf16.mxu0 0
        %2126 = vmatpush1.bf16.msra.mxu0 0
        %2127 = vmatprep.subr.bf16.mxu0 0
        %2128 = vmatpush1.bf16.msra.mxu0 0
        %2129 = vmatprep.subr.bf16.mxu0 0
        %2130 = vmatpush1.bf16.msra.mxu0 0
        %2131 = vmatprep.subr.bf16.mxu0 0
        %2132 = vmatpush1.bf16.msra.mxu0 0
        %2133 = vmatprep.subr.bf16.mxu0 0
        %2134 = vmatpush1.bf16.msra.mxu0 0
        %2135 = vmatprep.subr.bf16.mxu0 0
        %2136 = vmatpush1.bf16.msra.mxu0 0
        %2137 = vmatprep.subr.bf16.mxu0 0
        %2138 = vmatpush1.bf16.msra.mxu0 0
        %2139 = vmatprep.mubr.bf16.mxu0 0
        %2140 = vmatmul.mubr.bf16.gmra.mrb[0].mxu0 %v1691
        %v2141 = vpop.f32.mrb[0].mxu0
        %v2142 = vadd.f32 0.0, %v2141
        %v2143 = vpop.f32.mrb[0].mxu0
        %v2144 = vadd.f32 0.0, %v2143
        %v2145 = vpop.f32.mrb[0].mxu0
        %v2146 = vpop.f32.mrb[0].mxu0
        %2147 = vdwg.mxu0
        %2148 = vmatprep.subr.bf16.mxu0 0
        %2149 = vmatpush1.bf16.msra.mxu0 %v2061
        %2150 = vmatprep.subr.bf16.mxu0 0
        %2151 = vmatpush1.bf16.msra.mxu0 %v2064
        %2152 = vmatprep.subr.bf16.mxu0 0
        %2153 = vmatpush1.bf16.msra.mxu0 %v2067
        %2154 = vmatprep.subr.bf16.mxu0 0
        %2155 = vmatpush1.bf16.msra.mxu0 %v2070
        %2156 = vmatprep.subr.bf16.mxu0 0
        %2157 = vmatpush1.bf16.msra.mxu0 %v2073
        %2158 = vmatprep.subr.bf16.mxu0 0
        %2159 = vmatpush1.bf16.msra.mxu0 %v2076
        %2160 = vmatprep.subr.bf16.mxu0 0
        %2161 = vmatpush1.bf16.msra.mxu0 %v2079
        %2162 = vmatprep.subr.bf16.mxu0 0
        %2163 = vmatpush1.bf16.msra.mxu0 %v2082
        %2164 = vmatprep.subr.bf16.mxu0 0
        %2165 = vmatpush1.bf16.msra.mxu0 0
        %2166 = vmatprep.subr.bf16.mxu0 0
        %2167 = vmatpush1.bf16.msra.mxu0 0
        %2168 = vmatprep.subr.bf16.mxu0 0
        %2169 = vmatpush1.bf16.msra.mxu0 0
        %2170 = vmatprep.subr.bf16.mxu0 0
        %2171 = vmatpush1.bf16.msra.mxu0 0
        %2172 = vmatprep.subr.bf16.mxu0 0
        %2173 = vmatpush1.bf16.msra.mxu0 0
        %2174 = vmatprep.subr.bf16.mxu0 0
        %2175 = vmatpush1.bf16.msra.mxu0 0
        %2176 = vmatprep.subr.bf16.mxu0 0
        %2177 = vmatpush1.bf16.msra.mxu0 0
        %2178 = vmatprep.subr.bf16.mxu0 0
        %2179 = vmatpush1.bf16.msra.mxu0 0
        %2180 = vmatprep.mubr.bf16.mxu0 0
        %2181 = vmatmul.mubr.bf16.gmra.mrb[0].mxu0 %v1691
        %v2182 = vpop.f32.mrb[0].mxu0
        %v2183 = vadd.f32 0.0, %v2182
        %v2184 = vpop.f32.mrb[0].mxu0
        %v2185 = vpop.f32.mrb[0].mxu0
        %v2186 = vpop.f32.mrb[0].mxu0
        %2187 = vdwg.mxu0
        %v2188 = vadd.f32 %v1697, %v1901
        %v2189 = vadd.f32 %v1698, %v1903
        %v2190 = vxor.u32 %v2188, 2147483648
        %v2191 = vxor.u32 %v2189, 2147483648
        %v2192 = vmul.f32 %v2190, 1.442695
        %v2193 = vpow.pop %v2192
        %v2194 = vmul.f32 %v2191, 1.442695
        %v2195 = vpow.pop %v2194
        %v2196 = vadd.f32 %v2193, 1.0
        %v2197 = vadd.f32 %v2195, 1.0
        %v2198 = vrcp.pop %v2196
        %v2199 = vmul.f32 1.0, %v2198
        %v2200 = vrcp.pop %v2197
        %v2201 = vmul.f32 1.0, %v2200
        %v2202 = vadd.f32 %v1942, %v1651
        %v2203 = vmul.f32 %v2199, %v2202
        %v2204 = vadd.f32 %v1699, %v2203
        %v2205 = vtanh.pop %v2204
        %v2206 = vsub.f32 1.0, %v2201
        %v2207 = vmul.f32 %v2206, %v2205
        %v2208 = vmul.f32 %v2201, %v1660
        %v2209 = vadd.f32 %v2207, %v2208
        %v2210 = vadd.f32 %v1703, %v2142
        %v2211 = vadd.f32 %v1704, %v2144
        %v2212 = vxor.u32 %v2210, 2147483648
        %v2213 = vxor.u32 %v2211, 2147483648
        %v2214 = vmul.f32 %v2212, 1.442695
        %v2215 = vpow.pop %v2214
        %v2216 = vmul.f32 %v2213, 1.442695
        %v2217 = vpow.pop %v2216
        %v2218 = vadd.f32 %v2215, 1.0
        %v2219 = vadd.f32 %v2217, 1.0
        %v2220 = vrcp.pop %v2218
        %v2221 = vmul.f32 1.0, %v2220
        %v2222 = vrcp.pop %v2219
        %v2223 = vmul.f32 1.0, %v2222
        %v2224 = vadd.f32 %v2183, %v1679
        %v2225 = vmul.f32 %v2221, %v2224
        %v2226 = vadd.f32 %v1705, %v2225
        %v2227 = vtanh.pop %v2226
        %v2228 = vsub.f32 1.0, %v2223
        %v2229 = vmul.f32 %v2228, %v2227
        %v2230 = vmul.f32 %v2223, %v1688
        %v2231 = vadd.f32 %v2229, %v2230
        %v2232 = vpack.c.bf16 %v2209, %v2209
        %s2233 = scalar_lea.vmem %s403, 4
        %2234 = vst [vmem:[%s2233] sm:$0xf] %v2232
        %v2235 = vpack.c.bf16 %v2231, %v2231
        %s2236 = scalar_lea.vmem %s410, 8
        %2237 = vst [vmem:[%s2236] sm:$0xf] %v2235
        %s2238 = scalar_lea.vmem [#allocation4], 24
        %v2239 = vld [vmem:[%s2238] sm:$0xff]
        %v2240 = vld [vmem:[%s2238 + $0x8] sm:$0xf]
        %v2241 = vunpack.c.l.bf16 %v2239
        %v2242 = vunpack.c.h.bf16 %v2239
        %v2243 = vunpack.c.l.bf16 %v2240
        %s2244 = scalar_lea.vmem [#allocation5], 12
        %v2245 = vld [vmem:[%s2244] sm:$0xff]
        %v2246 = vld [vmem:[%s2244 + $0x8] sm:$0xf]
        %v2247 = vunpack.c.l.bf16 %v2245
        %v2248 = vunpack.c.h.bf16 %v2245
        %v2249 = vunpack.c.l.bf16 %v2246
        %v2250 = vld [vmem:[#allocation8] sm:$0xff]
        %v2251 = vld [vmem:[#allocation8 + $0x8] sm:$0xf]
        %v2252 = vld [vmem:[#allocation8 + $0xc] sm:$0xff]
        %v2253 = vld [vmem:[#allocation8 + $0x14] sm:$0xf]
        %v2254 = vld [vmem:[#allocation8 + $0x18] sm:$0xff]
        %v2255 = vld [vmem:[#allocation8 + $0x20] sm:$0xf]
        %v2256 = vld [vmem:[#allocation8 + $0x24] sm:$0xff]
        %v2257 = vld [vmem:[#allocation8 + $0x2c] sm:$0xf]
        %v2258 = vld [vmem:[#allocation8 + $0x30] sm:$0xff]
        %v2259 = vld [vmem:[#allocation8 + $0x38] sm:$0xf]
        %v2260 = vld [vmem:[#allocation8 + $0x3c] sm:$0xff]
        %v2261 = vld [vmem:[#allocation8 + $0x44] sm:$0xf]
        %v2262 = vld [vmem:[#allocation8 + $0x48] sm:$0xff]
        %v2263 = vld [vmem:[#allocation8 + $0x50] sm:$0xf]
        %v2264 = vld [vmem:[#allocation8 + $0x54] sm:$0xff]
        %v2265 = vld [vmem:[#allocation8 + $0x5c] sm:$0xf]
        %v2266 = vld [vmem:[#allocation8 + $0x60] sm:$0xff]
        %v2267 = vld [vmem:[#allocation8 + $0x68] sm:$0xf]
        %v2268 = vld [vmem:[#allocation8 + $0x6c] sm:$0xff]
        %v2269 = vld [vmem:[#allocation8 + $0x74] sm:$0xf]
        %v2270 = vld [vmem:[#allocation8 + $0x78] sm:$0xff]
        %v2271 = vld [vmem:[#allocation8 + $0x80] sm:$0xf]
        %v2272 = vld [vmem:[#allocation8 + $0x84] sm:$0xff]
        %v2273 = vld [vmem:[#allocation8 + $0x8c] sm:$0xf]
        %v2274 = vld [vmem:[#allocation8 + $0x90] sm:$0xff]
        %v2275 = vld [vmem:[#allocation8 + $0x98] sm:$0xf]
        %v2276 = vld [vmem:[#allocation8 + $0x9c] sm:$0xff]
        %v2277 = vld [vmem:[#allocation8 + $0xa4] sm:$0xf]
        %v2278 = vld [vmem:[#allocation8 + $0xa8] sm:$0xff]
        %v2279 = vld [vmem:[#allocation8 + $0xb0] sm:$0xf]
        %v2280 = vld [vmem:[#allocation8 + $0xb4] sm:$0xff]
        %v2281 = vld [vmem:[#allocation8 + $0xbc] sm:$0xf]
        %v2314 = vunpack.c.l.b16 %v2250
        %v2315 = vunpack.c.h.b16 %v2250
        %v2316 = vunpack.c.l.b16 %v2251
        %v2317 = vunpack.c.l.b16 %v2252
        %v2318 = vunpack.c.h.b16 %v2252
        %v2319 = vunpack.c.l.b16 %v2253
        %v2320 = vunpack.c.l.b16 %v2254
        %v2321 = vunpack.c.h.b16 %v2254
        %v2322 = vunpack.c.l.b16 %v2255
        %v2323 = vunpack.c.l.b16 %v2256
        %v2324 = vunpack.c.h.b16 %v2256
        %v2325 = vunpack.c.l.b16 %v2257
        %v2326 = vunpack.c.l.b16 %v2258
        %v2327 = vunpack.c.h.b16 %v2258
        %v2328 = vunpack.c.l.b16 %v2259
        %v2329 = vunpack.c.l.b16 %v2260
        %v2330 = vunpack.c.h.b16 %v2260
        %v2331 = vunpack.c.l.b16 %v2261
        %v2332 = vunpack.c.l.b16 %v2262
        %v2333 = vunpack.c.h.b16 %v2262
        %v2334 = vunpack.c.l.b16 %v2263
        %v2335 = vunpack.c.l.b16 %v2264
        %v2336 = vunpack.c.h.b16 %v2264
        %v2337 = vunpack.c.l.b16 %v2265
        %v2338 = vunpack.c.l.b16 %v2266
        %v2339 = vunpack.c.h.b16 %v2266
        %v2340 = vunpack.c.l.b16 %v2267
        %v2341 = vunpack.c.l.b16 %v2268
        %v2342 = vunpack.c.h.b16 %v2268
        %v2343 = vunpack.c.l.b16 %v2269
        %v2344 = vunpack.c.l.b16 %v2270
        %v2345 = vunpack.c.h.b16 %v2270
        %v2346 = vunpack.c.l.b16 %v2271
        %v2347 = vunpack.c.l.b16 %v2272
        %v2348 = vunpack.c.h.b16 %v2272
        %v2349 = vunpack.c.l.b16 %v2273
        %v2350 = vunpack.c.l.b16 %v2274
        %v2351 = vunpack.c.h.b16 %v2274
        %v2352 = vunpack.c.l.b16 %v2275
        %v2353 = vunpack.c.l.b16 %v2276
        %v2354 = vunpack.c.h.b16 %v2276
        %v2355 = vunpack.c.l.b16 %v2277
        %v2356 = vunpack.c.l.b16 %v2278
        %v2357 = vunpack.c.h.b16 %v2278
        %v2358 = vunpack.c.l.b16 %v2279
        %v2359 = vunpack.c.l.b16 %v2280
        %v2360 = vunpack.c.h.b16 %v2280
        %v2361 = vunpack.c.l.b16 %v2281
        %v2362 = vpack.c.b16 %v2317, %v2314
        %v2363 = vpack.c.b16 %v2318, %v2315
        %v2364 = vpack.c.b16 %v2319, %v2316
        %v2365 = vpack.c.b16 %v2323, %v2320
        %v2366 = vpack.c.b16 %v2324, %v2321
        %v2367 = vpack.c.b16 %v2325, %v2322
        %v2368 = vpack.c.b16 %v2329, %v2326
        %v2369 = vpack.c.b16 %v2330, %v2327
        %v2370 = vpack.c.b16 %v2331, %v2328
        %v2371 = vpack.c.b16 %v2335, %v2332
        %v2372 = vpack.c.b16 %v2336, %v2333
        %v2373 = vpack.c.b16 %v2337, %v2334
        %v2374 = vpack.c.b16 %v2341, %v2338
        %v2375 = vpack.c.b16 %v2342, %v2339
        %v2376 = vpack.c.b16 %v2343, %v2340
        %v2377 = vpack.c.b16 %v2347, %v2344
        %v2378 = vpack.c.b16 %v2348, %v2345
        %v2379 = vpack.c.b16 %v2349, %v2346
        %v2380 = vpack.c.b16 %v2353, %v2350
        %v2381 = vpack.c.b16 %v2354, %v2351
        %v2382 = vpack.c.b16 %v2355, %v2352
        %v2383 = vpack.c.b16 %v2359, %v2356
        %v2384 = vpack.c.b16 %v2360, %v2357
        %v2385 = vpack.c.b16 %v2361, %v2358
        %2410 = vmatprep.subr.bf16.mxu0 %v2363
        %2411 = vmatpush1.bf16.msra.mxu0 %v2362
        %2412 = vmatprep.subr.bf16.mxu0 %v2366
        %2413 = vmatpush1.bf16.msra.mxu0 %v2365
        %2414 = vmatprep.subr.bf16.mxu0 %v2369
        %2415 = vmatpush1.bf16.msra.mxu0 %v2368
        %2416 = vmatprep.subr.bf16.mxu0 %v2372
        %2417 = vmatpush1.bf16.msra.mxu0 %v2371
        %2418 = vmatprep.subr.bf16.mxu0 %v2375
        %2419 = vmatpush1.bf16.msra.mxu0 %v2374
        %2420 = vmatprep.subr.bf16.mxu0 %v2378
        %2421 = vmatpush1.bf16.msra.mxu0 %v2377
        %2422 = vmatprep.subr.bf16.mxu0 %v2381
        %2423 = vmatpush1.bf16.msra.mxu0 %v2380
        %2424 = vmatprep.subr.bf16.mxu0 %v2384
        %2425 = vmatpush1.bf16.msra.mxu0 %v2383
        %2426 = vmatprep.subr.bf16.mxu0 0
        %2427 = vmatpush1.bf16.msra.mxu0 0
        %2428 = vmatprep.subr.bf16.mxu0 0
        %2429 = vmatpush1.bf16.msra.mxu0 0
        %2430 = vmatprep.subr.bf16.mxu0 0
        %2431 = vmatpush1.bf16.msra.mxu0 0
        %2432 = vmatprep.subr.bf16.mxu0 0
        %2433 = vmatpush1.bf16.msra.mxu0 0
        %2434 = vmatprep.subr.bf16.mxu0 0
        %2435 = vmatpush1.bf16.msra.mxu0 0
        %2436 = vmatprep.subr.bf16.mxu0 0
        %2437 = vmatpush1.bf16.msra.mxu0 0
        %2438 = vmatprep.subr.bf16.mxu0 0
        %2439 = vmatpush1.bf16.msra.mxu0 0
        %2440 = vmatprep.subr.bf16.mxu0 0
        %2441 = vmatpush1.bf16.msra.mxu0 0
        %2442 = vmatprep.mubr.bf16.mxu0 0
        %2443 = vmatmul.mubr.bf16.gmra.mrb[0].mxu0 %v2232
        %v2444 = vpop.f32.mrb[0].mxu0
        %v2445 = vadd.f32 0.0, %v2444
        %v2446 = vpop.f32.mrb[0].mxu0
        %v2447 = vadd.f32 0.0, %v2446
        %v2448 = vpop.f32.mrb[0].mxu0
        %v2449 = vpop.f32.mrb[0].mxu0
        %2450 = vdwg.mxu0
        %2451 = vmatprep.subr.bf16.mxu0 0
        %2452 = vmatpush1.bf16.msra.mxu0 %v2364
        %2453 = vmatprep.subr.bf16.mxu0 0
        %2454 = vmatpush1.bf16.msra.mxu0 %v2367
        %2455 = vmatprep.subr.bf16.mxu0 0
        %2456 = vmatpush1.bf16.msra.mxu0 %v2370
        %2457 = vmatprep.subr.bf16.mxu0 0
        %2458 = vmatpush1.bf16.msra.mxu0 %v2373
        %2459 = vmatprep.subr.bf16.mxu0 0
        %2460 = vmatpush1.bf16.msra.mxu0 %v2376
        %2461 = vmatprep.subr.bf16.mxu0 0
        %2462 = vmatpush1.bf16.msra.mxu0 %v2379
        %2463 = vmatprep.subr.bf16.mxu0 0
        %2464 = vmatpush1.bf16.msra.mxu0 %v2382
        %2465 = vmatprep.subr.bf16.mxu0 0
        %2466 = vmatpush1.bf16.msra.mxu0 %v2385
        %2467 = vmatprep.subr.bf16.mxu0 0
        %2468 = vmatpush1.bf16.msra.mxu0 0
        %2469 = vmatprep.subr.bf16.mxu0 0
        %2470 = vmatpush1.bf16.msra.mxu0 0
        %2471 = vmatprep.subr.bf16.mxu0 0
        %2472 = vmatpush1.bf16.msra.mxu0 0
        %2473 = vmatprep.subr.bf16.mxu0 0
        %2474 = vmatpush1.bf16.msra.mxu0 0
        %2475 = vmatprep.subr.bf16.mxu0 0
        %2476 = vmatpush1.bf16.msra.mxu0 0
        %2477 = vmatprep.subr.bf16.mxu0 0
        %2478 = vmatpush1.bf16.msra.mxu0 0
        %2479 = vmatprep.subr.bf16.mxu0 0
        %2480 = vmatpush1.bf16.msra.mxu0 0
        %2481 = vmatprep.subr.bf16.mxu0 0
        %2482 = vmatpush1.bf16.msra.mxu0 0
        %2483 = vmatprep.mubr.bf16.mxu0 0
        %2484 = vmatmul.mubr.bf16.gmra.mrb[0].mxu0 %v2232
        %v2485 = vpop.f32.mrb[0].mxu0
        %v2486 = vadd.f32 0.0, %v2485
        %v2487 = vpop.f32.mrb[0].mxu0
        %v2488 = vpop.f32.mrb[0].mxu0
        %v2489 = vpop.f32.mrb[0].mxu0
        %2490 = vdwg.mxu0
        %v2491 = vld [vmem:[%s1391] sm:$0xff]
        %v2492 = vld [vmem:[%s1391 + $0x8] sm:$0xf]
        %v2493 = vld [vmem:[%s1391 + $0xc] sm:$0xff]
        %v2494 = vld [vmem:[%s1391 + $0x14] sm:$0xf]
        %v2495 = vld [vmem:[%s1391 + $0x18] sm:$0xff]
        %v2496 = vld [vmem:[%s1391 + $0x20] sm:$0xf]
        %v2497 = vld [vmem:[%s1391 + $0x24] sm:$0xff]
        %v2498 = vld [vmem:[%s1391 + $0x2c] sm:$0xf]
        %v2499 = vld [vmem:[%s1391 + $0x30] sm:$0xff]
        %v2500 = vld [vmem:[%s1391 + $0x38] sm:$0xf]
        %v2501 = vld [vmem:[%s1391 + $0x3c] sm:$0xff]
        %v2502 = vld [vmem:[%s1391 + $0x44] sm:$0xf]
        %v2503 = vld [vmem:[%s1391 + $0x48] sm:$0xff]
        %v2504 = vld [vmem:[%s1391 + $0x50] sm:$0xf]
        %v2505 = vld [vmem:[%s1391 + $0x54] sm:$0xff]
        %v2506 = vld [vmem:[%s1391 + $0x5c] sm:$0xf]
        %v2507 = vld [vmem:[%s1391 + $0x60] sm:$0xff]
        %v2508 = vld [vmem:[%s1391 + $0x68] sm:$0xf]
        %v2509 = vld [vmem:[%s1391 + $0x6c] sm:$0xff]
        %v2510 = vld [vmem:[%s1391 + $0x74] sm:$0xf]
        %v2511 = vld [vmem:[%s1391 + $0x78] sm:$0xff]
        %v2512 = vld [vmem:[%s1391 + $0x80] sm:$0xf]
        %v2513 = vld [vmem:[%s1391 + $0x84] sm:$0xff]
        %v2514 = vld [vmem:[%s1391 + $0x8c] sm:$0xf]
        %v2515 = vld [vmem:[%s1391 + $0x90] sm:$0xff]
        %v2516 = vld [vmem:[%s1391 + $0x98] sm:$0xf]
        %v2517 = vld [vmem:[%s1391 + $0x9c] sm:$0xff]
        %v2518 = vld [vmem:[%s1391 + $0xa4] sm:$0xf]
        %v2519 = vld [vmem:[%s1391 + $0xa8] sm:$0xff]
        %v2520 = vld [vmem:[%s1391 + $0xb0] sm:$0xf]
        %v2521 = vld [vmem:[%s1391 + $0xb4] sm:$0xff]
        %v2522 = vld [vmem:[%s1391 + $0xbc] sm:$0xf]
        %v2555 = vunpack.c.l.b16 %v2491
        %v2556 = vunpack.c.h.b16 %v2491
        %v2557 = vunpack.c.l.b16 %v2492
        %v2558 = vunpack.c.l.b16 %v2493
        %v2559 = vunpack.c.h.b16 %v2493
        %v2560 = vunpack.c.l.b16 %v2494
        %v2561 = vunpack.c.l.b16 %v2495
        %v2562 = vunpack.c.h.b16 %v2495
        %v2563 = vunpack.c.l.b16 %v2496
        %v2564 = vunpack.c.l.b16 %v2497
        %v2565 = vunpack.c.h.b16 %v2497
        %v2566 = vunpack.c.l.b16 %v2498
        %v2567 = vunpack.c.l.b16 %v2499
        %v2568 = vunpack.c.h.b16 %v2499
        %v2569 = vunpack.c.l.b16 %v2500
        %v2570 = vunpack.c.l.b16 %v2501
        %v2571 = vunpack.c.h.b16 %v2501
        %v2572 = vunpack.c.l.b16 %v2502
        %v2573 = vunpack.c.l.b16 %v2503
        %v2574 = vunpack.c.h.b16 %v2503
        %v2575 = vunpack.c.l.b16 %v2504
        %v2576 = vunpack.c.l.b16 %v2505
        %v2577 = vunpack.c.h.b16 %v2505
        %v2578 = vunpack.c.l.b16 %v2506
        %v2579 = vunpack.c.l.b16 %v2507
        %v2580 = vunpack.c.h.b16 %v2507
        %v2581 = vunpack.c.l.b16 %v2508
        %v2582 = vunpack.c.l.b16 %v2509
        %v2583 = vunpack.c.h.b16 %v2509
        %v2584 = vunpack.c.l.b16 %v2510
        %v2585 = vunpack.c.l.b16 %v2511
        %v2586 = vunpack.c.h.b16 %v2511
        %v2587 = vunpack.c.l.b16 %v2512
        %v2588 = vunpack.c.l.b16 %v2513
        %v2589 = vunpack.c.h.b16 %v2513
        %v2590 = vunpack.c.l.b16 %v2514
        %v2591 = vunpack.c.l.b16 %v2515
        %v2592 = vunpack.c.h.b16 %v2515
        %v2593 = vunpack.c.l.b16 %v2516
        %v2594 = vunpack.c.l.b16 %v2517
        %v2595 = vunpack.c.h.b16 %v2517
        %v2596 = vunpack.c.l.b16 %v2518
        %v2597 = vunpack.c.l.b16 %v2519
        %v2598 = vunpack.c.h.b16 %v2519
        %v2599 = vunpack.c.l.b16 %v2520
        %v2600 = vunpack.c.l.b16 %v2521
        %v2601 = vunpack.c.h.b16 %v2521
        %v2602 = vunpack.c.l.b16 %v2522
        %v2603 = vpack.c.b16 %v2558, %v2555
        %v2604 = vpack.c.b16 %v2559, %v2556
        %v2605 = vpack.c.b16 %v2560, %v2557
        %v2606 = vpack.c.b16 %v2564, %v2561
        %v2607 = vpack.c.b16 %v2565, %v2562
        %v2608 = vpack.c.b16 %v2566, %v2563
        %v2609 = vpack.c.b16 %v2570, %v2567
        %v2610 = vpack.c.b16 %v2571, %v2568
        %v2611 = vpack.c.b16 %v2572, %v2569
        %v2612 = vpack.c.b16 %v2576, %v2573
        %v2613 = vpack.c.b16 %v2577, %v2574
        %v2614 = vpack.c.b16 %v2578, %v2575
        %v2615 = vpack.c.b16 %v2582, %v2579
        %v2616 = vpack.c.b16 %v2583, %v2580
        %v2617 = vpack.c.b16 %v2584, %v2581
        %v2618 = vpack.c.b16 %v2588, %v2585
        %v2619 = vpack.c.b16 %v2589, %v2586
        %v2620 = vpack.c.b16 %v2590, %v2587
        %v2621 = vpack.c.b16 %v2594, %v2591
        %v2622 = vpack.c.b16 %v2595, %v2592
        %v2623 = vpack.c.b16 %v2596, %v2593
        %v2624 = vpack.c.b16 %v2600, %v2597
        %v2625 = vpack.c.b16 %v2601, %v2598
        %v2626 = vpack.c.b16 %v2602, %v2599
        %2651 = vmatprep.subr.bf16.mxu0 %v2604
        %2652 = vmatpush1.bf16.msra.mxu0 %v2603
        %2653 = vmatprep.subr.bf16.mxu0 %v2607
        %2654 = vmatpush1.bf16.msra.mxu0 %v2606
        %2655 = vmatprep.subr.bf16.mxu0 %v2610
        %2656 = vmatpush1.bf16.msra.mxu0 %v2609
        %2657 = vmatprep.subr.bf16.mxu0 %v2613
        %2658 = vmatpush1.bf16.msra.mxu0 %v2612
        %2659 = vmatprep.subr.bf16.mxu0 %v2616
        %2660 = vmatpush1.bf16.msra.mxu0 %v2615
        %2661 = vmatprep.subr.bf16.mxu0 %v2619
        %2662 = vmatpush1.bf16.msra.mxu0 %v2618
        %2663 = vmatprep.subr.bf16.mxu0 %v2622
        %2664 = vmatpush1.bf16.msra.mxu0 %v2621
        %2665 = vmatprep.subr.bf16.mxu0 %v2625
        %2666 = vmatpush1.bf16.msra.mxu0 %v2624
        %2667 = vmatprep.subr.bf16.mxu0 0
        %2668 = vmatpush1.bf16.msra.mxu0 0
        %2669 = vmatprep.subr.bf16.mxu0 0
        %2670 = vmatpush1.bf16.msra.mxu0 0
        %2671 = vmatprep.subr.bf16.mxu0 0
        %2672 = vmatpush1.bf16.msra.mxu0 0
        %2673 = vmatprep.subr.bf16.mxu0 0
        %2674 = vmatpush1.bf16.msra.mxu0 0
        %2675 = vmatprep.subr.bf16.mxu0 0
        %2676 = vmatpush1.bf16.msra.mxu0 0
        %2677 = vmatprep.subr.bf16.mxu0 0
        %2678 = vmatpush1.bf16.msra.mxu0 0
        %2679 = vmatprep.subr.bf16.mxu0 0
        %2680 = vmatpush1.bf16.msra.mxu0 0
        %2681 = vmatprep.subr.bf16.mxu0 0
        %2682 = vmatpush1.bf16.msra.mxu0 0
        %2683 = vmatprep.mubr.bf16.mxu0 0
        %2684 = vmatmul.mubr.bf16.gmra.mrb[0].mxu0 %v2235
        %v2685 = vpop.f32.mrb[0].mxu0
        %v2686 = vadd.f32 0.0, %v2685
        %v2687 = vpop.f32.mrb[0].mxu0
        %v2688 = vadd.f32 0.0, %v2687
        %v2689 = vpop.f32.mrb[0].mxu0
        %v2690 = vpop.f32.mrb[0].mxu0
        %2691 = vdwg.mxu0
        %2692 = vmatprep.subr.bf16.mxu0 0
        %2693 = vmatpush1.bf16.msra.mxu0 %v2605
        %2694 = vmatprep.subr.bf16.mxu0 0
        %2695 = vmatpush1.bf16.msra.mxu0 %v2608
        %2696 = vmatprep.subr.bf16.mxu0 0
        %2697 = vmatpush1.bf16.msra.mxu0 %v2611
        %2698 = vmatprep.subr.bf16.mxu0 0
        %2699 = vmatpush1.bf16.msra.mxu0 %v2614
        %2700 = vmatprep.subr.bf16.mxu0 0
        %2701 = vmatpush1.bf16.msra.mxu0 %v2617
        %2702 = vmatprep.subr.bf16.mxu0 0
        %2703 = vmatpush1.bf16.msra.mxu0 %v2620
        %2704 = vmatprep.subr.bf16.mxu0 0
        %2705 = vmatpush1.bf16.msra.mxu0 %v2623
        %2706 = vmatprep.subr.bf16.mxu0 0
        %2707 = vmatpush1.bf16.msra.mxu0 %v2626
        %2708 = vmatprep.subr.bf16.mxu0 0
        %2709 = vmatpush1.bf16.msra.mxu0 0
        %2710 = vmatprep.subr.bf16.mxu0 0
        %2711 = vmatpush1.bf16.msra.mxu0 0
        %2712 = vmatprep.subr.bf16.mxu0 0
        %2713 = vmatpush1.bf16.msra.mxu0 0
        %2714 = vmatprep.subr.bf16.mxu0 0
        %2715 = vmatpush1.bf16.msra.mxu0 0
        %2716 = vmatprep.subr.bf16.mxu0 0
        %2717 = vmatpush1.bf16.msra.mxu0 0
        %2718 = vmatprep.subr.bf16.mxu0 0
        %2719 = vmatpush1.bf16.msra.mxu0 0
        %2720 = vmatprep.subr.bf16.mxu0 0
        %2721 = vmatpush1.bf16.msra.mxu0 0
        %2722 = vmatprep.subr.bf16.mxu0 0
        %2723 = vmatpush1.bf16.msra.mxu0 0
        %2724 = vmatprep.mubr.bf16.mxu0 0
        %2725 = vmatmul.mubr.bf16.gmra.mrb[0].mxu0 %v2235
        %v2726 = vpop.f32.mrb[0].mxu0
        %v2727 = vadd.f32 0.0, %v2726
        %v2728 = vpop.f32.mrb[0].mxu0
        %v2729 = vpop.f32.mrb[0].mxu0
        %v2730 = vpop.f32.mrb[0].mxu0
        %2731 = vdwg.mxu0
        %v2732 = vadd.f32 %v2241, %v2445
        %v2733 = vadd.f32 %v2242, %v2447
        %v2734 = vxor.u32 %v2732, 2147483648
        %v2735 = vxor.u32 %v2733, 2147483648
        %v2736 = vmul.f32 %v2734, 1.442695
        %v2737 = vpow.pop %v2736
        %v2738 = vmul.f32 %v2735, 1.442695
        %v2739 = vpow.pop %v2738
        %v2740 = vadd.f32 %v2737, 1.0
        %v2741 = vadd.f32 %v2739, 1.0
        %v2742 = vrcp.pop %v2740
        %v2743 = vmul.f32 1.0, %v2742
        %v2744 = vrcp.pop %v2741
        %v2745 = vmul.f32 1.0, %v2744
        %v2746 = vadd.f32 %v2486, %v1651
        %v2747 = vmul.f32 %v2743, %v2746
        %v2748 = vadd.f32 %v2243, %v2747
        %v2749 = vtanh.pop %v2748
        %v2750 = vsub.f32 1.0, %v2745
        %v2751 = vmul.f32 %v2750, %v2749
        %v2752 = vmul.f32 %v2745, %v2209
        %v2753 = vadd.f32 %v2751, %v2752
        %v2754 = vadd.f32 %v2247, %v2686
        %v2755 = vadd.f32 %v2248, %v2688
        %v2756 = vxor.u32 %v2754, 2147483648
        %v2757 = vxor.u32 %v2755, 2147483648
        %v2758 = vmul.f32 %v2756, 1.442695
        %v2759 = vpow.pop %v2758
        %v2760 = vmul.f32 %v2757, 1.442695
        %v2761 = vpow.pop %v2760
        %v2762 = vadd.f32 %v2759, 1.0
        %v2763 = vadd.f32 %v2761, 1.0
        %v2764 = vrcp.pop %v2762
        %v2765 = vmul.f32 1.0, %v2764
        %v2766 = vrcp.pop %v2763
        %v2767 = vmul.f32 1.0, %v2766
        %v2768 = vadd.f32 %v2727, %v1679
        %v2769 = vmul.f32 %v2765, %v2768
        %v2770 = vadd.f32 %v2249, %v2769
        %v2771 = vtanh.pop %v2770
        %v2772 = vsub.f32 1.0, %v2767
        %v2773 = vmul.f32 %v2772, %v2771
        %v2774 = vmul.f32 %v2767, %v2231
        %v2775 = vadd.f32 %v2773, %v2774
        %v2776 = vpack.c.bf16 %v2753, %v2753
        %s2777 = scalar_lea.vmem %s403, 8
        %2778 = vst [vmem:[%s2777] sm:$0xf] %v2776
        %v2779 = vpack.c.bf16 %v2775, %v2775
        %s2780 = scalar_lea.vmem %s410, 4
        %2781 = vst [vmem:[%s2780] sm:$0xf] %v2779
        %s2782 = scalar_lea.vmem [#allocation4], 36
        %v2783 = vld [vmem:[%s2782] sm:$0xff]
        %v2784 = vld [vmem:[%s2782 + $0x8] sm:$0xf]
        %v2785 = vunpack.c.l.bf16 %v2783
        %v2786 = vunpack.c.h.bf16 %v2783
        %v2787 = vunpack.c.l.bf16 %v2784
        %v2788 = vld [vmem:[#allocation5] sm:$0xff]
        %v2789 = vld [vmem:[#allocation5 + $0x8] sm:$0xf]
        %v2790 = vunpack.c.l.bf16 %v2788
        %v2791 = vunpack.c.h.bf16 %v2788
        %v2792 = vunpack.c.l.bf16 %v2789
        %v2793 = vld [vmem:[#allocation8] sm:$0xff]
        %v2794 = vld [vmem:[#allocation8 + $0x8] sm:$0xf]
        %v2795 = vld [vmem:[#allocation8 + $0xc] sm:$0xff]
        %v2796 = vld [vmem:[#allocation8 + $0x14] sm:$0xf]
        %v2797 = vld [vmem:[#allocation8 + $0x18] sm:$0xff]
        %v2798 = vld [vmem:[#allocation8 + $0x20] sm:$0xf]
        %v2799 = vld [vmem:[#allocation8 + $0x24] sm:$0xff]
        %v2800 = vld [vmem:[#allocation8 + $0x2c] sm:$0xf]
        %v2801 = vld [vmem:[#allocation8 + $0x30] sm:$0xff]
        %v2802 = vld [vmem:[#allocation8 + $0x38] sm:$0xf]
        %v2803 = vld [vmem:[#allocation8 + $0x3c] sm:$0xff]
        %v2804 = vld [vmem:[#allocation8 + $0x44] sm:$0xf]
        %v2805 = vld [vmem:[#allocation8 + $0x48] sm:$0xff]
        %v2806 = vld [vmem:[#allocation8 + $0x50] sm:$0xf]
        %v2807 = vld [vmem:[#allocation8 + $0x54] sm:$0xff]
        %v2808 = vld [vmem:[#allocation8 + $0x5c] sm:$0xf]
        %v2809 = vld [vmem:[#allocation8 + $0x60] sm:$0xff]
        %v2810 = vld [vmem:[#allocation8 + $0x68] sm:$0xf]
        %v2811 = vld [vmem:[#allocation8 + $0x6c] sm:$0xff]
        %v2812 = vld [vmem:[#allocation8 + $0x74] sm:$0xf]
        %v2813 = vld [vmem:[#allocation8 + $0x78] sm:$0xff]
        %v2814 = vld [vmem:[#allocation8 + $0x80] sm:$0xf]
        %v2815 = vld [vmem:[#allocation8 + $0x84] sm:$0xff]
        %v2816 = vld [vmem:[#allocation8 + $0x8c] sm:$0xf]
        %v2817 = vld [vmem:[#allocation8 + $0x90] sm:$0xff]
        %v2818 = vld [vmem:[#allocation8 + $0x98] sm:$0xf]
        %v2819 = vld [vmem:[#allocation8 + $0x9c] sm:$0xff]
        %v2820 = vld [vmem:[#allocation8 + $0xa4] sm:$0xf]
        %v2821 = vld [vmem:[#allocation8 + $0xa8] sm:$0xff]
        %v2822 = vld [vmem:[#allocation8 + $0xb0] sm:$0xf]
        %v2823 = vld [vmem:[#allocation8 + $0xb4] sm:$0xff]
        %v2824 = vld [vmem:[#allocation8 + $0xbc] sm:$0xf]
        %v2857 = vunpack.c.l.b16 %v2793
        %v2858 = vunpack.c.h.b16 %v2793
        %v2859 = vunpack.c.l.b16 %v2794
        %v2860 = vunpack.c.l.b16 %v2795
        %v2861 = vunpack.c.h.b16 %v2795
        %v2862 = vunpack.c.l.b16 %v2796
        %v2863 = vunpack.c.l.b16 %v2797
        %v2864 = vunpack.c.h.b16 %v2797
        %v2865 = vunpack.c.l.b16 %v2798
        %v2866 = vunpack.c.l.b16 %v2799
        %v2867 = vunpack.c.h.b16 %v2799
        %v2868 = vunpack.c.l.b16 %v2800
        %v2869 = vunpack.c.l.b16 %v2801
        %v2870 = vunpack.c.h.b16 %v2801
        %v2871 = vunpack.c.l.b16 %v2802
        %v2872 = vunpack.c.l.b16 %v2803
        %v2873 = vunpack.c.h.b16 %v2803
        %v2874 = vunpack.c.l.b16 %v2804
        %v2875 = vunpack.c.l.b16 %v2805
        %v2876 = vunpack.c.h.b16 %v2805
        %v2877 = vunpack.c.l.b16 %v2806
        %v2878 = vunpack.c.l.b16 %v2807
        %v2879 = vunpack.c.h.b16 %v2807
        %v2880 = vunpack.c.l.b16 %v2808
        %v2881 = vunpack.c.l.b16 %v2809
        %v2882 = vunpack.c.h.b16 %v2809
        %v2883 = vunpack.c.l.b16 %v2810
        %v2884 = vunpack.c.l.b16 %v2811
        %v2885 = vunpack.c.h.b16 %v2811
        %v2886 = vunpack.c.l.b16 %v2812
        %v2887 = vunpack.c.l.b16 %v2813
        %v2888 = vunpack.c.h.b16 %v2813
        %v2889 = vunpack.c.l.b16 %v2814
        %v2890 = vunpack.c.l.b16 %v2815
        %v2891 = vunpack.c.h.b16 %v2815
        %v2892 = vunpack.c.l.b16 %v2816
        %v2893 = vunpack.c.l.b16 %v2817
        %v2894 = vunpack.c.h.b16 %v2817
        %v2895 = vunpack.c.l.b16 %v2818
        %v2896 = vunpack.c.l.b16 %v2819
        %v2897 = vunpack.c.h.b16 %v2819
        %v2898 = vunpack.c.l.b16 %v2820
        %v2899 = vunpack.c.l.b16 %v2821
        %v2900 = vunpack.c.h.b16 %v2821
        %v2901 = vunpack.c.l.b16 %v2822
        %v2902 = vunpack.c.l.b16 %v2823
        %v2903 = vunpack.c.h.b16 %v2823
        %v2904 = vunpack.c.l.b16 %v2824
        %v2905 = vpack.c.b16 %v2860, %v2857
        %v2906 = vpack.c.b16 %v2861, %v2858
        %v2907 = vpack.c.b16 %v2862, %v2859
        %v2908 = vpack.c.b16 %v2866, %v2863
        %v2909 = vpack.c.b16 %v2867, %v2864
        %v2910 = vpack.c.b16 %v2868, %v2865
        %v2911 = vpack.c.b16 %v2872, %v2869
        %v2912 = vpack.c.b16 %v2873, %v2870
        %v2913 = vpack.c.b16 %v2874, %v2871
        %v2914 = vpack.c.b16 %v2878, %v2875
        %v2915 = vpack.c.b16 %v2879, %v2876
        %v2916 = vpack.c.b16 %v2880, %v2877
        %v2917 = vpack.c.b16 %v2884, %v2881
        %v2918 = vpack.c.b16 %v2885, %v2882
        %v2919 = vpack.c.b16 %v2886, %v2883
        %v2920 = vpack.c.b16 %v2890, %v2887
        %v2921 = vpack.c.b16 %v2891, %v2888
        %v2922 = vpack.c.b16 %v2892, %v2889
        %v2923 = vpack.c.b16 %v2896, %v2893
        %v2924 = vpack.c.b16 %v2897, %v2894
        %v2925 = vpack.c.b16 %v2898, %v2895
        %v2926 = vpack.c.b16 %v2902, %v2899
        %v2927 = vpack.c.b16 %v2903, %v2900
        %v2928 = vpack.c.b16 %v2904, %v2901
        %2953 = vmatprep.subr.bf16.mxu0 %v2906
        %2954 = vmatpush1.bf16.msra.mxu0 %v2905
        %2955 = vmatprep.subr.bf16.mxu0 %v2909
        %2956 = vmatpush1.bf16.msra.mxu0 %v2908
        %2957 = vmatprep.subr.bf16.mxu0 %v2912
        %2958 = vmatpush1.bf16.msra.mxu0 %v2911
        %2959 = vmatprep.subr.bf16.mxu0 %v2915
        %2960 = vmatpush1.bf16.msra.mxu0 %v2914
        %2961 = vmatprep.subr.bf16.mxu0 %v2918
        %2962 = vmatpush1.bf16.msra.mxu0 %v2917
        %2963 = vmatprep.subr.bf16.mxu0 %v2921
        %2964 = vmatpush1.bf16.msra.mxu0 %v2920
        %2965 = vmatprep.subr.bf16.mxu0 %v2924
        %2966 = vmatpush1.bf16.msra.mxu0 %v2923
        %2967 = vmatprep.subr.bf16.mxu0 %v2927
        %2968 = vmatpush1.bf16.msra.mxu0 %v2926
        %2969 = vmatprep.subr.bf16.mxu0 0
        %2970 = vmatpush1.bf16.msra.mxu0 0
        %2971 = vmatprep.subr.bf16.mxu0 0
        %2972 = vmatpush1.bf16.msra.mxu0 0
        %2973 = vmatprep.subr.bf16.mxu0 0
        %2974 = vmatpush1.bf16.msra.mxu0 0
        %2975 = vmatprep.subr.bf16.mxu0 0
        %2976 = vmatpush1.bf16.msra.mxu0 0
        %2977 = vmatprep.subr.bf16.mxu0 0
        %2978 = vmatpush1.bf16.msra.mxu0 0
        %2979 = vmatprep.subr.bf16.mxu0 0
        %2980 = vmatpush1.bf16.msra.mxu0 0
        %2981 = vmatprep.subr.bf16.mxu0 0
        %2982 = vmatpush1.bf16.msra.mxu0 0
        %2983 = vmatprep.subr.bf16.mxu0 0
        %2984 = vmatpush1.bf16.msra.mxu0 0
        %2985 = vmatprep.mubr.bf16.mxu0 0
        %2986 = vmatmul.mubr.bf16.gmra.mrb[0].mxu0 %v2776
        %v2987 = vpop.f32.mrb[0].mxu0
        %v2988 = vadd.f32 0.0, %v2987
        %v2989 = vpop.f32.mrb[0].mxu0
        %v2990 = vadd.f32 0.0, %v2989
        %v2991 = vpop.f32.mrb[0].mxu0
        %v2992 = vpop.f32.mrb[0].mxu0
        %2993 = vdwg.mxu0
        %2994 = vmatprep.subr.bf16.mxu0 0
        %2995 = vmatpush1.bf16.msra.mxu0 %v2907
        %2996 = vmatprep.subr.bf16.mxu0 0
        %2997 = vmatpush1.bf16.msra.mxu0 %v2910
        %2998 = vmatprep.subr.bf16.mxu0 0
        %2999 = vmatpush1.bf16.msra.mxu0 %v2913
        %3000 = vmatprep.subr.bf16.mxu0 0
        %3001 = vmatpush1.bf16.msra.mxu0 %v2916
        %3002 = vmatprep.subr.bf16.mxu0 0
        %3003 = vmatpush1.bf16.msra.mxu0 %v2919
        %3004 = vmatprep.subr.bf16.mxu0 0
        %3005 = vmatpush1.bf16.msra.mxu0 %v2922
        %3006 = vmatprep.subr.bf16.mxu0 0
        %3007 = vmatpush1.bf16.msra.mxu0 %v2925
        %3008 = vmatprep.subr.bf16.mxu0 0
        %3009 = vmatpush1.bf16.msra.mxu0 %v2928
        %3010 = vmatprep.subr.bf16.mxu0 0
        %3011 = vmatpush1.bf16.msra.mxu0 0
        %3012 = vmatprep.subr.bf16.mxu0 0
        %3013 = vmatpush1.bf16.msra.mxu0 0
        %3014 = vmatprep.subr.bf16.mxu0 0
        %3015 = vmatpush1.bf16.msra.mxu0 0
        %3016 = vmatprep.subr.bf16.mxu0 0
        %3017 = vmatpush1.bf16.msra.mxu0 0
        %3018 = vmatprep.subr.bf16.mxu0 0
        %3019 = vmatpush1.bf16.msra.mxu0 0
        %3020 = vmatprep.subr.bf16.mxu0 0
        %3021 = vmatpush1.bf16.msra.mxu0 0
        %3022 = vmatprep.subr.bf16.mxu0 0
        %3023 = vmatpush1.bf16.msra.mxu0 0
        %3024 = vmatprep.subr.bf16.mxu0 0
        %3025 = vmatpush1.bf16.msra.mxu0 0
        %3026 = vmatprep.mubr.bf16.mxu0 0
        %3027 = vmatmul.mubr.bf16.gmra.mrb[0].mxu0 %v2776
        %v3028 = vpop.f32.mrb[0].mxu0
        %v3029 = vadd.f32 0.0, %v3028
        %v3030 = vpop.f32.mrb[0].mxu0
        %v3031 = vpop.f32.mrb[0].mxu0
        %v3032 = vpop.f32.mrb[0].mxu0
        %3033 = vdwg.mxu0
        %v3034 = vld [vmem:[%s1391] sm:$0xff]
        %v3035 = vld [vmem:[%s1391 + $0x8] sm:$0xf]
        %v3036 = vld [vmem:[%s1391 + $0xc] sm:$0xff]
        %v3037 = vld [vmem:[%s1391 + $0x14] sm:$0xf]
        %v3038 = vld [vmem:[%s1391 + $0x18] sm:$0xff]
        %v3039 = vld [vmem:[%s1391 + $0x20] sm:$0xf]
        %v3040 = vld [vmem:[%s1391 + $0x24] sm:$0xff]
        %v3041 = vld [vmem:[%s1391 + $0x2c] sm:$0xf]
        %v3042 = vld [vmem:[%s1391 + $0x30] sm:$0xff]
        %v3043 = vld [vmem:[%s1391 + $0x38] sm:$0xf]
        %v3044 = vld [vmem:[%s1391 + $0x3c] sm:$0xff]
        %v3045 = vld [vmem:[%s1391 + $0x44] sm:$0xf]
        %v3046 = vld [vmem:[%s1391 + $0x48] sm:$0xff]
        %v3047 = vld [vmem:[%s1391 + $0x50] sm:$0xf]
        %v3048 = vld [vmem:[%s1391 + $0x54] sm:$0xff]
        %v3049 = vld [vmem:[%s1391 + $0x5c] sm:$0xf]
        %v3050 = vld [vmem:[%s1391 + $0x60] sm:$0xff]
        %v3051 = vld [vmem:[%s1391 + $0x68] sm:$0xf]
        %v3052 = vld [vmem:[%s1391 + $0x6c] sm:$0xff]
        %v3053 = vld [vmem:[%s1391 + $0x74] sm:$0xf]
        %v3054 = vld [vmem:[%s1391 + $0x78] sm:$0xff]
        %v3055 = vld [vmem:[%s1391 + $0x80] sm:$0xf]
        %v3056 = vld [vmem:[%s1391 + $0x84] sm:$0xff]
        %v3057 = vld [vmem:[%s1391 + $0x8c] sm:$0xf]
        %v3058 = vld [vmem:[%s1391 + $0x90] sm:$0xff]
        %v3059 = vld [vmem:[%s1391 + $0x98] sm:$0xf]
        %v3060 = vld [vmem:[%s1391 + $0x9c] sm:$0xff]
        %v3061 = vld [vmem:[%s1391 + $0xa4] sm:$0xf]
        %v3062 = vld [vmem:[%s1391 + $0xa8] sm:$0xff]
        %v3063 = vld [vmem:[%s1391 + $0xb0] sm:$0xf]
        %v3064 = vld [vmem:[%s1391 + $0xb4] sm:$0xff]
        %v3065 = vld [vmem:[%s1391 + $0xbc] sm:$0xf]
        %v3098 = vunpack.c.l.b16 %v3034
        %v3099 = vunpack.c.h.b16 %v3034
        %v3100 = vunpack.c.l.b16 %v3035
        %v3101 = vunpack.c.l.b16 %v3036
        %v3102 = vunpack.c.h.b16 %v3036
        %v3103 = vunpack.c.l.b16 %v3037
        %v3104 = vunpack.c.l.b16 %v3038
        %v3105 = vunpack.c.h.b16 %v3038
        %v3106 = vunpack.c.l.b16 %v3039
        %v3107 = vunpack.c.l.b16 %v3040
        %v3108 = vunpack.c.h.b16 %v3040
        %v3109 = vunpack.c.l.b16 %v3041
        %v3110 = vunpack.c.l.b16 %v3042
        %v3111 = vunpack.c.h.b16 %v3042
        %v3112 = vunpack.c.l.b16 %v3043
        %v3113 = vunpack.c.l.b16 %v3044
        %v3114 = vunpack.c.h.b16 %v3044
        %v3115 = vunpack.c.l.b16 %v3045
        %v3116 = vunpack.c.l.b16 %v3046
        %v3117 = vunpack.c.h.b16 %v3046
        %v3118 = vunpack.c.l.b16 %v3047
        %v3119 = vunpack.c.l.b16 %v3048
        %v3120 = vunpack.c.h.b16 %v3048
        %v3121 = vunpack.c.l.b16 %v3049
        %v3122 = vunpack.c.l.b16 %v3050
        %v3123 = vunpack.c.h.b16 %v3050
        %v3124 = vunpack.c.l.b16 %v3051
        %v3125 = vunpack.c.l.b16 %v3052
        %v3126 = vunpack.c.h.b16 %v3052
        %v3127 = vunpack.c.l.b16 %v3053
        %v3128 = vunpack.c.l.b16 %v3054
        %v3129 = vunpack.c.h.b16 %v3054
        %v3130 = vunpack.c.l.b16 %v3055
        %v3131 = vunpack.c.l.b16 %v3056
        %v3132 = vunpack.c.h.b16 %v3056
        %v3133 = vunpack.c.l.b16 %v3057
        %v3134 = vunpack.c.l.b16 %v3058
        %v3135 = vunpack.c.h.b16 %v3058
        %v3136 = vunpack.c.l.b16 %v3059
        %v3137 = vunpack.c.l.b16 %v3060
        %v3138 = vunpack.c.h.b16 %v3060
        %v3139 = vunpack.c.l.b16 %v3061
        %v3140 = vunpack.c.l.b16 %v3062
        %v3141 = vunpack.c.h.b16 %v3062
        %v3142 = vunpack.c.l.b16 %v3063
        %v3143 = vunpack.c.l.b16 %v3064
        %v3144 = vunpack.c.h.b16 %v3064
        %v3145 = vunpack.c.l.b16 %v3065
        %v3146 = vpack.c.b16 %v3101, %v3098
        %v3147 = vpack.c.b16 %v3102, %v3099
        %v3148 = vpack.c.b16 %v3103, %v3100
        %v3149 = vpack.c.b16 %v3107, %v3104
        %v3150 = vpack.c.b16 %v3108, %v3105
        %v3151 = vpack.c.b16 %v3109, %v3106
        %v3152 = vpack.c.b16 %v3113, %v3110
        %v3153 = vpack.c.b16 %v3114, %v3111
        %v3154 = vpack.c.b16 %v3115, %v3112
        %v3155 = vpack.c.b16 %v3119, %v3116
        %v3156 = vpack.c.b16 %v3120, %v3117
        %v3157 = vpack.c.b16 %v3121, %v3118
        %v3158 = vpack.c.b16 %v3125, %v3122
        %v3159 = vpack.c.b16 %v3126, %v3123
        %v3160 = vpack.c.b16 %v3127, %v3124
        %v3161 = vpack.c.b16 %v3131, %v3128
        %v3162 = vpack.c.b16 %v3132, %v3129
        %v3163 = vpack.c.b16 %v3133, %v3130
        %v3164 = vpack.c.b16 %v3137, %v3134
        %v3165 = vpack.c.b16 %v3138, %v3135
        %v3166 = vpack.c.b16 %v3139, %v3136
        %v3167 = vpack.c.b16 %v3143, %v3140
        %v3168 = vpack.c.b16 %v3144, %v3141
        %v3169 = vpack.c.b16 %v3145, %v3142
        %3194 = vmatprep.subr.bf16.mxu0 %v3147
        %3195 = vmatpush1.bf16.msra.mxu0 %v3146
        %3196 = vmatprep.subr.bf16.mxu0 %v3150
        %3197 = vmatpush1.bf16.msra.mxu0 %v3149
        %3198 = vmatprep.subr.bf16.mxu0 %v3153
        %3199 = vmatpush1.bf16.msra.mxu0 %v3152
        %3200 = vmatprep.subr.bf16.mxu0 %v3156
        %3201 = vmatpush1.bf16.msra.mxu0 %v3155
        %3202 = vmatprep.subr.bf16.mxu0 %v3159
        %3203 = vmatpush1.bf16.msra.mxu0 %v3158
        %3204 = vmatprep.subr.bf16.mxu0 %v3162
        %3205 = vmatpush1.bf16.msra.mxu0 %v3161
        %3206 = vmatprep.subr.bf16.mxu0 %v3165
        %3207 = vmatpush1.bf16.msra.mxu0 %v3164
        %3208 = vmatprep.subr.bf16.mxu0 %v3168
        %3209 = vmatpush1.bf16.msra.mxu0 %v3167
        %3210 = vmatprep.subr.bf16.mxu0 0
        %3211 = vmatpush1.bf16.msra.mxu0 0
        %3212 = vmatprep.subr.bf16.mxu0 0
        %3213 = vmatpush1.bf16.msra.mxu0 0
        %3214 = vmatprep.subr.bf16.mxu0 0
        %3215 = vmatpush1.bf16.msra.mxu0 0
        %3216 = vmatprep.subr.bf16.mxu0 0
        %3217 = vmatpush1.bf16.msra.mxu0 0
        %3218 = vmatprep.subr.bf16.mxu0 0
        %3219 = vmatpush1.bf16.msra.mxu0 0
        %3220 = vmatprep.subr.bf16.mxu0 0
        %3221 = vmatpush1.bf16.msra.mxu0 0
        %3222 = vmatprep.subr.bf16.mxu0 0
        %3223 = vmatpush1.bf16.msra.mxu0 0
        %3224 = vmatprep.subr.bf16.mxu0 0
        %3225 = vmatpush1.bf16.msra.mxu0 0
        %3226 = vmatprep.mubr.bf16.mxu0 0
        %3227 = vmatmul.mubr.bf16.gmra.mrb[0].mxu0 %v2779
        %v3228 = vpop.f32.mrb[0].mxu0
        %v3229 = vadd.f32 0.0, %v3228
        %v3230 = vpop.f32.mrb[0].mxu0
        %v3231 = vadd.f32 0.0, %v3230
        %v3232 = vpop.f32.mrb[0].mxu0
        %v3233 = vpop.f32.mrb[0].mxu0
        %3234 = vdwg.mxu0
        %3235 = vmatprep.subr.bf16.mxu0 0
        %3236 = vmatpush1.bf16.msra.mxu0 %v3148
        %3237 = vmatprep.subr.bf16.mxu0 0
        %3238 = vmatpush1.bf16.msra.mxu0 %v3151
        %3239 = vmatprep.subr.bf16.mxu0 0
        %3240 = vmatpush1.bf16.msra.mxu0 %v3154
        %3241 = vmatprep.subr.bf16.mxu0 0
        %3242 = vmatpush1.bf16.msra.mxu0 %v3157
        %3243 = vmatprep.subr.bf16.mxu0 0
        %3244 = vmatpush1.bf16.msra.mxu0 %v3160
        %3245 = vmatprep.subr.bf16.mxu0 0
        %3246 = vmatpush1.bf16.msra.mxu0 %v3163
        %3247 = vmatprep.subr.bf16.mxu0 0
        %3248 = vmatpush1.bf16.msra.mxu0 %v3166
        %3249 = vmatprep.subr.bf16.mxu0 0
        %3250 = vmatpush1.bf16.msra.mxu0 %v3169
        %3251 = vmatprep.subr.bf16.mxu0 0
        %3252 = vmatpush1.bf16.msra.mxu0 0
        %3253 = vmatprep.subr.bf16.mxu0 0
        %3254 = vmatpush1.bf16.msra.mxu0 0
        %3255 = vmatprep.subr.bf16.mxu0 0
        %3256 = vmatpush1.bf16.msra.mxu0 0
        %3257 = vmatprep.subr.bf16.mxu0 0
        %3258 = vmatpush1.bf16.msra.mxu0 0
        %3259 = vmatprep.subr.bf16.mxu0 0
        %3260 = vmatpush1.bf16.msra.mxu0 0
        %3261 = vmatprep.subr.bf16.mxu0 0
        %3262 = vmatpush1.bf16.msra.mxu0 0
        %3263 = vmatprep.subr.bf16.mxu0 0
        %3264 = vmatpush1.bf16.msra.mxu0 0
        %3265 = vmatprep.subr.bf16.mxu0 0
        %3266 = vmatpush1.bf16.msra.mxu0 0
        %3267 = vmatprep.mubr.bf16.mxu0 0
        %3268 = vmatmul.mubr.bf16.gmra.mrb[0].mxu0 %v2779
        %v3269 = vpop.f32.mrb[0].mxu0
        %v3270 = vadd.f32 0.0, %v3269
        %v3271 = vpop.f32.mrb[0].mxu0
        %v3272 = vpop.f32.mrb[0].mxu0
        %v3273 = vpop.f32.mrb[0].mxu0
        %3274 = vdwg.mxu0
        %v3275 = vadd.f32 %v2785, %v2988
        %v3276 = vadd.f32 %v2786, %v2990
        %v3277 = vxor.u32 %v3275, 2147483648
        %v3278 = vxor.u32 %v3276, 2147483648
        %v3279 = vmul.f32 %v3277, 1.442695
        %v3280 = vpow.pop %v3279
        %v3281 = vmul.f32 %v3278, 1.442695
        %v3282 = vpow.pop %v3281
        %v3283 = vadd.f32 %v3280, 1.0
        %v3284 = vadd.f32 %v3282, 1.0
        %v3285 = vrcp.pop %v3283
        %v3286 = vmul.f32 1.0, %v3285
        %v3287 = vrcp.pop %v3284
        %v3288 = vmul.f32 1.0, %v3287
        %v3289 = vadd.f32 %v3029, %v1651
        %v3290 = vmul.f32 %v3286, %v3289
        %v3291 = vadd.f32 %v2787, %v3290
        %v3292 = vtanh.pop %v3291
        %v3293 = vsub.f32 1.0, %v3288
        %v3294 = vmul.f32 %v3293, %v3292
        %v3295 = vmul.f32 %v3288, %v2753
        %v3296 = vadd.f32 %v3294, %v3295
        %v3297 = vadd.f32 %v2790, %v3229
        %v3298 = vadd.f32 %v2791, %v3231
        %v3299 = vxor.u32 %v3297, 2147483648
        %v3300 = vxor.u32 %v3298, 2147483648
        %v3301 = vmul.f32 %v3299, 1.442695
        %v3302 = vpow.pop %v3301
        %v3303 = vmul.f32 %v3300, 1.442695
        %v3304 = vpow.pop %v3303
        %v3305 = vadd.f32 %v3302, 1.0
        %v3306 = vadd.f32 %v3304, 1.0
        %v3307 = vrcp.pop %v3305
        %v3308 = vmul.f32 1.0, %v3307
        %v3309 = vrcp.pop %v3306
        %v3310 = vmul.f32 1.0, %v3309
        %v3311 = vadd.f32 %v3270, %v1679
        %v3312 = vmul.f32 %v3308, %v3311
        %v3313 = vadd.f32 %v2792, %v3312
        %v3314 = vtanh.pop %v3313
        %v3315 = vsub.f32 1.0, %v3310
        %v3316 = vmul.f32 %v3315, %v3314
        %v3317 = vmul.f32 %v3310, %v2775
        %v3318 = vadd.f32 %v3316, %v3317
        %v3319 = vpack.c.bf16 %v3296, %v3296
        %s3320 = scalar_lea.vmem %s403, 12
        %3321 = vst [vmem:[%s3320] sm:$0xf] %v3319
        %v3322 = vpack.c.bf16 %v3318, %v3318
        %3323 = vst [vmem:[%s410] sm:$0xf] %v3322
        %3324 = vst [vmem:[#allocation2] sm:$0xff] %v3296
        %3325 = vst [vmem:[#allocation3] sm:$0xff] %v3318
        %3326 = vst [vmem:[%s8] sm:$0xff] %v3296
        %s3327 = scalar_lea.vmem %s8, 8
        %3328 = vst [vmem:[%s3327] sm:$0xff] %v3318
        %s3329 = smul.u32 4, %s23
        %p3330 = scmp.lt.s32.totalorder %s3329, 7
        %s3331 = scalar_select %p3330, %s3329, 7
        %s3332 = smul.addr %s3331, 4
        %s3333 = scalar_lea.vmem %s6, %s3332
        %s3334 = ssub.s32 1, %s23
        %s3335 = smul.u32 4, %s3334
        %p3336 = scmp.lt.s32.totalorder %s3335, 7
        %s3337 = scalar_select %p3336, %s3335, 7
        %s3338 = smul.addr %s3337, 4
        %s3339 = scalar_lea.vmem %s7, %s3338
        // Predicated region
        $region65: #{encoder_rnn_forward.2} parent=43 // pred_check
          %p3340 = pneg %p179
        $region66: #{encoder_rnn_forward.2} parent=43 // pred_check_branch
          %3342 = sbr.rel (%p3340) target = $region68
        $region67: #{encoder_rnn_forward.2} parent=43 // pred_region
          %s3343 = smul.u32 4, %s23
        $region68: #{encoder_rnn_forward.2} parent=43 // pred_fallthru
          _
        // Predicated region
        $region69: #{encoder_rnn_forward.2} parent=43 // pred_check
          %p3344 = pneg %p207
        $region70: #{encoder_rnn_forward.2} parent=43 // pred_check_branch
          %3346 = sbr.rel (%p3344) target = $region72
        $region71: #{encoder_rnn_forward.2} parent=43 // pred_region
          %s3347 = ssub.s32 1, %s23
          %s3348 = smul.u32 4, %s3347
        $region72: #{encoder_rnn_forward.2} parent=43 // pred_fallthru
          _
        // Predicated region
        $region73: #{encoder_rnn_forward.2} parent=43 // pred_check
          %p3349 = pneg %p228
        $region74: #{encoder_rnn_forward.2} parent=43 // pred_check_branch
          %3351 = sbr.rel (%p3349) target = $region76
        $region75: #{encoder_rnn_forward.2} parent=43 // pred_region
          _
        $region76: #{encoder_rnn_forward.2} parent=43 // pred_fallthru
          _
        // Predicated region
        $region77: #{encoder_rnn_forward.2} parent=43 // pred_check
          %p3352 = pneg %p228
        $region78: #{encoder_rnn_forward.2} parent=43 // pred_check_branch
          %3354 = sbr.rel (%p3352) target = $region80
        $region79: #{encoder_rnn_forward.2} parent=43 // pred_region
          _
        $region80: #{encoder_rnn_forward.2} parent=43 // pred_fallthru
          _
      $region44: #{encoder_rnn_forward.2} parent=5 // pred_fallthru
        _
      %p3355 = scmp.le.s32.totalorder 2, %s18
      // Predicated region
      $region81: #{encoder_rnn_forward.2} parent=5 // pred_check
        %p3356 = pneg %p3355
      $region82: #{encoder_rnn_forward.2} parent=5 // pred_check_branch
        %3358 = sbr.rel (%p3356) target = $region84
      $region83: #{encoder_rnn_forward.2} parent=5 // pred_region
        %s3359 = ssub.s32 %s18, 2
        // Predicated region
        $region85: #{encoder_rnn_forward.2} parent=83 // pred_check
          %p3360 = pneg %p185
        $region86: #{encoder_rnn_forward.2} parent=83 // pred_check_branch
          %3362 = sbr.rel (%p3360) target = $region88
        $region87: #{encoder_rnn_forward.2} parent=83 // pred_region
          %s3363 = smul.u32 4, %s24
          %p3364 = scmp.lt.s32.totalorder %s3363, 7
          %s3365 = scalar_select %p3364, %s3363, 7
          %s3366 = smul.addr %s3365, 4
          %s3367 = scalar_lea.vmem %s6, %s3366
        $region88: #{encoder_rnn_forward.2} parent=83 // pred_fallthru
          _
        // Predicated region
        $region89: #{encoder_rnn_forward.2} parent=83 // pred_check
          %p3368 = pneg %p213
        $region90: #{encoder_rnn_forward.2} parent=83 // pred_check_branch
          %3370 = sbr.rel (%p3368) target = $region92
        $region91: #{encoder_rnn_forward.2} parent=83 // pred_region
          %s3371 = ssub.s32 1, %s24
          %s3372 = smul.u32 4, %s3371
          %p3373 = scmp.lt.s32.totalorder %s3372, 7
          %s3374 = scalar_select %p3373, %s3372, 7
          %s3375 = smul.addr %s3374, 4
          %s3376 = scalar_lea.vmem %s7, %s3375
        $region92: #{encoder_rnn_forward.2} parent=83 // pred_fallthru
          _
      $region84: #{encoder_rnn_forward.2} parent=5 // pred_fallthru
        _
    $region6: #{encoder_rnn_forward.2} parent=1 // loop_footer
      %s22 = sadd.s32 1, %s18
    $region7: #{encoder_rnn_forward.2} parent=1 // loop_footer_branch
      %17 = sbr.rel target = $region3
    $region8: #{encoder_rnn_forward.2} parent=1 // loop_exit
      _
    %3377 = vsyncpa [#allocation7], 1
    %s3378 = scalar_lea.sflag [#allocation7], 1
    %3379 = vsyncpa %s3378, 1
    %3380 = vsyncpa [#allocation9], 1
    %3381 = vsyncpa [#allocation12], 1

// kernel: encoder_rnn_forward.3
$region0: #{encoder_rnn_forward.3}
  #allocation0 [shape = 'u32[]', space=smem, size = 0x4, offset = 0x4, fixed_abs, tag = 'smem constant byte address 0x4 - core index']
  #allocation1 [shape = 'u32[144,128]{1,0:T(1,128)}', space=vmem, size = 0x12000, scoped, tag = 'internal scratch']
  #allocation2 [shape = 'f32[8,128]{1,0:T(8,128)}', space=vmem, size = 0x1000, scoped, tag = 'scratch operand']
  #allocation3 [shape = 'f32[8,128]{1,0:T(8,128)}', space=vmem, size = 0x1000, scoped, tag = 'scratch operand']
  #allocation4 [shape = 'bf16[4,8,384]{2,1,0:T(8,128)(2,1)}', space=vmem, size = 0x6000, scoped, tag = 'scratch operand']
  #allocation5 [shape = 'bf16[4,8,384]{2,1,0:T(8,128)(2,1)}', space=vmem, size = 0x6000, scoped, tag = 'scratch operand']
  %s0 = inlined_call_operand.vmem [shape: bf16[8,8,128], index: 0, kind: input, shape index: {}, may-alias: {0,2}]
  %s1 = inlined_call_operand.vmem [shape: bf16[8,8,128], index: 1, kind: input, shape index: {}, may-alias: {1,3}]
  %s2 = inlined_call_operand.vmem [shape: bf16[8,8,128], index: 2, kind: input, shape index: {}, may-alias: {0,2}]
  %s3 = inlined_call_operand.vmem [shape: bf16[8,8,128], index: 3, kind: input, shape index: {}, may-alias: {1,3}]
  %s4 = inlined_call_operand.vmem [shape: bf16[2,256,384], index: 4, kind: input, shape index: {}]
  %s5 = inlined_call_operand.hbm [shape: bf16[2,128,384], index: 5, kind: input, shape index: {}]
  %s6 = inlined_call_operand.vmem [shape: f32[2,1,384], index: 6, kind: input, shape index: {}]
  %s7 = inlined_call_operand.vmem [shape: f32[2,1,128], index: 7, kind: input, shape index: {}]
  %s8 = inlined_call_operand.vmem [shape: f32[8,8,128], index: 8, kind: output, shape index: {0}]
  %s9 = inlined_call_operand.vmem [shape: f32[8,8,128], index: 9, kind: output, shape index: {1}]
  %s10 = inlined_call_operand.vmem [shape: f32[2,8,128], index: 10, kind: output, shape index: {2}]
  %11 = xla_tuple %s8, %s9, %s10
  %s12 = sld [smem:[#allocation0]]
  $region89: #{encoder_rnn_forward.3} parent=0
    _
  %s14 = ssub.s32 1, %s12
  %s15 = scalar_select 0, %s14, %s12
  $region1: #{encoder_rnn_forward.3} parent=0
    #allocation6 [shape = 'u8[196608]{0}', space=vmem, size = 0x30000, scoped, tag = 'input window, operand 5, single buffered']
    #allocation7 [shape = 's32[2]{0}', space=sflag, size = 0x8, scoped, tag = 'scoped memory for encoder_rnn_forward.3']
    %16 = vsyncpa [#allocation7], 0
    loop: start=0, step=1, limit=4
    $region2: #{encoder_rnn_forward.3} parent=1 // loop_pre_header
      _
    $region3: #{encoder_rnn_forward.3} parent=1 // loop_header
      %s18 = sphi 0, %s22
      %p19 = scmp.ge.s32.totalorder %s18, 4
      %s28 = sphi 0, %s30
      %s31 = sphi 0, %s28
      %s32 = sphi 0, %s31
      %s48 = sphi 0, %s32
      %s54 = sphi 0, %s56
      %s57 = sphi 0, %s54
      %s58 = sphi 0, %s57
      %s74 = sphi 0, %s58
      %s82 = sphi 0, %s84
      %s85 = sphi 0, %s82
      %s86 = sphi 0, %s85
      %s102 = sphi 0, %s86
      %s110 = sphi 0, %s112
      %s113 = sphi 0, %s110
      %s114 = sphi 0, %s113
      %s130 = sphi 0, %s114
      %s134 = sphi 0, %s134
      %s136 = sphi 0, %s134
      %s137 = sphi 0, %s136
      %s151 = sphi 0, %s137
      %s155 = sphi 0, %s155
      %s157 = sphi 0, %s155
      %s158 = sphi 0, %s157
      %s172 = sphi 0, %s158
      %s176 = sphi 0, %s176
      %s178 = sphi 0, %s176
      %s179 = sphi 0, %s178
      %s193 = sphi 0, %s179
      %s197 = sphi 0, %s197
      %s199 = sphi 0, %s197
      %s200 = sphi 0, %s199
      %s214 = sphi 0, %s200
      %s220 = sphi 0, %s222
      %s223 = sphi 0, %s220
      %s224 = sphi 0, %s223
      %s240 = sphi 0, %s224
      %s248 = sphi 0, %s250
      %s251 = sphi 0, %s248
      %s252 = sphi 0, %s251
      %s268 = sphi 0, %s252
      %s272 = sphi 0, %s272
      %s274 = sphi 0, %s272
      %s275 = sphi 0, %s274
      %s289 = sphi 0, %s275
    $region4: #{encoder_rnn_forward.3} parent=1 // loop_header_branch
      %21 = sbr.rel (%p19) target = $region8
    $region5: #{encoder_rnn_forward.3} parent=1 // loop_body
      %s23 = ssub.s32 %s18, 1
      %s24 = ssub.s32 %s18, 2
      %s25 = sadd.s32 %s18, 1
      %s26 = ssub.s32 %s18, %s25
      %p27 = scmp.eq.s32.totalorder %s26, 0
      %s29 = sadd.s32 %s28, 1
      %s30 = scalar_select %p27, %s28, %s29
      %p33 = pneg %p27
      %p34 = scmp.eq.s32.totalorder %s18, 1
      %p35 = por %p33, %p34
      %p36 = scmp.ne.s32.totalorder %s28, %s31
      %p37 = scmp.eq.s32.totalorder %s18, 0
      %p38 = por %p36, %p37
      %p39 = scmp.ne.s32.totalorder %s28, %s31
      %p40 = scmp.eq.s32.totalorder %s23, 1
      %p41 = por %p39, %p40
      %p42 = scmp.ne.s32.totalorder %s31, %s32
      %p43 = scmp.eq.s32.totalorder %s23, 0
      %p44 = por %p42, %p43
      %p45 = scmp.ne.s32.totalorder %s31, %s32
      %p46 = scmp.eq.s32.totalorder %s24, 1
      %p47 = por %p45, %p46
      %p49 = scmp.ne.s32.totalorder %s32, %s48
      %p50 = scmp.eq.s32.totalorder %s24, 0
      %p51 = por %p49, %p50
      %s52 = ssub.s32 %s18, %s25
      %p53 = scmp.eq.s32.totalorder %s52, 0
      %s55 = sadd.s32 %s54, 1
      %s56 = scalar_select %p53, %s54, %s55
      %p59 = pneg %p53
      %p60 = scmp.eq.s32.totalorder %s18, 1
      %p61 = por %p59, %p60
      %p62 = scmp.ne.s32.totalorder %s54, %s57
      %p63 = scmp.eq.s32.totalorder %s18, 0
      %p64 = por %p62, %p63
      %p65 = scmp.ne.s32.totalorder %s54, %s57
      %p66 = scmp.eq.s32.totalorder %s23, 1
      %p67 = por %p65, %p66
      %p68 = scmp.ne.s32.totalorder %s57, %s58
      %p69 = scmp.eq.s32.totalorder %s23, 0
      %p70 = por %p68, %p69
      %p71 = scmp.ne.s32.totalorder %s57, %s58
      %p72 = scmp.eq.s32.totalorder %s24, 1
      %p73 = por %p71, %p72
      %p75 = scmp.ne.s32.totalorder %s58, %s74
      %p76 = scmp.eq.s32.totalorder %s24, 0
      %p77 = por %p75, %p76
      %s78 = ssub.s32 1, %s18
      %s79 = ssub.s32 1, %s25
      %s80 = ssub.s32 %s78, %s79
      %p81 = scmp.eq.s32.totalorder %s80, 0
      %s83 = sadd.s32 %s82, 1
      %s84 = scalar_select %p81, %s82, %s83
      %p87 = pneg %p81
      %p88 = scmp.eq.s32.totalorder %s18, 1
      %p89 = por %p87, %p88
      %p90 = scmp.ne.s32.totalorder %s82, %s85
      %p91 = scmp.eq.s32.totalorder %s18, 0
      %p92 = por %p90, %p91
      %p93 = scmp.ne.s32.totalorder %s82, %s85
      %p94 = scmp.eq.s32.totalorder %s23, 1
      %p95 = por %p93, %p94
      %p96 = scmp.ne.s32.totalorder %s85, %s86
      %p97 = scmp.eq.s32.totalorder %s23, 0
      %p98 = por %p96, %p97
      %p99 = scmp.ne.s32.totalorder %s85, %s86
      %p100 = scmp.eq.s32.totalorder %s24, 1
      %p101 = por %p99, %p100
      %p103 = scmp.ne.s32.totalorder %s86, %s102
      %p104 = scmp.eq.s32.totalorder %s24, 0
      %p105 = por %p103, %p104
      %s106 = ssub.s32 1, %s18
      %s107 = ssub.s32 1, %s25
      %s108 = ssub.s32 %s106, %s107
      %p109 = scmp.eq.s32.totalorder %s108, 0
      %s111 = sadd.s32 %s110, 1
      %s112 = scalar_select %p109, %s110, %s111
      %p115 = pneg %p109
      %p116 = scmp.eq.s32.totalorder %s18, 1
      %p117 = por %p115, %p116
      %p118 = scmp.ne.s32.totalorder %s110, %s113
      %p119 = scmp.eq.s32.totalorder %s18, 0
      %p120 = por %p118, %p119
      %p121 = scmp.ne.s32.totalorder %s110, %s113
      %p122 = scmp.eq.s32.totalorder %s23, 1
      %p123 = por %p121, %p122
      %p124 = scmp.ne.s32.totalorder %s113, %s114
      %p125 = scmp.eq.s32.totalorder %s23, 0
      %p126 = por %p124, %p125
      %p127 = scmp.ne.s32.totalorder %s113, %s114
      %p128 = scmp.eq.s32.totalorder %s24, 1
      %p129 = por %p127, %p128
      %p131 = scmp.ne.s32.totalorder %s114, %s130
      %p132 = scmp.eq.s32.totalorder %s24, 0
      %p133 = por %p131, %p132
      %s135 = sadd.s32 %s134, 1
      %p138 = scmp.eq.s32.totalorder %s18, 1
      %p139 = scmp.ne.s32.totalorder %s134, %s136
      %p140 = scmp.eq.s32.totalorder %s18, 0
      %p141 = por %p139, %p140
      %p142 = scmp.ne.s32.totalorder %s134, %s136
      %p143 = scmp.eq.s32.totalorder %s23, 1
      %p144 = por %p142, %p143
      %p145 = scmp.ne.s32.totalorder %s136, %s137
      %p146 = scmp.eq.s32.totalorder %s23, 0
      %p147 = por %p145, %p146
      %p148 = scmp.ne.s32.totalorder %s136, %s137
      %p149 = scmp.eq.s32.totalorder %s24, 1
      %p150 = por %p148, %p149
      %p152 = scmp.ne.s32.totalorder %s137, %s151
      %p153 = scmp.eq.s32.totalorder %s24, 0
      %p154 = por %p152, %p153
      %s156 = sadd.s32 %s155, 1
      %p159 = scmp.eq.s32.totalorder %s18, 1
      %p160 = scmp.ne.s32.totalorder %s155, %s157
      %p161 = scmp.eq.s32.totalorder %s18, 0
      %p162 = por %p160, %p161
      %p163 = scmp.ne.s32.totalorder %s155, %s157
      %p164 = scmp.eq.s32.totalorder %s23, 1
      %p165 = por %p163, %p164
      %p166 = scmp.ne.s32.totalorder %s157, %s158
      %p167 = scmp.eq.s32.totalorder %s23, 0
      %p168 = por %p166, %p167
      %p169 = scmp.ne.s32.totalorder %s157, %s158
      %p170 = scmp.eq.s32.totalorder %s24, 1
      %p171 = por %p169, %p170
      %p173 = scmp.ne.s32.totalorder %s158, %s172
      %p174 = scmp.eq.s32.totalorder %s24, 0
      %p175 = por %p173, %p174
      %s177 = sadd.s32 %s176, 1
      %p180 = scmp.eq.s32.totalorder %s18, 1
      %p181 = scmp.ne.s32.totalorder %s176, %s178
      %p182 = scmp.eq.s32.totalorder %s18, 0
      %p183 = por %p181, %p182
      %p184 = scmp.ne.s32.totalorder %s176, %s178
      %p185 = scmp.eq.s32.totalorder %s23, 1
      %p186 = por %p184, %p185
      %p187 = scmp.ne.s32.totalorder %s178, %s179
      %p188 = scmp.eq.s32.totalorder %s23, 0
      %p189 = por %p187, %p188
      %p190 = scmp.ne.s32.totalorder %s178, %s179
      %p191 = scmp.eq.s32.totalorder %s24, 1
      %p192 = por %p190, %p191
      %p194 = scmp.ne.s32.totalorder %s179, %s193
      %p195 = scmp.eq.s32.totalorder %s24, 0
      %p196 = por %p194, %p195
      %s198 = sadd.s32 %s197, 1
      %p201 = scmp.eq.s32.totalorder %s18, 1
      %p202 = scmp.ne.s32.totalorder %s197, %s199
      %p203 = scmp.eq.s32.totalorder %s18, 0
      %p204 = por %p202, %p203
      %p205 = scmp.ne.s32.totalorder %s197, %s199
      %p206 = scmp.eq.s32.totalorder %s23, 1
      %p207 = por %p205, %p206
      %p208 = scmp.ne.s32.totalorder %s199, %s200
      %p209 = scmp.eq.s32.totalorder %s23, 0
      %p210 = por %p208, %p209
      %p211 = scmp.ne.s32.totalorder %s199, %s200
      %p212 = scmp.eq.s32.totalorder %s24, 1
      %p213 = por %p211, %p212
      %p215 = scmp.ne.s32.totalorder %s200, %s214
      %p216 = scmp.eq.s32.totalorder %s24, 0
      %p217 = por %p215, %p216
      %s218 = ssub.s32 %s18, %s25
      %p219 = scmp.eq.s32.totalorder %s218, 0
      %s221 = sadd.s32 %s220, 1
      %s222 = scalar_select %p219, %s220, %s221
      %p225 = pneg %p219
      %p226 = scmp.eq.s32.totalorder %s18, 1
      %p227 = por %p225, %p226
      %p228 = scmp.ne.s32.totalorder %s220, %s223
      %p229 = scmp.eq.s32.totalorder %s18, 0
      %p230 = por %p228, %p229
      %p231 = scmp.ne.s32.totalorder %s220, %s223
      %p232 = scmp.eq.s32.totalorder %s23, 1
      %p233 = por %p231, %p232
      %p234 = scmp.ne.s32.totalorder %s223, %s224
      %p235 = scmp.eq.s32.totalorder %s23, 0
      %p236 = por %p234, %p235
      %p237 = scmp.ne.s32.totalorder %s223, %s224
      %p238 = scmp.eq.s32.totalorder %s24, 1
      %p239 = por %p237, %p238
      %p241 = scmp.ne.s32.totalorder %s224, %s240
      %p242 = scmp.eq.s32.totalorder %s24, 0
      %p243 = por %p241, %p242
      %s244 = ssub.s32 1, %s18
      %s245 = ssub.s32 1, %s25
      %s246 = ssub.s32 %s244, %s245
      %p247 = scmp.eq.s32.totalorder %s246, 0
      %s249 = sadd.s32 %s248, 1
      %s250 = scalar_select %p247, %s248, %s249
      %p253 = pneg %p247
      %p254 = scmp.eq.s32.totalorder %s18, 1
      %p255 = por %p253, %p254
      %p256 = scmp.ne.s32.totalorder %s248, %s251
      %p257 = scmp.eq.s32.totalorder %s18, 0
      %p258 = por %p256, %p257
      %p259 = scmp.ne.s32.totalorder %s248, %s251
      %p260 = scmp.eq.s32.totalorder %s23, 1
      %p261 = por %p259, %p260
      %p262 = scmp.ne.s32.totalorder %s251, %s252
      %p263 = scmp.eq.s32.totalorder %s23, 0
      %p264 = por %p262, %p263
      %p265 = scmp.ne.s32.totalorder %s251, %s252
      %p266 = scmp.eq.s32.totalorder %s24, 1
      %p267 = por %p265, %p266
      %p269 = scmp.ne.s32.totalorder %s252, %s268
      %p270 = scmp.eq.s32.totalorder %s24, 0
      %p271 = por %p269, %p270
      %s273 = sadd.s32 %s272, 1
      %p276 = scmp.eq.s32.totalorder %s18, 1
      %p277 = scmp.ne.s32.totalorder %s272, %s274
      %p278 = scmp.eq.s32.totalorder %s18, 0
      %p279 = por %p277, %p278
      %p280 = scmp.ne.s32.totalorder %s272, %s274
      %p281 = scmp.eq.s32.totalorder %s23, 1
      %p282 = por %p280, %p281
      %p283 = scmp.ne.s32.totalorder %s274, %s275
      %p284 = scmp.eq.s32.totalorder %s23, 0
      %p285 = por %p283, %p284
      %p286 = scmp.ne.s32.totalorder %s274, %s275
      %p287 = scmp.eq.s32.totalorder %s24, 1
      %p288 = por %p286, %p287
      %p290 = scmp.ne.s32.totalorder %s275, %s289
      %p291 = scmp.eq.s32.totalorder %s24, 0
      %p292 = por %p290, %p291
      %p293 = scmp.le.s32.totalorder 1, %s18
      %p294 = scmp.lt.s32.totalorder %s18, 3
      %p295 = pnand %p293, %p294
      %p296 = pneg %p295
      // Predicated region
      $region9: #{encoder_rnn_forward.3} parent=5 // pred_check
        _
      $region10: #{encoder_rnn_forward.3} parent=5 // pred_check_branch
        %298 = sbr.rel (%p295) target = $region12
      $region11: #{encoder_rnn_forward.3} parent=5 // pred_region
        %s299 = ssub.s32 %s18, 1
        // Predicated region
        $region13: #{encoder_rnn_forward.3} parent=11 // pred_check
          %p300 = pneg %p147
        $region14: #{encoder_rnn_forward.3} parent=11 // pred_check_branch
          %302 = sbr.rel (%p300) target = $region16
        $region15: #{encoder_rnn_forward.3} parent=11 // pred_region
          _
        $region16: #{encoder_rnn_forward.3} parent=11 // pred_fallthru
          _
        // Predicated region
        $region17: #{encoder_rnn_forward.3} parent=11 // pred_check
          %p303 = pneg %p168
        $region18: #{encoder_rnn_forward.3} parent=11 // pred_check_branch
          %305 = sbr.rel (%p303) target = $region20
        $region19: #{encoder_rnn_forward.3} parent=11 // pred_region
          %s307 = ssub.s32 6144, 6144
          %308 = vsyncadd [#allocation7], %s307
          %s309 = sshll.u32 [#allocation6], 4
          %s310 = int_to_ptr.vmem [resolvable:$true] %s309
          %315 = dma.hbm_to_vmem [thread:$0]  %s5, 6144, %s310, [#allocation7], 192, 192, 12
        $region20: #{encoder_rnn_forward.3} parent=11 // pred_fallthru
          _
        // Predicated region
        $region21: #{encoder_rnn_forward.3} parent=11 // pred_check
          %p316 = pneg %p189
        $region22: #{encoder_rnn_forward.3} parent=11 // pred_check_branch
          %318 = sbr.rel (%p316) target = $region24
        $region23: #{encoder_rnn_forward.3} parent=11 // pred_region
          _
        $region24: #{encoder_rnn_forward.3} parent=11 // pred_fallthru
          _
        // Predicated region
        $region25: #{encoder_rnn_forward.3} parent=11 // pred_check
          %p319 = pneg %p210
        $region26: #{encoder_rnn_forward.3} parent=11 // pred_check_branch
          %321 = sbr.rel (%p319) target = $region28
        $region27: #{encoder_rnn_forward.3} parent=11 // pred_region
          _
        $region28: #{encoder_rnn_forward.3} parent=11 // pred_fallthru
          _
      $region12: #{encoder_rnn_forward.3} parent=5 // pred_fallthru
        _
      %p322 = scmp.lt.s32.totalorder %s18, 2
      // Predicated region
      $region29: #{encoder_rnn_forward.3} parent=5 // pred_check
        %p323 = pneg %p322
      $region30: #{encoder_rnn_forward.3} parent=5 // pred_check_branch
        %325 = sbr.rel (%p323) target = $region32
      $region31: #{encoder_rnn_forward.3} parent=5 // pred_region
        // Predicated region
        $region33: #{encoder_rnn_forward.3} parent=31 // pred_check
          %p326 = pneg %p38
        $region34: #{encoder_rnn_forward.3} parent=31 // pred_check_branch
          %328 = sbr.rel (%p326) target = $region36
        $region35: #{encoder_rnn_forward.3} parent=31 // pred_region
          %s329 = smul.u32 4, %s18
          %p330 = scmp.lt.s32.totalorder %s329, 7
          %s331 = scalar_select %p330, %s329, 7
          %s332 = smul.addr %s331, 4
          %s333 = scalar_lea.vmem %s0, %s332
          %s334 = smul.u32 4, %s18
        $region36: #{encoder_rnn_forward.3} parent=31 // pred_fallthru
          _
        // Predicated region
        $region37: #{encoder_rnn_forward.3} parent=31 // pred_check
          %p335 = pneg %p64
        $region38: #{encoder_rnn_forward.3} parent=31 // pred_check_branch
          %337 = sbr.rel (%p335) target = $region40
        $region39: #{encoder_rnn_forward.3} parent=31 // pred_region
          %s338 = smul.u32 4, %s18
          %p339 = scmp.lt.s32.totalorder %s338, 7
          %s340 = scalar_select %p339, %s338, 7
          %s341 = smul.addr %s340, 4
          %s342 = scalar_lea.vmem %s1, %s341
          %s343 = smul.u32 4, %s18
        $region40: #{encoder_rnn_forward.3} parent=31 // pred_fallthru
          _
        // Predicated region
        $region41: #{encoder_rnn_forward.3} parent=31 // pred_check
          %p344 = pneg %p92
        $region42: #{encoder_rnn_forward.3} parent=31 // pred_check_branch
          %346 = sbr.rel (%p344) target = $region44
        $region43: #{encoder_rnn_forward.3} parent=31 // pred_region
          %s347 = ssub.s32 1, %s18
          %s348 = smul.u32 4, %s347
          %p349 = scmp.lt.s32.totalorder %s348, 7
          %s350 = scalar_select %p349, %s348, 7
          %s351 = smul.addr %s350, 4
          %s352 = scalar_lea.vmem %s2, %s351
          %s353 = ssub.s32 1, %s18
          %s354 = smul.u32 4, %s353
        $region44: #{encoder_rnn_forward.3} parent=31 // pred_fallthru
          _
        // Predicated region
        $region45: #{encoder_rnn_forward.3} parent=31 // pred_check
          %p355 = pneg %p120
        $region46: #{encoder_rnn_forward.3} parent=31 // pred_check_branch
          %357 = sbr.rel (%p355) target = $region48
        $region47: #{encoder_rnn_forward.3} parent=31 // pred_region
          %s358 = ssub.s32 1, %s18
          %s359 = smul.u32 4, %s358
          %p360 = scmp.lt.s32.totalorder %s359, 7
          %s361 = scalar_select %p360, %s359, 7
          %s362 = smul.addr %s361, 4
          %s363 = scalar_lea.vmem %s3, %s362
          %s364 = ssub.s32 1, %s18
          %s365 = smul.u32 4, %s364
        $region48: #{encoder_rnn_forward.3} parent=31 // pred_fallthru
          _
      $region32: #{encoder_rnn_forward.3} parent=5 // pred_fallthru
        _
      %p366 = scmp.le.s32.totalorder 1, %s18
      %p367 = scmp.lt.s32.totalorder %s18, 3
      %p368 = pnand %p366, %p367
      %p369 = pneg %p368
      // Predicated region
      $region49: #{encoder_rnn_forward.3} parent=5 // pred_check
        _
      $region50: #{encoder_rnn_forward.3} parent=5 // pred_check_branch
        %371 = sbr.rel (%p368) target = $region52
      $region51: #{encoder_rnn_forward.3} parent=5 // pred_region
        %s372 = ssub.s32 %s18, 1
        // Predicated region
        $region53: #{encoder_rnn_forward.3} parent=51 // pred_check
          %p373 = pneg %p168
        $region54: #{encoder_rnn_forward.3} parent=51 // pred_check_branch
          %375 = sbr.rel (%p373) target = $region56
        $region55: #{encoder_rnn_forward.3} parent=51 // pred_region
          %376 = dma.done [#allocation7], 6144
        $region56: #{encoder_rnn_forward.3} parent=51 // pred_fallthru
          _
        %s377 = smul.u32 4, %s23
        %p378 = scmp.lt.s32.totalorder %s377, 7
        %s379 = scalar_select %p378, %s377, 7
        %s380 = smul.addr %s379, 4
        %s381 = scalar_lea.vmem %s0, %s380
        %p382 = pneg %p44
        %p383 = pneg %p41
        %s384 = smul.u32 4, %s23
        %p385 = scmp.lt.s32.totalorder %s384, 7
        %s386 = scalar_select %p385, %s384, 7
        %s387 = smul.addr %s386, 4
        %s388 = scalar_lea.vmem %s1, %s387
        %p389 = pneg %p70
        %p390 = pneg %p67
        %s391 = ssub.s32 1, %s23
        %s392 = smul.u32 4, %s391
        %p393 = scmp.lt.s32.totalorder %s392, 7
        %s394 = scalar_select %p393, %s392, 7
        %s395 = smul.addr %s394, 4
        %s396 = scalar_lea.vmem %s2, %s395
        %p397 = pneg %p98
        %p398 = pneg %p95
        %s399 = ssub.s32 1, %s23
        %s400 = smul.u32 4, %s399
        %p401 = scmp.lt.s32.totalorder %s400, 7
        %s402 = scalar_select %p401, %s400, 7
        %s403 = smul.addr %s402, 4
        %s404 = scalar_lea.vmem %s3, %s403
        %p405 = pneg %p126
        %p406 = pneg %p123
        %p407 = pneg %p147
        %p408 = pneg %p144
        %p409 = pneg %p168
        %p410 = pneg %p165
        %p411 = pneg %p189
        %p412 = pneg %p186
        %p413 = pneg %p210
        %p414 = pneg %p207
        %p415 = pneg %p236
        %p416 = pneg %p233
        %s417 = smul.u32 4, %s23
        %p418 = scmp.lt.s32.totalorder %s417, 7
        %s419 = scalar_select %p418, %s417, 7
        %s420 = smul.addr %s419, 8
        %s421 = scalar_lea.vmem %s8, %s420
        %p422 = pneg %p264
        %p423 = pneg %p261
        %s424 = ssub.s32 1, %s23
        %s425 = smul.u32 4, %s424
        %p426 = scmp.lt.s32.totalorder %s425, 7
        %s427 = scalar_select %p426, %s425, 7
        %s428 = smul.addr %s427, 8
        %s429 = scalar_lea.vmem %s9, %s428
        %p430 = pneg %p285
        %p431 = pneg %p282
        %s432 = smul.u32 4, %s23
        %p433 = scmp.lt.s32.totalorder %s432, 7
        %s434 = scalar_select %p433, %s432, 7
        %s435 = smul.addr %s434, 4
        %s436 = scalar_lea.vmem %s0, %s435
        %s437 = smul.u32 4, %s23
        %s438 = smul.u32 4, %s23
        %p439 = scmp.lt.s32.totalorder %s438, 7
        %s440 = scalar_select %p439, %s438, 7
        %s441 = smul.addr %s440, 4
        %s442 = scalar_lea.vmem %s1, %s441
        %s443 = smul.u32 4, %s23
        %s444 = ssub.s32 1, %s23
        %s445 = smul.u32 4, %s444
        %p446 = scmp.lt.s32.totalorder %s445, 7
        %s447 = scalar_select %p446, %s445, 7
        %s448 = smul.addr %s447, 4
        %s449 = scalar_lea.vmem %s2, %s448
        %s450 = ssub.s32 1, %s23
        %s451 = smul.u32 4, %s450
        %s452 = ssub.s32 1, %s23
        %s453 = smul.u32 4, %s452
        %p454 = scmp.lt.s32.totalorder %s453, 7
        %s455 = scalar_select %p454, %s453, 7
        %s456 = smul.addr %s455, 4
        %s457 = scalar_lea.vmem %s3, %s456
        %s458 = ssub.s32 1, %s23
        %s459 = smul.u32 4, %s458
        %s460 = smul.u32 4, %s23
        %p461 = scmp.lt.s32.totalorder %s460, 7
        %s462 = scalar_select %p461, %s460, 7
        %s463 = smul.addr %s462, 8
        %s464 = scalar_lea.vmem %s8, %s463
        %s465 = smul.u32 4, %s23
        %s466 = ssub.s32 1, %s23
        %s467 = smul.u32 4, %s466
        %p468 = scmp.lt.s32.totalorder %s467, 7
        %s469 = scalar_select %p468, %s467, 7
        %s470 = smul.addr %s469, 8
        %s471 = scalar_lea.vmem %s9, %s470
        %s472 = ssub.s32 1, %s23
        %s473 = smul.u32 4, %s472
        %p475 = scmp.eq.s32.totalorder %s23, 0
        // Predicated region
        $region57: #{encoder_rnn_forward.3} parent=51 // pred_check
          %p476 = pneg %p475
        $region58: #{encoder_rnn_forward.3} parent=51 // pred_check_branch
          %478 = sbr.rel (%p476) target = $region60
        $region59: #{encoder_rnn_forward.3} parent=51 // pred_region
          %479 = vst [vmem:[#allocation2] sm:$0xff] 0.0
          %480 = vst [vmem:[#allocation3] sm:$0xff] 0.0
        $region60: #{encoder_rnn_forward.3} parent=51 // pred_fallthru
          _
        %v481 = vld [vmem:[%s436] sm:$0xf]
        %v482 = vld [vmem:[%s436 + $0x4] sm:$0xf]
        %v483 = vld [vmem:[%s436 + $0x8] sm:$0xf]
        %v484 = vld [vmem:[%s436 + $0xc] sm:$0xf]
        %v485 = vld [vmem:[%s4] sm:$0xff]
        %v486 = vld [vmem:[%s4 + $0x8] sm:$0xf]
        %v487 = vld [vmem:[%s4 + $0xc] sm:$0xff]
        %v488 = vld [vmem:[%s4 + $0x14] sm:$0xf]
        %v489 = vld [vmem:[%s4 + $0x18] sm:$0xff]
        %v490 = vld [vmem:[%s4 + $0x20] sm:$0xf]
        %v491 = vld [vmem:[%s4 + $0x24] sm:$0xff]
        %v492 = vld [vmem:[%s4 + $0x2c] sm:$0xf]
        %v493 = vld [vmem:[%s4 + $0x30] sm:$0xff]
        %v494 = vld [vmem:[%s4 + $0x38] sm:$0xf]
        %v495 = vld [vmem:[%s4 + $0x3c] sm:$0xff]
        %v496 = vld [vmem:[%s4 + $0x44] sm:$0xf]
        %v497 = vld [vmem:[%s4 + $0x48] sm:$0xff]
        %v498 = vld [vmem:[%s4 + $0x50] sm:$0xf]
        %v499 = vld [vmem:[%s4 + $0x54] sm:$0xff]
        %v500 = vld [vmem:[%s4 + $0x5c] sm:$0xf]
        %v501 = vld [vmem:[%s4 + $0x60] sm:$0xff]
        %v502 = vld [vmem:[%s4 + $0x68] sm:$0xf]
        %v503 = vld [vmem:[%s4 + $0x6c] sm:$0xff]
        %v504 = vld [vmem:[%s4 + $0x74] sm:$0xf]
        %v505 = vld [vmem:[%s4 + $0x78] sm:$0xff]
        %v506 = vld [vmem:[%s4 + $0x80] sm:$0xf]
        %v507 = vld [vmem:[%s4 + $0x84] sm:$0xff]
        %v508 = vld [vmem:[%s4 + $0x8c] sm:$0xf]
        %v509 = vld [vmem:[%s4 + $0x90] sm:$0xff]
        %v510 = vld [vmem:[%s4 + $0x98] sm:$0xf]
        %v511 = vld [vmem:[%s4 + $0x9c] sm:$0xff]
        %v512 = vld [vmem:[%s4 + $0xa4] sm:$0xf]
        %v513 = vld [vmem:[%s4 + $0xa8] sm:$0xff]
        %v514 = vld [vmem:[%s4 + $0xb0] sm:$0xf]
        %v515 = vld [vmem:[%s4 + $0xb4] sm:$0xff]
        %v516 = vld [vmem:[%s4 + $0xbc] sm:$0xf]
        %v517 = vld [vmem:[%s442] sm:$0xf]
        %v518 = vld [vmem:[%s442 + $0x4] sm:$0xf]
        %v519 = vld [vmem:[%s442 + $0x8] sm:$0xf]
        %v520 = vld [vmem:[%s442 + $0xc] sm:$0xf]
        %v521 = vld [vmem:[%s4 + $0xc0] sm:$0xff]
        %v522 = vld [vmem:[%s4 + $0xc8] sm:$0xf]
        %v523 = vld [vmem:[%s4 + $0xcc] sm:$0xff]
        %v524 = vld [vmem:[%s4 + $0xd4] sm:$0xf]
        %v525 = vld [vmem:[%s4 + $0xd8] sm:$0xff]
        %v526 = vld [vmem:[%s4 + $0xe0] sm:$0xf]
        %v527 = vld [vmem:[%s4 + $0xe4] sm:$0xff]
        %v528 = vld [vmem:[%s4 + $0xec] sm:$0xf]
        %v529 = vld [vmem:[%s4 + $0xf0] sm:$0xff]
        %v530 = vld [vmem:[%s4 + $0xf8] sm:$0xf]
        %v531 = vld [vmem:[%s4 + $0xfc] sm:$0xff]
        %v532 = vld [vmem:[%s4 + $0x104] sm:$0xf]
        %v533 = vld [vmem:[%s4 + $0x108] sm:$0xff]
        %v534 = vld [vmem:[%s4 + $0x110] sm:$0xf]
        %v535 = vld [vmem:[%s4 + $0x114] sm:$0xff]
        %v536 = vld [vmem:[%s4 + $0x11c] sm:$0xf]
        %v537 = vld [vmem:[%s4 + $0x120] sm:$0xff]
        %v538 = vld [vmem:[%s4 + $0x128] sm:$0xf]
        %v539 = vld [vmem:[%s4 + $0x12c] sm:$0xff]
        %v540 = vld [vmem:[%s4 + $0x134] sm:$0xf]
        %v541 = vld [vmem:[%s4 + $0x138] sm:$0xff]
        %v542 = vld [vmem:[%s4 + $0x140] sm:$0xf]
        %v543 = vld [vmem:[%s4 + $0x144] sm:$0xff]
        %v544 = vld [vmem:[%s4 + $0x14c] sm:$0xf]
        %v545 = vld [vmem:[%s4 + $0x150] sm:$0xff]
        %v546 = vld [vmem:[%s4 + $0x158] sm:$0xf]
        %v547 = vld [vmem:[%s4 + $0x15c] sm:$0xff]
        %v548 = vld [vmem:[%s4 + $0x164] sm:$0xf]
        %v549 = vld [vmem:[%s4 + $0x168] sm:$0xff]
        %v550 = vld [vmem:[%s4 + $0x170] sm:$0xf]
        %v551 = vld [vmem:[%s4 + $0x174] sm:$0xff]
        %v552 = vld [vmem:[%s4 + $0x17c] sm:$0xf]
        %v557 = vunpack.c.l.b16 %v517
        %v558 = vunpack.c.l.b16 %v518
        %v559 = vunpack.c.l.b16 %v519
        %v560 = vunpack.c.l.b16 %v520
        %v561 = vpack.c.b16 %v558, %v557
        %v562 = vpack.c.b16 %v560, %v559
        %v597 = vunpack.c.l.b16 %v521
        %v598 = vunpack.c.h.b16 %v521
        %v599 = vunpack.c.l.b16 %v522
        %v600 = vunpack.c.l.b16 %v523
        %v601 = vunpack.c.h.b16 %v523
        %v602 = vunpack.c.l.b16 %v524
        %v603 = vunpack.c.l.b16 %v525
        %v604 = vunpack.c.h.b16 %v525
        %v605 = vunpack.c.l.b16 %v526
        %v606 = vunpack.c.l.b16 %v527
        %v607 = vunpack.c.h.b16 %v527
        %v608 = vunpack.c.l.b16 %v528
        %v609 = vunpack.c.l.b16 %v529
        %v610 = vunpack.c.h.b16 %v529
        %v611 = vunpack.c.l.b16 %v530
        %v612 = vunpack.c.l.b16 %v531
        %v613 = vunpack.c.h.b16 %v531
        %v614 = vunpack.c.l.b16 %v532
        %v615 = vunpack.c.l.b16 %v533
        %v616 = vunpack.c.h.b16 %v533
        %v617 = vunpack.c.l.b16 %v534
        %v618 = vunpack.c.l.b16 %v535
        %v619 = vunpack.c.h.b16 %v535
        %v620 = vunpack.c.l.b16 %v536
        %v621 = vunpack.c.l.b16 %v537
        %v622 = vunpack.c.h.b16 %v537
        %v623 = vunpack.c.l.b16 %v538
        %v624 = vunpack.c.l.b16 %v539
        %v625 = vunpack.c.h.b16 %v539
        %v626 = vunpack.c.l.b16 %v540
        %v627 = vunpack.c.l.b16 %v541
        %v628 = vunpack.c.h.b16 %v541
        %v629 = vunpack.c.l.b16 %v542
        %v630 = vunpack.c.l.b16 %v543
        %v631 = vunpack.c.h.b16 %v543
        %v632 = vunpack.c.l.b16 %v544
        %v633 = vunpack.c.l.b16 %v545
        %v634 = vunpack.c.h.b16 %v545
        %v635 = vunpack.c.l.b16 %v546
        %v636 = vunpack.c.l.b16 %v547
        %v637 = vunpack.c.h.b16 %v547
        %v638 = vunpack.c.l.b16 %v548
        %v639 = vunpack.c.l.b16 %v549
        %v640 = vunpack.c.h.b16 %v549
        %v641 = vunpack.c.l.b16 %v550
        %v642 = vunpack.c.l.b16 %v551
        %v643 = vunpack.c.h.b16 %v551
        %v644 = vunpack.c.l.b16 %v552
        %v645 = vpack.c.b16 %v600, %v597
        %v646 = vpack.c.b16 %v601, %v598
        %v647 = vpack.c.b16 %v602, %v599
        %v648 = vpack.c.b16 %v606, %v603
        %v649 = vpack.c.b16 %v607, %v604
        %v650 = vpack.c.b16 %v608, %v605
        %v651 = vpack.c.b16 %v612, %v609
        %v652 = vpack.c.b16 %v613, %v610
        %v653 = vpack.c.b16 %v614, %v611
        %v654 = vpack.c.b16 %v618, %v615
        %v655 = vpack.c.b16 %v619, %v616
        %v656 = vpack.c.b16 %v620, %v617
        %v657 = vpack.c.b16 %v624, %v621
        %v658 = vpack.c.b16 %v625, %v622
        %v659 = vpack.c.b16 %v626, %v623
        %v660 = vpack.c.b16 %v630, %v627
        %v661 = vpack.c.b16 %v631, %v628
        %v662 = vpack.c.b16 %v632, %v629
        %v663 = vpack.c.b16 %v636, %v633
        %v664 = vpack.c.b16 %v637, %v634
        %v665 = vpack.c.b16 %v638, %v635
        %v666 = vpack.c.b16 %v642, %v639
        %v667 = vpack.c.b16 %v643, %v640
        %v668 = vpack.c.b16 %v644, %v641
        %693 = vmatprep.subr.bf16.mxu0 %v646
        %694 = vmatpush1.bf16.msra.mxu0 %v645
        %695 = vmatprep.subr.bf16.mxu0 %v649
        %696 = vmatpush1.bf16.msra.mxu0 %v648
        %697 = vmatprep.subr.bf16.mxu0 %v652
        %698 = vmatpush1.bf16.msra.mxu0 %v651
        %699 = vmatprep.subr.bf16.mxu0 %v655
        %700 = vmatpush1.bf16.msra.mxu0 %v654
        %701 = vmatprep.subr.bf16.mxu0 %v658
        %702 = vmatpush1.bf16.msra.mxu0 %v657
        %703 = vmatprep.subr.bf16.mxu0 %v661
        %704 = vmatpush1.bf16.msra.mxu0 %v660
        %705 = vmatprep.subr.bf16.mxu0 %v664
        %706 = vmatpush1.bf16.msra.mxu0 %v663
        %707 = vmatprep.subr.bf16.mxu0 %v667
        %708 = vmatpush1.bf16.msra.mxu0 %v666
        %709 = vmatprep.subr.bf16.mxu0 0
        %710 = vmatpush1.bf16.msra.mxu0 0
        %711 = vmatprep.subr.bf16.mxu0 0
        %712 = vmatpush1.bf16.msra.mxu0 0
        %713 = vmatprep.subr.bf16.mxu0 0
        %714 = vmatpush1.bf16.msra.mxu0 0
        %715 = vmatprep.subr.bf16.mxu0 0
        %716 = vmatpush1.bf16.msra.mxu0 0
        %717 = vmatprep.subr.bf16.mxu0 0
        %718 = vmatpush1.bf16.msra.mxu0 0
        %719 = vmatprep.subr.bf16.mxu0 0
        %720 = vmatpush1.bf16.msra.mxu0 0
        %721 = vmatprep.subr.bf16.mxu0 0
        %722 = vmatpush1.bf16.msra.mxu0 0
        %723 = vmatprep.subr.bf16.mxu0 0
        %724 = vmatpush1.bf16.msra.mxu0 0
        %725 = vmatprep.mubr.bf16.mxu0 0
        %726 = vmatmul.mubr.bf16.gmra.mrb[0].mxu0 %v561
        %v727 = vpop.f32.mrb[0].mxu0
        %v728 = vadd.f32 0.0, %v727
        %v729 = vpop.f32.mrb[0].mxu0
        %v730 = vadd.f32 0.0, %v729
        %v731 = vpop.f32.mrb[0].mxu0
        %v732 = vadd.f32 0.0, %v731
        %v733 = vpop.f32.mrb[0].mxu0
        %v734 = vadd.f32 0.0, %v733
        %735 = vmatprep.mubr.bf16.mxu0 0
        %736 = vmatmul.mubr.bf16.gmra.mrb[0].mxu0 %v562
        %v737 = vpop.f32.mrb[0].mxu0
        %v738 = vadd.f32 0.0, %v737
        %v739 = vpop.f32.mrb[0].mxu0
        %v740 = vadd.f32 0.0, %v739
        %v741 = vpop.f32.mrb[0].mxu0
        %v742 = vadd.f32 0.0, %v741
        %v743 = vpop.f32.mrb[0].mxu0
        %v744 = vadd.f32 0.0, %v743
        %745 = vdwg.mxu0
        %746 = vmatprep.subr.bf16.mxu0 0
        %747 = vmatpush1.bf16.msra.mxu0 %v647
        %748 = vmatprep.subr.bf16.mxu0 0
        %749 = vmatpush1.bf16.msra.mxu0 %v650
        %750 = vmatprep.subr.bf16.mxu0 0
        %751 = vmatpush1.bf16.msra.mxu0 %v653
        %752 = vmatprep.subr.bf16.mxu0 0
        %753 = vmatpush1.bf16.msra.mxu0 %v656
        %754 = vmatprep.subr.bf16.mxu0 0
        %755 = vmatpush1.bf16.msra.mxu0 %v659
        %756 = vmatprep.subr.bf16.mxu0 0
        %757 = vmatpush1.bf16.msra.mxu0 %v662
        %758 = vmatprep.subr.bf16.mxu0 0
        %759 = vmatpush1.bf16.msra.mxu0 %v665
        %760 = vmatprep.subr.bf16.mxu0 0
        %761 = vmatpush1.bf16.msra.mxu0 %v668
        %762 = vmatprep.subr.bf16.mxu0 0
        %763 = vmatpush1.bf16.msra.mxu0 0
        %764 = vmatprep.subr.bf16.mxu0 0
        %765 = vmatpush1.bf16.msra.mxu0 0
        %766 = vmatprep.subr.bf16.mxu0 0
        %767 = vmatpush1.bf16.msra.mxu0 0
        %768 = vmatprep.subr.bf16.mxu0 0
        %769 = vmatpush1.bf16.msra.mxu0 0
        %770 = vmatprep.subr.bf16.mxu0 0
        %771 = vmatpush1.bf16.msra.mxu0 0
        %772 = vmatprep.subr.bf16.mxu0 0
        %773 = vmatpush1.bf16.msra.mxu0 0
        %774 = vmatprep.subr.bf16.mxu0 0
        %775 = vmatpush1.bf16.msra.mxu0 0
        %776 = vmatprep.subr.bf16.mxu0 0
        %777 = vmatpush1.bf16.msra.mxu0 0
        %778 = vmatprep.mubr.bf16.mxu0 0
        %779 = vmatmul.mubr.bf16.gmra.mrb[0].mxu0 %v561
        %v780 = vpop.f32.mrb[0].mxu0
        %v781 = vadd.f32 0.0, %v780
        %v782 = vpop.f32.mrb[0].mxu0
        %v783 = vpop.f32.mrb[0].mxu0
        %v784 = vadd.f32 0.0, %v783
        %v785 = vpop.f32.mrb[0].mxu0
        %786 = vmatprep.mubr.bf16.mxu0 0
        %787 = vmatmul.mubr.bf16.gmra.mrb[0].mxu0 %v562
        %v788 = vpop.f32.mrb[0].mxu0
        %v789 = vadd.f32 0.0, %v788
        %v790 = vpop.f32.mrb[0].mxu0
        %v791 = vpop.f32.mrb[0].mxu0
        %v792 = vadd.f32 0.0, %v791
        %v793 = vpop.f32.mrb[0].mxu0
        %794 = vdwg.mxu0
        %v799 = vunpack.c.l.b16 %v481
        %v800 = vunpack.c.l.b16 %v482
        %v801 = vunpack.c.l.b16 %v483
        %v802 = vunpack.c.l.b16 %v484
        %v803 = vpack.c.b16 %v800, %v799
        %v804 = vpack.c.b16 %v802, %v801
        %v839 = vunpack.c.l.b16 %v485
        %v840 = vunpack.c.h.b16 %v485
        %v841 = vunpack.c.l.b16 %v486
        %v842 = vunpack.c.l.b16 %v487
        %v843 = vunpack.c.h.b16 %v487
        %v844 = vunpack.c.l.b16 %v488
        %v845 = vunpack.c.l.b16 %v489
        %v846 = vunpack.c.h.b16 %v489
        %v847 = vunpack.c.l.b16 %v490
        %v848 = vunpack.c.l.b16 %v491
        %v849 = vunpack.c.h.b16 %v491
        %v850 = vunpack.c.l.b16 %v492
        %v851 = vunpack.c.l.b16 %v493
        %v852 = vunpack.c.h.b16 %v493
        %v853 = vunpack.c.l.b16 %v494
        %v854 = vunpack.c.l.b16 %v495
        %v855 = vunpack.c.h.b16 %v495
        %v856 = vunpack.c.l.b16 %v496
        %v857 = vunpack.c.l.b16 %v497
        %v858 = vunpack.c.h.b16 %v497
        %v859 = vunpack.c.l.b16 %v498
        %v860 = vunpack.c.l.b16 %v499
        %v861 = vunpack.c.h.b16 %v499
        %v862 = vunpack.c.l.b16 %v500
        %v863 = vunpack.c.l.b16 %v501
        %v864 = vunpack.c.h.b16 %v501
        %v865 = vunpack.c.l.b16 %v502
        %v866 = vunpack.c.l.b16 %v503
        %v867 = vunpack.c.h.b16 %v503
        %v868 = vunpack.c.l.b16 %v504
        %v869 = vunpack.c.l.b16 %v505
        %v870 = vunpack.c.h.b16 %v505
        %v871 = vunpack.c.l.b16 %v506
        %v872 = vunpack.c.l.b16 %v507
        %v873 = vunpack.c.h.b16 %v507
        %v874 = vunpack.c.l.b16 %v508
        %v875 = vunpack.c.l.b16 %v509
        %v876 = vunpack.c.h.b16 %v509
        %v877 = vunpack.c.l.b16 %v510
        %v878 = vunpack.c.l.b16 %v511
        %v879 = vunpack.c.h.b16 %v511
        %v880 = vunpack.c.l.b16 %v512
        %v881 = vunpack.c.l.b16 %v513
        %v882 = vunpack.c.h.b16 %v513
        %v883 = vunpack.c.l.b16 %v514
        %v884 = vunpack.c.l.b16 %v515
        %v885 = vunpack.c.h.b16 %v515
        %v886 = vunpack.c.l.b16 %v516
        %v887 = vpack.c.b16 %v842, %v839
        %v888 = vpack.c.b16 %v843, %v840
        %v889 = vpack.c.b16 %v844, %v841
        %v890 = vpack.c.b16 %v848, %v845
        %v891 = vpack.c.b16 %v849, %v846
        %v892 = vpack.c.b16 %v850, %v847
        %v893 = vpack.c.b16 %v854, %v851
        %v894 = vpack.c.b16 %v855, %v852
        %v895 = vpack.c.b16 %v856, %v853
        %v896 = vpack.c.b16 %v860, %v857
        %v897 = vpack.c.b16 %v861, %v858
        %v898 = vpack.c.b16 %v862, %v859
        %v899 = vpack.c.b16 %v866, %v863
        %v900 = vpack.c.b16 %v867, %v864
        %v901 = vpack.c.b16 %v868, %v865
        %v902 = vpack.c.b16 %v872, %v869
        %v903 = vpack.c.b16 %v873, %v870
        %v904 = vpack.c.b16 %v874, %v871
        %v905 = vpack.c.b16 %v878, %v875
        %v906 = vpack.c.b16 %v879, %v876
        %v907 = vpack.c.b16 %v880, %v877
        %v908 = vpack.c.b16 %v884, %v881
        %v909 = vpack.c.b16 %v885, %v882
        %v910 = vpack.c.b16 %v886, %v883
        %935 = vmatprep.subr.bf16.mxu0 %v888
        %936 = vmatpush1.bf16.msra.mxu0 %v887
        %937 = vmatprep.subr.bf16.mxu0 %v891
        %938 = vmatpush1.bf16.msra.mxu0 %v890
        %939 = vmatprep.subr.bf16.mxu0 %v894
        %940 = vmatpush1.bf16.msra.mxu0 %v893
        %941 = vmatprep.subr.bf16.mxu0 %v897
        %942 = vmatpush1.bf16.msra.mxu0 %v896
        %943 = vmatprep.subr.bf16.mxu0 %v900
        %944 = vmatpush1.bf16.msra.mxu0 %v899
        %945 = vmatprep.subr.bf16.mxu0 %v903
        %946 = vmatpush1.bf16.msra.mxu0 %v902
        %947 = vmatprep.subr.bf16.mxu0 %v906
        %948 = vmatpush1.bf16.msra.mxu0 %v905
        %949 = vmatprep.subr.bf16.mxu0 %v909
        %950 = vmatpush1.bf16.msra.mxu0 %v908
        %951 = vmatprep.subr.bf16.mxu0 0
        %952 = vmatpush1.bf16.msra.mxu0 0
        %953 = vmatprep.subr.bf16.mxu0 0
        %954 = vmatpush1.bf16.msra.mxu0 0
        %955 = vmatprep.subr.bf16.mxu0 0
        %956 = vmatpush1.bf16.msra.mxu0 0
        %957 = vmatprep.subr.bf16.mxu0 0
        %958 = vmatpush1.bf16.msra.mxu0 0
        %959 = vmatprep.subr.bf16.mxu0 0
        %960 = vmatpush1.bf16.msra.mxu0 0
        %961 = vmatprep.subr.bf16.mxu0 0
        %962 = vmatpush1.bf16.msra.mxu0 0
        %963 = vmatprep.subr.bf16.mxu0 0
        %964 = vmatpush1.bf16.msra.mxu0 0
        %965 = vmatprep.subr.bf16.mxu0 0
        %966 = vmatpush1.bf16.msra.mxu0 0
        %967 = vmatprep.mubr.bf16.mxu0 0
        %968 = vmatmul.mubr.bf16.gmra.mrb[0].mxu0 %v803
        %v969 = vpop.f32.mrb[0].mxu0
        %v970 = vadd.f32 %v728, %v969
        %v971 = vpop.f32.mrb[0].mxu0
        %v972 = vadd.f32 %v730, %v971
        %v973 = vpop.f32.mrb[0].mxu0
        %v974 = vadd.f32 %v732, %v973
        %v975 = vpop.f32.mrb[0].mxu0
        %v976 = vadd.f32 %v734, %v975
        %977 = vmatprep.mubr.bf16.mxu0 0
        %978 = vmatmul.mubr.bf16.gmra.mrb[0].mxu0 %v804
        %v979 = vpop.f32.mrb[0].mxu0
        %v980 = vadd.f32 %v738, %v979
        %v981 = vpop.f32.mrb[0].mxu0
        %v982 = vadd.f32 %v740, %v981
        %v983 = vpop.f32.mrb[0].mxu0
        %v984 = vadd.f32 %v742, %v983
        %v985 = vpop.f32.mrb[0].mxu0
        %v986 = vadd.f32 %v744, %v985
        %987 = vdwg.mxu0
        %988 = vmatprep.subr.bf16.mxu0 0
        %989 = vmatpush1.bf16.msra.mxu0 %v889
        %990 = vmatprep.subr.bf16.mxu0 0
        %991 = vmatpush1.bf16.msra.mxu0 %v892
        %992 = vmatprep.subr.bf16.mxu0 0
        %993 = vmatpush1.bf16.msra.mxu0 %v895
        %994 = vmatprep.subr.bf16.mxu0 0
        %995 = vmatpush1.bf16.msra.mxu0 %v898
        %996 = vmatprep.subr.bf16.mxu0 0
        %997 = vmatpush1.bf16.msra.mxu0 %v901
        %998 = vmatprep.subr.bf16.mxu0 0
        %999 = vmatpush1.bf16.msra.mxu0 %v904
        %1000 = vmatprep.subr.bf16.mxu0 0
        %1001 = vmatpush1.bf16.msra.mxu0 %v907
        %1002 = vmatprep.subr.bf16.mxu0 0
        %1003 = vmatpush1.bf16.msra.mxu0 %v910
        %1004 = vmatprep.subr.bf16.mxu0 0
        %1005 = vmatpush1.bf16.msra.mxu0 0
        %1006 = vmatprep.subr.bf16.mxu0 0
        %1007 = vmatpush1.bf16.msra.mxu0 0
        %1008 = vmatprep.subr.bf16.mxu0 0
        %1009 = vmatpush1.bf16.msra.mxu0 0
        %1010 = vmatprep.subr.bf16.mxu0 0
        %1011 = vmatpush1.bf16.msra.mxu0 0
        %1012 = vmatprep.subr.bf16.mxu0 0
        %1013 = vmatpush1.bf16.msra.mxu0 0
        %1014 = vmatprep.subr.bf16.mxu0 0
        %1015 = vmatpush1.bf16.msra.mxu0 0
        %1016 = vmatprep.subr.bf16.mxu0 0
        %1017 = vmatpush1.bf16.msra.mxu0 0
        %1018 = vmatprep.subr.bf16.mxu0 0
        %1019 = vmatpush1.bf16.msra.mxu0 0
        %1020 = vmatprep.mubr.bf16.mxu0 0
        %1021 = vmatmul.mubr.bf16.gmra.mrb[0].mxu0 %v803
        %v1022 = vpop.f32.mrb[0].mxu0
        %v1023 = vadd.f32 %v781, %v1022
        %v1024 = vpop.f32.mrb[0].mxu0
        %v1025 = vpop.f32.mrb[0].mxu0
        %v1026 = vadd.f32 %v784, %v1025
        %v1027 = vpop.f32.mrb[0].mxu0
        %1028 = vmatprep.mubr.bf16.mxu0 0
        %1029 = vmatmul.mubr.bf16.gmra.mrb[0].mxu0 %v804
        %v1030 = vpop.f32.mrb[0].mxu0
        %v1031 = vadd.f32 %v789, %v1030
        %v1032 = vpop.f32.mrb[0].mxu0
        %v1033 = vpop.f32.mrb[0].mxu0
        %v1034 = vadd.f32 %v792, %v1033
        %v1035 = vpop.f32.mrb[0].mxu0
        %1036 = vdwg.mxu0
        %v1037 = vld [vmem:[%s6] sm:$0x7]
        %v1039 = vlaneseq
        %v1040 = vshrl.u32 %v1039, 7
        %v1041 = vsub.s32 0, %v1040
        %v1042 = vrot.slane %v1037, %v1041
        %v1043 = vlaneseq
        %v1044 = vshrl.u32 %v1043, 7
        %v1045 = vsub.s32 1, %v1044
        %v1046 = vrot.slane %v1037, %v1045
        %v1047 = vlaneseq
        %v1048 = vshrl.u32 %v1047, 7
        %v1049 = vsub.s32 2, %v1048
        %v1050 = vrot.slane %v1037, %v1049
        %v1054 = vadd.f32 %v970, %v1042
        %v1055 = vadd.f32 %v972, %v1046
        %v1056 = vadd.f32 %v1023, %v1050
        %v1057 = vadd.f32 %v974, %v1042
        %v1058 = vadd.f32 %v976, %v1046
        %v1059 = vadd.f32 %v1026, %v1050
        %v1060 = vadd.f32 %v980, %v1042
        %v1061 = vadd.f32 %v982, %v1046
        %v1062 = vadd.f32 %v1031, %v1050
        %v1063 = vadd.f32 %v984, %v1042
        %v1064 = vadd.f32 %v986, %v1046
        %v1065 = vadd.f32 %v1034, %v1050
        %v1066 = vpack.c.bf16 %v1054, %v1054
        %v1067 = vpack.c.bf16 %v1055, %v1055
        %v1068 = vpack.c.bf16 %v1056, %v1056
        %v1069 = vpack.c.bf16 %v1057, %v1057
        %v1070 = vpack.c.bf16 %v1058, %v1058
        %v1071 = vpack.c.bf16 %v1059, %v1059
        %v1072 = vpack.c.bf16 %v1060, %v1060
        %v1073 = vpack.c.bf16 %v1061, %v1061
        %v1074 = vpack.c.bf16 %v1062, %v1062
        %v1075 = vpack.c.bf16 %v1063, %v1063
        %v1076 = vpack.c.bf16 %v1064, %v1064
        %v1077 = vpack.c.bf16 %v1065, %v1065
        %v1090 = vunpack.c.l.b16 %v1066
        %v1091 = vunpack.c.l.b16 %v1067
        %v1092 = vunpack.c.l.b16 %v1068
        %v1093 = vunpack.c.l.b16 %v1069
        %v1094 = vunpack.c.l.b16 %v1070
        %v1095 = vunpack.c.l.b16 %v1071
        %v1096 = vunpack.c.l.b16 %v1072
        %v1097 = vunpack.c.l.b16 %v1073
        %v1098 = vunpack.c.l.b16 %v1074
        %v1099 = vunpack.c.l.b16 %v1075
        %v1100 = vunpack.c.l.b16 %v1076
        %v1101 = vunpack.c.l.b16 %v1077
        %v1102 = vpack.c.b16 %v1091, %v1090
        %v1103 = vpack.c.b16 %v1092, %v1092
        %v1104 = vpack.c.b16 %v1094, %v1093
        %v1105 = vpack.c.b16 %v1095, %v1095
        %v1106 = vpack.c.b16 %v1097, %v1096
        %v1107 = vpack.c.b16 %v1098, %v1098
        %v1108 = vpack.c.b16 %v1100, %v1099
        %v1109 = vpack.c.b16 %v1101, %v1101
        %1118 = vst [vmem:[#allocation4] sm:$0xff] %v1102
        %1119 = vst [vmem:[#allocation4 + $0x8] sm:$0xf] %v1103
        %1120 = vst [vmem:[#allocation4 + $0xc] sm:$0xff] %v1104
        %1121 = vst [vmem:[#allocation4 + $0x14] sm:$0xf] %v1105
        %1122 = vst [vmem:[#allocation4 + $0x18] sm:$0xff] %v1106
        %1123 = vst [vmem:[#allocation4 + $0x20] sm:$0xf] %v1107
        %1124 = vst [vmem:[#allocation4 + $0x24] sm:$0xff] %v1108
        %1125 = vst [vmem:[#allocation4 + $0x2c] sm:$0xf] %v1109
        %v1126 = vld [vmem:[%s449] sm:$0xf]
        %v1127 = vld [vmem:[%s449 + $0x4] sm:$0xf]
        %v1128 = vld [vmem:[%s449 + $0x8] sm:$0xf]
        %v1129 = vld [vmem:[%s449 + $0xc] sm:$0xf]
        %s1130 = scalar_lea.vmem %s4, 384
        %v1131 = vld [vmem:[%s1130] sm:$0xff]
        %v1132 = vld [vmem:[%s1130 + $0x8] sm:$0xf]
        %v1133 = vld [vmem:[%s1130 + $0xc] sm:$0xff]
        %v1134 = vld [vmem:[%s1130 + $0x14] sm:$0xf]
        %v1135 = vld [vmem:[%s1130 + $0x18] sm:$0xff]
        %v1136 = vld [vmem:[%s1130 + $0x20] sm:$0xf]
        %v1137 = vld [vmem:[%s1130 + $0x24] sm:$0xff]
        %v1138 = vld [vmem:[%s1130 + $0x2c] sm:$0xf]
        %v1139 = vld [vmem:[%s1130 + $0x30] sm:$0xff]
        %v1140 = vld [vmem:[%s1130 + $0x38] sm:$0xf]
        %v1141 = vld [vmem:[%s1130 + $0x3c] sm:$0xff]
        %v1142 = vld [vmem:[%s1130 + $0x44] sm:$0xf]
        %v1143 = vld [vmem:[%s1130 + $0x48] sm:$0xff]
        %v1144 = vld [vmem:[%s1130 + $0x50] sm:$0xf]
        %v1145 = vld [vmem:[%s1130 + $0x54] sm:$0xff]
        %v1146 = vld [vmem:[%s1130 + $0x5c] sm:$0xf]
        %v1147 = vld [vmem:[%s1130 + $0x60] sm:$0xff]
        %v1148 = vld [vmem:[%s1130 + $0x68] sm:$0xf]
        %v1149 = vld [vmem:[%s1130 + $0x6c] sm:$0xff]
        %v1150 = vld [vmem:[%s1130 + $0x74] sm:$0xf]
        %v1151 = vld [vmem:[%s1130 + $0x78] sm:$0xff]
        %v1152 = vld [vmem:[%s1130 + $0x80] sm:$0xf]
        %v1153 = vld [vmem:[%s1130 + $0x84] sm:$0xff]
        %v1154 = vld [vmem:[%s1130 + $0x8c] sm:$0xf]
        %v1155 = vld [vmem:[%s1130 + $0x90] sm:$0xff]
        %v1156 = vld [vmem:[%s1130 + $0x98] sm:$0xf]
        %v1157 = vld [vmem:[%s1130 + $0x9c] sm:$0xff]
        %v1158 = vld [vmem:[%s1130 + $0xa4] sm:$0xf]
        %v1159 = vld [vmem:[%s1130 + $0xa8] sm:$0xff]
        %v1160 = vld [vmem:[%s1130 + $0xb0] sm:$0xf]
        %v1161 = vld [vmem:[%s1130 + $0xb4] sm:$0xff]
        %v1162 = vld [vmem:[%s1130 + $0xbc] sm:$0xf]
        %v1163 = vld [vmem:[%s457] sm:$0xf]
        %v1164 = vld [vmem:[%s457 + $0x4] sm:$0xf]
        %v1165 = vld [vmem:[%s457 + $0x8] sm:$0xf]
        %v1166 = vld [vmem:[%s457 + $0xc] sm:$0xf]
        %v1167 = vld [vmem:[%s1130 + $0xc0] sm:$0xff]
        %v1168 = vld [vmem:[%s1130 + $0xc8] sm:$0xf]
        %v1169 = vld [vmem:[%s1130 + $0xcc] sm:$0xff]
        %v1170 = vld [vmem:[%s1130 + $0xd4] sm:$0xf]
        %v1171 = vld [vmem:[%s1130 + $0xd8] sm:$0xff]
        %v1172 = vld [vmem:[%s1130 + $0xe0] sm:$0xf]
        %v1173 = vld [vmem:[%s1130 + $0xe4] sm:$0xff]
        %v1174 = vld [vmem:[%s1130 + $0xec] sm:$0xf]
        %v1175 = vld [vmem:[%s1130 + $0xf0] sm:$0xff]
        %v1176 = vld [vmem:[%s1130 + $0xf8] sm:$0xf]
        %v1177 = vld [vmem:[%s1130 + $0xfc] sm:$0xff]
        %v1178 = vld [vmem:[%s1130 + $0x104] sm:$0xf]
        %v1179 = vld [vmem:[%s1130 + $0x108] sm:$0xff]
        %v1180 = vld [vmem:[%s1130 + $0x110] sm:$0xf]
        %v1181 = vld [vmem:[%s1130 + $0x114] sm:$0xff]
        %v1182 = vld [vmem:[%s1130 + $0x11c] sm:$0xf]
        %v1183 = vld [vmem:[%s1130 + $0x120] sm:$0xff]
        %v1184 = vld [vmem:[%s1130 + $0x128] sm:$0xf]
        %v1185 = vld [vmem:[%s1130 + $0x12c] sm:$0xff]
        %v1186 = vld [vmem:[%s1130 + $0x134] sm:$0xf]
        %v1187 = vld [vmem:[%s1130 + $0x138] sm:$0xff]
        %v1188 = vld [vmem:[%s1130 + $0x140] sm:$0xf]
        %v1189 = vld [vmem:[%s1130 + $0x144] sm:$0xff]
        %v1190 = vld [vmem:[%s1130 + $0x14c] sm:$0xf]
        %v1191 = vld [vmem:[%s1130 + $0x150] sm:$0xff]
        %v1192 = vld [vmem:[%s1130 + $0x158] sm:$0xf]
        %v1193 = vld [vmem:[%s1130 + $0x15c] sm:$0xff]
        %v1194 = vld [vmem:[%s1130 + $0x164] sm:$0xf]
        %v1195 = vld [vmem:[%s1130 + $0x168] sm:$0xff]
        %v1196 = vld [vmem:[%s1130 + $0x170] sm:$0xf]
        %v1197 = vld [vmem:[%s1130 + $0x174] sm:$0xff]
        %v1198 = vld [vmem:[%s1130 + $0x17c] sm:$0xf]
        %v1203 = vunpack.c.l.b16 %v1163
        %v1204 = vunpack.c.l.b16 %v1164
        %v1205 = vunpack.c.l.b16 %v1165
        %v1206 = vunpack.c.l.b16 %v1166
        %v1207 = vpack.c.b16 %v1204, %v1203
        %v1208 = vpack.c.b16 %v1206, %v1205
        %v1243 = vunpack.c.l.b16 %v1167
        %v1244 = vunpack.c.h.b16 %v1167
        %v1245 = vunpack.c.l.b16 %v1168
        %v1246 = vunpack.c.l.b16 %v1169
        %v1247 = vunpack.c.h.b16 %v1169
        %v1248 = vunpack.c.l.b16 %v1170
        %v1249 = vunpack.c.l.b16 %v1171
        %v1250 = vunpack.c.h.b16 %v1171
        %v1251 = vunpack.c.l.b16 %v1172
        %v1252 = vunpack.c.l.b16 %v1173
        %v1253 = vunpack.c.h.b16 %v1173
        %v1254 = vunpack.c.l.b16 %v1174
        %v1255 = vunpack.c.l.b16 %v1175
        %v1256 = vunpack.c.h.b16 %v1175
        %v1257 = vunpack.c.l.b16 %v1176
        %v1258 = vunpack.c.l.b16 %v1177
        %v1259 = vunpack.c.h.b16 %v1177
        %v1260 = vunpack.c.l.b16 %v1178
        %v1261 = vunpack.c.l.b16 %v1179
        %v1262 = vunpack.c.h.b16 %v1179
        %v1263 = vunpack.c.l.b16 %v1180
        %v1264 = vunpack.c.l.b16 %v1181
        %v1265 = vunpack.c.h.b16 %v1181
        %v1266 = vunpack.c.l.b16 %v1182
        %v1267 = vunpack.c.l.b16 %v1183
        %v1268 = vunpack.c.h.b16 %v1183
        %v1269 = vunpack.c.l.b16 %v1184
        %v1270 = vunpack.c.l.b16 %v1185
        %v1271 = vunpack.c.h.b16 %v1185
        %v1272 = vunpack.c.l.b16 %v1186
        %v1273 = vunpack.c.l.b16 %v1187
        %v1274 = vunpack.c.h.b16 %v1187
        %v1275 = vunpack.c.l.b16 %v1188
        %v1276 = vunpack.c.l.b16 %v1189
        %v1277 = vunpack.c.h.b16 %v1189
        %v1278 = vunpack.c.l.b16 %v1190
        %v1279 = vunpack.c.l.b16 %v1191
        %v1280 = vunpack.c.h.b16 %v1191
        %v1281 = vunpack.c.l.b16 %v1192
        %v1282 = vunpack.c.l.b16 %v1193
        %v1283 = vunpack.c.h.b16 %v1193
        %v1284 = vunpack.c.l.b16 %v1194
        %v1285 = vunpack.c.l.b16 %v1195
        %v1286 = vunpack.c.h.b16 %v1195
        %v1287 = vunpack.c.l.b16 %v1196
        %v1288 = vunpack.c.l.b16 %v1197
        %v1289 = vunpack.c.h.b16 %v1197
        %v1290 = vunpack.c.l.b16 %v1198
        %v1291 = vpack.c.b16 %v1246, %v1243
        %v1292 = vpack.c.b16 %v1247, %v1244
        %v1293 = vpack.c.b16 %v1248, %v1245
        %v1294 = vpack.c.b16 %v1252, %v1249
        %v1295 = vpack.c.b16 %v1253, %v1250
        %v1296 = vpack.c.b16 %v1254, %v1251
        %v1297 = vpack.c.b16 %v1258, %v1255
        %v1298 = vpack.c.b16 %v1259, %v1256
        %v1299 = vpack.c.b16 %v1260, %v1257
        %v1300 = vpack.c.b16 %v1264, %v1261
        %v1301 = vpack.c.b16 %v1265, %v1262
        %v1302 = vpack.c.b16 %v1266, %v1263
        %v1303 = vpack.c.b16 %v1270, %v1267
        %v1304 = vpack.c.b16 %v1271, %v1268
        %v1305 = vpack.c.b16 %v1272, %v1269
        %v1306 = vpack.c.b16 %v1276, %v1273
        %v1307 = vpack.c.b16 %v1277, %v1274
        %v1308 = vpack.c.b16 %v1278, %v1275
        %v1309 = vpack.c.b16 %v1282, %v1279
        %v1310 = vpack.c.b16 %v1283, %v1280
        %v1311 = vpack.c.b16 %v1284, %v1281
        %v1312 = vpack.c.b16 %v1288, %v1285
        %v1313 = vpack.c.b16 %v1289, %v1286
        %v1314 = vpack.c.b16 %v1290, %v1287
        %1339 = vmatprep.subr.bf16.mxu0 %v1292
        %1340 = vmatpush1.bf16.msra.mxu0 %v1291
        %1341 = vmatprep.subr.bf16.mxu0 %v1295
        %1342 = vmatpush1.bf16.msra.mxu0 %v1294
        %1343 = vmatprep.subr.bf16.mxu0 %v1298
        %1344 = vmatpush1.bf16.msra.mxu0 %v1297
        %1345 = vmatprep.subr.bf16.mxu0 %v1301
        %1346 = vmatpush1.bf16.msra.mxu0 %v1300
        %1347 = vmatprep.subr.bf16.mxu0 %v1304
        %1348 = vmatpush1.bf16.msra.mxu0 %v1303
        %1349 = vmatprep.subr.bf16.mxu0 %v1307
        %1350 = vmatpush1.bf16.msra.mxu0 %v1306
        %1351 = vmatprep.subr.bf16.mxu0 %v1310
        %1352 = vmatpush1.bf16.msra.mxu0 %v1309
        %1353 = vmatprep.subr.bf16.mxu0 %v1313
        %1354 = vmatpush1.bf16.msra.mxu0 %v1312
        %1355 = vmatprep.subr.bf16.mxu0 0
        %1356 = vmatpush1.bf16.msra.mxu0 0
        %1357 = vmatprep.subr.bf16.mxu0 0
        %1358 = vmatpush1.bf16.msra.mxu0 0
        %1359 = vmatprep.subr.bf16.mxu0 0
        %1360 = vmatpush1.bf16.msra.mxu0 0
        %1361 = vmatprep.subr.bf16.mxu0 0
        %1362 = vmatpush1.bf16.msra.mxu0 0
        %1363 = vmatprep.subr.bf16.mxu0 0
        %1364 = vmatpush1.bf16.msra.mxu0 0
        %1365 = vmatprep.subr.bf16.mxu0 0
        %1366 = vmatpush1.bf16.msra.mxu0 0
        %1367 = vmatprep.subr.bf16.mxu0 0
        %1368 = vmatpush1.bf16.msra.mxu0 0
        %1369 = vmatprep.subr.bf16.mxu0 0
        %1370 = vmatpush1.bf16.msra.mxu0 0
        %1371 = vmatprep.mubr.bf16.mxu0 0
        %1372 = vmatmul.mubr.bf16.gmra.mrb[0].mxu0 %v1207
        %v1373 = vpop.f32.mrb[0].mxu0
        %v1374 = vadd.f32 0.0, %v1373
        %v1375 = vpop.f32.mrb[0].mxu0
        %v1376 = vadd.f32 0.0, %v1375
        %v1377 = vpop.f32.mrb[0].mxu0
        %v1378 = vadd.f32 0.0, %v1377
        %v1379 = vpop.f32.mrb[0].mxu0
        %v1380 = vadd.f32 0.0, %v1379
        %1381 = vmatprep.mubr.bf16.mxu0 0
        %1382 = vmatmul.mubr.bf16.gmra.mrb[0].mxu0 %v1208
        %v1383 = vpop.f32.mrb[0].mxu0
        %v1384 = vadd.f32 0.0, %v1383
        %v1385 = vpop.f32.mrb[0].mxu0
        %v1386 = vadd.f32 0.0, %v1385
        %v1387 = vpop.f32.mrb[0].mxu0
        %v1388 = vadd.f32 0.0, %v1387
        %v1389 = vpop.f32.mrb[0].mxu0
        %v1390 = vadd.f32 0.0, %v1389
        %1391 = vdwg.mxu0
        %1392 = vmatprep.subr.bf16.mxu0 0
        %1393 = vmatpush1.bf16.msra.mxu0 %v1293
        %1394 = vmatprep.subr.bf16.mxu0 0
        %1395 = vmatpush1.bf16.msra.mxu0 %v1296
        %1396 = vmatprep.subr.bf16.mxu0 0
        %1397 = vmatpush1.bf16.msra.mxu0 %v1299
        %1398 = vmatprep.subr.bf16.mxu0 0
        %1399 = vmatpush1.bf16.msra.mxu0 %v1302
        %1400 = vmatprep.subr.bf16.mxu0 0
        %1401 = vmatpush1.bf16.msra.mxu0 %v1305
        %1402 = vmatprep.subr.bf16.mxu0 0
        %1403 = vmatpush1.bf16.msra.mxu0 %v1308
        %1404 = vmatprep.subr.bf16.mxu0 0
        %1405 = vmatpush1.bf16.msra.mxu0 %v1311
        %1406 = vmatprep.subr.bf16.mxu0 0
        %1407 = vmatpush1.bf16.msra.mxu0 %v1314
        %1408 = vmatprep.subr.bf16.mxu0 0
        %1409 = vmatpush1.bf16.msra.mxu0 0
        %1410 = vmatprep.subr.bf16.mxu0 0
        %1411 = vmatpush1.bf16.msra.mxu0 0
        %1412 = vmatprep.subr.bf16.mxu0 0
        %1413 = vmatpush1.bf16.msra.mxu0 0
        %1414 = vmatprep.subr.bf16.mxu0 0
        %1415 = vmatpush1.bf16.msra.mxu0 0
        %1416 = vmatprep.subr.bf16.mxu0 0
        %1417 = vmatpush1.bf16.msra.mxu0 0
        %1418 = vmatprep.subr.bf16.mxu0 0
        %1419 = vmatpush1.bf16.msra.mxu0 0
        %1420 = vmatprep.subr.bf16.mxu0 0
        %1421 = vmatpush1.bf16.msra.mxu0 0
        %1422 = vmatprep.subr.bf16.mxu0 0
        %1423 = vmatpush1.bf16.msra.mxu0 0
        %1424 = vmatprep.mubr.bf16.mxu0 0
        %1425 = vmatmul.mubr.bf16.gmra.mrb[0].mxu0 %v1207
        %v1426 = vpop.f32.mrb[0].mxu0
        %v1427 = vadd.f32 0.0, %v1426
        %v1428 = vpop.f32.mrb[0].mxu0
        %v1429 = vpop.f32.mrb[0].mxu0
        %v1430 = vadd.f32 0.0, %v1429
        %v1431 = vpop.f32.mrb[0].mxu0
        %1432 = vmatprep.mubr.bf16.mxu0 0
        %1433 = vmatmul.mubr.bf16.gmra.mrb[0].mxu0 %v1208
        %v1434 = vpop.f32.mrb[0].mxu0
        %v1435 = vadd.f32 0.0, %v1434
        %v1436 = vpop.f32.mrb[0].mxu0
        %v1437 = vpop.f32.mrb[0].mxu0
        %v1438 = vadd.f32 0.0, %v1437
        %v1439 = vpop.f32.mrb[0].mxu0
        %1440 = vdwg.mxu0
        %v1445 = vunpack.c.l.b16 %v1126
        %v1446 = vunpack.c.l.b16 %v1127
        %v1447 = vunpack.c.l.b16 %v1128
        %v1448 = vunpack.c.l.b16 %v1129
        %v1449 = vpack.c.b16 %v1446, %v1445
        %v1450 = vpack.c.b16 %v1448, %v1447
        %v1485 = vunpack.c.l.b16 %v1131
        %v1486 = vunpack.c.h.b16 %v1131
        %v1487 = vunpack.c.l.b16 %v1132
        %v1488 = vunpack.c.l.b16 %v1133
        %v1489 = vunpack.c.h.b16 %v1133
        %v1490 = vunpack.c.l.b16 %v1134
        %v1491 = vunpack.c.l.b16 %v1135
        %v1492 = vunpack.c.h.b16 %v1135
        %v1493 = vunpack.c.l.b16 %v1136
        %v1494 = vunpack.c.l.b16 %v1137
        %v1495 = vunpack.c.h.b16 %v1137
        %v1496 = vunpack.c.l.b16 %v1138
        %v1497 = vunpack.c.l.b16 %v1139
        %v1498 = vunpack.c.h.b16 %v1139
        %v1499 = vunpack.c.l.b16 %v1140
        %v1500 = vunpack.c.l.b16 %v1141
        %v1501 = vunpack.c.h.b16 %v1141
        %v1502 = vunpack.c.l.b16 %v1142
        %v1503 = vunpack.c.l.b16 %v1143
        %v1504 = vunpack.c.h.b16 %v1143
        %v1505 = vunpack.c.l.b16 %v1144
        %v1506 = vunpack.c.l.b16 %v1145
        %v1507 = vunpack.c.h.b16 %v1145
        %v1508 = vunpack.c.l.b16 %v1146
        %v1509 = vunpack.c.l.b16 %v1147
        %v1510 = vunpack.c.h.b16 %v1147
        %v1511 = vunpack.c.l.b16 %v1148
        %v1512 = vunpack.c.l.b16 %v1149
        %v1513 = vunpack.c.h.b16 %v1149
        %v1514 = vunpack.c.l.b16 %v1150
        %v1515 = vunpack.c.l.b16 %v1151
        %v1516 = vunpack.c.h.b16 %v1151
        %v1517 = vunpack.c.l.b16 %v1152
        %v1518 = vunpack.c.l.b16 %v1153
        %v1519 = vunpack.c.h.b16 %v1153
        %v1520 = vunpack.c.l.b16 %v1154
        %v1521 = vunpack.c.l.b16 %v1155
        %v1522 = vunpack.c.h.b16 %v1155
        %v1523 = vunpack.c.l.b16 %v1156
        %v1524 = vunpack.c.l.b16 %v1157
        %v1525 = vunpack.c.h.b16 %v1157
        %v1526 = vunpack.c.l.b16 %v1158
        %v1527 = vunpack.c.l.b16 %v1159
        %v1528 = vunpack.c.h.b16 %v1159
        %v1529 = vunpack.c.l.b16 %v1160
        %v1530 = vunpack.c.l.b16 %v1161
        %v1531 = vunpack.c.h.b16 %v1161
        %v1532 = vunpack.c.l.b16 %v1162
        %v1533 = vpack.c.b16 %v1488, %v1485
        %v1534 = vpack.c.b16 %v1489, %v1486
        %v1535 = vpack.c.b16 %v1490, %v1487
        %v1536 = vpack.c.b16 %v1494, %v1491
        %v1537 = vpack.c.b16 %v1495, %v1492
        %v1538 = vpack.c.b16 %v1496, %v1493
        %v1539 = vpack.c.b16 %v1500, %v1497
        %v1540 = vpack.c.b16 %v1501, %v1498
        %v1541 = vpack.c.b16 %v1502, %v1499
        %v1542 = vpack.c.b16 %v1506, %v1503
        %v1543 = vpack.c.b16 %v1507, %v1504
        %v1544 = vpack.c.b16 %v1508, %v1505
        %v1545 = vpack.c.b16 %v1512, %v1509
        %v1546 = vpack.c.b16 %v1513, %v1510
        %v1547 = vpack.c.b16 %v1514, %v1511
        %v1548 = vpack.c.b16 %v1518, %v1515
        %v1549 = vpack.c.b16 %v1519, %v1516
        %v1550 = vpack.c.b16 %v1520, %v1517
        %v1551 = vpack.c.b16 %v1524, %v1521
        %v1552 = vpack.c.b16 %v1525, %v1522
        %v1553 = vpack.c.b16 %v1526, %v1523
        %v1554 = vpack.c.b16 %v1530, %v1527
        %v1555 = vpack.c.b16 %v1531, %v1528
        %v1556 = vpack.c.b16 %v1532, %v1529
        %1581 = vmatprep.subr.bf16.mxu0 %v1534
        %1582 = vmatpush1.bf16.msra.mxu0 %v1533
        %1583 = vmatprep.subr.bf16.mxu0 %v1537
        %1584 = vmatpush1.bf16.msra.mxu0 %v1536
        %1585 = vmatprep.subr.bf16.mxu0 %v1540
        %1586 = vmatpush1.bf16.msra.mxu0 %v1539
        %1587 = vmatprep.subr.bf16.mxu0 %v1543
        %1588 = vmatpush1.bf16.msra.mxu0 %v1542
        %1589 = vmatprep.subr.bf16.mxu0 %v1546
        %1590 = vmatpush1.bf16.msra.mxu0 %v1545
        %1591 = vmatprep.subr.bf16.mxu0 %v1549
        %1592 = vmatpush1.bf16.msra.mxu0 %v1548
        %1593 = vmatprep.subr.bf16.mxu0 %v1552
        %1594 = vmatpush1.bf16.msra.mxu0 %v1551
        %1595 = vmatprep.subr.bf16.mxu0 %v1555
        %1596 = vmatpush1.bf16.msra.mxu0 %v1554
        %1597 = vmatprep.subr.bf16.mxu0 0
        %1598 = vmatpush1.bf16.msra.mxu0 0
        %1599 = vmatprep.subr.bf16.mxu0 0
        %1600 = vmatpush1.bf16.msra.mxu0 0
        %1601 = vmatprep.subr.bf16.mxu0 0
        %1602 = vmatpush1.bf16.msra.mxu0 0
        %1603 = vmatprep.subr.bf16.mxu0 0
        %1604 = vmatpush1.bf16.msra.mxu0 0
        %1605 = vmatprep.subr.bf16.mxu0 0
        %1606 = vmatpush1.bf16.msra.mxu0 0
        %1607 = vmatprep.subr.bf16.mxu0 0
        %1608 = vmatpush1.bf16.msra.mxu0 0
        %1609 = vmatprep.subr.bf16.mxu0 0
        %1610 = vmatpush1.bf16.msra.mxu0 0
        %1611 = vmatprep.subr.bf16.mxu0 0
        %1612 = vmatpush1.bf16.msra.mxu0 0
        %1613 = vmatprep.mubr.bf16.mxu0 0
        %1614 = vmatmul.mubr.bf16.gmra.mrb[0].mxu0 %v1449
        %v1615 = vpop.f32.mrb[0].mxu0
        %v1616 = vadd.f32 %v1374, %v1615
        %v1617 = vpop.f32.mrb[0].mxu0
        %v1618 = vadd.f32 %v1376, %v1617
        %v1619 = vpop.f32.mrb[0].mxu0
        %v1620 = vadd.f32 %v1378, %v1619
        %v1621 = vpop.f32.mrb[0].mxu0
        %v1622 = vadd.f32 %v1380, %v1621
        %1623 = vmatprep.mubr.bf16.mxu0 0
        %1624 = vmatmul.mubr.bf16.gmra.mrb[0].mxu0 %v1450
        %v1625 = vpop.f32.mrb[0].mxu0
        %v1626 = vadd.f32 %v1384, %v1625
        %v1627 = vpop.f32.mrb[0].mxu0
        %v1628 = vadd.f32 %v1386, %v1627
        %v1629 = vpop.f32.mrb[0].mxu0
        %v1630 = vadd.f32 %v1388, %v1629
        %v1631 = vpop.f32.mrb[0].mxu0
        %v1632 = vadd.f32 %v1390, %v1631
        %1633 = vdwg.mxu0
        %1634 = vmatprep.subr.bf16.mxu0 0
        %1635 = vmatpush1.bf16.msra.mxu0 %v1535
        %1636 = vmatprep.subr.bf16.mxu0 0
        %1637 = vmatpush1.bf16.msra.mxu0 %v1538
        %1638 = vmatprep.subr.bf16.mxu0 0
        %1639 = vmatpush1.bf16.msra.mxu0 %v1541
        %1640 = vmatprep.subr.bf16.mxu0 0
        %1641 = vmatpush1.bf16.msra.mxu0 %v1544
        %1642 = vmatprep.subr.bf16.mxu0 0
        %1643 = vmatpush1.bf16.msra.mxu0 %v1547
        %1644 = vmatprep.subr.bf16.mxu0 0
        %1645 = vmatpush1.bf16.msra.mxu0 %v1550
        %1646 = vmatprep.subr.bf16.mxu0 0
        %1647 = vmatpush1.bf16.msra.mxu0 %v1553
        %1648 = vmatprep.subr.bf16.mxu0 0
        %1649 = vmatpush1.bf16.msra.mxu0 %v1556
        %1650 = vmatprep.subr.bf16.mxu0 0
        %1651 = vmatpush1.bf16.msra.mxu0 0
        %1652 = vmatprep.subr.bf16.mxu0 0
        %1653 = vmatpush1.bf16.msra.mxu0 0
        %1654 = vmatprep.subr.bf16.mxu0 0
        %1655 = vmatpush1.bf16.msra.mxu0 0
        %1656 = vmatprep.subr.bf16.mxu0 0
        %1657 = vmatpush1.bf16.msra.mxu0 0
        %1658 = vmatprep.subr.bf16.mxu0 0
        %1659 = vmatpush1.bf16.msra.mxu0 0
        %1660 = vmatprep.subr.bf16.mxu0 0
        %1661 = vmatpush1.bf16.msra.mxu0 0
        %1662 = vmatprep.subr.bf16.mxu0 0
        %1663 = vmatpush1.bf16.msra.mxu0 0
        %1664 = vmatprep.subr.bf16.mxu0 0
        %1665 = vmatpush1.bf16.msra.mxu0 0
        %1666 = vmatprep.mubr.bf16.mxu0 0
        %1667 = vmatmul.mubr.bf16.gmra.mrb[0].mxu0 %v1449
        %v1668 = vpop.f32.mrb[0].mxu0
        %v1669 = vadd.f32 %v1427, %v1668
        %v1670 = vpop.f32.mrb[0].mxu0
        %v1671 = vpop.f32.mrb[0].mxu0
        %v1672 = vadd.f32 %v1430, %v1671
        %v1673 = vpop.f32.mrb[0].mxu0
        %1674 = vmatprep.mubr.bf16.mxu0 0
        %1675 = vmatmul.mubr.bf16.gmra.mrb[0].mxu0 %v1450
        %v1676 = vpop.f32.mrb[0].mxu0
        %v1677 = vadd.f32 %v1435, %v1676
        %v1678 = vpop.f32.mrb[0].mxu0
        %v1679 = vpop.f32.mrb[0].mxu0
        %v1680 = vadd.f32 %v1438, %v1679
        %v1681 = vpop.f32.mrb[0].mxu0
        %1682 = vdwg.mxu0
        %s1683 = scalar_lea.vmem %s6, 3
        %v1684 = vld [vmem:[%s1683] sm:$0x7]
        %v1686 = vlaneseq
        %v1687 = vshrl.u32 %v1686, 7
        %v1688 = vsub.s32 0, %v1687
        %v1689 = vrot.slane %v1684, %v1688
        %v1690 = vlaneseq
        %v1691 = vshrl.u32 %v1690, 7
        %v1692 = vsub.s32 1, %v1691
        %v1693 = vrot.slane %v1684, %v1692
        %v1694 = vlaneseq
        %v1695 = vshrl.u32 %v1694, 7
        %v1696 = vsub.s32 2, %v1695
        %v1697 = vrot.slane %v1684, %v1696
        %v1701 = vadd.f32 %v1616, %v1689
        %v1702 = vadd.f32 %v1618, %v1693
        %v1703 = vadd.f32 %v1669, %v1697
        %v1704 = vadd.f32 %v1620, %v1689
        %v1705 = vadd.f32 %v1622, %v1693
        %v1706 = vadd.f32 %v1672, %v1697
        %v1707 = vadd.f32 %v1626, %v1689
        %v1708 = vadd.f32 %v1628, %v1693
        %v1709 = vadd.f32 %v1677, %v1697
        %v1710 = vadd.f32 %v1630, %v1689
        %v1711 = vadd.f32 %v1632, %v1693
        %v1712 = vadd.f32 %v1680, %v1697
        %v1713 = vpack.c.bf16 %v1701, %v1701
        %v1714 = vpack.c.bf16 %v1702, %v1702
        %v1715 = vpack.c.bf16 %v1703, %v1703
        %v1716 = vpack.c.bf16 %v1704, %v1704
        %v1717 = vpack.c.bf16 %v1705, %v1705
        %v1718 = vpack.c.bf16 %v1706, %v1706
        %v1719 = vpack.c.bf16 %v1707, %v1707
        %v1720 = vpack.c.bf16 %v1708, %v1708
        %v1721 = vpack.c.bf16 %v1709, %v1709
        %v1722 = vpack.c.bf16 %v1710, %v1710
        %v1723 = vpack.c.bf16 %v1711, %v1711
        %v1724 = vpack.c.bf16 %v1712, %v1712
        %v1737 = vunpack.c.l.b16 %v1713
        %v1738 = vunpack.c.l.b16 %v1714
        %v1739 = vunpack.c.l.b16 %v1715
        %v1740 = vunpack.c.l.b16 %v1716
        %v1741 = vunpack.c.l.b16 %v1717
        %v1742 = vunpack.c.l.b16 %v1718
        %v1743 = vunpack.c.l.b16 %v1719
        %v1744 = vunpack.c.l.b16 %v1720
        %v1745 = vunpack.c.l.b16 %v1721
        %v1746 = vunpack.c.l.b16 %v1722
        %v1747 = vunpack.c.l.b16 %v1723
        %v1748 = vunpack.c.l.b16 %v1724
        %v1749 = vpack.c.b16 %v1738, %v1737
        %v1750 = vpack.c.b16 %v1739, %v1739
        %v1751 = vpack.c.b16 %v1741, %v1740
        %v1752 = vpack.c.b16 %v1742, %v1742
        %v1753 = vpack.c.b16 %v1744, %v1743
        %v1754 = vpack.c.b16 %v1745, %v1745
        %v1755 = vpack.c.b16 %v1747, %v1746
        %v1756 = vpack.c.b16 %v1748, %v1748
        %1765 = vst [vmem:[#allocation5] sm:$0xff] %v1749
        %1766 = vst [vmem:[#allocation5 + $0x8] sm:$0xf] %v1750
        %1767 = vst [vmem:[#allocation5 + $0xc] sm:$0xff] %v1751
        %1768 = vst [vmem:[#allocation5 + $0x14] sm:$0xf] %v1752
        %1769 = vst [vmem:[#allocation5 + $0x18] sm:$0xff] %v1753
        %1770 = vst [vmem:[#allocation5 + $0x20] sm:$0xf] %v1754
        %1771 = vst [vmem:[#allocation5 + $0x24] sm:$0xff] %v1755
        %1772 = vst [vmem:[#allocation5 + $0x2c] sm:$0xf] %v1756
        %v1773 = vld [vmem:[%s7] sm:$0x1]
        %s1774 = scalar_lea.vmem %s7, 1
        %v1775 = vld [vmem:[%s1774] sm:$0x1]
        %v1776 = vld [vmem:[#allocation2] sm:$0xff]
        %v1777 = vld [vmem:[#allocation3] sm:$0xff]
        %v1778 = vld [vmem:[#allocation4] sm:$0xff]
        %v1779 = vld [vmem:[#allocation4 + $0x8] sm:$0xf]
        %v1780 = vunpack.c.l.bf16 %v1778
        %v1781 = vunpack.c.h.bf16 %v1778
        %v1782 = vunpack.c.l.bf16 %v1779
        %s1783 = scalar_lea.vmem [#allocation5], 36
        %v1784 = vld [vmem:[%s1783] sm:$0xff]
        %v1785 = vld [vmem:[%s1783 + $0x8] sm:$0xf]
        %v1786 = vunpack.c.l.bf16 %v1784
        %v1787 = vunpack.c.h.bf16 %v1784
        %v1788 = vunpack.c.l.bf16 %v1785
        %v1789 = vpack.c.bf16 %v1776, %v1776
        %v1790 = vld [vmem:[#allocation6] sm:$0xff]
        %v1791 = vld [vmem:[#allocation6 + $0x8] sm:$0xf]
        %v1792 = vld [vmem:[#allocation6 + $0xc] sm:$0xff]
        %v1793 = vld [vmem:[#allocation6 + $0x14] sm:$0xf]
        %v1794 = vld [vmem:[#allocation6 + $0x18] sm:$0xff]
        %v1795 = vld [vmem:[#allocation6 + $0x20] sm:$0xf]
        %v1796 = vld [vmem:[#allocation6 + $0x24] sm:$0xff]
        %v1797 = vld [vmem:[#allocation6 + $0x2c] sm:$0xf]
        %v1798 = vld [vmem:[#allocation6 + $0x30] sm:$0xff]
        %v1799 = vld [vmem:[#allocation6 + $0x38] sm:$0xf]
        %v1800 = vld [vmem:[#allocation6 + $0x3c] sm:$0xff]
        %v1801 = vld [vmem:[#allocation6 + $0x44] sm:$0xf]
        %v1802 = vld [vmem:[#allocation6 + $0x48] sm:$0xff]
        %v1803 = vld [vmem:[#allocation6 + $0x50] sm:$0xf]
        %v1804 = vld [vmem:[#allocation6 + $0x54] sm:$0xff]
        %v1805 = vld [vmem:[#allocation6 + $0x5c] sm:$0xf]
        %v1806 = vld [vmem:[#allocation6 + $0x60] sm:$0xff]
        %v1807 = vld [vmem:[#allocation6 + $0x68] sm:$0xf]
        %v1808 = vld [vmem:[#allocation6 + $0x6c] sm:$0xff]
        %v1809 = vld [vmem:[#allocation6 + $0x74] sm:$0xf]
        %v1810 = vld [vmem:[#allocation6 + $0x78] sm:$0xff]
        %v1811 = vld [vmem:[#allocation6 + $0x80] sm:$0xf]
        %v1812 = vld [vmem:[#allocation6 + $0x84] sm:$0xff]
        %v1813 = vld [vmem:[#allocation6 + $0x8c] sm:$0xf]
        %v1814 = vld [vmem:[#allocation6 + $0x90] sm:$0xff]
        %v1815 = vld [vmem:[#allocation6 + $0x98] sm:$0xf]
        %v1816 = vld [vmem:[#allocation6 + $0x9c] sm:$0xff]
        %v1817 = vld [vmem:[#allocation6 + $0xa4] sm:$0xf]
        %v1818 = vld [vmem:[#allocation6 + $0xa8] sm:$0xff]
        %v1819 = vld [vmem:[#allocation6 + $0xb0] sm:$0xf]
        %v1820 = vld [vmem:[#allocation6 + $0xb4] sm:$0xff]
        %v1821 = vld [vmem:[#allocation6 + $0xbc] sm:$0xf]
        %v1854 = vunpack.c.l.b16 %v1790
        %v1855 = vunpack.c.h.b16 %v1790
        %v1856 = vunpack.c.l.b16 %v1791
        %v1857 = vunpack.c.l.b16 %v1792
        %v1858 = vunpack.c.h.b16 %v1792
        %v1859 = vunpack.c.l.b16 %v1793
        %v1860 = vunpack.c.l.b16 %v1794
        %v1861 = vunpack.c.h.b16 %v1794
        %v1862 = vunpack.c.l.b16 %v1795
        %v1863 = vunpack.c.l.b16 %v1796
        %v1864 = vunpack.c.h.b16 %v1796
        %v1865 = vunpack.c.l.b16 %v1797
        %v1866 = vunpack.c.l.b16 %v1798
        %v1867 = vunpack.c.h.b16 %v1798
        %v1868 = vunpack.c.l.b16 %v1799
        %v1869 = vunpack.c.l.b16 %v1800
        %v1870 = vunpack.c.h.b16 %v1800
        %v1871 = vunpack.c.l.b16 %v1801
        %v1872 = vunpack.c.l.b16 %v1802
        %v1873 = vunpack.c.h.b16 %v1802
        %v1874 = vunpack.c.l.b16 %v1803
        %v1875 = vunpack.c.l.b16 %v1804
        %v1876 = vunpack.c.h.b16 %v1804
        %v1877 = vunpack.c.l.b16 %v1805
        %v1878 = vunpack.c.l.b16 %v1806
        %v1879 = vunpack.c.h.b16 %v1806
        %v1880 = vunpack.c.l.b16 %v1807
        %v1881 = vunpack.c.l.b16 %v1808
        %v1882 = vunpack.c.h.b16 %v1808
        %v1883 = vunpack.c.l.b16 %v1809
        %v1884 = vunpack.c.l.b16 %v1810
        %v1885 = vunpack.c.h.b16 %v1810
        %v1886 = vunpack.c.l.b16 %v1811
        %v1887 = vunpack.c.l.b16 %v1812
        %v1888 = vunpack.c.h.b16 %v1812
        %v1889 = vunpack.c.l.b16 %v1813
        %v1890 = vunpack.c.l.b16 %v1814
        %v1891 = vunpack.c.h.b16 %v1814
        %v1892 = vunpack.c.l.b16 %v1815
        %v1893 = vunpack.c.l.b16 %v1816
        %v1894 = vunpack.c.h.b16 %v1816
        %v1895 = vunpack.c.l.b16 %v1817
        %v1896 = vunpack.c.l.b16 %v1818
        %v1897 = vunpack.c.h.b16 %v1818
        %v1898 = vunpack.c.l.b16 %v1819
        %v1899 = vunpack.c.l.b16 %v1820
        %v1900 = vunpack.c.h.b16 %v1820
        %v1901 = vunpack.c.l.b16 %v1821
        %v1902 = vpack.c.b16 %v1857, %v1854
        %v1903 = vpack.c.b16 %v1858, %v1855
        %v1904 = vpack.c.b16 %v1859, %v1856
        %v1905 = vpack.c.b16 %v1863, %v1860
        %v1906 = vpack.c.b16 %v1864, %v1861
        %v1907 = vpack.c.b16 %v1865, %v1862
        %v1908 = vpack.c.b16 %v1869, %v1866
        %v1909 = vpack.c.b16 %v1870, %v1867
        %v1910 = vpack.c.b16 %v1871, %v1868
        %v1911 = vpack.c.b16 %v1875, %v1872
        %v1912 = vpack.c.b16 %v1876, %v1873
        %v1913 = vpack.c.b16 %v1877, %v1874
        %v1914 = vpack.c.b16 %v1881, %v1878
        %v1915 = vpack.c.b16 %v1882, %v1879
        %v1916 = vpack.c.b16 %v1883, %v1880
        %v1917 = vpack.c.b16 %v1887, %v1884
        %v1918 = vpack.c.b16 %v1888, %v1885
        %v1919 = vpack.c.b16 %v1889, %v1886
        %v1920 = vpack.c.b16 %v1893, %v1890
        %v1921 = vpack.c.b16 %v1894, %v1891
        %v1922 = vpack.c.b16 %v1895, %v1892
        %v1923 = vpack.c.b16 %v1899, %v1896
        %v1924 = vpack.c.b16 %v1900, %v1897
        %v1925 = vpack.c.b16 %v1901, %v1898
        %1950 = vmatprep.subr.bf16.mxu0 %v1903
        %1951 = vmatpush1.bf16.msra.mxu0 %v1902
        %1952 = vmatprep.subr.bf16.mxu0 %v1906
        %1953 = vmatpush1.bf16.msra.mxu0 %v1905
        %1954 = vmatprep.subr.bf16.mxu0 %v1909
        %1955 = vmatpush1.bf16.msra.mxu0 %v1908
        %1956 = vmatprep.subr.bf16.mxu0 %v1912
        %1957 = vmatpush1.bf16.msra.mxu0 %v1911
        %1958 = vmatprep.subr.bf16.mxu0 %v1915
        %1959 = vmatpush1.bf16.msra.mxu0 %v1914
        %1960 = vmatprep.subr.bf16.mxu0 %v1918
        %1961 = vmatpush1.bf16.msra.mxu0 %v1917
        %1962 = vmatprep.subr.bf16.mxu0 %v1921
        %1963 = vmatpush1.bf16.msra.mxu0 %v1920
        %1964 = vmatprep.subr.bf16.mxu0 %v1924
        %1965 = vmatpush1.bf16.msra.mxu0 %v1923
        %1966 = vmatprep.subr.bf16.mxu0 0
        %1967 = vmatpush1.bf16.msra.mxu0 0
        %1968 = vmatprep.subr.bf16.mxu0 0
        %1969 = vmatpush1.bf16.msra.mxu0 0
        %1970 = vmatprep.subr.bf16.mxu0 0
        %1971 = vmatpush1.bf16.msra.mxu0 0
        %1972 = vmatprep.subr.bf16.mxu0 0
        %1973 = vmatpush1.bf16.msra.mxu0 0
        %1974 = vmatprep.subr.bf16.mxu0 0
        %1975 = vmatpush1.bf16.msra.mxu0 0
        %1976 = vmatprep.subr.bf16.mxu0 0
        %1977 = vmatpush1.bf16.msra.mxu0 0
        %1978 = vmatprep.subr.bf16.mxu0 0
        %1979 = vmatpush1.bf16.msra.mxu0 0
        %1980 = vmatprep.subr.bf16.mxu0 0
        %1981 = vmatpush1.bf16.msra.mxu0 0
        %1982 = vmatprep.mubr.bf16.mxu0 0
        %1983 = vmatmul.mubr.bf16.gmra.mrb[0].mxu0 %v1789
        %v1984 = vpop.f32.mrb[0].mxu0
        %v1985 = vadd.f32 0.0, %v1984
        %v1986 = vpop.f32.mrb[0].mxu0
        %v1987 = vadd.f32 0.0, %v1986
        %v1988 = vpop.f32.mrb[0].mxu0
        %v1989 = vpop.f32.mrb[0].mxu0
        %1990 = vdwg.mxu0
        %1991 = vmatprep.subr.bf16.mxu0 0
        %1992 = vmatpush1.bf16.msra.mxu0 %v1904
        %1993 = vmatprep.subr.bf16.mxu0 0
        %1994 = vmatpush1.bf16.msra.mxu0 %v1907
        %1995 = vmatprep.subr.bf16.mxu0 0
        %1996 = vmatpush1.bf16.msra.mxu0 %v1910
        %1997 = vmatprep.subr.bf16.mxu0 0
        %1998 = vmatpush1.bf16.msra.mxu0 %v1913
        %1999 = vmatprep.subr.bf16.mxu0 0
        %2000 = vmatpush1.bf16.msra.mxu0 %v1916
        %2001 = vmatprep.subr.bf16.mxu0 0
        %2002 = vmatpush1.bf16.msra.mxu0 %v1919
        %2003 = vmatprep.subr.bf16.mxu0 0
        %2004 = vmatpush1.bf16.msra.mxu0 %v1922
        %2005 = vmatprep.subr.bf16.mxu0 0
        %2006 = vmatpush1.bf16.msra.mxu0 %v1925
        %2007 = vmatprep.subr.bf16.mxu0 0
        %2008 = vmatpush1.bf16.msra.mxu0 0
        %2009 = vmatprep.subr.bf16.mxu0 0
        %2010 = vmatpush1.bf16.msra.mxu0 0
        %2011 = vmatprep.subr.bf16.mxu0 0
        %2012 = vmatpush1.bf16.msra.mxu0 0
        %2013 = vmatprep.subr.bf16.mxu0 0
        %2014 = vmatpush1.bf16.msra.mxu0 0
        %2015 = vmatprep.subr.bf16.mxu0 0
        %2016 = vmatpush1.bf16.msra.mxu0 0
        %2017 = vmatprep.subr.bf16.mxu0 0
        %2018 = vmatpush1.bf16.msra.mxu0 0
        %2019 = vmatprep.subr.bf16.mxu0 0
        %2020 = vmatpush1.bf16.msra.mxu0 0
        %2021 = vmatprep.subr.bf16.mxu0 0
        %2022 = vmatpush1.bf16.msra.mxu0 0
        %2023 = vmatprep.mubr.bf16.mxu0 0
        %2024 = vmatmul.mubr.bf16.gmra.mrb[0].mxu0 %v1789
        %v2025 = vpop.f32.mrb[0].mxu0
        %v2026 = vadd.f32 0.0, %v2025
        %v2027 = vpop.f32.mrb[0].mxu0
        %v2028 = vpop.f32.mrb[0].mxu0
        %v2029 = vpop.f32.mrb[0].mxu0
        %2030 = vdwg.mxu0
        %v2031 = vpack.c.bf16 %v1777, %v1777
        %s2032 = scalar_lea.vmem [#allocation6], 192
        %v2033 = vld [vmem:[%s2032] sm:$0xff]
        %v2034 = vld [vmem:[%s2032 + $0x8] sm:$0xf]
        %v2035 = vld [vmem:[%s2032 + $0xc] sm:$0xff]
        %v2036 = vld [vmem:[%s2032 + $0x14] sm:$0xf]
        %v2037 = vld [vmem:[%s2032 + $0x18] sm:$0xff]
        %v2038 = vld [vmem:[%s2032 + $0x20] sm:$0xf]
        %v2039 = vld [vmem:[%s2032 + $0x24] sm:$0xff]
        %v2040 = vld [vmem:[%s2032 + $0x2c] sm:$0xf]
        %v2041 = vld [vmem:[%s2032 + $0x30] sm:$0xff]
        %v2042 = vld [vmem:[%s2032 + $0x38] sm:$0xf]
        %v2043 = vld [vmem:[%s2032 + $0x3c] sm:$0xff]
        %v2044 = vld [vmem:[%s2032 + $0x44] sm:$0xf]
        %v2045 = vld [vmem:[%s2032 + $0x48] sm:$0xff]
        %v2046 = vld [vmem:[%s2032 + $0x50] sm:$0xf]
        %v2047 = vld [vmem:[%s2032 + $0x54] sm:$0xff]
        %v2048 = vld [vmem:[%s2032 + $0x5c] sm:$0xf]
        %v2049 = vld [vmem:[%s2032 + $0x60] sm:$0xff]
        %v2050 = vld [vmem:[%s2032 + $0x68] sm:$0xf]
        %v2051 = vld [vmem:[%s2032 + $0x6c] sm:$0xff]
        %v2052 = vld [vmem:[%s2032 + $0x74] sm:$0xf]
        %v2053 = vld [vmem:[%s2032 + $0x78] sm:$0xff]
        %v2054 = vld [vmem:[%s2032 + $0x80] sm:$0xf]
        %v2055 = vld [vmem:[%s2032 + $0x84] sm:$0xff]
        %v2056 = vld [vmem:[%s2032 + $0x8c] sm:$0xf]
        %v2057 = vld [vmem:[%s2032 + $0x90] sm:$0xff]
        %v2058 = vld [vmem:[%s2032 + $0x98] sm:$0xf]
        %v2059 = vld [vmem:[%s2032 + $0x9c] sm:$0xff]
        %v2060 = vld [vmem:[%s2032 + $0xa4] sm:$0xf]
        %v2061 = vld [vmem:[%s2032 + $0xa8] sm:$0xff]
        %v2062 = vld [vmem:[%s2032 + $0xb0] sm:$0xf]
        %v2063 = vld [vmem:[%s2032 + $0xb4] sm:$0xff]
        %v2064 = vld [vmem:[%s2032 + $0xbc] sm:$0xf]
        %v2097 = vunpack.c.l.b16 %v2033
        %v2098 = vunpack.c.h.b16 %v2033
        %v2099 = vunpack.c.l.b16 %v2034
        %v2100 = vunpack.c.l.b16 %v2035
        %v2101 = vunpack.c.h.b16 %v2035
        %v2102 = vunpack.c.l.b16 %v2036
        %v2103 = vunpack.c.l.b16 %v2037
        %v2104 = vunpack.c.h.b16 %v2037
        %v2105 = vunpack.c.l.b16 %v2038
        %v2106 = vunpack.c.l.b16 %v2039
        %v2107 = vunpack.c.h.b16 %v2039
        %v2108 = vunpack.c.l.b16 %v2040
        %v2109 = vunpack.c.l.b16 %v2041
        %v2110 = vunpack.c.h.b16 %v2041
        %v2111 = vunpack.c.l.b16 %v2042
        %v2112 = vunpack.c.l.b16 %v2043
        %v2113 = vunpack.c.h.b16 %v2043
        %v2114 = vunpack.c.l.b16 %v2044
        %v2115 = vunpack.c.l.b16 %v2045
        %v2116 = vunpack.c.h.b16 %v2045
        %v2117 = vunpack.c.l.b16 %v2046
        %v2118 = vunpack.c.l.b16 %v2047
        %v2119 = vunpack.c.h.b16 %v2047
        %v2120 = vunpack.c.l.b16 %v2048
        %v2121 = vunpack.c.l.b16 %v2049
        %v2122 = vunpack.c.h.b16 %v2049
        %v2123 = vunpack.c.l.b16 %v2050
        %v2124 = vunpack.c.l.b16 %v2051
        %v2125 = vunpack.c.h.b16 %v2051
        %v2126 = vunpack.c.l.b16 %v2052
        %v2127 = vunpack.c.l.b16 %v2053
        %v2128 = vunpack.c.h.b16 %v2053
        %v2129 = vunpack.c.l.b16 %v2054
        %v2130 = vunpack.c.l.b16 %v2055
        %v2131 = vunpack.c.h.b16 %v2055
        %v2132 = vunpack.c.l.b16 %v2056
        %v2133 = vunpack.c.l.b16 %v2057
        %v2134 = vunpack.c.h.b16 %v2057
        %v2135 = vunpack.c.l.b16 %v2058
        %v2136 = vunpack.c.l.b16 %v2059
        %v2137 = vunpack.c.h.b16 %v2059
        %v2138 = vunpack.c.l.b16 %v2060
        %v2139 = vunpack.c.l.b16 %v2061
        %v2140 = vunpack.c.h.b16 %v2061
        %v2141 = vunpack.c.l.b16 %v2062
        %v2142 = vunpack.c.l.b16 %v2063
        %v2143 = vunpack.c.h.b16 %v2063
        %v2144 = vunpack.c.l.b16 %v2064
        %v2145 = vpack.c.b16 %v2100, %v2097
        %v2146 = vpack.c.b16 %v2101, %v2098
        %v2147 = vpack.c.b16 %v2102, %v2099
        %v2148 = vpack.c.b16 %v2106, %v2103
        %v2149 = vpack.c.b16 %v2107, %v2104
        %v2150 = vpack.c.b16 %v2108, %v2105
        %v2151 = vpack.c.b16 %v2112, %v2109
        %v2152 = vpack.c.b16 %v2113, %v2110
        %v2153 = vpack.c.b16 %v2114, %v2111
        %v2154 = vpack.c.b16 %v2118, %v2115
        %v2155 = vpack.c.b16 %v2119, %v2116
        %v2156 = vpack.c.b16 %v2120, %v2117
        %v2157 = vpack.c.b16 %v2124, %v2121
        %v2158 = vpack.c.b16 %v2125, %v2122
        %v2159 = vpack.c.b16 %v2126, %v2123
        %v2160 = vpack.c.b16 %v2130, %v2127
        %v2161 = vpack.c.b16 %v2131, %v2128
        %v2162 = vpack.c.b16 %v2132, %v2129
        %v2163 = vpack.c.b16 %v2136, %v2133
        %v2164 = vpack.c.b16 %v2137, %v2134
        %v2165 = vpack.c.b16 %v2138, %v2135
        %v2166 = vpack.c.b16 %v2142, %v2139
        %v2167 = vpack.c.b16 %v2143, %v2140
        %v2168 = vpack.c.b16 %v2144, %v2141
        %2193 = vmatprep.subr.bf16.mxu0 %v2146
        %2194 = vmatpush1.bf16.msra.mxu0 %v2145
        %2195 = vmatprep.subr.bf16.mxu0 %v2149
        %2196 = vmatpush1.bf16.msra.mxu0 %v2148
        %2197 = vmatprep.subr.bf16.mxu0 %v2152
        %2198 = vmatpush1.bf16.msra.mxu0 %v2151
        %2199 = vmatprep.subr.bf16.mxu0 %v2155
        %2200 = vmatpush1.bf16.msra.mxu0 %v2154
        %2201 = vmatprep.subr.bf16.mxu0 %v2158
        %2202 = vmatpush1.bf16.msra.mxu0 %v2157
        %2203 = vmatprep.subr.bf16.mxu0 %v2161
        %2204 = vmatpush1.bf16.msra.mxu0 %v2160
        %2205 = vmatprep.subr.bf16.mxu0 %v2164
        %2206 = vmatpush1.bf16.msra.mxu0 %v2163
        %2207 = vmatprep.subr.bf16.mxu0 %v2167
        %2208 = vmatpush1.bf16.msra.mxu0 %v2166
        %2209 = vmatprep.subr.bf16.mxu0 0
        %2210 = vmatpush1.bf16.msra.mxu0 0
        %2211 = vmatprep.subr.bf16.mxu0 0
        %2212 = vmatpush1.bf16.msra.mxu0 0
        %2213 = vmatprep.subr.bf16.mxu0 0
        %2214 = vmatpush1.bf16.msra.mxu0 0
        %2215 = vmatprep.subr.bf16.mxu0 0
        %2216 = vmatpush1.bf16.msra.mxu0 0
        %2217 = vmatprep.subr.bf16.mxu0 0
        %2218 = vmatpush1.bf16.msra.mxu0 0
        %2219 = vmatprep.subr.bf16.mxu0 0
        %2220 = vmatpush1.bf16.msra.mxu0 0
        %2221 = vmatprep.subr.bf16.mxu0 0
        %2222 = vmatpush1.bf16.msra.mxu0 0
        %2223 = vmatprep.subr.bf16.mxu0 0
        %2224 = vmatpush1.bf16.msra.mxu0 0
        %2225 = vmatprep.mubr.bf16.mxu0 0
        %2226 = vmatmul.mubr.bf16.gmra.mrb[0].mxu0 %v2031
        %v2227 = vpop.f32.mrb[0].mxu0
        %v2228 = vadd.f32 0.0, %v2227
        %v2229 = vpop.f32.mrb[0].mxu0
        %v2230 = vadd.f32 0.0, %v2229
        %v2231 = vpop.f32.mrb[0].mxu0
        %v2232 = vpop.f32.mrb[0].mxu0
        %2233 = vdwg.mxu0
        %2234 = vmatprep.subr.bf16.mxu0 0
        %2235 = vmatpush1.bf16.msra.mxu0 %v2147
        %2236 = vmatprep.subr.bf16.mxu0 0
        %2237 = vmatpush1.bf16.msra.mxu0 %v2150
        %2238 = vmatprep.subr.bf16.mxu0 0
        %2239 = vmatpush1.bf16.msra.mxu0 %v2153
        %2240 = vmatprep.subr.bf16.mxu0 0
        %2241 = vmatpush1.bf16.msra.mxu0 %v2156
        %2242 = vmatprep.subr.bf16.mxu0 0
        %2243 = vmatpush1.bf16.msra.mxu0 %v2159
        %2244 = vmatprep.subr.bf16.mxu0 0
        %2245 = vmatpush1.bf16.msra.mxu0 %v2162
        %2246 = vmatprep.subr.bf16.mxu0 0
        %2247 = vmatpush1.bf16.msra.mxu0 %v2165
        %2248 = vmatprep.subr.bf16.mxu0 0
        %2249 = vmatpush1.bf16.msra.mxu0 %v2168
        %2250 = vmatprep.subr.bf16.mxu0 0
        %2251 = vmatpush1.bf16.msra.mxu0 0
        %2252 = vmatprep.subr.bf16.mxu0 0
        %2253 = vmatpush1.bf16.msra.mxu0 0
        %2254 = vmatprep.subr.bf16.mxu0 0
        %2255 = vmatpush1.bf16.msra.mxu0 0
        %2256 = vmatprep.subr.bf16.mxu0 0
        %2257 = vmatpush1.bf16.msra.mxu0 0
        %2258 = vmatprep.subr.bf16.mxu0 0
        %2259 = vmatpush1.bf16.msra.mxu0 0
        %2260 = vmatprep.subr.bf16.mxu0 0
        %2261 = vmatpush1.bf16.msra.mxu0 0
        %2262 = vmatprep.subr.bf16.mxu0 0
        %2263 = vmatpush1.bf16.msra.mxu0 0
        %2264 = vmatprep.subr.bf16.mxu0 0
        %2265 = vmatpush1.bf16.msra.mxu0 0
        %2266 = vmatprep.mubr.bf16.mxu0 0
        %2267 = vmatmul.mubr.bf16.gmra.mrb[0].mxu0 %v2031
        %v2268 = vpop.f32.mrb[0].mxu0
        %v2269 = vadd.f32 0.0, %v2268
        %v2270 = vpop.f32.mrb[0].mxu0
        %v2271 = vpop.f32.mrb[0].mxu0
        %v2272 = vpop.f32.mrb[0].mxu0
        %2273 = vdwg.mxu0
        %v2274 = vadd.f32 %v1780, %v1985
        %v2275 = vadd.f32 %v1781, %v1987
        %v2276 = vxor.u32 %v2274, 2147483648
        %v2277 = vxor.u32 %v2275, 2147483648
        %v2278 = vmul.f32 %v2276, 1.442695
        %v2279 = vpow.pop %v2278
        %v2280 = vmul.f32 %v2277, 1.442695
        %v2281 = vpow.pop %v2280
        %v2282 = vadd.f32 %v2279, 1.0
        %v2283 = vadd.f32 %v2281, 1.0
        %v2284 = vrcp.pop %v2282
        %v2285 = vmul.f32 1.0, %v2284
        %v2286 = vrcp.pop %v2283
        %v2287 = vmul.f32 1.0, %v2286
        %v2289 = vlaneseq
        %v2290 = vshrl.u32 %v2289, 7
        %v2291 = vsub.s32 0, %v2290
        %v2292 = vrot.slane %v1773, %v2291
        %v2294 = vadd.f32 %v2026, %v2292
        %v2295 = vmul.f32 %v2285, %v2294
        %v2296 = vadd.f32 %v1782, %v2295
        %v2297 = vtanh.pop %v2296
        %v2298 = vsub.f32 1.0, %v2287
        %v2299 = vmul.f32 %v2298, %v2297
        %v2300 = vmul.f32 %v2287, %v1776
        %v2301 = vadd.f32 %v2299, %v2300
        %v2302 = vadd.f32 %v1786, %v2228
        %v2303 = vadd.f32 %v1787, %v2230
        %v2304 = vxor.u32 %v2302, 2147483648
        %v2305 = vxor.u32 %v2303, 2147483648
        %v2306 = vmul.f32 %v2304, 1.442695
        %v2307 = vpow.pop %v2306
        %v2308 = vmul.f32 %v2305, 1.442695
        %v2309 = vpow.pop %v2308
        %v2310 = vadd.f32 %v2307, 1.0
        %v2311 = vadd.f32 %v2309, 1.0
        %v2312 = vrcp.pop %v2310
        %v2313 = vmul.f32 1.0, %v2312
        %v2314 = vrcp.pop %v2311
        %v2315 = vmul.f32 1.0, %v2314
        %v2317 = vlaneseq
        %v2318 = vshrl.u32 %v2317, 7
        %v2319 = vsub.s32 0, %v2318
        %v2320 = vrot.slane %v1775, %v2319
        %v2322 = vadd.f32 %v2269, %v2320
        %v2323 = vmul.f32 %v2313, %v2322
        %v2324 = vadd.f32 %v1788, %v2323
        %v2325 = vtanh.pop %v2324
        %v2326 = vsub.f32 1.0, %v2315
        %v2327 = vmul.f32 %v2326, %v2325
        %v2328 = vmul.f32 %v2315, %v1777
        %v2329 = vadd.f32 %v2327, %v2328
        %2330 = vst [vmem:[%s464] sm:$0xff] %v2301
        %s2331 = scalar_lea.vmem %s471, 24
        %2332 = vst [vmem:[%s2331] sm:$0xff] %v2329
        %s2333 = scalar_lea.vmem [#allocation4], 12
        %v2334 = vld [vmem:[%s2333] sm:$0xff]
        %v2335 = vld [vmem:[%s2333 + $0x8] sm:$0xf]
        %v2336 = vunpack.c.l.bf16 %v2334
        %v2337 = vunpack.c.h.bf16 %v2334
        %v2338 = vunpack.c.l.bf16 %v2335
        %s2339 = scalar_lea.vmem [#allocation5], 24
        %v2340 = vld [vmem:[%s2339] sm:$0xff]
        %v2341 = vld [vmem:[%s2339 + $0x8] sm:$0xf]
        %v2342 = vunpack.c.l.bf16 %v2340
        %v2343 = vunpack.c.h.bf16 %v2340
        %v2344 = vunpack.c.l.bf16 %v2341
        %v2345 = vpack.c.bf16 %v2301, %v2301
        %v2346 = vld [vmem:[#allocation6] sm:$0xff]
        %v2347 = vld [vmem:[#allocation6 + $0x8] sm:$0xf]
        %v2348 = vld [vmem:[#allocation6 + $0xc] sm:$0xff]
        %v2349 = vld [vmem:[#allocation6 + $0x14] sm:$0xf]
        %v2350 = vld [vmem:[#allocation6 + $0x18] sm:$0xff]
        %v2351 = vld [vmem:[#allocation6 + $0x20] sm:$0xf]
        %v2352 = vld [vmem:[#allocation6 + $0x24] sm:$0xff]
        %v2353 = vld [vmem:[#allocation6 + $0x2c] sm:$0xf]
        %v2354 = vld [vmem:[#allocation6 + $0x30] sm:$0xff]
        %v2355 = vld [vmem:[#allocation6 + $0x38] sm:$0xf]
        %v2356 = vld [vmem:[#allocation6 + $0x3c] sm:$0xff]
        %v2357 = vld [vmem:[#allocation6 + $0x44] sm:$0xf]
        %v2358 = vld [vmem:[#allocation6 + $0x48] sm:$0xff]
        %v2359 = vld [vmem:[#allocation6 + $0x50] sm:$0xf]
        %v2360 = vld [vmem:[#allocation6 + $0x54] sm:$0xff]
        %v2361 = vld [vmem:[#allocation6 + $0x5c] sm:$0xf]
        %v2362 = vld [vmem:[#allocation6 + $0x60] sm:$0xff]
        %v2363 = vld [vmem:[#allocation6 + $0x68] sm:$0xf]
        %v2364 = vld [vmem:[#allocation6 + $0x6c] sm:$0xff]
        %v2365 = vld [vmem:[#allocation6 + $0x74] sm:$0xf]
        %v2366 = vld [vmem:[#allocation6 + $0x78] sm:$0xff]
        %v2367 = vld [vmem:[#allocation6 + $0x80] sm:$0xf]
        %v2368 = vld [vmem:[#allocation6 + $0x84] sm:$0xff]
        %v2369 = vld [vmem:[#allocation6 + $0x8c] sm:$0xf]
        %v2370 = vld [vmem:[#allocation6 + $0x90] sm:$0xff]
        %v2371 = vld [vmem:[#allocation6 + $0x98] sm:$0xf]
        %v2372 = vld [vmem:[#allocation6 + $0x9c] sm:$0xff]
        %v2373 = vld [vmem:[#allocation6 + $0xa4] sm:$0xf]
        %v2374 = vld [vmem:[#allocation6 + $0xa8] sm:$0xff]
        %v2375 = vld [vmem:[#allocation6 + $0xb0] sm:$0xf]
        %v2376 = vld [vmem:[#allocation6 + $0xb4] sm:$0xff]
        %v2377 = vld [vmem:[#allocation6 + $0xbc] sm:$0xf]
        %v2410 = vunpack.c.l.b16 %v2346
        %v2411 = vunpack.c.h.b16 %v2346
        %v2412 = vunpack.c.l.b16 %v2347
        %v2413 = vunpack.c.l.b16 %v2348
        %v2414 = vunpack.c.h.b16 %v2348
        %v2415 = vunpack.c.l.b16 %v2349
        %v2416 = vunpack.c.l.b16 %v2350
        %v2417 = vunpack.c.h.b16 %v2350
        %v2418 = vunpack.c.l.b16 %v2351
        %v2419 = vunpack.c.l.b16 %v2352
        %v2420 = vunpack.c.h.b16 %v2352
        %v2421 = vunpack.c.l.b16 %v2353
        %v2422 = vunpack.c.l.b16 %v2354
        %v2423 = vunpack.c.h.b16 %v2354
        %v2424 = vunpack.c.l.b16 %v2355
        %v2425 = vunpack.c.l.b16 %v2356
        %v2426 = vunpack.c.h.b16 %v2356
        %v2427 = vunpack.c.l.b16 %v2357
        %v2428 = vunpack.c.l.b16 %v2358
        %v2429 = vunpack.c.h.b16 %v2358
        %v2430 = vunpack.c.l.b16 %v2359
        %v2431 = vunpack.c.l.b16 %v2360
        %v2432 = vunpack.c.h.b16 %v2360
        %v2433 = vunpack.c.l.b16 %v2361
        %v2434 = vunpack.c.l.b16 %v2362
        %v2435 = vunpack.c.h.b16 %v2362
        %v2436 = vunpack.c.l.b16 %v2363
        %v2437 = vunpack.c.l.b16 %v2364
        %v2438 = vunpack.c.h.b16 %v2364
        %v2439 = vunpack.c.l.b16 %v2365
        %v2440 = vunpack.c.l.b16 %v2366
        %v2441 = vunpack.c.h.b16 %v2366
        %v2442 = vunpack.c.l.b16 %v2367
        %v2443 = vunpack.c.l.b16 %v2368
        %v2444 = vunpack.c.h.b16 %v2368
        %v2445 = vunpack.c.l.b16 %v2369
        %v2446 = vunpack.c.l.b16 %v2370
        %v2447 = vunpack.c.h.b16 %v2370
        %v2448 = vunpack.c.l.b16 %v2371
        %v2449 = vunpack.c.l.b16 %v2372
        %v2450 = vunpack.c.h.b16 %v2372
        %v2451 = vunpack.c.l.b16 %v2373
        %v2452 = vunpack.c.l.b16 %v2374
        %v2453 = vunpack.c.h.b16 %v2374
        %v2454 = vunpack.c.l.b16 %v2375
        %v2455 = vunpack.c.l.b16 %v2376
        %v2456 = vunpack.c.h.b16 %v2376
        %v2457 = vunpack.c.l.b16 %v2377
        %v2458 = vpack.c.b16 %v2413, %v2410
        %v2459 = vpack.c.b16 %v2414, %v2411
        %v2460 = vpack.c.b16 %v2415, %v2412
        %v2461 = vpack.c.b16 %v2419, %v2416
        %v2462 = vpack.c.b16 %v2420, %v2417
        %v2463 = vpack.c.b16 %v2421, %v2418
        %v2464 = vpack.c.b16 %v2425, %v2422
        %v2465 = vpack.c.b16 %v2426, %v2423
        %v2466 = vpack.c.b16 %v2427, %v2424
        %v2467 = vpack.c.b16 %v2431, %v2428
        %v2468 = vpack.c.b16 %v2432, %v2429
        %v2469 = vpack.c.b16 %v2433, %v2430
        %v2470 = vpack.c.b16 %v2437, %v2434
        %v2471 = vpack.c.b16 %v2438, %v2435
        %v2472 = vpack.c.b16 %v2439, %v2436
        %v2473 = vpack.c.b16 %v2443, %v2440
        %v2474 = vpack.c.b16 %v2444, %v2441
        %v2475 = vpack.c.b16 %v2445, %v2442
        %v2476 = vpack.c.b16 %v2449, %v2446
        %v2477 = vpack.c.b16 %v2450, %v2447
        %v2478 = vpack.c.b16 %v2451, %v2448
        %v2479 = vpack.c.b16 %v2455, %v2452
        %v2480 = vpack.c.b16 %v2456, %v2453
        %v2481 = vpack.c.b16 %v2457, %v2454
        %2506 = vmatprep.subr.bf16.mxu0 %v2459
        %2507 = vmatpush1.bf16.msra.mxu0 %v2458
        %2508 = vmatprep.subr.bf16.mxu0 %v2462
        %2509 = vmatpush1.bf16.msra.mxu0 %v2461
        %2510 = vmatprep.subr.bf16.mxu0 %v2465
        %2511 = vmatpush1.bf16.msra.mxu0 %v2464
        %2512 = vmatprep.subr.bf16.mxu0 %v2468
        %2513 = vmatpush1.bf16.msra.mxu0 %v2467
        %2514 = vmatprep.subr.bf16.mxu0 %v2471
        %2515 = vmatpush1.bf16.msra.mxu0 %v2470
        %2516 = vmatprep.subr.bf16.mxu0 %v2474
        %2517 = vmatpush1.bf16.msra.mxu0 %v2473
        %2518 = vmatprep.subr.bf16.mxu0 %v2477
        %2519 = vmatpush1.bf16.msra.mxu0 %v2476
        %2520 = vmatprep.subr.bf16.mxu0 %v2480
        %2521 = vmatpush1.bf16.msra.mxu0 %v2479
        %2522 = vmatprep.subr.bf16.mxu0 0
        %2523 = vmatpush1.bf16.msra.mxu0 0
        %2524 = vmatprep.subr.bf16.mxu0 0
        %2525 = vmatpush1.bf16.msra.mxu0 0
        %2526 = vmatprep.subr.bf16.mxu0 0
        %2527 = vmatpush1.bf16.msra.mxu0 0
        %2528 = vmatprep.subr.bf16.mxu0 0
        %2529 = vmatpush1.bf16.msra.mxu0 0
        %2530 = vmatprep.subr.bf16.mxu0 0
        %2531 = vmatpush1.bf16.msra.mxu0 0
        %2532 = vmatprep.subr.bf16.mxu0 0
        %2533 = vmatpush1.bf16.msra.mxu0 0
        %2534 = vmatprep.subr.bf16.mxu0 0
        %2535 = vmatpush1.bf16.msra.mxu0 0
        %2536 = vmatprep.subr.bf16.mxu0 0
        %2537 = vmatpush1.bf16.msra.mxu0 0
        %2538 = vmatprep.mubr.bf16.mxu0 0
        %2539 = vmatmul.mubr.bf16.gmra.mrb[0].mxu0 %v2345
        %v2540 = vpop.f32.mrb[0].mxu0
        %v2541 = vadd.f32 0.0, %v2540
        %v2542 = vpop.f32.mrb[0].mxu0
        %v2543 = vadd.f32 0.0, %v2542
        %v2544 = vpop.f32.mrb[0].mxu0
        %v2545 = vpop.f32.mrb[0].mxu0
        %2546 = vdwg.mxu0
        %2547 = vmatprep.subr.bf16.mxu0 0
        %2548 = vmatpush1.bf16.msra.mxu0 %v2460
        %2549 = vmatprep.subr.bf16.mxu0 0
        %2550 = vmatpush1.bf16.msra.mxu0 %v2463
        %2551 = vmatprep.subr.bf16.mxu0 0
        %2552 = vmatpush1.bf16.msra.mxu0 %v2466
        %2553 = vmatprep.subr.bf16.mxu0 0
        %2554 = vmatpush1.bf16.msra.mxu0 %v2469
        %2555 = vmatprep.subr.bf16.mxu0 0
        %2556 = vmatpush1.bf16.msra.mxu0 %v2472
        %2557 = vmatprep.subr.bf16.mxu0 0
        %2558 = vmatpush1.bf16.msra.mxu0 %v2475
        %2559 = vmatprep.subr.bf16.mxu0 0
        %2560 = vmatpush1.bf16.msra.mxu0 %v2478
        %2561 = vmatprep.subr.bf16.mxu0 0
        %2562 = vmatpush1.bf16.msra.mxu0 %v2481
        %2563 = vmatprep.subr.bf16.mxu0 0
        %2564 = vmatpush1.bf16.msra.mxu0 0
        %2565 = vmatprep.subr.bf16.mxu0 0
        %2566 = vmatpush1.bf16.msra.mxu0 0
        %2567 = vmatprep.subr.bf16.mxu0 0
        %2568 = vmatpush1.bf16.msra.mxu0 0
        %2569 = vmatprep.subr.bf16.mxu0 0
        %2570 = vmatpush1.bf16.msra.mxu0 0
        %2571 = vmatprep.subr.bf16.mxu0 0
        %2572 = vmatpush1.bf16.msra.mxu0 0
        %2573 = vmatprep.subr.bf16.mxu0 0
        %2574 = vmatpush1.bf16.msra.mxu0 0
        %2575 = vmatprep.subr.bf16.mxu0 0
        %2576 = vmatpush1.bf16.msra.mxu0 0
        %2577 = vmatprep.subr.bf16.mxu0 0
        %2578 = vmatpush1.bf16.msra.mxu0 0
        %2579 = vmatprep.mubr.bf16.mxu0 0
        %2580 = vmatmul.mubr.bf16.gmra.mrb[0].mxu0 %v2345
        %v2581 = vpop.f32.mrb[0].mxu0
        %v2582 = vadd.f32 0.0, %v2581
        %v2583 = vpop.f32.mrb[0].mxu0
        %v2584 = vpop.f32.mrb[0].mxu0
        %v2585 = vpop.f32.mrb[0].mxu0
        %2586 = vdwg.mxu0
        %v2587 = vpack.c.bf16 %v2329, %v2329
        %v2588 = vld [vmem:[%s2032] sm:$0xff]
        %v2589 = vld [vmem:[%s2032 + $0x8] sm:$0xf]
        %v2590 = vld [vmem:[%s2032 + $0xc] sm:$0xff]
        %v2591 = vld [vmem:[%s2032 + $0x14] sm:$0xf]
        %v2592 = vld [vmem:[%s2032 + $0x18] sm:$0xff]
        %v2593 = vld [vmem:[%s2032 + $0x20] sm:$0xf]
        %v2594 = vld [vmem:[%s2032 + $0x24] sm:$0xff]
        %v2595 = vld [vmem:[%s2032 + $0x2c] sm:$0xf]
        %v2596 = vld [vmem:[%s2032 + $0x30] sm:$0xff]
        %v2597 = vld [vmem:[%s2032 + $0x38] sm:$0xf]
        %v2598 = vld [vmem:[%s2032 + $0x3c] sm:$0xff]
        %v2599 = vld [vmem:[%s2032 + $0x44] sm:$0xf]
        %v2600 = vld [vmem:[%s2032 + $0x48] sm:$0xff]
        %v2601 = vld [vmem:[%s2032 + $0x50] sm:$0xf]
        %v2602 = vld [vmem:[%s2032 + $0x54] sm:$0xff]
        %v2603 = vld [vmem:[%s2032 + $0x5c] sm:$0xf]
        %v2604 = vld [vmem:[%s2032 + $0x60] sm:$0xff]
        %v2605 = vld [vmem:[%s2032 + $0x68] sm:$0xf]
        %v2606 = vld [vmem:[%s2032 + $0x6c] sm:$0xff]
        %v2607 = vld [vmem:[%s2032 + $0x74] sm:$0xf]
        %v2608 = vld [vmem:[%s2032 + $0x78] sm:$0xff]
        %v2609 = vld [vmem:[%s2032 + $0x80] sm:$0xf]
        %v2610 = vld [vmem:[%s2032 + $0x84] sm:$0xff]
        %v2611 = vld [vmem:[%s2032 + $0x8c] sm:$0xf]
        %v2612 = vld [vmem:[%s2032 + $0x90] sm:$0xff]
        %v2613 = vld [vmem:[%s2032 + $0x98] sm:$0xf]
        %v2614 = vld [vmem:[%s2032 + $0x9c] sm:$0xff]
        %v2615 = vld [vmem:[%s2032 + $0xa4] sm:$0xf]
        %v2616 = vld [vmem:[%s2032 + $0xa8] sm:$0xff]
        %v2617 = vld [vmem:[%s2032 + $0xb0] sm:$0xf]
        %v2618 = vld [vmem:[%s2032 + $0xb4] sm:$0xff]
        %v2619 = vld [vmem:[%s2032 + $0xbc] sm:$0xf]
        %v2652 = vunpack.c.l.b16 %v2588
        %v2653 = vunpack.c.h.b16 %v2588
        %v2654 = vunpack.c.l.b16 %v2589
        %v2655 = vunpack.c.l.b16 %v2590
        %v2656 = vunpack.c.h.b16 %v2590
        %v2657 = vunpack.c.l.b16 %v2591
        %v2658 = vunpack.c.l.b16 %v2592
        %v2659 = vunpack.c.h.b16 %v2592
        %v2660 = vunpack.c.l.b16 %v2593
        %v2661 = vunpack.c.l.b16 %v2594
        %v2662 = vunpack.c.h.b16 %v2594
        %v2663 = vunpack.c.l.b16 %v2595
        %v2664 = vunpack.c.l.b16 %v2596
        %v2665 = vunpack.c.h.b16 %v2596
        %v2666 = vunpack.c.l.b16 %v2597
        %v2667 = vunpack.c.l.b16 %v2598
        %v2668 = vunpack.c.h.b16 %v2598
        %v2669 = vunpack.c.l.b16 %v2599
        %v2670 = vunpack.c.l.b16 %v2600
        %v2671 = vunpack.c.h.b16 %v2600
        %v2672 = vunpack.c.l.b16 %v2601
        %v2673 = vunpack.c.l.b16 %v2602
        %v2674 = vunpack.c.h.b16 %v2602
        %v2675 = vunpack.c.l.b16 %v2603
        %v2676 = vunpack.c.l.b16 %v2604
        %v2677 = vunpack.c.h.b16 %v2604
        %v2678 = vunpack.c.l.b16 %v2605
        %v2679 = vunpack.c.l.b16 %v2606
        %v2680 = vunpack.c.h.b16 %v2606
        %v2681 = vunpack.c.l.b16 %v2607
        %v2682 = vunpack.c.l.b16 %v2608
        %v2683 = vunpack.c.h.b16 %v2608
        %v2684 = vunpack.c.l.b16 %v2609
        %v2685 = vunpack.c.l.b16 %v2610
        %v2686 = vunpack.c.h.b16 %v2610
        %v2687 = vunpack.c.l.b16 %v2611
        %v2688 = vunpack.c.l.b16 %v2612
        %v2689 = vunpack.c.h.b16 %v2612
        %v2690 = vunpack.c.l.b16 %v2613
        %v2691 = vunpack.c.l.b16 %v2614
        %v2692 = vunpack.c.h.b16 %v2614
        %v2693 = vunpack.c.l.b16 %v2615
        %v2694 = vunpack.c.l.b16 %v2616
        %v2695 = vunpack.c.h.b16 %v2616
        %v2696 = vunpack.c.l.b16 %v2617
        %v2697 = vunpack.c.l.b16 %v2618
        %v2698 = vunpack.c.h.b16 %v2618
        %v2699 = vunpack.c.l.b16 %v2619
        %v2700 = vpack.c.b16 %v2655, %v2652
        %v2701 = vpack.c.b16 %v2656, %v2653
        %v2702 = vpack.c.b16 %v2657, %v2654
        %v2703 = vpack.c.b16 %v2661, %v2658
        %v2704 = vpack.c.b16 %v2662, %v2659
        %v2705 = vpack.c.b16 %v2663, %v2660
        %v2706 = vpack.c.b16 %v2667, %v2664
        %v2707 = vpack.c.b16 %v2668, %v2665
        %v2708 = vpack.c.b16 %v2669, %v2666
        %v2709 = vpack.c.b16 %v2673, %v2670
        %v2710 = vpack.c.b16 %v2674, %v2671
        %v2711 = vpack.c.b16 %v2675, %v2672
        %v2712 = vpack.c.b16 %v2679, %v2676
        %v2713 = vpack.c.b16 %v2680, %v2677
        %v2714 = vpack.c.b16 %v2681, %v2678
        %v2715 = vpack.c.b16 %v2685, %v2682
        %v2716 = vpack.c.b16 %v2686, %v2683
        %v2717 = vpack.c.b16 %v2687, %v2684
        %v2718 = vpack.c.b16 %v2691, %v2688
        %v2719 = vpack.c.b16 %v2692, %v2689
        %v2720 = vpack.c.b16 %v2693, %v2690
        %v2721 = vpack.c.b16 %v2697, %v2694
        %v2722 = vpack.c.b16 %v2698, %v2695
        %v2723 = vpack.c.b16 %v2699, %v2696
        %2748 = vmatprep.subr.bf16.mxu0 %v2701
        %2749 = vmatpush1.bf16.msra.mxu0 %v2700
        %2750 = vmatprep.subr.bf16.mxu0 %v2704
        %2751 = vmatpush1.bf16.msra.mxu0 %v2703
        %2752 = vmatprep.subr.bf16.mxu0 %v2707
        %2753 = vmatpush1.bf16.msra.mxu0 %v2706
        %2754 = vmatprep.subr.bf16.mxu0 %v2710
        %2755 = vmatpush1.bf16.msra.mxu0 %v2709
        %2756 = vmatprep.subr.bf16.mxu0 %v2713
        %2757 = vmatpush1.bf16.msra.mxu0 %v2712
        %2758 = vmatprep.subr.bf16.mxu0 %v2716
        %2759 = vmatpush1.bf16.msra.mxu0 %v2715
        %2760 = vmatprep.subr.bf16.mxu0 %v2719
        %2761 = vmatpush1.bf16.msra.mxu0 %v2718
        %2762 = vmatprep.subr.bf16.mxu0 %v2722
        %2763 = vmatpush1.bf16.msra.mxu0 %v2721
        %2764 = vmatprep.subr.bf16.mxu0 0
        %2765 = vmatpush1.bf16.msra.mxu0 0
        %2766 = vmatprep.subr.bf16.mxu0 0
        %2767 = vmatpush1.bf16.msra.mxu0 0
        %2768 = vmatprep.subr.bf16.mxu0 0
        %2769 = vmatpush1.bf16.msra.mxu0 0
        %2770 = vmatprep.subr.bf16.mxu0 0
        %2771 = vmatpush1.bf16.msra.mxu0 0
        %2772 = vmatprep.subr.bf16.mxu0 0
        %2773 = vmatpush1.bf16.msra.mxu0 0
        %2774 = vmatprep.subr.bf16.mxu0 0
        %2775 = vmatpush1.bf16.msra.mxu0 0
        %2776 = vmatprep.subr.bf16.mxu0 0
        %2777 = vmatpush1.bf16.msra.mxu0 0
        %2778 = vmatprep.subr.bf16.mxu0 0
        %2779 = vmatpush1.bf16.msra.mxu0 0
        %2780 = vmatprep.mubr.bf16.mxu0 0
        %2781 = vmatmul.mubr.bf16.gmra.mrb[0].mxu0 %v2587
        %v2782 = vpop.f32.mrb[0].mxu0
        %v2783 = vadd.f32 0.0, %v2782
        %v2784 = vpop.f32.mrb[0].mxu0
        %v2785 = vadd.f32 0.0, %v2784
        %v2786 = vpop.f32.mrb[0].mxu0
        %v2787 = vpop.f32.mrb[0].mxu0
        %2788 = vdwg.mxu0
        %2789 = vmatprep.subr.bf16.mxu0 0
        %2790 = vmatpush1.bf16.msra.mxu0 %v2702
        %2791 = vmatprep.subr.bf16.mxu0 0
        %2792 = vmatpush1.bf16.msra.mxu0 %v2705
        %2793 = vmatprep.subr.bf16.mxu0 0
        %2794 = vmatpush1.bf16.msra.mxu0 %v2708
        %2795 = vmatprep.subr.bf16.mxu0 0
        %2796 = vmatpush1.bf16.msra.mxu0 %v2711
        %2797 = vmatprep.subr.bf16.mxu0 0
        %2798 = vmatpush1.bf16.msra.mxu0 %v2714
        %2799 = vmatprep.subr.bf16.mxu0 0
        %2800 = vmatpush1.bf16.msra.mxu0 %v2717
        %2801 = vmatprep.subr.bf16.mxu0 0
        %2802 = vmatpush1.bf16.msra.mxu0 %v2720
        %2803 = vmatprep.subr.bf16.mxu0 0
        %2804 = vmatpush1.bf16.msra.mxu0 %v2723
        %2805 = vmatprep.subr.bf16.mxu0 0
        %2806 = vmatpush1.bf16.msra.mxu0 0
        %2807 = vmatprep.subr.bf16.mxu0 0
        %2808 = vmatpush1.bf16.msra.mxu0 0
        %2809 = vmatprep.subr.bf16.mxu0 0
        %2810 = vmatpush1.bf16.msra.mxu0 0
        %2811 = vmatprep.subr.bf16.mxu0 0
        %2812 = vmatpush1.bf16.msra.mxu0 0
        %2813 = vmatprep.subr.bf16.mxu0 0
        %2814 = vmatpush1.bf16.msra.mxu0 0
        %2815 = vmatprep.subr.bf16.mxu0 0
        %2816 = vmatpush1.bf16.msra.mxu0 0
        %2817 = vmatprep.subr.bf16.mxu0 0
        %2818 = vmatpush1.bf16.msra.mxu0 0
        %2819 = vmatprep.subr.bf16.mxu0 0
        %2820 = vmatpush1.bf16.msra.mxu0 0
        %2821 = vmatprep.mubr.bf16.mxu0 0
        %2822 = vmatmul.mubr.bf16.gmra.mrb[0].mxu0 %v2587
        %v2823 = vpop.f32.mrb[0].mxu0
        %v2824 = vadd.f32 0.0, %v2823
        %v2825 = vpop.f32.mrb[0].mxu0
        %v2826 = vpop.f32.mrb[0].mxu0
        %v2827 = vpop.f32.mrb[0].mxu0
        %2828 = vdwg.mxu0
        %v2829 = vadd.f32 %v2336, %v2541
        %v2830 = vadd.f32 %v2337, %v2543
        %v2831 = vxor.u32 %v2829, 2147483648
        %v2832 = vxor.u32 %v2830, 2147483648
        %v2833 = vmul.f32 %v2831, 1.442695
        %v2834 = vpow.pop %v2833
        %v2835 = vmul.f32 %v2832, 1.442695
        %v2836 = vpow.pop %v2835
        %v2837 = vadd.f32 %v2834, 1.0
        %v2838 = vadd.f32 %v2836, 1.0
        %v2839 = vrcp.pop %v2837
        %v2840 = vmul.f32 1.0, %v2839
        %v2841 = vrcp.pop %v2838
        %v2842 = vmul.f32 1.0, %v2841
        %v2843 = vadd.f32 %v2582, %v2292
        %v2844 = vmul.f32 %v2840, %v2843
        %v2845 = vadd.f32 %v2338, %v2844
        %v2846 = vtanh.pop %v2845
        %v2847 = vsub.f32 1.0, %v2842
        %v2848 = vmul.f32 %v2847, %v2846
        %v2849 = vmul.f32 %v2842, %v2301
        %v2850 = vadd.f32 %v2848, %v2849
        %v2851 = vadd.f32 %v2342, %v2783
        %v2852 = vadd.f32 %v2343, %v2785
        %v2853 = vxor.u32 %v2851, 2147483648
        %v2854 = vxor.u32 %v2852, 2147483648
        %v2855 = vmul.f32 %v2853, 1.442695
        %v2856 = vpow.pop %v2855
        %v2857 = vmul.f32 %v2854, 1.442695
        %v2858 = vpow.pop %v2857
        %v2859 = vadd.f32 %v2856, 1.0
        %v2860 = vadd.f32 %v2858, 1.0
        %v2861 = vrcp.pop %v2859
        %v2862 = vmul.f32 1.0, %v2861
        %v2863 = vrcp.pop %v2860
        %v2864 = vmul.f32 1.0, %v2863
        %v2865 = vadd.f32 %v2824, %v2320
        %v2866 = vmul.f32 %v2862, %v2865
        %v2867 = vadd.f32 %v2344, %v2866
        %v2868 = vtanh.pop %v2867
        %v2869 = vsub.f32 1.0, %v2864
        %v2870 = vmul.f32 %v2869, %v2868
        %v2871 = vmul.f32 %v2864, %v2329
        %v2872 = vadd.f32 %v2870, %v2871
        %s2873 = scalar_lea.vmem %s464, 8
        %2874 = vst [vmem:[%s2873] sm:$0xff] %v2850
        %s2875 = scalar_lea.vmem %s471, 16
        %2876 = vst [vmem:[%s2875] sm:$0xff] %v2872
        %s2877 = scalar_lea.vmem [#allocation4], 24
        %v2878 = vld [vmem:[%s2877] sm:$0xff]
        %v2879 = vld [vmem:[%s2877 + $0x8] sm:$0xf]
        %v2880 = vunpack.c.l.bf16 %v2878
        %v2881 = vunpack.c.h.bf16 %v2878
        %v2882 = vunpack.c.l.bf16 %v2879
        %s2883 = scalar_lea.vmem [#allocation5], 12
        %v2884 = vld [vmem:[%s2883] sm:$0xff]
        %v2885 = vld [vmem:[%s2883 + $0x8] sm:$0xf]
        %v2886 = vunpack.c.l.bf16 %v2884
        %v2887 = vunpack.c.h.bf16 %v2884
        %v2888 = vunpack.c.l.bf16 %v2885
        %v2889 = vpack.c.bf16 %v2850, %v2850
        %v2890 = vld [vmem:[#allocation6] sm:$0xff]
        %v2891 = vld [vmem:[#allocation6 + $0x8] sm:$0xf]
        %v2892 = vld [vmem:[#allocation6 + $0xc] sm:$0xff]
        %v2893 = vld [vmem:[#allocation6 + $0x14] sm:$0xf]
        %v2894 = vld [vmem:[#allocation6 + $0x18] sm:$0xff]
        %v2895 = vld [vmem:[#allocation6 + $0x20] sm:$0xf]
        %v2896 = vld [vmem:[#allocation6 + $0x24] sm:$0xff]
        %v2897 = vld [vmem:[#allocation6 + $0x2c] sm:$0xf]
        %v2898 = vld [vmem:[#allocation6 + $0x30] sm:$0xff]
        %v2899 = vld [vmem:[#allocation6 + $0x38] sm:$0xf]
        %v2900 = vld [vmem:[#allocation6 + $0x3c] sm:$0xff]
        %v2901 = vld [vmem:[#allocation6 + $0x44] sm:$0xf]
        %v2902 = vld [vmem:[#allocation6 + $0x48] sm:$0xff]
        %v2903 = vld [vmem:[#allocation6 + $0x50] sm:$0xf]
        %v2904 = vld [vmem:[#allocation6 + $0x54] sm:$0xff]
        %v2905 = vld [vmem:[#allocation6 + $0x5c] sm:$0xf]
        %v2906 = vld [vmem:[#allocation6 + $0x60] sm:$0xff]
        %v2907 = vld [vmem:[#allocation6 + $0x68] sm:$0xf]
        %v2908 = vld [vmem:[#allocation6 + $0x6c] sm:$0xff]
        %v2909 = vld [vmem:[#allocation6 + $0x74] sm:$0xf]
        %v2910 = vld [vmem:[#allocation6 + $0x78] sm:$0xff]
        %v2911 = vld [vmem:[#allocation6 + $0x80] sm:$0xf]
        %v2912 = vld [vmem:[#allocation6 + $0x84] sm:$0xff]
        %v2913 = vld [vmem:[#allocation6 + $0x8c] sm:$0xf]
        %v2914 = vld [vmem:[#allocation6 + $0x90] sm:$0xff]
        %v2915 = vld [vmem:[#allocation6 + $0x98] sm:$0xf]
        %v2916 = vld [vmem:[#allocation6 + $0x9c] sm:$0xff]
        %v2917 = vld [vmem:[#allocation6 + $0xa4] sm:$0xf]
        %v2918 = vld [vmem:[#allocation6 + $0xa8] sm:$0xff]
        %v2919 = vld [vmem:[#allocation6 + $0xb0] sm:$0xf]
        %v2920 = vld [vmem:[#allocation6 + $0xb4] sm:$0xff]
        %v2921 = vld [vmem:[#allocation6 + $0xbc] sm:$0xf]
        %v2954 = vunpack.c.l.b16 %v2890
        %v2955 = vunpack.c.h.b16 %v2890
        %v2956 = vunpack.c.l.b16 %v2891
        %v2957 = vunpack.c.l.b16 %v2892
        %v2958 = vunpack.c.h.b16 %v2892
        %v2959 = vunpack.c.l.b16 %v2893
        %v2960 = vunpack.c.l.b16 %v2894
        %v2961 = vunpack.c.h.b16 %v2894
        %v2962 = vunpack.c.l.b16 %v2895
        %v2963 = vunpack.c.l.b16 %v2896
        %v2964 = vunpack.c.h.b16 %v2896
        %v2965 = vunpack.c.l.b16 %v2897
        %v2966 = vunpack.c.l.b16 %v2898
        %v2967 = vunpack.c.h.b16 %v2898
        %v2968 = vunpack.c.l.b16 %v2899
        %v2969 = vunpack.c.l.b16 %v2900
        %v2970 = vunpack.c.h.b16 %v2900
        %v2971 = vunpack.c.l.b16 %v2901
        %v2972 = vunpack.c.l.b16 %v2902
        %v2973 = vunpack.c.h.b16 %v2902
        %v2974 = vunpack.c.l.b16 %v2903
        %v2975 = vunpack.c.l.b16 %v2904
        %v2976 = vunpack.c.h.b16 %v2904
        %v2977 = vunpack.c.l.b16 %v2905
        %v2978 = vunpack.c.l.b16 %v2906
        %v2979 = vunpack.c.h.b16 %v2906
        %v2980 = vunpack.c.l.b16 %v2907
        %v2981 = vunpack.c.l.b16 %v2908
        %v2982 = vunpack.c.h.b16 %v2908
        %v2983 = vunpack.c.l.b16 %v2909
        %v2984 = vunpack.c.l.b16 %v2910
        %v2985 = vunpack.c.h.b16 %v2910
        %v2986 = vunpack.c.l.b16 %v2911
        %v2987 = vunpack.c.l.b16 %v2912
        %v2988 = vunpack.c.h.b16 %v2912
        %v2989 = vunpack.c.l.b16 %v2913
        %v2990 = vunpack.c.l.b16 %v2914
        %v2991 = vunpack.c.h.b16 %v2914
        %v2992 = vunpack.c.l.b16 %v2915
        %v2993 = vunpack.c.l.b16 %v2916
        %v2994 = vunpack.c.h.b16 %v2916
        %v2995 = vunpack.c.l.b16 %v2917
        %v2996 = vunpack.c.l.b16 %v2918
        %v2997 = vunpack.c.h.b16 %v2918
        %v2998 = vunpack.c.l.b16 %v2919
        %v2999 = vunpack.c.l.b16 %v2920
        %v3000 = vunpack.c.h.b16 %v2920
        %v3001 = vunpack.c.l.b16 %v2921
        %v3002 = vpack.c.b16 %v2957, %v2954
        %v3003 = vpack.c.b16 %v2958, %v2955
        %v3004 = vpack.c.b16 %v2959, %v2956
        %v3005 = vpack.c.b16 %v2963, %v2960
        %v3006 = vpack.c.b16 %v2964, %v2961
        %v3007 = vpack.c.b16 %v2965, %v2962
        %v3008 = vpack.c.b16 %v2969, %v2966
        %v3009 = vpack.c.b16 %v2970, %v2967
        %v3010 = vpack.c.b16 %v2971, %v2968
        %v3011 = vpack.c.b16 %v2975, %v2972
        %v3012 = vpack.c.b16 %v2976, %v2973
        %v3013 = vpack.c.b16 %v2977, %v2974
        %v3014 = vpack.c.b16 %v2981, %v2978
        %v3015 = vpack.c.b16 %v2982, %v2979
        %v3016 = vpack.c.b16 %v2983, %v2980
        %v3017 = vpack.c.b16 %v2987, %v2984
        %v3018 = vpack.c.b16 %v2988, %v2985
        %v3019 = vpack.c.b16 %v2989, %v2986
        %v3020 = vpack.c.b16 %v2993, %v2990
        %v3021 = vpack.c.b16 %v2994, %v2991
        %v3022 = vpack.c.b16 %v2995, %v2992
        %v3023 = vpack.c.b16 %v2999, %v2996
        %v3024 = vpack.c.b16 %v3000, %v2997
        %v3025 = vpack.c.b16 %v3001, %v2998
        %3050 = vmatprep.subr.bf16.mxu0 %v3003
        %3051 = vmatpush1.bf16.msra.mxu0 %v3002
        %3052 = vmatprep.subr.bf16.mxu0 %v3006
        %3053 = vmatpush1.bf16.msra.mxu0 %v3005
        %3054 = vmatprep.subr.bf16.mxu0 %v3009
        %3055 = vmatpush1.bf16.msra.mxu0 %v3008
        %3056 = vmatprep.subr.bf16.mxu0 %v3012
        %3057 = vmatpush1.bf16.msra.mxu0 %v3011
        %3058 = vmatprep.subr.bf16.mxu0 %v3015
        %3059 = vmatpush1.bf16.msra.mxu0 %v3014
        %3060 = vmatprep.subr.bf16.mxu0 %v3018
        %3061 = vmatpush1.bf16.msra.mxu0 %v3017
        %3062 = vmatprep.subr.bf16.mxu0 %v3021
        %3063 = vmatpush1.bf16.msra.mxu0 %v3020
        %3064 = vmatprep.subr.bf16.mxu0 %v3024
        %3065 = vmatpush1.bf16.msra.mxu0 %v3023
        %3066 = vmatprep.subr.bf16.mxu0 0
        %3067 = vmatpush1.bf16.msra.mxu0 0
        %3068 = vmatprep.subr.bf16.mxu0 0
        %3069 = vmatpush1.bf16.msra.mxu0 0
        %3070 = vmatprep.subr.bf16.mxu0 0
        %3071 = vmatpush1.bf16.msra.mxu0 0
        %3072 = vmatprep.subr.bf16.mxu0 0
        %3073 = vmatpush1.bf16.msra.mxu0 0
        %3074 = vmatprep.subr.bf16.mxu0 0
        %3075 = vmatpush1.bf16.msra.mxu0 0
        %3076 = vmatprep.subr.bf16.mxu0 0
        %3077 = vmatpush1.bf16.msra.mxu0 0
        %3078 = vmatprep.subr.bf16.mxu0 0
        %3079 = vmatpush1.bf16.msra.mxu0 0
        %3080 = vmatprep.subr.bf16.mxu0 0
        %3081 = vmatpush1.bf16.msra.mxu0 0
        %3082 = vmatprep.mubr.bf16.mxu0 0
        %3083 = vmatmul.mubr.bf16.gmra.mrb[0].mxu0 %v2889
        %v3084 = vpop.f32.mrb[0].mxu0
        %v3085 = vadd.f32 0.0, %v3084
        %v3086 = vpop.f32.mrb[0].mxu0
        %v3087 = vadd.f32 0.0, %v3086
        %v3088 = vpop.f32.mrb[0].mxu0
        %v3089 = vpop.f32.mrb[0].mxu0
        %3090 = vdwg.mxu0
        %3091 = vmatprep.subr.bf16.mxu0 0
        %3092 = vmatpush1.bf16.msra.mxu0 %v3004
        %3093 = vmatprep.subr.bf16.mxu0 0
        %3094 = vmatpush1.bf16.msra.mxu0 %v3007
        %3095 = vmatprep.subr.bf16.mxu0 0
        %3096 = vmatpush1.bf16.msra.mxu0 %v3010
        %3097 = vmatprep.subr.bf16.mxu0 0
        %3098 = vmatpush1.bf16.msra.mxu0 %v3013
        %3099 = vmatprep.subr.bf16.mxu0 0
        %3100 = vmatpush1.bf16.msra.mxu0 %v3016
        %3101 = vmatprep.subr.bf16.mxu0 0
        %3102 = vmatpush1.bf16.msra.mxu0 %v3019
        %3103 = vmatprep.subr.bf16.mxu0 0
        %3104 = vmatpush1.bf16.msra.mxu0 %v3022
        %3105 = vmatprep.subr.bf16.mxu0 0
        %3106 = vmatpush1.bf16.msra.mxu0 %v3025
        %3107 = vmatprep.subr.bf16.mxu0 0
        %3108 = vmatpush1.bf16.msra.mxu0 0
        %3109 = vmatprep.subr.bf16.mxu0 0
        %3110 = vmatpush1.bf16.msra.mxu0 0
        %3111 = vmatprep.subr.bf16.mxu0 0
        %3112 = vmatpush1.bf16.msra.mxu0 0
        %3113 = vmatprep.subr.bf16.mxu0 0
        %3114 = vmatpush1.bf16.msra.mxu0 0
        %3115 = vmatprep.subr.bf16.mxu0 0
        %3116 = vmatpush1.bf16.msra.mxu0 0
        %3117 = vmatprep.subr.bf16.mxu0 0
        %3118 = vmatpush1.bf16.msra.mxu0 0
        %3119 = vmatprep.subr.bf16.mxu0 0
        %3120 = vmatpush1.bf16.msra.mxu0 0
        %3121 = vmatprep.subr.bf16.mxu0 0
        %3122 = vmatpush1.bf16.msra.mxu0 0
        %3123 = vmatprep.mubr.bf16.mxu0 0
        %3124 = vmatmul.mubr.bf16.gmra.mrb[0].mxu0 %v2889
        %v3125 = vpop.f32.mrb[0].mxu0
        %v3126 = vadd.f32 0.0, %v3125
        %v3127 = vpop.f32.mrb[0].mxu0
        %v3128 = vpop.f32.mrb[0].mxu0
        %v3129 = vpop.f32.mrb[0].mxu0
        %3130 = vdwg.mxu0
        %v3131 = vpack.c.bf16 %v2872, %v2872
        %v3132 = vld [vmem:[%s2032] sm:$0xff]
        %v3133 = vld [vmem:[%s2032 + $0x8] sm:$0xf]
        %v3134 = vld [vmem:[%s2032 + $0xc] sm:$0xff]
        %v3135 = vld [vmem:[%s2032 + $0x14] sm:$0xf]
        %v3136 = vld [vmem:[%s2032 + $0x18] sm:$0xff]
        %v3137 = vld [vmem:[%s2032 + $0x20] sm:$0xf]
        %v3138 = vld [vmem:[%s2032 + $0x24] sm:$0xff]
        %v3139 = vld [vmem:[%s2032 + $0x2c] sm:$0xf]
        %v3140 = vld [vmem:[%s2032 + $0x30] sm:$0xff]
        %v3141 = vld [vmem:[%s2032 + $0x38] sm:$0xf]
        %v3142 = vld [vmem:[%s2032 + $0x3c] sm:$0xff]
        %v3143 = vld [vmem:[%s2032 + $0x44] sm:$0xf]
        %v3144 = vld [vmem:[%s2032 + $0x48] sm:$0xff]
        %v3145 = vld [vmem:[%s2032 + $0x50] sm:$0xf]
        %v3146 = vld [vmem:[%s2032 + $0x54] sm:$0xff]
        %v3147 = vld [vmem:[%s2032 + $0x5c] sm:$0xf]
        %v3148 = vld [vmem:[%s2032 + $0x60] sm:$0xff]
        %v3149 = vld [vmem:[%s2032 + $0x68] sm:$0xf]
        %v3150 = vld [vmem:[%s2032 + $0x6c] sm:$0xff]
        %v3151 = vld [vmem:[%s2032 + $0x74] sm:$0xf]
        %v3152 = vld [vmem:[%s2032 + $0x78] sm:$0xff]
        %v3153 = vld [vmem:[%s2032 + $0x80] sm:$0xf]
        %v3154 = vld [vmem:[%s2032 + $0x84] sm:$0xff]
        %v3155 = vld [vmem:[%s2032 + $0x8c] sm:$0xf]
        %v3156 = vld [vmem:[%s2032 + $0x90] sm:$0xff]
        %v3157 = vld [vmem:[%s2032 + $0x98] sm:$0xf]
        %v3158 = vld [vmem:[%s2032 + $0x9c] sm:$0xff]
        %v3159 = vld [vmem:[%s2032 + $0xa4] sm:$0xf]
        %v3160 = vld [vmem:[%s2032 + $0xa8] sm:$0xff]
        %v3161 = vld [vmem:[%s2032 + $0xb0] sm:$0xf]
        %v3162 = vld [vmem:[%s2032 + $0xb4] sm:$0xff]
        %v3163 = vld [vmem:[%s2032 + $0xbc] sm:$0xf]
        %v3196 = vunpack.c.l.b16 %v3132
        %v3197 = vunpack.c.h.b16 %v3132
        %v3198 = vunpack.c.l.b16 %v3133
        %v3199 = vunpack.c.l.b16 %v3134
        %v3200 = vunpack.c.h.b16 %v3134
        %v3201 = vunpack.c.l.b16 %v3135
        %v3202 = vunpack.c.l.b16 %v3136
        %v3203 = vunpack.c.h.b16 %v3136
        %v3204 = vunpack.c.l.b16 %v3137
        %v3205 = vunpack.c.l.b16 %v3138
        %v3206 = vunpack.c.h.b16 %v3138
        %v3207 = vunpack.c.l.b16 %v3139
        %v3208 = vunpack.c.l.b16 %v3140
        %v3209 = vunpack.c.h.b16 %v3140
        %v3210 = vunpack.c.l.b16 %v3141
        %v3211 = vunpack.c.l.b16 %v3142
        %v3212 = vunpack.c.h.b16 %v3142
        %v3213 = vunpack.c.l.b16 %v3143
        %v3214 = vunpack.c.l.b16 %v3144
        %v3215 = vunpack.c.h.b16 %v3144
        %v3216 = vunpack.c.l.b16 %v3145
        %v3217 = vunpack.c.l.b16 %v3146
        %v3218 = vunpack.c.h.b16 %v3146
        %v3219 = vunpack.c.l.b16 %v3147
        %v3220 = vunpack.c.l.b16 %v3148
        %v3221 = vunpack.c.h.b16 %v3148
        %v3222 = vunpack.c.l.b16 %v3149
        %v3223 = vunpack.c.l.b16 %v3150
        %v3224 = vunpack.c.h.b16 %v3150
        %v3225 = vunpack.c.l.b16 %v3151
        %v3226 = vunpack.c.l.b16 %v3152
        %v3227 = vunpack.c.h.b16 %v3152
        %v3228 = vunpack.c.l.b16 %v3153
        %v3229 = vunpack.c.l.b16 %v3154
        %v3230 = vunpack.c.h.b16 %v3154
        %v3231 = vunpack.c.l.b16 %v3155
        %v3232 = vunpack.c.l.b16 %v3156
        %v3233 = vunpack.c.h.b16 %v3156
        %v3234 = vunpack.c.l.b16 %v3157
        %v3235 = vunpack.c.l.b16 %v3158
        %v3236 = vunpack.c.h.b16 %v3158
        %v3237 = vunpack.c.l.b16 %v3159
        %v3238 = vunpack.c.l.b16 %v3160
        %v3239 = vunpack.c.h.b16 %v3160
        %v3240 = vunpack.c.l.b16 %v3161
        %v3241 = vunpack.c.l.b16 %v3162
        %v3242 = vunpack.c.h.b16 %v3162
        %v3243 = vunpack.c.l.b16 %v3163
        %v3244 = vpack.c.b16 %v3199, %v3196
        %v3245 = vpack.c.b16 %v3200, %v3197
        %v3246 = vpack.c.b16 %v3201, %v3198
        %v3247 = vpack.c.b16 %v3205, %v3202
        %v3248 = vpack.c.b16 %v3206, %v3203
        %v3249 = vpack.c.b16 %v3207, %v3204
        %v3250 = vpack.c.b16 %v3211, %v3208
        %v3251 = vpack.c.b16 %v3212, %v3209
        %v3252 = vpack.c.b16 %v3213, %v3210
        %v3253 = vpack.c.b16 %v3217, %v3214
        %v3254 = vpack.c.b16 %v3218, %v3215
        %v3255 = vpack.c.b16 %v3219, %v3216
        %v3256 = vpack.c.b16 %v3223, %v3220
        %v3257 = vpack.c.b16 %v3224, %v3221
        %v3258 = vpack.c.b16 %v3225, %v3222
        %v3259 = vpack.c.b16 %v3229, %v3226
        %v3260 = vpack.c.b16 %v3230, %v3227
        %v3261 = vpack.c.b16 %v3231, %v3228
        %v3262 = vpack.c.b16 %v3235, %v3232
        %v3263 = vpack.c.b16 %v3236, %v3233
        %v3264 = vpack.c.b16 %v3237, %v3234
        %v3265 = vpack.c.b16 %v3241, %v3238
        %v3266 = vpack.c.b16 %v3242, %v3239
        %v3267 = vpack.c.b16 %v3243, %v3240
        %3292 = vmatprep.subr.bf16.mxu0 %v3245
        %3293 = vmatpush1.bf16.msra.mxu0 %v3244
        %3294 = vmatprep.subr.bf16.mxu0 %v3248
        %3295 = vmatpush1.bf16.msra.mxu0 %v3247
        %3296 = vmatprep.subr.bf16.mxu0 %v3251
        %3297 = vmatpush1.bf16.msra.mxu0 %v3250
        %3298 = vmatprep.subr.bf16.mxu0 %v3254
        %3299 = vmatpush1.bf16.msra.mxu0 %v3253
        %3300 = vmatprep.subr.bf16.mxu0 %v3257
        %3301 = vmatpush1.bf16.msra.mxu0 %v3256
        %3302 = vmatprep.subr.bf16.mxu0 %v3260
        %3303 = vmatpush1.bf16.msra.mxu0 %v3259
        %3304 = vmatprep.subr.bf16.mxu0 %v3263
        %3305 = vmatpush1.bf16.msra.mxu0 %v3262
        %3306 = vmatprep.subr.bf16.mxu0 %v3266
        %3307 = vmatpush1.bf16.msra.mxu0 %v3265
        %3308 = vmatprep.subr.bf16.mxu0 0
        %3309 = vmatpush1.bf16.msra.mxu0 0
        %3310 = vmatprep.subr.bf16.mxu0 0
        %3311 = vmatpush1.bf16.msra.mxu0 0
        %3312 = vmatprep.subr.bf16.mxu0 0
        %3313 = vmatpush1.bf16.msra.mxu0 0
        %3314 = vmatprep.subr.bf16.mxu0 0
        %3315 = vmatpush1.bf16.msra.mxu0 0
        %3316 = vmatprep.subr.bf16.mxu0 0
        %3317 = vmatpush1.bf16.msra.mxu0 0
        %3318 = vmatprep.subr.bf16.mxu0 0
        %3319 = vmatpush1.bf16.msra.mxu0 0
        %3320 = vmatprep.subr.bf16.mxu0 0
        %3321 = vmatpush1.bf16.msra.mxu0 0
        %3322 = vmatprep.subr.bf16.mxu0 0
        %3323 = vmatpush1.bf16.msra.mxu0 0
        %3324 = vmatprep.mubr.bf16.mxu0 0
        %3325 = vmatmul.mubr.bf16.gmra.mrb[0].mxu0 %v3131
        %v3326 = vpop.f32.mrb[0].mxu0
        %v3327 = vadd.f32 0.0, %v3326
        %v3328 = vpop.f32.mrb[0].mxu0
        %v3329 = vadd.f32 0.0, %v3328
        %v3330 = vpop.f32.mrb[0].mxu0
        %v3331 = vpop.f32.mrb[0].mxu0
        %3332 = vdwg.mxu0
        %3333 = vmatprep.subr.bf16.mxu0 0
        %3334 = vmatpush1.bf16.msra.mxu0 %v3246
        %3335 = vmatprep.subr.bf16.mxu0 0
        %3336 = vmatpush1.bf16.msra.mxu0 %v3249
        %3337 = vmatprep.subr.bf16.mxu0 0
        %3338 = vmatpush1.bf16.msra.mxu0 %v3252
        %3339 = vmatprep.subr.bf16.mxu0 0
        %3340 = vmatpush1.bf16.msra.mxu0 %v3255
        %3341 = vmatprep.subr.bf16.mxu0 0
        %3342 = vmatpush1.bf16.msra.mxu0 %v3258
        %3343 = vmatprep.subr.bf16.mxu0 0
        %3344 = vmatpush1.bf16.msra.mxu0 %v3261
        %3345 = vmatprep.subr.bf16.mxu0 0
        %3346 = vmatpush1.bf16.msra.mxu0 %v3264
        %3347 = vmatprep.subr.bf16.mxu0 0
        %3348 = vmatpush1.bf16.msra.mxu0 %v3267
        %3349 = vmatprep.subr.bf16.mxu0 0
        %3350 = vmatpush1.bf16.msra.mxu0 0
        %3351 = vmatprep.subr.bf16.mxu0 0
        %3352 = vmatpush1.bf16.msra.mxu0 0
        %3353 = vmatprep.subr.bf16.mxu0 0
        %3354 = vmatpush1.bf16.msra.mxu0 0
        %3355 = vmatprep.subr.bf16.mxu0 0
        %3356 = vmatpush1.bf16.msra.mxu0 0
        %3357 = vmatprep.subr.bf16.mxu0 0
        %3358 = vmatpush1.bf16.msra.mxu0 0
        %3359 = vmatprep.subr.bf16.mxu0 0
        %3360 = vmatpush1.bf16.msra.mxu0 0
        %3361 = vmatprep.subr.bf16.mxu0 0
        %3362 = vmatpush1.bf16.msra.mxu0 0
        %3363 = vmatprep.subr.bf16.mxu0 0
        %3364 = vmatpush1.bf16.msra.mxu0 0
        %3365 = vmatprep.mubr.bf16.mxu0 0
        %3366 = vmatmul.mubr.bf16.gmra.mrb[0].mxu0 %v3131
        %v3367 = vpop.f32.mrb[0].mxu0
        %v3368 = vadd.f32 0.0, %v3367
        %v3369 = vpop.f32.mrb[0].mxu0
        %v3370 = vpop.f32.mrb[0].mxu0
        %v3371 = vpop.f32.mrb[0].mxu0
        %3372 = vdwg.mxu0
        %v3373 = vadd.f32 %v2880, %v3085
        %v3374 = vadd.f32 %v2881, %v3087
        %v3375 = vxor.u32 %v3373, 2147483648
        %v3376 = vxor.u32 %v3374, 2147483648
        %v3377 = vmul.f32 %v3375, 1.442695
        %v3378 = vpow.pop %v3377
        %v3379 = vmul.f32 %v3376, 1.442695
        %v3380 = vpow.pop %v3379
        %v3381 = vadd.f32 %v3378, 1.0
        %v3382 = vadd.f32 %v3380, 1.0
        %v3383 = vrcp.pop %v3381
        %v3384 = vmul.f32 1.0, %v3383
        %v3385 = vrcp.pop %v3382
        %v3386 = vmul.f32 1.0, %v3385
        %v3387 = vadd.f32 %v3126, %v2292
        %v3388 = vmul.f32 %v3384, %v3387
        %v3389 = vadd.f32 %v2882, %v3388
        %v3390 = vtanh.pop %v3389
        %v3391 = vsub.f32 1.0, %v3386
        %v3392 = vmul.f32 %v3391, %v3390
        %v3393 = vmul.f32 %v3386, %v2850
        %v3394 = vadd.f32 %v3392, %v3393
        %v3395 = vadd.f32 %v2886, %v3327
        %v3396 = vadd.f32 %v2887, %v3329
        %v3397 = vxor.u32 %v3395, 2147483648
        %v3398 = vxor.u32 %v3396, 2147483648
        %v3399 = vmul.f32 %v3397, 1.442695
        %v3400 = vpow.pop %v3399
        %v3401 = vmul.f32 %v3398, 1.442695
        %v3402 = vpow.pop %v3401
        %v3403 = vadd.f32 %v3400, 1.0
        %v3404 = vadd.f32 %v3402, 1.0
        %v3405 = vrcp.pop %v3403
        %v3406 = vmul.f32 1.0, %v3405
        %v3407 = vrcp.pop %v3404
        %v3408 = vmul.f32 1.0, %v3407
        %v3409 = vadd.f32 %v3368, %v2320
        %v3410 = vmul.f32 %v3406, %v3409
        %v3411 = vadd.f32 %v2888, %v3410
        %v3412 = vtanh.pop %v3411
        %v3413 = vsub.f32 1.0, %v3408
        %v3414 = vmul.f32 %v3413, %v3412
        %v3415 = vmul.f32 %v3408, %v2872
        %v3416 = vadd.f32 %v3414, %v3415
        %s3417 = scalar_lea.vmem %s464, 16
        %3418 = vst [vmem:[%s3417] sm:$0xff] %v3394
        %s3419 = scalar_lea.vmem %s471, 8
        %3420 = vst [vmem:[%s3419] sm:$0xff] %v3416
        %s3421 = scalar_lea.vmem [#allocation4], 36
        %v3422 = vld [vmem:[%s3421] sm:$0xff]
        %v3423 = vld [vmem:[%s3421 + $0x8] sm:$0xf]
        %v3424 = vunpack.c.l.bf16 %v3422
        %v3425 = vunpack.c.h.bf16 %v3422
        %v3426 = vunpack.c.l.bf16 %v3423
        %v3427 = vld [vmem:[#allocation5] sm:$0xff]
        %v3428 = vld [vmem:[#allocation5 + $0x8] sm:$0xf]
        %v3429 = vunpack.c.l.bf16 %v3427
        %v3430 = vunpack.c.h.bf16 %v3427
        %v3431 = vunpack.c.l.bf16 %v3428
        %v3432 = vpack.c.bf16 %v3394, %v3394
        %v3433 = vld [vmem:[#allocation6] sm:$0xff]
        %v3434 = vld [vmem:[#allocation6 + $0x8] sm:$0xf]
        %v3435 = vld [vmem:[#allocation6 + $0xc] sm:$0xff]
        %v3436 = vld [vmem:[#allocation6 + $0x14] sm:$0xf]
        %v3437 = vld [vmem:[#allocation6 + $0x18] sm:$0xff]
        %v3438 = vld [vmem:[#allocation6 + $0x20] sm:$0xf]
        %v3439 = vld [vmem:[#allocation6 + $0x24] sm:$0xff]
        %v3440 = vld [vmem:[#allocation6 + $0x2c] sm:$0xf]
        %v3441 = vld [vmem:[#allocation6 + $0x30] sm:$0xff]
        %v3442 = vld [vmem:[#allocation6 + $0x38] sm:$0xf]
        %v3443 = vld [vmem:[#allocation6 + $0x3c] sm:$0xff]
        %v3444 = vld [vmem:[#allocation6 + $0x44] sm:$0xf]
        %v3445 = vld [vmem:[#allocation6 + $0x48] sm:$0xff]
        %v3446 = vld [vmem:[#allocation6 + $0x50] sm:$0xf]
        %v3447 = vld [vmem:[#allocation6 + $0x54] sm:$0xff]
        %v3448 = vld [vmem:[#allocation6 + $0x5c] sm:$0xf]
        %v3449 = vld [vmem:[#allocation6 + $0x60] sm:$0xff]
        %v3450 = vld [vmem:[#allocation6 + $0x68] sm:$0xf]
        %v3451 = vld [vmem:[#allocation6 + $0x6c] sm:$0xff]
        %v3452 = vld [vmem:[#allocation6 + $0x74] sm:$0xf]
        %v3453 = vld [vmem:[#allocation6 + $0x78] sm:$0xff]
        %v3454 = vld [vmem:[#allocation6 + $0x80] sm:$0xf]
        %v3455 = vld [vmem:[#allocation6 + $0x84] sm:$0xff]
        %v3456 = vld [vmem:[#allocation6 + $0x8c] sm:$0xf]
        %v3457 = vld [vmem:[#allocation6 + $0x90] sm:$0xff]
        %v3458 = vld [vmem:[#allocation6 + $0x98] sm:$0xf]
        %v3459 = vld [vmem:[#allocation6 + $0x9c] sm:$0xff]
        %v3460 = vld [vmem:[#allocation6 + $0xa4] sm:$0xf]
        %v3461 = vld [vmem:[#allocation6 + $0xa8] sm:$0xff]
        %v3462 = vld [vmem:[#allocation6 + $0xb0] sm:$0xf]
        %v3463 = vld [vmem:[#allocation6 + $0xb4] sm:$0xff]
        %v3464 = vld [vmem:[#allocation6 + $0xbc] sm:$0xf]
        %v3497 = vunpack.c.l.b16 %v3433
        %v3498 = vunpack.c.h.b16 %v3433
        %v3499 = vunpack.c.l.b16 %v3434
        %v3500 = vunpack.c.l.b16 %v3435
        %v3501 = vunpack.c.h.b16 %v3435
        %v3502 = vunpack.c.l.b16 %v3436
        %v3503 = vunpack.c.l.b16 %v3437
        %v3504 = vunpack.c.h.b16 %v3437
        %v3505 = vunpack.c.l.b16 %v3438
        %v3506 = vunpack.c.l.b16 %v3439
        %v3507 = vunpack.c.h.b16 %v3439
        %v3508 = vunpack.c.l.b16 %v3440
        %v3509 = vunpack.c.l.b16 %v3441
        %v3510 = vunpack.c.h.b16 %v3441
        %v3511 = vunpack.c.l.b16 %v3442
        %v3512 = vunpack.c.l.b16 %v3443
        %v3513 = vunpack.c.h.b16 %v3443
        %v3514 = vunpack.c.l.b16 %v3444
        %v3515 = vunpack.c.l.b16 %v3445
        %v3516 = vunpack.c.h.b16 %v3445
        %v3517 = vunpack.c.l.b16 %v3446
        %v3518 = vunpack.c.l.b16 %v3447
        %v3519 = vunpack.c.h.b16 %v3447
        %v3520 = vunpack.c.l.b16 %v3448
        %v3521 = vunpack.c.l.b16 %v3449
        %v3522 = vunpack.c.h.b16 %v3449
        %v3523 = vunpack.c.l.b16 %v3450
        %v3524 = vunpack.c.l.b16 %v3451
        %v3525 = vunpack.c.h.b16 %v3451
        %v3526 = vunpack.c.l.b16 %v3452
        %v3527 = vunpack.c.l.b16 %v3453
        %v3528 = vunpack.c.h.b16 %v3453
        %v3529 = vunpack.c.l.b16 %v3454
        %v3530 = vunpack.c.l.b16 %v3455
        %v3531 = vunpack.c.h.b16 %v3455
        %v3532 = vunpack.c.l.b16 %v3456
        %v3533 = vunpack.c.l.b16 %v3457
        %v3534 = vunpack.c.h.b16 %v3457
        %v3535 = vunpack.c.l.b16 %v3458
        %v3536 = vunpack.c.l.b16 %v3459
        %v3537 = vunpack.c.h.b16 %v3459
        %v3538 = vunpack.c.l.b16 %v3460
        %v3539 = vunpack.c.l.b16 %v3461
        %v3540 = vunpack.c.h.b16 %v3461
        %v3541 = vunpack.c.l.b16 %v3462
        %v3542 = vunpack.c.l.b16 %v3463
        %v3543 = vunpack.c.h.b16 %v3463
        %v3544 = vunpack.c.l.b16 %v3464
        %v3545 = vpack.c.b16 %v3500, %v3497
        %v3546 = vpack.c.b16 %v3501, %v3498
        %v3547 = vpack.c.b16 %v3502, %v3499
        %v3548 = vpack.c.b16 %v3506, %v3503
        %v3549 = vpack.c.b16 %v3507, %v3504
        %v3550 = vpack.c.b16 %v3508, %v3505
        %v3551 = vpack.c.b16 %v3512, %v3509
        %v3552 = vpack.c.b16 %v3513, %v3510
        %v3553 = vpack.c.b16 %v3514, %v3511
        %v3554 = vpack.c.b16 %v3518, %v3515
        %v3555 = vpack.c.b16 %v3519, %v3516
        %v3556 = vpack.c.b16 %v3520, %v3517
        %v3557 = vpack.c.b16 %v3524, %v3521
        %v3558 = vpack.c.b16 %v3525, %v3522
        %v3559 = vpack.c.b16 %v3526, %v3523
        %v3560 = vpack.c.b16 %v3530, %v3527
        %v3561 = vpack.c.b16 %v3531, %v3528
        %v3562 = vpack.c.b16 %v3532, %v3529
        %v3563 = vpack.c.b16 %v3536, %v3533
        %v3564 = vpack.c.b16 %v3537, %v3534
        %v3565 = vpack.c.b16 %v3538, %v3535
        %v3566 = vpack.c.b16 %v3542, %v3539
        %v3567 = vpack.c.b16 %v3543, %v3540
        %v3568 = vpack.c.b16 %v3544, %v3541
        %3593 = vmatprep.subr.bf16.mxu0 %v3546
        %3594 = vmatpush1.bf16.msra.mxu0 %v3545
        %3595 = vmatprep.subr.bf16.mxu0 %v3549
        %3596 = vmatpush1.bf16.msra.mxu0 %v3548
        %3597 = vmatprep.subr.bf16.mxu0 %v3552
        %3598 = vmatpush1.bf16.msra.mxu0 %v3551
        %3599 = vmatprep.subr.bf16.mxu0 %v3555
        %3600 = vmatpush1.bf16.msra.mxu0 %v3554
        %3601 = vmatprep.subr.bf16.mxu0 %v3558
        %3602 = vmatpush1.bf16.msra.mxu0 %v3557
        %3603 = vmatprep.subr.bf16.mxu0 %v3561
        %3604 = vmatpush1.bf16.msra.mxu0 %v3560
        %3605 = vmatprep.subr.bf16.mxu0 %v3564
        %3606 = vmatpush1.bf16.msra.mxu0 %v3563
        %3607 = vmatprep.subr.bf16.mxu0 %v3567
        %3608 = vmatpush1.bf16.msra.mxu0 %v3566
        %3609 = vmatprep.subr.bf16.mxu0 0
        %3610 = vmatpush1.bf16.msra.mxu0 0
        %3611 = vmatprep.subr.bf16.mxu0 0
        %3612 = vmatpush1.bf16.msra.mxu0 0
        %3613 = vmatprep.subr.bf16.mxu0 0
        %3614 = vmatpush1.bf16.msra.mxu0 0
        %3615 = vmatprep.subr.bf16.mxu0 0
        %3616 = vmatpush1.bf16.msra.mxu0 0
        %3617 = vmatprep.subr.bf16.mxu0 0
        %3618 = vmatpush1.bf16.msra.mxu0 0
        %3619 = vmatprep.subr.bf16.mxu0 0
        %3620 = vmatpush1.bf16.msra.mxu0 0
        %3621 = vmatprep.subr.bf16.mxu0 0
        %3622 = vmatpush1.bf16.msra.mxu0 0
        %3623 = vmatprep.subr.bf16.mxu0 0
        %3624 = vmatpush1.bf16.msra.mxu0 0
        %3625 = vmatprep.mubr.bf16.mxu0 0
        %3626 = vmatmul.mubr.bf16.gmra.mrb[0].mxu0 %v3432
        %v3627 = vpop.f32.mrb[0].mxu0
        %v3628 = vadd.f32 0.0, %v3627
        %v3629 = vpop.f32.mrb[0].mxu0
        %v3630 = vadd.f32 0.0, %v3629
        %v3631 = vpop.f32.mrb[0].mxu0
        %v3632 = vpop.f32.mrb[0].mxu0
        %3633 = vdwg.mxu0
        %3634 = vmatprep.subr.bf16.mxu0 0
        %3635 = vmatpush1.bf16.msra.mxu0 %v3547
        %3636 = vmatprep.subr.bf16.mxu0 0
        %3637 = vmatpush1.bf16.msra.mxu0 %v3550
        %3638 = vmatprep.subr.bf16.mxu0 0
        %3639 = vmatpush1.bf16.msra.mxu0 %v3553
        %3640 = vmatprep.subr.bf16.mxu0 0
        %3641 = vmatpush1.bf16.msra.mxu0 %v3556
        %3642 = vmatprep.subr.bf16.mxu0 0
        %3643 = vmatpush1.bf16.msra.mxu0 %v3559
        %3644 = vmatprep.subr.bf16.mxu0 0
        %3645 = vmatpush1.bf16.msra.mxu0 %v3562
        %3646 = vmatprep.subr.bf16.mxu0 0
        %3647 = vmatpush1.bf16.msra.mxu0 %v3565
        %3648 = vmatprep.subr.bf16.mxu0 0
        %3649 = vmatpush1.bf16.msra.mxu0 %v3568
        %3650 = vmatprep.subr.bf16.mxu0 0
        %3651 = vmatpush1.bf16.msra.mxu0 0
        %3652 = vmatprep.subr.bf16.mxu0 0
        %3653 = vmatpush1.bf16.msra.mxu0 0
        %3654 = vmatprep.subr.bf16.mxu0 0
        %3655 = vmatpush1.bf16.msra.mxu0 0
        %3656 = vmatprep.subr.bf16.mxu0 0
        %3657 = vmatpush1.bf16.msra.mxu0 0
        %3658 = vmatprep.subr.bf16.mxu0 0
        %3659 = vmatpush1.bf16.msra.mxu0 0
        %3660 = vmatprep.subr.bf16.mxu0 0
        %3661 = vmatpush1.bf16.msra.mxu0 0
        %3662 = vmatprep.subr.bf16.mxu0 0
        %3663 = vmatpush1.bf16.msra.mxu0 0
        %3664 = vmatprep.subr.bf16.mxu0 0
        %3665 = vmatpush1.bf16.msra.mxu0 0
        %3666 = vmatprep.mubr.bf16.mxu0 0
        %3667 = vmatmul.mubr.bf16.gmra.mrb[0].mxu0 %v3432
        %v3668 = vpop.f32.mrb[0].mxu0
        %v3669 = vadd.f32 0.0, %v3668
        %v3670 = vpop.f32.mrb[0].mxu0
        %v3671 = vpop.f32.mrb[0].mxu0
        %v3672 = vpop.f32.mrb[0].mxu0
        %3673 = vdwg.mxu0
        %v3674 = vpack.c.bf16 %v3416, %v3416
        %v3675 = vld [vmem:[%s2032] sm:$0xff]
        %v3676 = vld [vmem:[%s2032 + $0x8] sm:$0xf]
        %v3677 = vld [vmem:[%s2032 + $0xc] sm:$0xff]
        %v3678 = vld [vmem:[%s2032 + $0x14] sm:$0xf]
        %v3679 = vld [vmem:[%s2032 + $0x18] sm:$0xff]
        %v3680 = vld [vmem:[%s2032 + $0x20] sm:$0xf]
        %v3681 = vld [vmem:[%s2032 + $0x24] sm:$0xff]
        %v3682 = vld [vmem:[%s2032 + $0x2c] sm:$0xf]
        %v3683 = vld [vmem:[%s2032 + $0x30] sm:$0xff]
        %v3684 = vld [vmem:[%s2032 + $0x38] sm:$0xf]
        %v3685 = vld [vmem:[%s2032 + $0x3c] sm:$0xff]
        %v3686 = vld [vmem:[%s2032 + $0x44] sm:$0xf]
        %v3687 = vld [vmem:[%s2032 + $0x48] sm:$0xff]
        %v3688 = vld [vmem:[%s2032 + $0x50] sm:$0xf]
        %v3689 = vld [vmem:[%s2032 + $0x54] sm:$0xff]
        %v3690 = vld [vmem:[%s2032 + $0x5c] sm:$0xf]
        %v3691 = vld [vmem:[%s2032 + $0x60] sm:$0xff]
        %v3692 = vld [vmem:[%s2032 + $0x68] sm:$0xf]
        %v3693 = vld [vmem:[%s2032 + $0x6c] sm:$0xff]
        %v3694 = vld [vmem:[%s2032 + $0x74] sm:$0xf]
        %v3695 = vld [vmem:[%s2032 + $0x78] sm:$0xff]
        %v3696 = vld [vmem:[%s2032 + $0x80] sm:$0xf]
        %v3697 = vld [vmem:[%s2032 + $0x84] sm:$0xff]
        %v3698 = vld [vmem:[%s2032 + $0x8c] sm:$0xf]
        %v3699 = vld [vmem:[%s2032 + $0x90] sm:$0xff]
        %v3700 = vld [vmem:[%s2032 + $0x98] sm:$0xf]
        %v3701 = vld [vmem:[%s2032 + $0x9c] sm:$0xff]
        %v3702 = vld [vmem:[%s2032 + $0xa4] sm:$0xf]
        %v3703 = vld [vmem:[%s2032 + $0xa8] sm:$0xff]
        %v3704 = vld [vmem:[%s2032 + $0xb0] sm:$0xf]
        %v3705 = vld [vmem:[%s2032 + $0xb4] sm:$0xff]
        %v3706 = vld [vmem:[%s2032 + $0xbc] sm:$0xf]
        %v3739 = vunpack.c.l.b16 %v3675
        %v3740 = vunpack.c.h.b16 %v3675
        %v3741 = vunpack.c.l.b16 %v3676
        %v3742 = vunpack.c.l.b16 %v3677
        %v3743 = vunpack.c.h.b16 %v3677
        %v3744 = vunpack.c.l.b16 %v3678
        %v3745 = vunpack.c.l.b16 %v3679
        %v3746 = vunpack.c.h.b16 %v3679
        %v3747 = vunpack.c.l.b16 %v3680
        %v3748 = vunpack.c.l.b16 %v3681
        %v3749 = vunpack.c.h.b16 %v3681
        %v3750 = vunpack.c.l.b16 %v3682
        %v3751 = vunpack.c.l.b16 %v3683
        %v3752 = vunpack.c.h.b16 %v3683
        %v3753 = vunpack.c.l.b16 %v3684
        %v3754 = vunpack.c.l.b16 %v3685
        %v3755 = vunpack.c.h.b16 %v3685
        %v3756 = vunpack.c.l.b16 %v3686
        %v3757 = vunpack.c.l.b16 %v3687
        %v3758 = vunpack.c.h.b16 %v3687
        %v3759 = vunpack.c.l.b16 %v3688
        %v3760 = vunpack.c.l.b16 %v3689
        %v3761 = vunpack.c.h.b16 %v3689
        %v3762 = vunpack.c.l.b16 %v3690
        %v3763 = vunpack.c.l.b16 %v3691
        %v3764 = vunpack.c.h.b16 %v3691
        %v3765 = vunpack.c.l.b16 %v3692
        %v3766 = vunpack.c.l.b16 %v3693
        %v3767 = vunpack.c.h.b16 %v3693
        %v3768 = vunpack.c.l.b16 %v3694
        %v3769 = vunpack.c.l.b16 %v3695
        %v3770 = vunpack.c.h.b16 %v3695
        %v3771 = vunpack.c.l.b16 %v3696
        %v3772 = vunpack.c.l.b16 %v3697
        %v3773 = vunpack.c.h.b16 %v3697
        %v3774 = vunpack.c.l.b16 %v3698
        %v3775 = vunpack.c.l.b16 %v3699
        %v3776 = vunpack.c.h.b16 %v3699
        %v3777 = vunpack.c.l.b16 %v3700
        %v3778 = vunpack.c.l.b16 %v3701
        %v3779 = vunpack.c.h.b16 %v3701
        %v3780 = vunpack.c.l.b16 %v3702
        %v3781 = vunpack.c.l.b16 %v3703
        %v3782 = vunpack.c.h.b16 %v3703
        %v3783 = vunpack.c.l.b16 %v3704
        %v3784 = vunpack.c.l.b16 %v3705
        %v3785 = vunpack.c.h.b16 %v3705
        %v3786 = vunpack.c.l.b16 %v3706
        %v3787 = vpack.c.b16 %v3742, %v3739
        %v3788 = vpack.c.b16 %v3743, %v3740
        %v3789 = vpack.c.b16 %v3744, %v3741
        %v3790 = vpack.c.b16 %v3748, %v3745
        %v3791 = vpack.c.b16 %v3749, %v3746
        %v3792 = vpack.c.b16 %v3750, %v3747
        %v3793 = vpack.c.b16 %v3754, %v3751
        %v3794 = vpack.c.b16 %v3755, %v3752
        %v3795 = vpack.c.b16 %v3756, %v3753
        %v3796 = vpack.c.b16 %v3760, %v3757
        %v3797 = vpack.c.b16 %v3761, %v3758
        %v3798 = vpack.c.b16 %v3762, %v3759
        %v3799 = vpack.c.b16 %v3766, %v3763
        %v3800 = vpack.c.b16 %v3767, %v3764
        %v3801 = vpack.c.b16 %v3768, %v3765
        %v3802 = vpack.c.b16 %v3772, %v3769
        %v3803 = vpack.c.b16 %v3773, %v3770
        %v3804 = vpack.c.b16 %v3774, %v3771
        %v3805 = vpack.c.b16 %v3778, %v3775
        %v3806 = vpack.c.b16 %v3779, %v3776
        %v3807 = vpack.c.b16 %v3780, %v3777
        %v3808 = vpack.c.b16 %v3784, %v3781
        %v3809 = vpack.c.b16 %v3785, %v3782
        %v3810 = vpack.c.b16 %v3786, %v3783
        %3835 = vmatprep.subr.bf16.mxu0 %v3788
        %3836 = vmatpush1.bf16.msra.mxu0 %v3787
        %3837 = vmatprep.subr.bf16.mxu0 %v3791
        %3838 = vmatpush1.bf16.msra.mxu0 %v3790
        %3839 = vmatprep.subr.bf16.mxu0 %v3794
        %3840 = vmatpush1.bf16.msra.mxu0 %v3793
        %3841 = vmatprep.subr.bf16.mxu0 %v3797
        %3842 = vmatpush1.bf16.msra.mxu0 %v3796
        %3843 = vmatprep.subr.bf16.mxu0 %v3800
        %3844 = vmatpush1.bf16.msra.mxu0 %v3799
        %3845 = vmatprep.subr.bf16.mxu0 %v3803
        %3846 = vmatpush1.bf16.msra.mxu0 %v3802
        %3847 = vmatprep.subr.bf16.mxu0 %v3806
        %3848 = vmatpush1.bf16.msra.mxu0 %v3805
        %3849 = vmatprep.subr.bf16.mxu0 %v3809
        %3850 = vmatpush1.bf16.msra.mxu0 %v3808
        %3851 = vmatprep.subr.bf16.mxu0 0
        %3852 = vmatpush1.bf16.msra.mxu0 0
        %3853 = vmatprep.subr.bf16.mxu0 0
        %3854 = vmatpush1.bf16.msra.mxu0 0
        %3855 = vmatprep.subr.bf16.mxu0 0
        %3856 = vmatpush1.bf16.msra.mxu0 0
        %3857 = vmatprep.subr.bf16.mxu0 0
        %3858 = vmatpush1.bf16.msra.mxu0 0
        %3859 = vmatprep.subr.bf16.mxu0 0
        %3860 = vmatpush1.bf16.msra.mxu0 0
        %3861 = vmatprep.subr.bf16.mxu0 0
        %3862 = vmatpush1.bf16.msra.mxu0 0
        %3863 = vmatprep.subr.bf16.mxu0 0
        %3864 = vmatpush1.bf16.msra.mxu0 0
        %3865 = vmatprep.subr.bf16.mxu0 0
        %3866 = vmatpush1.bf16.msra.mxu0 0
        %3867 = vmatprep.mubr.bf16.mxu0 0
        %3868 = vmatmul.mubr.bf16.gmra.mrb[0].mxu0 %v3674
        %v3869 = vpop.f32.mrb[0].mxu0
        %v3870 = vadd.f32 0.0, %v3869
        %v3871 = vpop.f32.mrb[0].mxu0
        %v3872 = vadd.f32 0.0, %v3871
        %v3873 = vpop.f32.mrb[0].mxu0
        %v3874 = vpop.f32.mrb[0].mxu0
        %3875 = vdwg.mxu0
        %3876 = vmatprep.subr.bf16.mxu0 0
        %3877 = vmatpush1.bf16.msra.mxu0 %v3789
        %3878 = vmatprep.subr.bf16.mxu0 0
        %3879 = vmatpush1.bf16.msra.mxu0 %v3792
        %3880 = vmatprep.subr.bf16.mxu0 0
        %3881 = vmatpush1.bf16.msra.mxu0 %v3795
        %3882 = vmatprep.subr.bf16.mxu0 0
        %3883 = vmatpush1.bf16.msra.mxu0 %v3798
        %3884 = vmatprep.subr.bf16.mxu0 0
        %3885 = vmatpush1.bf16.msra.mxu0 %v3801
        %3886 = vmatprep.subr.bf16.mxu0 0
        %3887 = vmatpush1.bf16.msra.mxu0 %v3804
        %3888 = vmatprep.subr.bf16.mxu0 0
        %3889 = vmatpush1.bf16.msra.mxu0 %v3807
        %3890 = vmatprep.subr.bf16.mxu0 0
        %3891 = vmatpush1.bf16.msra.mxu0 %v3810
        %3892 = vmatprep.subr.bf16.mxu0 0
        %3893 = vmatpush1.bf16.msra.mxu0 0
        %3894 = vmatprep.subr.bf16.mxu0 0
        %3895 = vmatpush1.bf16.msra.mxu0 0
        %3896 = vmatprep.subr.bf16.mxu0 0
        %3897 = vmatpush1.bf16.msra.mxu0 0
        %3898 = vmatprep.subr.bf16.mxu0 0
        %3899 = vmatpush1.bf16.msra.mxu0 0
        %3900 = vmatprep.subr.bf16.mxu0 0
        %3901 = vmatpush1.bf16.msra.mxu0 0
        %3902 = vmatprep.subr.bf16.mxu0 0
        %3903 = vmatpush1.bf16.msra.mxu0 0
        %3904 = vmatprep.subr.bf16.mxu0 0
        %3905 = vmatpush1.bf16.msra.mxu0 0
        %3906 = vmatprep.subr.bf16.mxu0 0
        %3907 = vmatpush1.bf16.msra.mxu0 0
        %3908 = vmatprep.mubr.bf16.mxu0 0
        %3909 = vmatmul.mubr.bf16.gmra.mrb[0].mxu0 %v3674
        %v3910 = vpop.f32.mrb[0].mxu0
        %v3911 = vadd.f32 0.0, %v3910
        %v3912 = vpop.f32.mrb[0].mxu0
        %v3913 = vpop.f32.mrb[0].mxu0
        %v3914 = vpop.f32.mrb[0].mxu0
        %3915 = vdwg.mxu0
        %v3916 = vadd.f32 %v3424, %v3628
        %v3917 = vadd.f32 %v3425, %v3630
        %v3918 = vxor.u32 %v3916, 2147483648
        %v3919 = vxor.u32 %v3917, 2147483648
        %v3920 = vmul.f32 %v3918, 1.442695
        %v3921 = vpow.pop %v3920
        %v3922 = vmul.f32 %v3919, 1.442695
        %v3923 = vpow.pop %v3922
        %v3924 = vadd.f32 %v3921, 1.0
        %v3925 = vadd.f32 %v3923, 1.0
        %v3926 = vrcp.pop %v3924
        %v3927 = vmul.f32 1.0, %v3926
        %v3928 = vrcp.pop %v3925
        %v3929 = vmul.f32 1.0, %v3928
        %v3930 = vadd.f32 %v3669, %v2292
        %v3931 = vmul.f32 %v3927, %v3930
        %v3932 = vadd.f32 %v3426, %v3931
        %v3933 = vtanh.pop %v3932
        %v3934 = vsub.f32 1.0, %v3929
        %v3935 = vmul.f32 %v3934, %v3933
        %v3936 = vmul.f32 %v3929, %v3394
        %v3937 = vadd.f32 %v3935, %v3936
        %v3938 = vadd.f32 %v3429, %v3870
        %v3939 = vadd.f32 %v3430, %v3872
        %v3940 = vxor.u32 %v3938, 2147483648
        %v3941 = vxor.u32 %v3939, 2147483648
        %v3942 = vmul.f32 %v3940, 1.442695
        %v3943 = vpow.pop %v3942
        %v3944 = vmul.f32 %v3941, 1.442695
        %v3945 = vpow.pop %v3944
        %v3946 = vadd.f32 %v3943, 1.0
        %v3947 = vadd.f32 %v3945, 1.0
        %v3948 = vrcp.pop %v3946
        %v3949 = vmul.f32 1.0, %v3948
        %v3950 = vrcp.pop %v3947
        %v3951 = vmul.f32 1.0, %v3950
        %v3952 = vadd.f32 %v3911, %v2320
        %v3953 = vmul.f32 %v3949, %v3952
        %v3954 = vadd.f32 %v3431, %v3953
        %v3955 = vtanh.pop %v3954
        %v3956 = vsub.f32 1.0, %v3951
        %v3957 = vmul.f32 %v3956, %v3955
        %v3958 = vmul.f32 %v3951, %v3416
        %v3959 = vadd.f32 %v3957, %v3958
        %s3960 = scalar_lea.vmem %s464, 24
        %3961 = vst [vmem:[%s3960] sm:$0xff] %v3937
        %3962 = vst [vmem:[%s471] sm:$0xff] %v3959
        %3963 = vst [vmem:[#allocation2] sm:$0xff] %v3937
        %3964 = vst [vmem:[#allocation3] sm:$0xff] %v3959
        %3965 = vst [vmem:[%s10] sm:$0xff] %v3937
        %s3966 = scalar_lea.vmem %s10, 8
        %3967 = vst [vmem:[%s3966] sm:$0xff] %v3959
        %s3968 = smul.u32 4, %s23
        %p3969 = scmp.lt.s32.totalorder %s3968, 7
        %s3970 = scalar_select %p3969, %s3968, 7
        %s3971 = smul.addr %s3970, 8
        %s3972 = scalar_lea.vmem %s8, %s3971
        %s3973 = ssub.s32 1, %s23
        %s3974 = smul.u32 4, %s3973
        %p3975 = scmp.lt.s32.totalorder %s3974, 7
        %s3976 = scalar_select %p3975, %s3974, 7
        %s3977 = smul.addr %s3976, 8
        %s3978 = scalar_lea.vmem %s9, %s3977
        // Predicated region
        $region61: #{encoder_rnn_forward.3} parent=51 // pred_check
          %p3979 = pneg %p233
        $region62: #{encoder_rnn_forward.3} parent=51 // pred_check_branch
          %3981 = sbr.rel (%p3979) target = $region64
        $region63: #{encoder_rnn_forward.3} parent=51 // pred_region
          %s3982 = smul.u32 4, %s23
        $region64: #{encoder_rnn_forward.3} parent=51 // pred_fallthru
          _
        // Predicated region
        $region65: #{encoder_rnn_forward.3} parent=51 // pred_check
          %p3983 = pneg %p261
        $region66: #{encoder_rnn_forward.3} parent=51 // pred_check_branch
          %3985 = sbr.rel (%p3983) target = $region68
        $region67: #{encoder_rnn_forward.3} parent=51 // pred_region
          %s3986 = ssub.s32 1, %s23
          %s3987 = smul.u32 4, %s3986
        $region68: #{encoder_rnn_forward.3} parent=51 // pred_fallthru
          _
        // Predicated region
        $region69: #{encoder_rnn_forward.3} parent=51 // pred_check
          %p3988 = pneg %p282
        $region70: #{encoder_rnn_forward.3} parent=51 // pred_check_branch
          %3990 = sbr.rel (%p3988) target = $region72
        $region71: #{encoder_rnn_forward.3} parent=51 // pred_region
          _
        $region72: #{encoder_rnn_forward.3} parent=51 // pred_fallthru
          _
        // Predicated region
        $region73: #{encoder_rnn_forward.3} parent=51 // pred_check
          %p3991 = pneg %p282
        $region74: #{encoder_rnn_forward.3} parent=51 // pred_check_branch
          %3993 = sbr.rel (%p3991) target = $region76
        $region75: #{encoder_rnn_forward.3} parent=51 // pred_region
          _
        $region76: #{encoder_rnn_forward.3} parent=51 // pred_fallthru
          _
      $region52: #{encoder_rnn_forward.3} parent=5 // pred_fallthru
        _
      %p3994 = scmp.le.s32.totalorder 2, %s18
      // Predicated region
      $region77: #{encoder_rnn_forward.3} parent=5 // pred_check
        %p3995 = pneg %p3994
      $region78: #{encoder_rnn_forward.3} parent=5 // pred_check_branch
        %3997 = sbr.rel (%p3995) target = $region80
      $region79: #{encoder_rnn_forward.3} parent=5 // pred_region
        %s3998 = ssub.s32 %s18, 2
        // Predicated region
        $region81: #{encoder_rnn_forward.3} parent=79 // pred_check
          %p3999 = pneg %p239
        $region82: #{encoder_rnn_forward.3} parent=79 // pred_check_branch
          %4001 = sbr.rel (%p3999) target = $region84
        $region83: #{encoder_rnn_forward.3} parent=79 // pred_region
          %s4002 = smul.u32 4, %s24
          %p4003 = scmp.lt.s32.totalorder %s4002, 7
          %s4004 = scalar_select %p4003, %s4002, 7
          %s4005 = smul.addr %s4004, 8
          %s4006 = scalar_lea.vmem %s8, %s4005
        $region84: #{encoder_rnn_forward.3} parent=79 // pred_fallthru
          _
        // Predicated region
        $region85: #{encoder_rnn_forward.3} parent=79 // pred_check
          %p4007 = pneg %p267
        $region86: #{encoder_rnn_forward.3} parent=79 // pred_check_branch
          %4009 = sbr.rel (%p4007) target = $region88
        $region87: #{encoder_rnn_forward.3} parent=79 // pred_region
          %s4010 = ssub.s32 1, %s24
          %s4011 = smul.u32 4, %s4010
          %p4012 = scmp.lt.s32.totalorder %s4011, 7
          %s4013 = scalar_select %p4012, %s4011, 7
          %s4014 = smul.addr %s4013, 8
          %s4015 = scalar_lea.vmem %s9, %s4014
        $region88: #{encoder_rnn_forward.3} parent=79 // pred_fallthru
          _
      $region80: #{encoder_rnn_forward.3} parent=5 // pred_fallthru
        _
    $region6: #{encoder_rnn_forward.3} parent=1 // loop_footer
      %s22 = sadd.s32 1, %s18
    $region7: #{encoder_rnn_forward.3} parent=1 // loop_footer_branch
      %17 = sbr.rel target = $region3
    $region8: #{encoder_rnn_forward.3} parent=1 // loop_exit
      _
    %4016 = vsyncpa [#allocation7], 1
    %s4017 = scalar_lea.sflag [#allocation7], 1
    %4018 = vsyncpa %s4017, 1

</llo_original>
